<compile_context>
chip_gen: v7x
topology: tpu7x:2x2x1
jax: 0.10.0
libtpu: 0.0.40
codegen_flags: <defaults>
</compile_context>

<pallas_src>
import math

import numpy as np
import jax
import jax.numpy as jnp
from jax.experimental import pallas as pl
from jax.experimental.pallas import tpu as pltpu  # noqa: F401

# ----------------------------- config (small) -------------------------------
SEQ_LEN = 32
PATCH_LEN = 4
D_MODEL = 32
N_HEADS = 4
D_HEAD = D_MODEL // N_HEADS
D_FF = 64
E_LAYERS = 1
D_LAYERS = 1
MS_KERNELS = [4, 2]          # multi-scale interval-sampling kernels
N_SCALES = len(MS_KERNELS)
BANK_SIZE = 2
QUERY_LEN = 4
N_VARS = 3
BATCH = 2

# derived lengths (== MS_Utils._dummy_forward / PatchEmbedding._dummy_forward)
MS_T_LENS = [-(-SEQ_LEN // k) for k in MS_KERNELS] + [SEQ_LEN]        # [8, 16, 32]
MS_P_LENS = [(l - 1) // PATCH_LEN + 1 for l in MS_T_LENS]             # [2, 4, 8]
MS_T_LENS_ = [pn * PATCH_LEN for pn in MS_P_LENS]                     # [8, 16, 32]

P_ENC = sum(MS_P_LENS[:-1])          # 6   encoder tokens per (batch*var) row
P_DEC = sum(MS_P_LENS[1:])           # 12  decoder tokens per (batch*var) row
CTX_LEN = BANK_SIZE * QUERY_LEN      # 8

NEG_INF = -1e30

# TODO(synk): general trim path (ms_t_lens_ != ms_t_lens) not needed for this config.
assert MS_T_LENS_ == MS_T_LENS, "trim path not implemented for this configuration"


# ------------------------- numpy constant builders ---------------------------
def _positional_table():
    """Multi-scale down-sampled sinusoidal positional table, shape (P_ENC, D_MODEL)."""
    position = np.arange(MS_P_LENS[-1], dtype=np.float32)[:, None]
    div_term = np.exp(np.arange(0, D_MODEL, 2, dtype=np.float32)
                      * (-math.log(10000.0) / D_MODEL))
    pe = np.zeros((MS_P_LENS[-1], D_MODEL), np.float32)
    pe[:, 0::2] = np.sin(position * div_term)
    pe[:, 1::2] = np.cos(position * div_term)
    return np.concatenate([pe[::k] for k in MS_KERNELS], axis=0)


def _block_scale_mask(rows, lens, mode):
    """Additive mask (rows*L, rows*L): block-diag over rows AND scale-id rule."""
    L = sum(lens)
    sid = np.concatenate([np.full(l, i) for i, l in enumerate(lens)])
    rid = np.repeat(np.arange(rows), L)
    gsid = np.tile(sid, rows)
    same_row = rid[:, None] == rid[None, :]
    if mode == "eq":
        ok = gsid[:, None] == gsid[None, :]          # scale-independent mask
    else:
        ok = gsid[:, None] >= gsid[None, :]          # next-scale (causal-by-scale) mask
    return np.where(same_row & ok, 0.0, NEG_INF).astype(np.float32)


def _upsample_matrix(rows):
    """(rows*P_DEC, rows*P_ENC) 0/1 nearest-neighbour up-sampling matrix."""
    U = np.zeros((rows * P_DEC, rows * P_ENC), np.float32)
    in_off = np.concatenate([[0], np.cumsum(MS_P_LENS[:-1])])[:N_SCALES].astype(int)
    out_off = np.concatenate([[0], np.cumsum(MS_P_LENS[1:])])[:N_SCALES].astype(int)
    for r in range(rows):
        for i in range(N_SCALES):
            li, lo = MS_P_LENS[i], MS_P_LENS[i + 1]
            for j in range(lo):
                src = (j * li) // lo                 # F.interpolate(mode='nearest')
                U[r * P_DEC + out_off[i] + j, r * P_ENC + in_off[i] + src] = 1.0
    return U


# --------------------------- parameter slab packing --------------------------
def _pack_params(params):
    """Flatten the param tree into ONE 8-row-aligned f32 slab (single DMA).

    Returns (slab, treedef, layout) where layout[i] = (row_offset, rows, cols)
    of leaf i inside the slab (static Python ints, closed over by the kernel).
    """
    leaves, treedef = jax.tree_util.tree_flatten(params)
    maxw = max(int(l.shape[1]) for l in leaves)
    layout, chunks, r0 = [], [], 0
    for leaf in leaves:
        h, w = int(leaf.shape[0]), int(leaf.shape[1])
        hp = -(-h // 8) * 8                       # sublane-align each leaf start
        layout.append((r0, h, w))
        chunks.append(jnp.pad(leaf.astype(jnp.float32),
                              ((0, hp - h), (0, maxw - w))))
        r0 += hp
    slab = jnp.concatenate(chunks, axis=0)        # (total_rows, maxw)
    return slab, treedef, layout


# ------------------------------ fused kernel ---------------------------------
def _make_fused_kernel(treedef, layout):
    scale = 1.0 / math.sqrt(D_HEAD)

    def kernel(patches_ref, pos_ref, gt_ref, encm_ref, decm_ref, ups_ref,
               slab_ref, o_ref):
        # unpack every (tiny) parameter from the single VMEM slab (static slices)
        leaves = [slab_ref[r0:r0 + h, :w] for (r0, h, w) in layout]
        P = jax.tree_util.tree_unflatten(treedef, leaves)

        def lin(x, w, b=None):
            y = jnp.dot(x, w, preferred_element_type=jnp.float32)
            return y if b is None else y + b

        def lnorm(x, g, b):
            mu = jnp.mean(x, axis=-1, keepdims=True)
            xc = x - mu
            var = jnp.mean(xc * xc, axis=-1, keepdims=True)
            return xc * jax.lax.rsqrt(var + 1e-5) * g + b

        def softmax(s):
            s = s - jnp.max(s, axis=-1, keepdims=True)
            p = jnp.exp(s)
            return p * pl.reciprocal(jnp.sum(p, axis=-1, keepdims=True), approx=True)

        def mh_self_attn(x, wqkv, bqkv, wo, bo, mask):
            # x: (N, D); mask: (N, N) block-diag-over-rows additive mask
            qkv = lin(x, wqkv, bqkv)                                 # (N, 3D) fused QKV
            out = None
            for h in range(N_HEADS):
                lo_, hi_ = h * D_HEAD, (h + 1) * D_HEAD
                qh = qkv[:, lo_:hi_]
                kh = qkv[:, D_MODEL + lo_:D_MODEL + hi_]
                vh = qkv[:, 2 * D_MODEL + lo_:2 * D_MODEL + hi_]
                s = jnp.dot(qh, kh.T, preferred_element_type=jnp.float32) * scale + mask
                p = softmax(s)
                oh = jnp.dot(p, vh, preferred_element_type=jnp.float32)
                contrib = jnp.dot(oh, wo[lo_:hi_, :], preferred_element_type=jnp.float32)
                out = contrib if out is None else out + contrib
            return out + bo

        def mh_cross_attn(x, ctx, wq, bq, wkv, bkv, wo, bo):
            # x: (N, D); ctx shared by every row -> pure 2-D matmuls, no mask
            q = lin(x, wq, bq)                                       # (N, D)
            kv = lin(ctx, wkv, bkv)                                  # (CTX, 2D) fused KV
            out = None
            for h in range(N_HEADS):
                lo_, hi_ = h * D_HEAD, (h + 1) * D_HEAD
                qh = q[:, lo_:hi_]
                kh = kv[:, lo_:hi_]
                vh = kv[:, D_MODEL + lo_:D_MODEL + hi_]
                s = jnp.dot(qh, kh.T, preferred_element_type=jnp.float32) * scale
                p = softmax(s)
                oh = jnp.dot(p, vh, preferred_element_type=jnp.float32)
                contrib = jnp.dot(oh, wo[lo_:hi_, :], preferred_element_type=jnp.float32)
                out = contrib if out is None else out + contrib
            return out + bo

        def ffn(x, w1, b1, w2, b2):
            return lin(jax.nn.gelu(lin(x, w1, b1)), w2, b2)

        # ---- patch value embedding (bias-free) + multi-scale positional embedding ----
        x = jnp.dot(patches_ref[...], P["value_emb_w"],
                    preferred_element_type=jnp.float32) + pos_ref[...]   # (R*P_ENC, D)

        # ---- encoder (scale-independent mask) ----
        enc_mask = encm_ref[...]
        for lp in P["enc_layers"]:
            a = mh_self_attn(x, lp["wqkv"], lp["bqkv"], lp["wo"], lp["bo"], enc_mask)
            x = lnorm(x + a, lp["ln1_g"], lp["ln1_b"])
            f = ffn(x, lp["w1"], lp["b1"], lp["w2"], lp["b2"])
            x = lnorm(x + f, lp["ln2_g"], lp["ln2_b"])
        x = lnorm(x, P["enc_norm_g"], P["enc_norm_b"])

        # ---- nearest-neighbour upsample each scale to the next (constant 0/1 matmul) ----
        xd = jnp.dot(ups_ref[...], x, preferred_element_type=jnp.float32)  # (R*P_DEC, D)

        # ---- decoder (next-scale mask + cross attention over the context bank) ----
        dec_mask = decm_ref[...]
        ctx = P["context_bank"]
        for lp in P["dec_layers"]:
            a = mh_self_attn(xd, lp["self_wqkv"], lp["self_bqkv"],
                             lp["self_wo"], lp["self_bo"], dec_mask)
            xd = lnorm(xd + a, lp["ln1_g"], lp["ln1_b"])
            a2 = mh_cross_attn(xd, ctx, lp["cross_wq"], lp["cross_bq"],
                               lp["cross_wkv"], lp["cross_bkv"],
                               lp["cross_wo"], lp["cross_bo"])
            xd = lnorm(xd + a2, lp["ln2_g"], lp["ln2_b"])
            f = ffn(xd, lp["w1"], lp["b1"], lp["w2"], lp["b2"])
            xd = lnorm(xd + f, lp["ln3_g"], lp["ln3_b"])
        xd = lnorm(xd, P["dec_norm_g"], P["dec_norm_b"])

        # ---- projection back to patch space + fused MSE loss (single scalar store) ----
        recon = lin(xd, P["proj_w"], P["proj_b"])                    # (R*P_DEC, patch_len)
        d = recon - gt_ref[...]
        sse = jnp.sum(jnp.sum(d * d, axis=-1, keepdims=True), axis=0, keepdims=True)
        o_ref[...] = sse / float(gt_ref.shape[0] * gt_ref.shape[1])

    return kernel


# -------------------------------- parameters ---------------------------------
def init_params(key):
    def nrm(k, shape):
        return 0.02 * jax.random.normal(k, shape, jnp.float32)

    kit = iter(jax.random.split(key, 64))
    zeros = lambda *s: jnp.zeros(s, jnp.float32)
    ones = lambda *s: jnp.ones(s, jnp.float32)

    def enc_layer():
        return dict(
            wqkv=nrm(next(kit), (D_MODEL, 3 * D_MODEL)), bqkv=zeros(1, 3 * D_MODEL),
            wo=nrm(next(kit), (D_MODEL, D_MODEL)), bo=zeros(1, D_MODEL),
            w1=nrm(next(kit), (D_MODEL, D_FF)), b1=zeros(1, D_FF),
            w2=nrm(next(kit), (D_FF, D_MODEL)), b2=zeros(1, D_MODEL),
            ln1_g=ones(1, D_MODEL), ln1_b=zeros(1, D_MODEL),
            ln2_g=ones(1, D_MODEL), ln2_b=zeros(1, D_MODEL),
        )

    def dec_layer():
        return dict(
            self_wqkv=nrm(next(kit), (D_MODEL, 3 * D_MODEL)), self_bqkv=zeros(1, 3 * D_MODEL),
            self_wo=nrm(next(kit), (D_MODEL, D_MODEL)), self_bo=zeros(1, D_MODEL),
            cross_wq=nrm(next(kit), (D_MODEL, D_MODEL)), cross_bq=zeros(1, D_MODEL),
            cross_wkv=nrm(next(kit), (D_MODEL, 2 * D_MODEL)), cross_bkv=zeros(1, 2 * D_MODEL),
            cross_wo=nrm(next(kit), (D_MODEL, D_MODEL)), cross_bo=zeros(1, D_MODEL),
            w1=nrm(next(kit), (D_MODEL, D_FF)), b1=zeros(1, D_FF),
            w2=nrm(next(kit), (D_FF, D_MODEL)), b2=zeros(1, D_MODEL),
            ln1_g=ones(1, D_MODEL), ln1_b=zeros(1, D_MODEL),
            ln2_g=ones(1, D_MODEL), ln2_b=zeros(1, D_MODEL),
            ln3_g=ones(1, D_MODEL), ln3_b=zeros(1, D_MODEL),
        )

    return dict(
        value_emb_w=nrm(next(kit), (PATCH_LEN, D_MODEL)),   # Linear(patch_len, d_model, bias=False)
        enc_layers=[enc_layer() for _ in range(E_LAYERS)],
        enc_norm_g=ones(1, D_MODEL), enc_norm_b=zeros(1, D_MODEL),
        context_bank=nrm(next(kit), (CTX_LEN, D_MODEL)),
        dec_layers=[dec_layer() for _ in range(D_LAYERS)],
        dec_norm_g=ones(1, D_MODEL), dec_norm_b=zeros(1, D_MODEL),
        proj_w=nrm(next(kit), (D_MODEL, PATCH_LEN)),        # Linear(d_model, patch_len)
        proj_b=zeros(1, PATCH_LEN),
    )


# ------------------------------- JAX glue -------------------------------------
def _patchify(x2d):
    """(R, T) -> (R, PN, PATCH_LEN): ReplicationPad1d((0, patch_len-1)) + unfold."""
    r, t = x2d.shape
    pn = (t - 1) // PATCH_LEN + 1
    pad = pn * PATCH_LEN - t
    if pad > 0:
        x2d = jnp.concatenate([x2d, jnp.repeat(x2d[:, -1:], pad, axis=1)], axis=1)
    return x2d.reshape(r, pn, PATCH_LEN)


def forward(params, x_enc, x_mark_enc=None, x_dec=None, x_mark_dec=None):
    bs, t, c = x_enc.shape
    R = bs * c
    x = jnp.transpose(x_enc, (0, 2, 1)).reshape(R, t).astype(jnp.float32)

    # multi-scale interval sampling (MS_Utils.down, method='interval_sampling')
    ms_series = [x[:, ::k] for k in MS_KERNELS] + [x]

    # encoder patches: scales [:-1], concatenated along the token axis
    enc_patches = jnp.concatenate(
        [_patchify(ms_series[i]) for i in range(N_SCALES)], axis=1
    ).reshape(R * P_ENC, PATCH_LEN)

    # ground truth (scales [1:]) in the same patch frame as the projection output.
    # The MSE is permutation invariant and ms_t_lens_ == ms_t_lens, so no trim needed.
    gt_patches = jnp.concatenate(
        [_patchify(ms_series[i + 1]) for i in range(N_SCALES)], axis=1
    ).reshape(R * P_DEC, PATCH_LEN)

    # numpy-built constants (DMA'd once into the single fused kernel)
    pos = jnp.asarray(np.tile(_positional_table(), (R, 1)))              # (R*P_ENC, D)
    enc_mask = jnp.asarray(_block_scale_mask(R, MS_P_LENS[:-1], "eq"))   # (R*P_ENC,)^2
    dec_mask = jnp.asarray(_block_scale_mask(R, MS_P_LENS[1:], "geq"))   # (R*P_DEC,)^2
    ups = jnp.asarray(_upsample_matrix(R))                               # (R*P_DEC, R*P_ENC)

    # pack every parameter leaf into ONE slab -> one DMA instead of ~40
    slab, treedef, layout = _pack_params(params)
    kernel = _make_fused_kernel(treedef, layout)

    loss = pl.pallas_call(
        kernel,
        out_shape=jax.ShapeDtypeStruct((1, 1), jnp.float32),
    )(enc_patches, pos, gt_patches, enc_mask, dec_mask, ups, slab)[0, 0]

    # eval-mode ContextNet branch: query_latent_distances = zeros(bs, 1, c)
    qld_mean = jnp.mean(jnp.zeros((bs, 1, c), jnp.float32))
    return loss, qld_mean


# ----------------------------------- main --------------------------------------
if __name__ == "__main__":
    key = jax.random.PRNGKey(0)
    pkey, xkey = jax.random.split(key)
    params = init_params(pkey)
    x_enc = jax.random.normal(xkey, (BATCH, SEQ_LEN, N_VARS), jnp.float32)
    x_mark_enc = jnp.zeros((BATCH, SEQ_LEN, 1), jnp.float32)

    loss, mean_qld = jax.jit(forward)(params, x_enc, x_mark_enc, None, None)
    jax.block_until_ready((loss, mean_qld))
    assert jnp.isfinite(loss)
    print("KERNEL_OK")
</pallas_src>

<mosaic_0001>
module attributes {stable_mosaic.version = 11 : i64} {
  func.func @kernel(%arg0: memref<36x4xf32, #tpu.memory_space<vmem>>, %arg1: memref<36x32xf32, #tpu.memory_space<vmem>>, %arg2: memref<72x4xf32, #tpu.memory_space<vmem>>, %arg3: memref<36x36xf32, #tpu.memory_space<vmem>>, %arg4: memref<72x72xf32, #tpu.memory_space<vmem>>, %arg5: memref<72x36xf32, #tpu.memory_space<vmem>>, %arg6: memref<672x96xf32, #tpu.memory_space<vmem>>, %arg7: memref<1x1xf32, #tpu.memory_space<vmem>>) attributes {dimension_semantics = [], scalar_prefetch = 0 : i64, scratch_operands = 0 : i64, tpu.core_type = #tpu.core_type<tc>} {
    %c0 = arith.constant 0 : index
    %c0_0 = arith.constant 0 : index
    %0 = vector.load %arg6[%c0, %c0_0] : memref<672x96xf32, #tpu.memory_space<vmem>>, vector<8x32xf32>
    %c8 = arith.constant 8 : index
    %c0_1 = arith.constant 0 : index
    %1 = vector.load %arg6[%c8, %c0_1] : memref<672x96xf32, #tpu.memory_space<vmem>>, vector<1x64xf32>
    %c16 = arith.constant 16 : index
    %c0_2 = arith.constant 0 : index
    %2 = vector.load %arg6[%c16, %c0_2] : memref<672x96xf32, #tpu.memory_space<vmem>>, vector<1x32xf32>
    %c24 = arith.constant 24 : index
    %c0_3 = arith.constant 0 : index
    %3 = vector.load %arg6[%c24, %c0_3] : memref<672x96xf32, #tpu.memory_space<vmem>>, vector<1x64xf32>
    %c32 = arith.constant 32 : index
    %c0_4 = arith.constant 0 : index
    %4 = vector.load %arg6[%c32, %c0_4] : memref<672x96xf32, #tpu.memory_space<vmem>>, vector<1x32xf32>
    %c40 = arith.constant 40 : index
    %c0_5 = arith.constant 0 : index
    %5 = vector.load %arg6[%c40, %c0_5] : memref<672x96xf32, #tpu.memory_space<vmem>>, vector<1x32xf32>
    %c48 = arith.constant 48 : index
    %c0_6 = arith.constant 0 : index
    %6 = vector.load %arg6[%c48, %c0_6] : memref<672x96xf32, #tpu.memory_space<vmem>>, vector<32x64xf32>
    %c80 = arith.constant 80 : index
    %c0_7 = arith.constant 0 : index
    %7 = vector.load %arg6[%c80, %c0_7] : memref<672x96xf32, #tpu.memory_space<vmem>>, vector<32x32xf32>
    %c112 = arith.constant 112 : index
    %c0_8 = arith.constant 0 : index
    %8 = vector.load %arg6[%c112, %c0_8] : memref<672x96xf32, #tpu.memory_space<vmem>>, vector<32x32xf32>
    %c144 = arith.constant 144 : index
    %c0_9 = arith.constant 0 : index
    %9 = vector.load %arg6[%c144, %c0_9] : memref<672x96xf32, #tpu.memory_space<vmem>>, vector<1x32xf32>
    %c152 = arith.constant 152 : index
    %c0_10 = arith.constant 0 : index
    %10 = vector.load %arg6[%c152, %c0_10] : memref<672x96xf32, #tpu.memory_space<vmem>>, vector<1x32xf32>
    %c160 = arith.constant 160 : index
    %c0_11 = arith.constant 0 : index
    %11 = vector.load %arg6[%c160, %c0_11] : memref<672x96xf32, #tpu.memory_space<vmem>>, vector<1x32xf32>
    %c168 = arith.constant 168 : index
    %c0_12 = arith.constant 0 : index
    %12 = vector.load %arg6[%c168, %c0_12] : memref<672x96xf32, #tpu.memory_space<vmem>>, vector<1x32xf32>
    %c176 = arith.constant 176 : index
    %c0_13 = arith.constant 0 : index
    %13 = vector.load %arg6[%c176, %c0_13] : memref<672x96xf32, #tpu.memory_space<vmem>>, vector<1x32xf32>
    %c184 = arith.constant 184 : index
    %c0_14 = arith.constant 0 : index
    %14 = vector.load %arg6[%c184, %c0_14] : memref<672x96xf32, #tpu.memory_space<vmem>>, vector<1x32xf32>
    %c192 = arith.constant 192 : index
    %c0_15 = arith.constant 0 : index
    %15 = vector.load %arg6[%c192, %c0_15] : memref<672x96xf32, #tpu.memory_space<vmem>>, vector<1x32xf32>
    %c200 = arith.constant 200 : index
    %c0_16 = arith.constant 0 : index
    %16 = vector.load %arg6[%c200, %c0_16] : memref<672x96xf32, #tpu.memory_space<vmem>>, vector<1x96xf32>
    %c208 = arith.constant 208 : index
    %c0_17 = arith.constant 0 : index
    %17 = vector.load %arg6[%c208, %c0_17] : memref<672x96xf32, #tpu.memory_space<vmem>>, vector<32x32xf32>
    %c240 = arith.constant 240 : index
    %c0_18 = arith.constant 0 : index
    %18 = vector.load %arg6[%c240, %c0_18] : memref<672x96xf32, #tpu.memory_space<vmem>>, vector<32x96xf32>
    %c272 = arith.constant 272 : index
    %c0_19 = arith.constant 0 : index
    %19 = vector.load %arg6[%c272, %c0_19] : memref<672x96xf32, #tpu.memory_space<vmem>>, vector<32x64xf32>
    %c304 = arith.constant 304 : index
    %c0_20 = arith.constant 0 : index
    %20 = vector.load %arg6[%c304, %c0_20] : memref<672x96xf32, #tpu.memory_space<vmem>>, vector<64x32xf32>
    %c368 = arith.constant 368 : index
    %c0_21 = arith.constant 0 : index
    %21 = vector.load %arg6[%c368, %c0_21] : memref<672x96xf32, #tpu.memory_space<vmem>>, vector<1x32xf32>
    %c376 = arith.constant 376 : index
    %c0_22 = arith.constant 0 : index
    %22 = vector.load %arg6[%c376, %c0_22] : memref<672x96xf32, #tpu.memory_space<vmem>>, vector<1x32xf32>
    %c384 = arith.constant 384 : index
    %c0_23 = arith.constant 0 : index
    %23 = vector.load %arg6[%c384, %c0_23] : memref<672x96xf32, #tpu.memory_space<vmem>>, vector<1x64xf32>
    %c392 = arith.constant 392 : index
    %c0_24 = arith.constant 0 : index
    %24 = vector.load %arg6[%c392, %c0_24] : memref<672x96xf32, #tpu.memory_space<vmem>>, vector<1x32xf32>
    %c400 = arith.constant 400 : index
    %c0_25 = arith.constant 0 : index
    %25 = vector.load %arg6[%c400, %c0_25] : memref<672x96xf32, #tpu.memory_space<vmem>>, vector<1x32xf32>
    %c408 = arith.constant 408 : index
    %c0_26 = arith.constant 0 : index
    %26 = vector.load %arg6[%c408, %c0_26] : memref<672x96xf32, #tpu.memory_space<vmem>>, vector<1x96xf32>
    %c416 = arith.constant 416 : index
    %c0_27 = arith.constant 0 : index
    %27 = vector.load %arg6[%c416, %c0_27] : memref<672x96xf32, #tpu.memory_space<vmem>>, vector<1x32xf32>
    %c424 = arith.constant 424 : index
    %c0_28 = arith.constant 0 : index
    %28 = vector.load %arg6[%c424, %c0_28] : memref<672x96xf32, #tpu.memory_space<vmem>>, vector<1x32xf32>
    %c432 = arith.constant 432 : index
    %c0_29 = arith.constant 0 : index
    %29 = vector.load %arg6[%c432, %c0_29] : memref<672x96xf32, #tpu.memory_space<vmem>>, vector<1x32xf32>
    %c440 = arith.constant 440 : index
    %c0_30 = arith.constant 0 : index
    %30 = vector.load %arg6[%c440, %c0_30] : memref<672x96xf32, #tpu.memory_space<vmem>>, vector<1x32xf32>
    %c448 = arith.constant 448 : index
    %c0_31 = arith.constant 0 : index
    %31 = vector.load %arg6[%c448, %c0_31] : memref<672x96xf32, #tpu.memory_space<vmem>>, vector<32x64xf32>
    %c480 = arith.constant 480 : index
    %c0_32 = arith.constant 0 : index
    %32 = vector.load %arg6[%c480, %c0_32] : memref<672x96xf32, #tpu.memory_space<vmem>>, vector<64x32xf32>
    %c544 = arith.constant 544 : index
    %c0_33 = arith.constant 0 : index
    %33 = vector.load %arg6[%c544, %c0_33] : memref<672x96xf32, #tpu.memory_space<vmem>>, vector<32x32xf32>
    %c576 = arith.constant 576 : index
    %c0_34 = arith.constant 0 : index
    %34 = vector.load %arg6[%c576, %c0_34] : memref<672x96xf32, #tpu.memory_space<vmem>>, vector<32x96xf32>
    %c608 = arith.constant 608 : index
    %c0_35 = arith.constant 0 : index
    %35 = vector.load %arg6[%c608, %c0_35] : memref<672x96xf32, #tpu.memory_space<vmem>>, vector<1x32xf32>
    %c616 = arith.constant 616 : index
    %c0_36 = arith.constant 0 : index
    %36 = vector.load %arg6[%c616, %c0_36] : memref<672x96xf32, #tpu.memory_space<vmem>>, vector<1x32xf32>
    %c624 = arith.constant 624 : index
    %c0_37 = arith.constant 0 : index
    %37 = vector.load %arg6[%c624, %c0_37] : memref<672x96xf32, #tpu.memory_space<vmem>>, vector<1x4xf32>
    %c632 = arith.constant 632 : index
    %c0_38 = arith.constant 0 : index
    %38 = vector.load %arg6[%c632, %c0_38] : memref<672x96xf32, #tpu.memory_space<vmem>>, vector<32x4xf32>
    %c664 = arith.constant 664 : index
    %c0_39 = arith.constant 0 : index
    %39 = vector.load %arg6[%c664, %c0_39] : memref<672x96xf32, #tpu.memory_space<vmem>>, vector<4x32xf32>
    %c0_40 = arith.constant 0 : index
    %c0_41 = arith.constant 0 : index
    %40 = vector.load %arg0[%c0_40, %c0_41] : memref<36x4xf32, #tpu.memory_space<vmem>>, vector<36x4xf32>
    %cst = arith.constant dense<0.000000e+00> : vector<36x32xf32>
    %41 = tpu.matmul %40, %39, %cst {dimension_numbers = #tpu.dot_dimension_numbers<[1], [0], [0], [1], [0, 0, 1, 1], [], []>} : vector<36x4xf32>, vector<4x32xf32>, vector<36x32xf32> -> vector<36x32xf32>
    %c0_42 = arith.constant 0 : index
    %c0_43 = arith.constant 0 : index
    %42 = vector.load %arg1[%c0_42, %c0_43] : memref<36x32xf32, #tpu.memory_space<vmem>>, vector<36x32xf32>
    %43 = arith.addf %41, %42 : vector<36x32xf32>
    %c0_44 = arith.constant 0 : index
    %c0_45 = arith.constant 0 : index
    %44 = vector.load %arg3[%c0_44, %c0_45] : memref<36x36xf32, #tpu.memory_space<vmem>>, vector<36x36xf32>
    %cst_46 = arith.constant dense<0.000000e+00> : vector<36x96xf32>
    %45 = tpu.matmul %43, %34, %cst_46 {dimension_numbers = #tpu.dot_dimension_numbers<[1], [0], [0], [1], [0, 0, 1, 1], [], []>} : vector<36x32xf32>, vector<32x96xf32>, vector<36x96xf32> -> vector<36x96xf32>
    %46 = vector.broadcast %26 : vector<1x96xf32> to vector<36x96xf32>
    %47 = arith.addf %45, %46 : vector<36x96xf32>
    %48 = vector.extract_strided_slice %47 {offsets = [0, 0], sizes = [36, 8], strides = [1, 1]} : vector<36x96xf32> to vector<36x8xf32>
    %49 = vector.extract_strided_slice %47 {offsets = [0, 32], sizes = [36, 8], strides = [1, 1]} : vector<36x96xf32> to vector<36x8xf32>
    %50 = vector.extract_strided_slice %47 {offsets = [0, 64], sizes = [36, 8], strides = [1, 1]} : vector<36x96xf32> to vector<36x8xf32>
    %51 = tpu.transpose %49, [1, 0] : vector<36x8xf32> -> vector<8x36xf32>
    %cst_47 = arith.constant dense<0.000000e+00> : vector<36x36xf32>
    %52 = tpu.matmul %48, %51, %cst_47 {dimension_numbers = #tpu.dot_dimension_numbers<[1], [0], [0], [1], [0, 0, 1, 1], [], []>} : vector<36x8xf32>, vector<8x36xf32>, vector<36x36xf32> -> vector<36x36xf32>
    %cst_48 = arith.constant 0.353553385 : f32
    %53 = vector.broadcast %cst_48 : f32 to vector<36x36xf32>
    %54 = arith.mulf %52, %53 : vector<36x36xf32>
    %55 = arith.addf %54, %44 : vector<36x36xf32>
    %cst_49 = arith.constant dense<0xFF800000> : vector<36xf32>
    %56 = vector.multi_reduction <maximumf>, %55, %cst_49 [1] : vector<36x36xf32> to vector<36xf32>
    %57 = vector.shape_cast %56 : vector<36xf32> to vector<36x1xf32>
    %58 = vector.broadcast %57 : vector<36x1xf32> to vector<36x36xf32>
    %59 = arith.subf %55, %58 : vector<36x36xf32>
    %60 = math.exp %59 : vector<36x36xf32>
    %cst_50 = arith.constant dense<0.000000e+00> : vector<36xf32>
    %61 = vector.multi_reduction <add>, %60, %cst_50 [1] : vector<36x36xf32> to vector<36xf32>
    %62 = vector.shape_cast %61 : vector<36xf32> to vector<36x1xf32>
    %63 = tpu.reciprocal %62 {approx = true} : vector<36x1xf32> -> vector<36x1xf32>
    %64 = vector.broadcast %63 : vector<36x1xf32> to vector<36x36xf32>
    %65 = arith.mulf %60, %64 : vector<36x36xf32>
    %cst_51 = arith.constant dense<0.000000e+00> : vector<36x8xf32>
    %66 = tpu.matmul %65, %50, %cst_51 {dimension_numbers = #tpu.dot_dimension_numbers<[1], [0], [0], [1], [0, 0, 1, 1], [], []>} : vector<36x36xf32>, vector<36x8xf32>, vector<36x8xf32> -> vector<36x8xf32>
    %67 = vector.extract_strided_slice %33 {offsets = [0, 0], sizes = [8, 32], strides = [1, 1]} : vector<32x32xf32> to vector<8x32xf32>
    %cst_52 = arith.constant dense<0.000000e+00> : vector<36x32xf32>
    %68 = tpu.matmul %66, %67, %cst_52 {dimension_numbers = #tpu.dot_dimension_numbers<[1], [0], [0], [1], [0, 0, 1, 1], [], []>} : vector<36x8xf32>, vector<8x32xf32>, vector<36x32xf32> -> vector<36x32xf32>
    %69 = vector.extract_strided_slice %47 {offsets = [0, 8], sizes = [36, 8], strides = [1, 1]} : vector<36x96xf32> to vector<36x8xf32>
    %70 = vector.extract_strided_slice %47 {offsets = [0, 40], sizes = [36, 8], strides = [1, 1]} : vector<36x96xf32> to vector<36x8xf32>
    %71 = vector.extract_strided_slice %47 {offsets = [0, 72], sizes = [36, 8], strides = [1, 1]} : vector<36x96xf32> to vector<36x8xf32>
    %72 = tpu.transpose %70, [1, 0] : vector<36x8xf32> -> vector<8x36xf32>
    %cst_53 = arith.constant dense<0.000000e+00> : vector<36x36xf32>
    %73 = tpu.matmul %69, %72, %cst_53 {dimension_numbers = #tpu.dot_dimension_numbers<[1], [0], [0], [1], [0, 0, 1, 1], [], []>} : vector<36x8xf32>, vector<8x36xf32>, vector<36x36xf32> -> vector<36x36xf32>
    %cst_54 = arith.constant 0.353553385 : f32
    %74 = vector.broadcast %cst_54 : f32 to vector<36x36xf32>
    %75 = arith.mulf %73, %74 : vector<36x36xf32>
    %76 = arith.addf %75, %44 : vector<36x36xf32>
    %cst_55 = arith.constant dense<0xFF800000> : vector<36xf32>
    %77 = vector.multi_reduction <maximumf>, %76, %cst_55 [1] : vector<36x36xf32> to vector<36xf32>
    %78 = vector.shape_cast %77 : vector<36xf32> to vector<36x1xf32>
    %79 = vector.broadcast %78 : vector<36x1xf32> to vector<36x36xf32>
    %80 = arith.subf %76, %79 : vector<36x36xf32>
    %81 = math.exp %80 : vector<36x36xf32>
    %cst_56 = arith.constant dense<0.000000e+00> : vector<36xf32>
    %82 = vector.multi_reduction <add>, %81, %cst_56 [1] : vector<36x36xf32> to vector<36xf32>
    %83 = vector.shape_cast %82 : vector<36xf32> to vector<36x1xf32>
    %84 = tpu.reciprocal %83 {approx = true} : vector<36x1xf32> -> vector<36x1xf32>
    %85 = vector.broadcast %84 : vector<36x1xf32> to vector<36x36xf32>
    %86 = arith.mulf %81, %85 : vector<36x36xf32>
    %cst_57 = arith.constant dense<0.000000e+00> : vector<36x8xf32>
    %87 = tpu.matmul %86, %71, %cst_57 {dimension_numbers = #tpu.dot_dimension_numbers<[1], [0], [0], [1], [0, 0, 1, 1], [], []>} : vector<36x36xf32>, vector<36x8xf32>, vector<36x8xf32> -> vector<36x8xf32>
    %88 = vector.extract_strided_slice %33 {offsets = [8, 0], sizes = [8, 32], strides = [1, 1]} : vector<32x32xf32> to vector<8x32xf32>
    %cst_58 = arith.constant dense<0.000000e+00> : vector<36x32xf32>
    %89 = tpu.matmul %87, %88, %cst_58 {dimension_numbers = #tpu.dot_dimension_numbers<[1], [0], [0], [1], [0, 0, 1, 1], [], []>} : vector<36x8xf32>, vector<8x32xf32>, vector<36x32xf32> -> vector<36x32xf32>
    %90 = arith.addf %68, %89 : vector<36x32xf32>
    %91 = vector.extract_strided_slice %47 {offsets = [0, 16], sizes = [36, 8], strides = [1, 1]} : vector<36x96xf32> to vector<36x8xf32>
    %92 = vector.extract_strided_slice %47 {offsets = [0, 48], sizes = [36, 8], strides = [1, 1]} : vector<36x96xf32> to vector<36x8xf32>
    %93 = vector.extract_strided_slice %47 {offsets = [0, 80], sizes = [36, 8], strides = [1, 1]} : vector<36x96xf32> to vector<36x8xf32>
    %94 = tpu.transpose %92, [1, 0] : vector<36x8xf32> -> vector<8x36xf32>
    %cst_59 = arith.constant dense<0.000000e+00> : vector<36x36xf32>
    %95 = tpu.matmul %91, %94, %cst_59 {dimension_numbers = #tpu.dot_dimension_numbers<[1], [0], [0], [1], [0, 0, 1, 1], [], []>} : vector<36x8xf32>, vector<8x36xf32>, vector<36x36xf32> -> vector<36x36xf32>
    %cst_60 = arith.constant 0.353553385 : f32
    %96 = vector.broadcast %cst_60 : f32 to vector<36x36xf32>
    %97 = arith.mulf %95, %96 : vector<36x36xf32>
    %98 = arith.addf %97, %44 : vector<36x36xf32>
    %cst_61 = arith.constant dense<0xFF800000> : vector<36xf32>
    %99 = vector.multi_reduction <maximumf>, %98, %cst_61 [1] : vector<36x36xf32> to vector<36xf32>
    %100 = vector.shape_cast %99 : vector<36xf32> to vector<36x1xf32>
    %101 = vector.broadcast %100 : vector<36x1xf32> to vector<36x36xf32>
    %102 = arith.subf %98, %101 : vector<36x36xf32>
    %103 = math.exp %102 : vector<36x36xf32>
    %cst_62 = arith.constant dense<0.000000e+00> : vector<36xf32>
    %104 = vector.multi_reduction <add>, %103, %cst_62 [1] : vector<36x36xf32> to vector<36xf32>
    %105 = vector.shape_cast %104 : vector<36xf32> to vector<36x1xf32>
    %106 = tpu.reciprocal %105 {approx = true} : vector<36x1xf32> -> vector<36x1xf32>
    %107 = vector.broadcast %106 : vector<36x1xf32> to vector<36x36xf32>
    %108 = arith.mulf %103, %107 : vector<36x36xf32>
    %cst_63 = arith.constant dense<0.000000e+00> : vector<36x8xf32>
    %109 = tpu.matmul %108, %93, %cst_63 {dimension_numbers = #tpu.dot_dimension_numbers<[1], [0], [0], [1], [0, 0, 1, 1], [], []>} : vector<36x36xf32>, vector<36x8xf32>, vector<36x8xf32> -> vector<36x8xf32>
    %110 = vector.extract_strided_slice %33 {offsets = [16, 0], sizes = [8, 32], strides = [1, 1]} : vector<32x32xf32> to vector<8x32xf32>
    %cst_64 = arith.constant dense<0.000000e+00> : vector<36x32xf32>
    %111 = tpu.matmul %109, %110, %cst_64 {dimension_numbers = #tpu.dot_dimension_numbers<[1], [0], [0], [1], [0, 0, 1, 1], [], []>} : vector<36x8xf32>, vector<8x32xf32>, vector<36x32xf32> -> vector<36x32xf32>
    %112 = arith.addf %90, %111 : vector<36x32xf32>
    %113 = vector.extract_strided_slice %47 {offsets = [0, 24], sizes = [36, 8], strides = [1, 1]} : vector<36x96xf32> to vector<36x8xf32>
    %114 = vector.extract_strided_slice %47 {offsets = [0, 56], sizes = [36, 8], strides = [1, 1]} : vector<36x96xf32> to vector<36x8xf32>
    %115 = vector.extract_strided_slice %47 {offsets = [0, 88], sizes = [36, 8], strides = [1, 1]} : vector<36x96xf32> to vector<36x8xf32>
    %116 = tpu.transpose %114, [1, 0] : vector<36x8xf32> -> vector<8x36xf32>
    %cst_65 = arith.constant dense<0.000000e+00> : vector<36x36xf32>
    %117 = tpu.matmul %113, %116, %cst_65 {dimension_numbers = #tpu.dot_dimension_numbers<[1], [0], [0], [1], [0, 0, 1, 1], [], []>} : vector<36x8xf32>, vector<8x36xf32>, vector<36x36xf32> -> vector<36x36xf32>
    %cst_66 = arith.constant 0.353553385 : f32
    %118 = vector.broadcast %cst_66 : f32 to vector<36x36xf32>
    %119 = arith.mulf %117, %118 : vector<36x36xf32>
    %120 = arith.addf %119, %44 : vector<36x36xf32>
    %cst_67 = arith.constant dense<0xFF800000> : vector<36xf32>
    %121 = vector.multi_reduction <maximumf>, %120, %cst_67 [1] : vector<36x36xf32> to vector<36xf32>
    %122 = vector.shape_cast %121 : vector<36xf32> to vector<36x1xf32>
    %123 = vector.broadcast %122 : vector<36x1xf32> to vector<36x36xf32>
    %124 = arith.subf %120, %123 : vector<36x36xf32>
    %125 = math.exp %124 : vector<36x36xf32>
    %cst_68 = arith.constant dense<0.000000e+00> : vector<36xf32>
    %126 = vector.multi_reduction <add>, %125, %cst_68 [1] : vector<36x36xf32> to vector<36xf32>
    %127 = vector.shape_cast %126 : vector<36xf32> to vector<36x1xf32>
    %128 = tpu.reciprocal %127 {approx = true} : vector<36x1xf32> -> vector<36x1xf32>
    %129 = vector.broadcast %128 : vector<36x1xf32> to vector<36x36xf32>
    %130 = arith.mulf %125, %129 : vector<36x36xf32>
    %cst_69 = arith.constant dense<0.000000e+00> : vector<36x8xf32>
    %131 = tpu.matmul %130, %115, %cst_69 {dimension_numbers = #tpu.dot_dimension_numbers<[1], [0], [0], [1], [0, 0, 1, 1], [], []>} : vector<36x36xf32>, vector<36x8xf32>, vector<36x8xf32> -> vector<36x8xf32>
    %132 = vector.extract_strided_slice %33 {offsets = [24, 0], sizes = [8, 32], strides = [1, 1]} : vector<32x32xf32> to vector<8x32xf32>
    %cst_70 = arith.constant dense<0.000000e+00> : vector<36x32xf32>
    %133 = tpu.matmul %131, %132, %cst_70 {dimension_numbers = #tpu.dot_dimension_numbers<[1], [0], [0], [1], [0, 0, 1, 1], [], []>} : vector<36x8xf32>, vector<8x32xf32>, vector<36x32xf32> -> vector<36x32xf32>
    %134 = arith.addf %112, %133 : vector<36x32xf32>
    %135 = vector.broadcast %25 : vector<1x32xf32> to vector<36x32xf32>
    %136 = arith.addf %134, %135 : vector<36x32xf32>
    %137 = arith.addf %43, %136 : vector<36x32xf32>
    %cst_71 = arith.constant dense<0.000000e+00> : vector<36xf32>
    %138 = vector.multi_reduction <add>, %137, %cst_71 [1] : vector<36x32xf32> to vector<36xf32>
    %139 = vector.shape_cast %138 : vector<36xf32> to vector<36x1xf32>
    %cst_72 = arith.constant 3.200000e+01 : f32
    %140 = vector.broadcast %cst_72 : f32 to vector<36x1xf32>
    %141 = arith.divf %139, %140 : vector<36x1xf32>
    %142 = vector.broadcast %141 : vector<36x1xf32> to vector<36x32xf32>
    %143 = arith.subf %137, %142 : vector<36x32xf32>
    %144 = arith.mulf %143, %143 : vector<36x32xf32>
    %cst_73 = arith.constant dense<0.000000e+00> : vector<36xf32>
    %145 = vector.multi_reduction <add>, %144, %cst_73 [1] : vector<36x32xf32> to vector<36xf32>
    %146 = vector.shape_cast %145 : vector<36xf32> to vector<36x1xf32>
    %cst_74 = arith.constant 3.200000e+01 : f32
    %147 = vector.broadcast %cst_74 : f32 to vector<36x1xf32>
    %148 = arith.divf %146, %147 : vector<36x1xf32>
    %cst_75 = arith.constant 9.99999974E-6 : f32
    %149 = vector.broadcast %cst_75 : f32 to vector<36x1xf32>
    %150 = arith.addf %148, %149 : vector<36x1xf32>
    %151 = math.rsqrt %150 : vector<36x1xf32>
    %152 = vector.broadcast %151 : vector<36x1xf32> to vector<36x32xf32>
    %153 = arith.mulf %143, %152 : vector<36x32xf32>
    %154 = vector.broadcast %28 : vector<1x32xf32> to vector<36x32xf32>
    %155 = arith.mulf %153, %154 : vector<36x32xf32>
    %156 = vector.broadcast %27 : vector<1x32xf32> to vector<36x32xf32>
    %157 = arith.addf %155, %156 : vector<36x32xf32>
    %cst_76 = arith.constant dense<0.000000e+00> : vector<36x64xf32>
    %158 = tpu.matmul %157, %31, %cst_76 {dimension_numbers = #tpu.dot_dimension_numbers<[1], [0], [0], [1], [0, 0, 1, 1], [], []>} : vector<36x32xf32>, vector<32x64xf32>, vector<36x64xf32> -> vector<36x64xf32>
    %159 = vector.broadcast %23 : vector<1x64xf32> to vector<36x64xf32>
    %160 = arith.addf %158, %159 : vector<36x64xf32>
    %161 = arith.mulf %160, %160 : vector<36x64xf32>
    %162 = arith.mulf %160, %161 : vector<36x64xf32>
    %cst_77 = arith.constant 4.471500e-02 : f32
    %163 = vector.broadcast %cst_77 : f32 to vector<36x64xf32>
    %164 = arith.mulf %163, %162 : vector<36x64xf32>
    %165 = arith.addf %160, %164 : vector<36x64xf32>
    %cst_78 = arith.constant 0.797884583 : f32
    %166 = vector.broadcast %cst_78 : f32 to vector<36x64xf32>
    %167 = arith.mulf %166, %165 : vector<36x64xf32>
    %168 = math.tanh %167 : vector<36x64xf32>
    %cst_79 = arith.constant 1.000000e+00 : f32
    %169 = vector.broadcast %cst_79 : f32 to vector<36x64xf32>
    %170 = arith.addf %169, %168 : vector<36x64xf32>
    %cst_80 = arith.constant 5.000000e-01 : f32
    %171 = vector.broadcast %cst_80 : f32 to vector<36x64xf32>
    %172 = arith.mulf %171, %170 : vector<36x64xf32>
    %173 = arith.mulf %160, %172 : vector<36x64xf32>
    %cst_81 = arith.constant dense<0.000000e+00> : vector<36x32xf32>
    %174 = tpu.matmul %173, %32, %cst_81 {dimension_numbers = #tpu.dot_dimension_numbers<[1], [0], [0], [1], [0, 0, 1, 1], [], []>} : vector<36x64xf32>, vector<64x32xf32>, vector<36x32xf32> -> vector<36x32xf32>
    %175 = vector.broadcast %24 : vector<1x32xf32> to vector<36x32xf32>
    %176 = arith.addf %174, %175 : vector<36x32xf32>
    %177 = arith.addf %157, %176 : vector<36x32xf32>
    %cst_82 = arith.constant dense<0.000000e+00> : vector<36xf32>
    %178 = vector.multi_reduction <add>, %177, %cst_82 [1] : vector<36x32xf32> to vector<36xf32>
    %179 = vector.shape_cast %178 : vector<36xf32> to vector<36x1xf32>
    %cst_83 = arith.constant 3.200000e+01 : f32
    %180 = vector.broadcast %cst_83 : f32 to vector<36x1xf32>
    %181 = arith.divf %179, %180 : vector<36x1xf32>
    %182 = vector.broadcast %181 : vector<36x1xf32> to vector<36x32xf32>
    %183 = arith.subf %177, %182 : vector<36x32xf32>
    %184 = arith.mulf %183, %183 : vector<36x32xf32>
    %cst_84 = arith.constant dense<0.000000e+00> : vector<36xf32>
    %185 = vector.multi_reduction <add>, %184, %cst_84 [1] : vector<36x32xf32> to vector<36xf32>
    %186 = vector.shape_cast %185 : vector<36xf32> to vector<36x1xf32>
    %cst_85 = arith.constant 3.200000e+01 : f32
    %187 = vector.broadcast %cst_85 : f32 to vector<36x1xf32>
    %188 = arith.divf %186, %187 : vector<36x1xf32>
    %cst_86 = arith.constant 9.99999974E-6 : f32
    %189 = vector.broadcast %cst_86 : f32 to vector<36x1xf32>
    %190 = arith.addf %188, %189 : vector<36x1xf32>
    %191 = math.rsqrt %190 : vector<36x1xf32>
    %192 = vector.broadcast %191 : vector<36x1xf32> to vector<36x32xf32>
    %193 = arith.mulf %183, %192 : vector<36x32xf32>
    %194 = vector.broadcast %30 : vector<1x32xf32> to vector<36x32xf32>
    %195 = arith.mulf %193, %194 : vector<36x32xf32>
    %196 = vector.broadcast %29 : vector<1x32xf32> to vector<36x32xf32>
    %197 = arith.addf %195, %196 : vector<36x32xf32>
    %cst_87 = arith.constant dense<0.000000e+00> : vector<36xf32>
    %198 = vector.multi_reduction <add>, %197, %cst_87 [1] : vector<36x32xf32> to vector<36xf32>
    %199 = vector.shape_cast %198 : vector<36xf32> to vector<36x1xf32>
    %cst_88 = arith.constant 3.200000e+01 : f32
    %200 = vector.broadcast %cst_88 : f32 to vector<36x1xf32>
    %201 = arith.divf %199, %200 : vector<36x1xf32>
    %202 = vector.broadcast %201 : vector<36x1xf32> to vector<36x32xf32>
    %203 = arith.subf %197, %202 : vector<36x32xf32>
    %204 = arith.mulf %203, %203 : vector<36x32xf32>
    %cst_89 = arith.constant dense<0.000000e+00> : vector<36xf32>
    %205 = vector.multi_reduction <add>, %204, %cst_89 [1] : vector<36x32xf32> to vector<36xf32>
    %206 = vector.shape_cast %205 : vector<36xf32> to vector<36x1xf32>
    %cst_90 = arith.constant 3.200000e+01 : f32
    %207 = vector.broadcast %cst_90 : f32 to vector<36x1xf32>
    %208 = arith.divf %206, %207 : vector<36x1xf32>
    %cst_91 = arith.constant 9.99999974E-6 : f32
    %209 = vector.broadcast %cst_91 : f32 to vector<36x1xf32>
    %210 = arith.addf %208, %209 : vector<36x1xf32>
    %211 = math.rsqrt %210 : vector<36x1xf32>
    %212 = vector.broadcast %211 : vector<36x1xf32> to vector<36x32xf32>
    %213 = arith.mulf %203, %212 : vector<36x32xf32>
    %214 = vector.broadcast %36 : vector<1x32xf32> to vector<36x32xf32>
    %215 = arith.mulf %213, %214 : vector<36x32xf32>
    %216 = vector.broadcast %35 : vector<1x32xf32> to vector<36x32xf32>
    %217 = arith.addf %215, %216 : vector<36x32xf32>
    %c0_92 = arith.constant 0 : index
    %c0_93 = arith.constant 0 : index
    %218 = vector.load %arg5[%c0_92, %c0_93] : memref<72x36xf32, #tpu.memory_space<vmem>>, vector<72x36xf32>
    %cst_94 = arith.constant dense<0.000000e+00> : vector<72x32xf32>
    %219 = tpu.matmul %218, %217, %cst_94 {dimension_numbers = #tpu.dot_dimension_numbers<[1], [0], [0], [1], [0, 0, 1, 1], [], []>} : vector<72x36xf32>, vector<36x32xf32>, vector<72x32xf32> -> vector<72x32xf32>
    %c0_95 = arith.constant 0 : index
    %c0_96 = arith.constant 0 : index
    %220 = vector.load %arg4[%c0_95, %c0_96] : memref<72x72xf32, #tpu.memory_space<vmem>>, vector<72x72xf32>
    %cst_97 = arith.constant dense<0.000000e+00> : vector<72x96xf32>
    %221 = tpu.matmul %219, %18, %cst_97 {dimension_numbers = #tpu.dot_dimension_numbers<[1], [0], [0], [1], [0, 0, 1, 1], [], []>} : vector<72x32xf32>, vector<32x96xf32>, vector<72x96xf32> -> vector<72x96xf32>
    %222 = vector.broadcast %16 : vector<1x96xf32> to vector<72x96xf32>
    %223 = arith.addf %221, %222 : vector<72x96xf32>
    %224 = vector.extract_strided_slice %223 {offsets = [0, 0], sizes = [72, 8], strides = [1, 1]} : vector<72x96xf32> to vector<72x8xf32>
    %225 = vector.extract_strided_slice %223 {offsets = [0, 32], sizes = [72, 8], strides = [1, 1]} : vector<72x96xf32> to vector<72x8xf32>
    %226 = vector.extract_strided_slice %223 {offsets = [0, 64], sizes = [72, 8], strides = [1, 1]} : vector<72x96xf32> to vector<72x8xf32>
    %227 = tpu.transpose %225, [1, 0] : vector<72x8xf32> -> vector<8x72xf32>
    %cst_98 = arith.constant dense<0.000000e+00> : vector<72x72xf32>
    %228 = tpu.matmul %224, %227, %cst_98 {dimension_numbers = #tpu.dot_dimension_numbers<[1], [0], [0], [1], [0, 0, 1, 1], [], []>} : vector<72x8xf32>, vector<8x72xf32>, vector<72x72xf32> -> vector<72x72xf32>
    %cst_99 = arith.constant 0.353553385 : f32
    %229 = vector.broadcast %cst_99 : f32 to vector<72x72xf32>
    %230 = arith.mulf %228, %229 : vector<72x72xf32>
    %231 = arith.addf %230, %220 : vector<72x72xf32>
    %cst_100 = arith.constant dense<0xFF800000> : vector<72xf32>
    %232 = vector.multi_reduction <maximumf>, %231, %cst_100 [1] : vector<72x72xf32> to vector<72xf32>
    %233 = vector.shape_cast %232 : vector<72xf32> to vector<72x1xf32>
    %234 = vector.broadcast %233 : vector<72x1xf32> to vector<72x72xf32>
    %235 = arith.subf %231, %234 : vector<72x72xf32>
    %236 = math.exp %235 : vector<72x72xf32>
    %cst_101 = arith.constant dense<0.000000e+00> : vector<72xf32>
    %237 = vector.multi_reduction <add>, %236, %cst_101 [1] : vector<72x72xf32> to vector<72xf32>
    %238 = vector.shape_cast %237 : vector<72xf32> to vector<72x1xf32>
    %239 = tpu.reciprocal %238 {approx = true} : vector<72x1xf32> -> vector<72x1xf32>
    %240 = vector.broadcast %239 : vector<72x1xf32> to vector<72x72xf32>
    %241 = arith.mulf %236, %240 : vector<72x72xf32>
    %cst_102 = arith.constant dense<0.000000e+00> : vector<72x8xf32>
    %242 = tpu.matmul %241, %226, %cst_102 {dimension_numbers = #tpu.dot_dimension_numbers<[1], [0], [0], [1], [0, 0, 1, 1], [], []>} : vector<72x72xf32>, vector<72x8xf32>, vector<72x8xf32> -> vector<72x8xf32>
    %243 = vector.extract_strided_slice %17 {offsets = [0, 0], sizes = [8, 32], strides = [1, 1]} : vector<32x32xf32> to vector<8x32xf32>
    %cst_103 = arith.constant dense<0.000000e+00> : vector<72x32xf32>
    %244 = tpu.matmul %242, %243, %cst_103 {dimension_numbers = #tpu.dot_dimension_numbers<[1], [0], [0], [1], [0, 0, 1, 1], [], []>} : vector<72x8xf32>, vector<8x32xf32>, vector<72x32xf32> -> vector<72x32xf32>
    %245 = vector.extract_strided_slice %223 {offsets = [0, 8], sizes = [72, 8], strides = [1, 1]} : vector<72x96xf32> to vector<72x8xf32>
    %246 = vector.extract_strided_slice %223 {offsets = [0, 40], sizes = [72, 8], strides = [1, 1]} : vector<72x96xf32> to vector<72x8xf32>
    %247 = vector.extract_strided_slice %223 {offsets = [0, 72], sizes = [72, 8], strides = [1, 1]} : vector<72x96xf32> to vector<72x8xf32>
    %248 = tpu.transpose %246, [1, 0] : vector<72x8xf32> -> vector<8x72xf32>
    %cst_104 = arith.constant dense<0.000000e+00> : vector<72x72xf32>
    %249 = tpu.matmul %245, %248, %cst_104 {dimension_numbers = #tpu.dot_dimension_numbers<[1], [0], [0], [1], [0, 0, 1, 1], [], []>} : vector<72x8xf32>, vector<8x72xf32>, vector<72x72xf32> -> vector<72x72xf32>
    %cst_105 = arith.constant 0.353553385 : f32
    %250 = vector.broadcast %cst_105 : f32 to vector<72x72xf32>
    %251 = arith.mulf %249, %250 : vector<72x72xf32>
    %252 = arith.addf %251, %220 : vector<72x72xf32>
    %cst_106 = arith.constant dense<0xFF800000> : vector<72xf32>
    %253 = vector.multi_reduction <maximumf>, %252, %cst_106 [1] : vector<72x72xf32> to vector<72xf32>
    %254 = vector.shape_cast %253 : vector<72xf32> to vector<72x1xf32>
    %255 = vector.broadcast %254 : vector<72x1xf32> to vector<72x72xf32>
    %256 = arith.subf %252, %255 : vector<72x72xf32>
    %257 = math.exp %256 : vector<72x72xf32>
    %cst_107 = arith.constant dense<0.000000e+00> : vector<72xf32>
    %258 = vector.multi_reduction <add>, %257, %cst_107 [1] : vector<72x72xf32> to vector<72xf32>
    %259 = vector.shape_cast %258 : vector<72xf32> to vector<72x1xf32>
    %260 = tpu.reciprocal %259 {approx = true} : vector<72x1xf32> -> vector<72x1xf32>
    %261 = vector.broadcast %260 : vector<72x1xf32> to vector<72x72xf32>
    %262 = arith.mulf %257, %261 : vector<72x72xf32>
    %cst_108 = arith.constant dense<0.000000e+00> : vector<72x8xf32>
    %263 = tpu.matmul %262, %247, %cst_108 {dimension_numbers = #tpu.dot_dimension_numbers<[1], [0], [0], [1], [0, 0, 1, 1], [], []>} : vector<72x72xf32>, vector<72x8xf32>, vector<72x8xf32> -> vector<72x8xf32>
    %264 = vector.extract_strided_slice %17 {offsets = [8, 0], sizes = [8, 32], strides = [1, 1]} : vector<32x32xf32> to vector<8x32xf32>
    %cst_109 = arith.constant dense<0.000000e+00> : vector<72x32xf32>
    %265 = tpu.matmul %263, %264, %cst_109 {dimension_numbers = #tpu.dot_dimension_numbers<[1], [0], [0], [1], [0, 0, 1, 1], [], []>} : vector<72x8xf32>, vector<8x32xf32>, vector<72x32xf32> -> vector<72x32xf32>
    %266 = arith.addf %244, %265 : vector<72x32xf32>
    %267 = vector.extract_strided_slice %223 {offsets = [0, 16], sizes = [72, 8], strides = [1, 1]} : vector<72x96xf32> to vector<72x8xf32>
    %268 = vector.extract_strided_slice %223 {offsets = [0, 48], sizes = [72, 8], strides = [1, 1]} : vector<72x96xf32> to vector<72x8xf32>
    %269 = vector.extract_strided_slice %223 {offsets = [0, 80], sizes = [72, 8], strides = [1, 1]} : vector<72x96xf32> to vector<72x8xf32>
    %270 = tpu.transpose %268, [1, 0] : vector<72x8xf32> -> vector<8x72xf32>
    %cst_110 = arith.constant dense<0.000000e+00> : vector<72x72xf32>
    %271 = tpu.matmul %267, %270, %cst_110 {dimension_numbers = #tpu.dot_dimension_numbers<[1], [0], [0], [1], [0, 0, 1, 1], [], []>} : vector<72x8xf32>, vector<8x72xf32>, vector<72x72xf32> -> vector<72x72xf32>
    %cst_111 = arith.constant 0.353553385 : f32
    %272 = vector.broadcast %cst_111 : f32 to vector<72x72xf32>
    %273 = arith.mulf %271, %272 : vector<72x72xf32>
    %274 = arith.addf %273, %220 : vector<72x72xf32>
    %cst_112 = arith.constant dense<0xFF800000> : vector<72xf32>
    %275 = vector.multi_reduction <maximumf>, %274, %cst_112 [1] : vector<72x72xf32> to vector<72xf32>
    %276 = vector.shape_cast %275 : vector<72xf32> to vector<72x1xf32>
    %277 = vector.broadcast %276 : vector<72x1xf32> to vector<72x72xf32>
    %278 = arith.subf %274, %277 : vector<72x72xf32>
    %279 = math.exp %278 : vector<72x72xf32>
    %cst_113 = arith.constant dense<0.000000e+00> : vector<72xf32>
    %280 = vector.multi_reduction <add>, %279, %cst_113 [1] : vector<72x72xf32> to vector<72xf32>
    %281 = vector.shape_cast %280 : vector<72xf32> to vector<72x1xf32>
    %282 = tpu.reciprocal %281 {approx = true} : vector<72x1xf32> -> vector<72x1xf32>
    %283 = vector.broadcast %282 : vector<72x1xf32> to vector<72x72xf32>
    %284 = arith.mulf %279, %283 : vector<72x72xf32>
    %cst_114 = arith.constant dense<0.000000e+00> : vector<72x8xf32>
    %285 = tpu.matmul %284, %269, %cst_114 {dimension_numbers = #tpu.dot_dimension_numbers<[1], [0], [0], [1], [0, 0, 1, 1], [], []>} : vector<72x72xf32>, vector<72x8xf32>, vector<72x8xf32> -> vector<72x8xf32>
    %286 = vector.extract_strided_slice %17 {offsets = [16, 0], sizes = [8, 32], strides = [1, 1]} : vector<32x32xf32> to vector<8x32xf32>
    %cst_115 = arith.constant dense<0.000000e+00> : vector<72x32xf32>
    %287 = tpu.matmul %285, %286, %cst_115 {dimension_numbers = #tpu.dot_dimension_numbers<[1], [0], [0], [1], [0, 0, 1, 1], [], []>} : vector<72x8xf32>, vector<8x32xf32>, vector<72x32xf32> -> vector<72x32xf32>
    %288 = arith.addf %266, %287 : vector<72x32xf32>
    %289 = vector.extract_strided_slice %223 {offsets = [0, 24], sizes = [72, 8], strides = [1, 1]} : vector<72x96xf32> to vector<72x8xf32>
    %290 = vector.extract_strided_slice %223 {offsets = [0, 56], sizes = [72, 8], strides = [1, 1]} : vector<72x96xf32> to vector<72x8xf32>
    %291 = vector.extract_strided_slice %223 {offsets = [0, 88], sizes = [72, 8], strides = [1, 1]} : vector<72x96xf32> to vector<72x8xf32>
    %292 = tpu.transpose %290, [1, 0] : vector<72x8xf32> -> vector<8x72xf32>
    %cst_116 = arith.constant dense<0.000000e+00> : vector<72x72xf32>
    %293 = tpu.matmul %289, %292, %cst_116 {dimension_numbers = #tpu.dot_dimension_numbers<[1], [0], [0], [1], [0, 0, 1, 1], [], []>} : vector<72x8xf32>, vector<8x72xf32>, vector<72x72xf32> -> vector<72x72xf32>
    %cst_117 = arith.constant 0.353553385 : f32
    %294 = vector.broadcast %cst_117 : f32 to vector<72x72xf32>
    %295 = arith.mulf %293, %294 : vector<72x72xf32>
    %296 = arith.addf %295, %220 : vector<72x72xf32>
    %cst_118 = arith.constant dense<0xFF800000> : vector<72xf32>
    %297 = vector.multi_reduction <maximumf>, %296, %cst_118 [1] : vector<72x72xf32> to vector<72xf32>
    %298 = vector.shape_cast %297 : vector<72xf32> to vector<72x1xf32>
    %299 = vector.broadcast %298 : vector<72x1xf32> to vector<72x72xf32>
    %300 = arith.subf %296, %299 : vector<72x72xf32>
    %301 = math.exp %300 : vector<72x72xf32>
    %cst_119 = arith.constant dense<0.000000e+00> : vector<72xf32>
    %302 = vector.multi_reduction <add>, %301, %cst_119 [1] : vector<72x72xf32> to vector<72xf32>
    %303 = vector.shape_cast %302 : vector<72xf32> to vector<72x1xf32>
    %304 = tpu.reciprocal %303 {approx = true} : vector<72x1xf32> -> vector<72x1xf32>
    %305 = vector.broadcast %304 : vector<72x1xf32> to vector<72x72xf32>
    %306 = arith.mulf %301, %305 : vector<72x72xf32>
    %cst_120 = arith.constant dense<0.000000e+00> : vector<72x8xf32>
    %307 = tpu.matmul %306, %291, %cst_120 {dimension_numbers = #tpu.dot_dimension_numbers<[1], [0], [0], [1], [0, 0, 1, 1], [], []>} : vector<72x72xf32>, vector<72x8xf32>, vector<72x8xf32> -> vector<72x8xf32>
    %308 = vector.extract_strided_slice %17 {offsets = [24, 0], sizes = [8, 32], strides = [1, 1]} : vector<32x32xf32> to vector<8x32xf32>
    %cst_121 = arith.constant dense<0.000000e+00> : vector<72x32xf32>
    %309 = tpu.matmul %307, %308, %cst_121 {dimension_numbers = #tpu.dot_dimension_numbers<[1], [0], [0], [1], [0, 0, 1, 1], [], []>} : vector<72x8xf32>, vector<8x32xf32>, vector<72x32xf32> -> vector<72x32xf32>
    %310 = arith.addf %288, %309 : vector<72x32xf32>
    %311 = vector.broadcast %15 : vector<1x32xf32> to vector<72x32xf32>
    %312 = arith.addf %310, %311 : vector<72x32xf32>
    %313 = arith.addf %219, %312 : vector<72x32xf32>
    %cst_122 = arith.constant dense<0.000000e+00> : vector<72xf32>
    %314 = vector.multi_reduction <add>, %313, %cst_122 [1] : vector<72x32xf32> to vector<72xf32>
    %315 = vector.shape_cast %314 : vector<72xf32> to vector<72x1xf32>
    %cst_123 = arith.constant 3.200000e+01 : f32
    %316 = vector.broadcast %cst_123 : f32 to vector<72x1xf32>
    %317 = arith.divf %315, %316 : vector<72x1xf32>
    %318 = vector.broadcast %317 : vector<72x1xf32> to vector<72x32xf32>
    %319 = arith.subf %313, %318 : vector<72x32xf32>
    %320 = arith.mulf %319, %319 : vector<72x32xf32>
    %cst_124 = arith.constant dense<0.000000e+00> : vector<72xf32>
    %321 = vector.multi_reduction <add>, %320, %cst_124 [1] : vector<72x32xf32> to vector<72xf32>
    %322 = vector.shape_cast %321 : vector<72xf32> to vector<72x1xf32>
    %cst_125 = arith.constant 3.200000e+01 : f32
    %323 = vector.broadcast %cst_125 : f32 to vector<72x1xf32>
    %324 = arith.divf %322, %323 : vector<72x1xf32>
    %cst_126 = arith.constant 9.99999974E-6 : f32
    %325 = vector.broadcast %cst_126 : f32 to vector<72x1xf32>
    %326 = arith.addf %324, %325 : vector<72x1xf32>
    %327 = math.rsqrt %326 : vector<72x1xf32>
    %328 = vector.broadcast %327 : vector<72x1xf32> to vector<72x32xf32>
    %329 = arith.mulf %319, %328 : vector<72x32xf32>
    %330 = vector.broadcast %10 : vector<1x32xf32> to vector<72x32xf32>
    %331 = arith.mulf %329, %330 : vector<72x32xf32>
    %332 = vector.broadcast %9 : vector<1x32xf32> to vector<72x32xf32>
    %333 = arith.addf %331, %332 : vector<72x32xf32>
    %cst_127 = arith.constant dense<0.000000e+00> : vector<72x32xf32>
    %334 = tpu.matmul %333, %8, %cst_127 {dimension_numbers = #tpu.dot_dimension_numbers<[1], [0], [0], [1], [0, 0, 1, 1], [], []>} : vector<72x32xf32>, vector<32x32xf32>, vector<72x32xf32> -> vector<72x32xf32>
    %335 = vector.broadcast %5 : vector<1x32xf32> to vector<72x32xf32>
    %336 = arith.addf %334, %335 : vector<72x32xf32>
    %cst_128 = arith.constant dense<0.000000e+00> : vector<8x64xf32>
    %337 = tpu.matmul %0, %6, %cst_128 {dimension_numbers = #tpu.dot_dimension_numbers<[1], [0], [0], [1], [0, 0, 1, 1], [], []>} : vector<8x32xf32>, vector<32x64xf32>, vector<8x64xf32> -> vector<8x64xf32>
    %338 = vector.broadcast %3 : vector<1x64xf32> to vector<8x64xf32>
    %339 = arith.addf %337, %338 : vector<8x64xf32>
    %340 = vector.extract_strided_slice %336 {offsets = [0, 0], sizes = [72, 8], strides = [1, 1]} : vector<72x32xf32> to vector<72x8xf32>
    %341 = vector.extract_strided_slice %339 {offsets = [0, 0], sizes = [8, 8], strides = [1, 1]} : vector<8x64xf32> to vector<8x8xf32>
    %342 = vector.extract_strided_slice %339 {offsets = [0, 32], sizes = [8, 8], strides = [1, 1]} : vector<8x64xf32> to vector<8x8xf32>
    %343 = tpu.transpose %341, [1, 0] : vector<8x8xf32> -> vector<8x8xf32>
    %cst_129 = arith.constant dense<0.000000e+00> : vector<72x8xf32>
    %344 = tpu.matmul %340, %343, %cst_129 {dimension_numbers = #tpu.dot_dimension_numbers<[1], [0], [0], [1], [0, 0, 1, 1], [], []>} : vector<72x8xf32>, vector<8x8xf32>, vector<72x8xf32> -> vector<72x8xf32>
    %cst_130 = arith.constant 0.353553385 : f32
    %345 = vector.broadcast %cst_130 : f32 to vector<72x8xf32>
    %346 = arith.mulf %344, %345 : vector<72x8xf32>
    %cst_131 = arith.constant dense<0xFF800000> : vector<72xf32>
    %347 = vector.multi_reduction <maximumf>, %346, %cst_131 [1] : vector<72x8xf32> to vector<72xf32>
    %348 = vector.shape_cast %347 : vector<72xf32> to vector<72x1xf32>
    %349 = vector.broadcast %348 : vector<72x1xf32> to vector<72x8xf32>
    %350 = arith.subf %346, %349 : vector<72x8xf32>
    %351 = math.exp %350 : vector<72x8xf32>
    %cst_132 = arith.constant dense<0.000000e+00> : vector<72xf32>
    %352 = vector.multi_reduction <add>, %351, %cst_132 [1] : vector<72x8xf32> to vector<72xf32>
    %353 = vector.shape_cast %352 : vector<72xf32> to vector<72x1xf32>
    %354 = tpu.reciprocal %353 {approx = true} : vector<72x1xf32> -> vector<72x1xf32>
    %355 = vector.broadcast %354 : vector<72x1xf32> to vector<72x8xf32>
    %356 = arith.mulf %351, %355 : vector<72x8xf32>
    %cst_133 = arith.constant dense<0.000000e+00> : vector<72x8xf32>
    %357 = tpu.matmul %356, %342, %cst_133 {dimension_numbers = #tpu.dot_dimension_numbers<[1], [0], [0], [1], [0, 0, 1, 1], [], []>} : vector<72x8xf32>, vector<8x8xf32>, vector<72x8xf32> -> vector<72x8xf32>
    %358 = vector.extract_strided_slice %7 {offsets = [0, 0], sizes = [8, 32], strides = [1, 1]} : vector<32x32xf32> to vector<8x32xf32>
    %cst_134 = arith.constant dense<0.000000e+00> : vector<72x32xf32>
    %359 = tpu.matmul %357, %358, %cst_134 {dimension_numbers = #tpu.dot_dimension_numbers<[1], [0], [0], [1], [0, 0, 1, 1], [], []>} : vector<72x8xf32>, vector<8x32xf32>, vector<72x32xf32> -> vector<72x32xf32>
    %360 = vector.extract_strided_slice %336 {offsets = [0, 8], sizes = [72, 8], strides = [1, 1]} : vector<72x32xf32> to vector<72x8xf32>
    %361 = vector.extract_strided_slice %339 {offsets = [0, 8], sizes = [8, 8], strides = [1, 1]} : vector<8x64xf32> to vector<8x8xf32>
    %362 = vector.extract_strided_slice %339 {offsets = [0, 40], sizes = [8, 8], strides = [1, 1]} : vector<8x64xf32> to vector<8x8xf32>
    %363 = tpu.transpose %361, [1, 0] : vector<8x8xf32> -> vector<8x8xf32>
    %cst_135 = arith.constant dense<0.000000e+00> : vector<72x8xf32>
    %364 = tpu.matmul %360, %363, %cst_135 {dimension_numbers = #tpu.dot_dimension_numbers<[1], [0], [0], [1], [0, 0, 1, 1], [], []>} : vector<72x8xf32>, vector<8x8xf32>, vector<72x8xf32> -> vector<72x8xf32>
    %cst_136 = arith.constant 0.353553385 : f32
    %365 = vector.broadcast %cst_136 : f32 to vector<72x8xf32>
    %366 = arith.mulf %364, %365 : vector<72x8xf32>
    %cst_137 = arith.constant dense<0xFF800000> : vector<72xf32>
    %367 = vector.multi_reduction <maximumf>, %366, %cst_137 [1] : vector<72x8xf32> to vector<72xf32>
    %368 = vector.shape_cast %367 : vector<72xf32> to vector<72x1xf32>
    %369 = vector.broadcast %368 : vector<72x1xf32> to vector<72x8xf32>
    %370 = arith.subf %366, %369 : vector<72x8xf32>
    %371 = math.exp %370 : vector<72x8xf32>
    %cst_138 = arith.constant dense<0.000000e+00> : vector<72xf32>
    %372 = vector.multi_reduction <add>, %371, %cst_138 [1] : vector<72x8xf32> to vector<72xf32>
    %373 = vector.shape_cast %372 : vector<72xf32> to vector<72x1xf32>
    %374 = tpu.reciprocal %373 {approx = true} : vector<72x1xf32> -> vector<72x1xf32>
    %375 = vector.broadcast %374 : vector<72x1xf32> to vector<72x8xf32>
    %376 = arith.mulf %371, %375 : vector<72x8xf32>
    %cst_139 = arith.constant dense<0.000000e+00> : vector<72x8xf32>
    %377 = tpu.matmul %376, %362, %cst_139 {dimension_numbers = #tpu.dot_dimension_numbers<[1], [0], [0], [1], [0, 0, 1, 1], [], []>} : vector<72x8xf32>, vector<8x8xf32>, vector<72x8xf32> -> vector<72x8xf32>
    %378 = vector.extract_strided_slice %7 {offsets = [8, 0], sizes = [8, 32], strides = [1, 1]} : vector<32x32xf32> to vector<8x32xf32>
    %cst_140 = arith.constant dense<0.000000e+00> : vector<72x32xf32>
    %379 = tpu.matmul %377, %378, %cst_140 {dimension_numbers = #tpu.dot_dimension_numbers<[1], [0], [0], [1], [0, 0, 1, 1], [], []>} : vector<72x8xf32>, vector<8x32xf32>, vector<72x32xf32> -> vector<72x32xf32>
    %380 = arith.addf %359, %379 : vector<72x32xf32>
    %381 = vector.extract_strided_slice %336 {offsets = [0, 16], sizes = [72, 8], strides = [1, 1]} : vector<72x32xf32> to vector<72x8xf32>
    %382 = vector.extract_strided_slice %339 {offsets = [0, 16], sizes = [8, 8], strides = [1, 1]} : vector<8x64xf32> to vector<8x8xf32>
    %383 = vector.extract_strided_slice %339 {offsets = [0, 48], sizes = [8, 8], strides = [1, 1]} : vector<8x64xf32> to vector<8x8xf32>
    %384 = tpu.transpose %382, [1, 0] : vector<8x8xf32> -> vector<8x8xf32>
    %cst_141 = arith.constant dense<0.000000e+00> : vector<72x8xf32>
    %385 = tpu.matmul %381, %384, %cst_141 {dimension_numbers = #tpu.dot_dimension_numbers<[1], [0], [0], [1], [0, 0, 1, 1], [], []>} : vector<72x8xf32>, vector<8x8xf32>, vector<72x8xf32> -> vector<72x8xf32>
    %cst_142 = arith.constant 0.353553385 : f32
    %386 = vector.broadcast %cst_142 : f32 to vector<72x8xf32>
    %387 = arith.mulf %385, %386 : vector<72x8xf32>
    %cst_143 = arith.constant dense<0xFF800000> : vector<72xf32>
    %388 = vector.multi_reduction <maximumf>, %387, %cst_143 [1] : vector<72x8xf32> to vector<72xf32>
    %389 = vector.shape_cast %388 : vector<72xf32> to vector<72x1xf32>
    %390 = vector.broadcast %389 : vector<72x1xf32> to vector<72x8xf32>
    %391 = arith.subf %387, %390 : vector<72x8xf32>
    %392 = math.exp %391 : vector<72x8xf32>
    %cst_144 = arith.constant dense<0.000000e+00> : vector<72xf32>
    %393 = vector.multi_reduction <add>, %392, %cst_144 [1] : vector<72x8xf32> to vector<72xf32>
    %394 = vector.shape_cast %393 : vector<72xf32> to vector<72x1xf32>
    %395 = tpu.reciprocal %394 {approx = true} : vector<72x1xf32> -> vector<72x1xf32>
    %396 = vector.broadcast %395 : vector<72x1xf32> to vector<72x8xf32>
    %397 = arith.mulf %392, %396 : vector<72x8xf32>
    %cst_145 = arith.constant dense<0.000000e+00> : vector<72x8xf32>
    %398 = tpu.matmul %397, %383, %cst_145 {dimension_numbers = #tpu.dot_dimension_numbers<[1], [0], [0], [1], [0, 0, 1, 1], [], []>} : vector<72x8xf32>, vector<8x8xf32>, vector<72x8xf32> -> vector<72x8xf32>
    %399 = vector.extract_strided_slice %7 {offsets = [16, 0], sizes = [8, 32], strides = [1, 1]} : vector<32x32xf32> to vector<8x32xf32>
    %cst_146 = arith.constant dense<0.000000e+00> : vector<72x32xf32>
    %400 = tpu.matmul %398, %399, %cst_146 {dimension_numbers = #tpu.dot_dimension_numbers<[1], [0], [0], [1], [0, 0, 1, 1], [], []>} : vector<72x8xf32>, vector<8x32xf32>, vector<72x32xf32> -> vector<72x32xf32>
    %401 = arith.addf %380, %400 : vector<72x32xf32>
    %402 = vector.extract_strided_slice %336 {offsets = [0, 24], sizes = [72, 8], strides = [1, 1]} : vector<72x32xf32> to vector<72x8xf32>
    %403 = vector.extract_strided_slice %339 {offsets = [0, 24], sizes = [8, 8], strides = [1, 1]} : vector<8x64xf32> to vector<8x8xf32>
    %404 = vector.extract_strided_slice %339 {offsets = [0, 56], sizes = [8, 8], strides = [1, 1]} : vector<8x64xf32> to vector<8x8xf32>
    %405 = tpu.transpose %403, [1, 0] : vector<8x8xf32> -> vector<8x8xf32>
    %cst_147 = arith.constant dense<0.000000e+00> : vector<72x8xf32>
    %406 = tpu.matmul %402, %405, %cst_147 {dimension_numbers = #tpu.dot_dimension_numbers<[1], [0], [0], [1], [0, 0, 1, 1], [], []>} : vector<72x8xf32>, vector<8x8xf32>, vector<72x8xf32> -> vector<72x8xf32>
    %cst_148 = arith.constant 0.353553385 : f32
    %407 = vector.broadcast %cst_148 : f32 to vector<72x8xf32>
    %408 = arith.mulf %406, %407 : vector<72x8xf32>
    %cst_149 = arith.constant dense<0xFF800000> : vector<72xf32>
    %409 = vector.multi_reduction <maximumf>, %408, %cst_149 [1] : vector<72x8xf32> to vector<72xf32>
    %410 = vector.shape_cast %409 : vector<72xf32> to vector<72x1xf32>
    %411 = vector.broadcast %410 : vector<72x1xf32> to vector<72x8xf32>
    %412 = arith.subf %408, %411 : vector<72x8xf32>
    %413 = math.exp %412 : vector<72x8xf32>
    %cst_150 = arith.constant dense<0.000000e+00> : vector<72xf32>
    %414 = vector.multi_reduction <add>, %413, %cst_150 [1] : vector<72x8xf32> to vector<72xf32>
    %415 = vector.shape_cast %414 : vector<72xf32> to vector<72x1xf32>
    %416 = tpu.reciprocal %415 {approx = true} : vector<72x1xf32> -> vector<72x1xf32>
    %417 = vector.broadcast %416 : vector<72x1xf32> to vector<72x8xf32>
    %418 = arith.mulf %413, %417 : vector<72x8xf32>
    %cst_151 = arith.constant dense<0.000000e+00> : vector<72x8xf32>
    %419 = tpu.matmul %418, %404, %cst_151 {dimension_numbers = #tpu.dot_dimension_numbers<[1], [0], [0], [1], [0, 0, 1, 1], [], []>} : vector<72x8xf32>, vector<8x8xf32>, vector<72x8xf32> -> vector<72x8xf32>
    %420 = vector.extract_strided_slice %7 {offsets = [24, 0], sizes = [8, 32], strides = [1, 1]} : vector<32x32xf32> to vector<8x32xf32>
    %cst_152 = arith.constant dense<0.000000e+00> : vector<72x32xf32>
    %421 = tpu.matmul %419, %420, %cst_152 {dimension_numbers = #tpu.dot_dimension_numbers<[1], [0], [0], [1], [0, 0, 1, 1], [], []>} : vector<72x8xf32>, vector<8x32xf32>, vector<72x32xf32> -> vector<72x32xf32>
    %422 = arith.addf %401, %421 : vector<72x32xf32>
    %423 = vector.broadcast %4 : vector<1x32xf32> to vector<72x32xf32>
    %424 = arith.addf %422, %423 : vector<72x32xf32>
    %425 = arith.addf %333, %424 : vector<72x32xf32>
    %cst_153 = arith.constant dense<0.000000e+00> : vector<72xf32>
    %426 = vector.multi_reduction <add>, %425, %cst_153 [1] : vector<72x32xf32> to vector<72xf32>
    %427 = vector.shape_cast %426 : vector<72xf32> to vector<72x1xf32>
    %cst_154 = arith.constant 3.200000e+01 : f32
    %428 = vector.broadcast %cst_154 : f32 to vector<72x1xf32>
    %429 = arith.divf %427, %428 : vector<72x1xf32>
    %430 = vector.broadcast %429 : vector<72x1xf32> to vector<72x32xf32>
    %431 = arith.subf %425, %430 : vector<72x32xf32>
    %432 = arith.mulf %431, %431 : vector<72x32xf32>
    %cst_155 = arith.constant dense<0.000000e+00> : vector<72xf32>
    %433 = vector.multi_reduction <add>, %432, %cst_155 [1] : vector<72x32xf32> to vector<72xf32>
    %434 = vector.shape_cast %433 : vector<72xf32> to vector<72x1xf32>
    %cst_156 = arith.constant 3.200000e+01 : f32
    %435 = vector.broadcast %cst_156 : f32 to vector<72x1xf32>
    %436 = arith.divf %434, %435 : vector<72x1xf32>
    %cst_157 = arith.constant 9.99999974E-6 : f32
    %437 = vector.broadcast %cst_157 : f32 to vector<72x1xf32>
    %438 = arith.addf %436, %437 : vector<72x1xf32>
    %439 = math.rsqrt %438 : vector<72x1xf32>
    %440 = vector.broadcast %439 : vector<72x1xf32> to vector<72x32xf32>
    %441 = arith.mulf %431, %440 : vector<72x32xf32>
    %442 = vector.broadcast %12 : vector<1x32xf32> to vector<72x32xf32>
    %443 = arith.mulf %441, %442 : vector<72x32xf32>
    %444 = vector.broadcast %11 : vector<1x32xf32> to vector<72x32xf32>
    %445 = arith.addf %443, %444 : vector<72x32xf32>
    %cst_158 = arith.constant dense<0.000000e+00> : vector<72x64xf32>
    %446 = tpu.matmul %445, %19, %cst_158 {dimension_numbers = #tpu.dot_dimension_numbers<[1], [0], [0], [1], [0, 0, 1, 1], [], []>} : vector<72x32xf32>, vector<32x64xf32>, vector<72x64xf32> -> vector<72x64xf32>
    %447 = vector.broadcast %1 : vector<1x64xf32> to vector<72x64xf32>
    %448 = arith.addf %446, %447 : vector<72x64xf32>
    %449 = arith.mulf %448, %448 : vector<72x64xf32>
    %450 = arith.mulf %448, %449 : vector<72x64xf32>
    %cst_159 = arith.constant 4.471500e-02 : f32
    %451 = vector.broadcast %cst_159 : f32 to vector<72x64xf32>
    %452 = arith.mulf %451, %450 : vector<72x64xf32>
    %453 = arith.addf %448, %452 : vector<72x64xf32>
    %cst_160 = arith.constant 0.797884583 : f32
    %454 = vector.broadcast %cst_160 : f32 to vector<72x64xf32>
    %455 = arith.mulf %454, %453 : vector<72x64xf32>
    %456 = math.tanh %455 : vector<72x64xf32>
    %cst_161 = arith.constant 1.000000e+00 : f32
    %457 = vector.broadcast %cst_161 : f32 to vector<72x64xf32>
    %458 = arith.addf %457, %456 : vector<72x64xf32>
    %cst_162 = arith.constant 5.000000e-01 : f32
    %459 = vector.broadcast %cst_162 : f32 to vector<72x64xf32>
    %460 = arith.mulf %459, %458 : vector<72x64xf32>
    %461 = arith.mulf %448, %460 : vector<72x64xf32>
    %cst_163 = arith.constant dense<0.000000e+00> : vector<72x32xf32>
    %462 = tpu.matmul %461, %20, %cst_163 {dimension_numbers = #tpu.dot_dimension_numbers<[1], [0], [0], [1], [0, 0, 1, 1], [], []>} : vector<72x64xf32>, vector<64x32xf32>, vector<72x32xf32> -> vector<72x32xf32>
    %463 = vector.broadcast %2 : vector<1x32xf32> to vector<72x32xf32>
    %464 = arith.addf %462, %463 : vector<72x32xf32>
    %465 = arith.addf %445, %464 : vector<72x32xf32>
    %cst_164 = arith.constant dense<0.000000e+00> : vector<72xf32>
    %466 = vector.multi_reduction <add>, %465, %cst_164 [1] : vector<72x32xf32> to vector<72xf32>
    %467 = vector.shape_cast %466 : vector<72xf32> to vector<72x1xf32>
    %cst_165 = arith.constant 3.200000e+01 : f32
    %468 = vector.broadcast %cst_165 : f32 to vector<72x1xf32>
    %469 = arith.divf %467, %468 : vector<72x1xf32>
    %470 = vector.broadcast %469 : vector<72x1xf32> to vector<72x32xf32>
    %471 = arith.subf %465, %470 : vector<72x32xf32>
    %472 = arith.mulf %471, %471 : vector<72x32xf32>
    %cst_166 = arith.constant dense<0.000000e+00> : vector<72xf32>
    %473 = vector.multi_reduction <add>, %472, %cst_166 [1] : vector<72x32xf32> to vector<72xf32>
    %474 = vector.shape_cast %473 : vector<72xf32> to vector<72x1xf32>
    %cst_167 = arith.constant 3.200000e+01 : f32
    %475 = vector.broadcast %cst_167 : f32 to vector<72x1xf32>
    %476 = arith.divf %474, %475 : vector<72x1xf32>
    %cst_168 = arith.constant 9.99999974E-6 : f32
    %477 = vector.broadcast %cst_168 : f32 to vector<72x1xf32>
    %478 = arith.addf %476, %477 : vector<72x1xf32>
    %479 = math.rsqrt %478 : vector<72x1xf32>
    %480 = vector.broadcast %479 : vector<72x1xf32> to vector<72x32xf32>
    %481 = arith.mulf %471, %480 : vector<72x32xf32>
    %482 = vector.broadcast %14 : vector<1x32xf32> to vector<72x32xf32>
    %483 = arith.mulf %481, %482 : vector<72x32xf32>
    %484 = vector.broadcast %13 : vector<1x32xf32> to vector<72x32xf32>
    %485 = arith.addf %483, %484 : vector<72x32xf32>
    %cst_169 = arith.constant dense<0.000000e+00> : vector<72xf32>
    %486 = vector.multi_reduction <add>, %485, %cst_169 [1] : vector<72x32xf32> to vector<72xf32>
    %487 = vector.shape_cast %486 : vector<72xf32> to vector<72x1xf32>
    %cst_170 = arith.constant 3.200000e+01 : f32
    %488 = vector.broadcast %cst_170 : f32 to vector<72x1xf32>
    %489 = arith.divf %487, %488 : vector<72x1xf32>
    %490 = vector.broadcast %489 : vector<72x1xf32> to vector<72x32xf32>
    %491 = arith.subf %485, %490 : vector<72x32xf32>
    %492 = arith.mulf %491, %491 : vector<72x32xf32>
    %cst_171 = arith.constant dense<0.000000e+00> : vector<72xf32>
    %493 = vector.multi_reduction <add>, %492, %cst_171 [1] : vector<72x32xf32> to vector<72xf32>
    %494 = vector.shape_cast %493 : vector<72xf32> to vector<72x1xf32>
    %cst_172 = arith.constant 3.200000e+01 : f32
    %495 = vector.broadcast %cst_172 : f32 to vector<72x1xf32>
    %496 = arith.divf %494, %495 : vector<72x1xf32>
    %cst_173 = arith.constant 9.99999974E-6 : f32
    %497 = vector.broadcast %cst_173 : f32 to vector<72x1xf32>
    %498 = arith.addf %496, %497 : vector<72x1xf32>
    %499 = math.rsqrt %498 : vector<72x1xf32>
    %500 = vector.broadcast %499 : vector<72x1xf32> to vector<72x32xf32>
    %501 = arith.mulf %491, %500 : vector<72x32xf32>
    %502 = vector.broadcast %22 : vector<1x32xf32> to vector<72x32xf32>
    %503 = arith.mulf %501, %502 : vector<72x32xf32>
    %504 = vector.broadcast %21 : vector<1x32xf32> to vector<72x32xf32>
    %505 = arith.addf %503, %504 : vector<72x32xf32>
    %cst_174 = arith.constant dense<0.000000e+00> : vector<72x4xf32>
    %506 = tpu.matmul %505, %38, %cst_174 {dimension_numbers = #tpu.dot_dimension_numbers<[1], [0], [0], [1], [0, 0, 1, 1], [], []>} : vector<72x32xf32>, vector<32x4xf32>, vector<72x4xf32> -> vector<72x4xf32>
    %507 = vector.broadcast %37 : vector<1x4xf32> to vector<72x4xf32>
    %508 = arith.addf %506, %507 : vector<72x4xf32>
    %c0_175 = arith.constant 0 : index
    %c0_176 = arith.constant 0 : index
    %509 = vector.load %arg2[%c0_175, %c0_176] : memref<72x4xf32, #tpu.memory_space<vmem>>, vector<72x4xf32>
    %510 = arith.subf %508, %509 : vector<72x4xf32>
    %511 = arith.mulf %510, %510 : vector<72x4xf32>
    %cst_177 = arith.constant dense<0.000000e+00> : vector<72xf32>
    %512 = vector.multi_reduction <add>, %511, %cst_177 [1] : vector<72x4xf32> to vector<72xf32>
    %513 = vector.shape_cast %512 : vector<72xf32> to vector<72x1xf32>
    %cst_178 = arith.constant dense<0.000000e+00> : vector<1xf32>
    %514 = vector.multi_reduction <add>, %513, %cst_178 [0] : vector<72x1xf32> to vector<1xf32>
    %515 = vector.shape_cast %514 : vector<1xf32> to vector<1x1xf32>
    %cst_179 = arith.constant 2.880000e+02 : f32
    %516 = vector.broadcast %cst_179 : f32 to vector<1x1xf32>
    %517 = arith.divf %515, %516 : vector<1x1xf32>
    %c0_180 = arith.constant 0 : index
    %c0_181 = arith.constant 0 : index
    %518 = vector.load %arg7[%c0_180, %c0_181] : memref<1x1xf32, #tpu.memory_space<vmem>>, vector<1x1xf32>
    tpu.vector_store %arg7[%c0_180, %c0_181], %517 {strides = array<i32>} : memref<1x1xf32, #tpu.memory_space<vmem>>, vector<1x1xf32>,
    return
  }
}

</mosaic_0001>

<llo_original>
// kernel: forward.1
$region0: #{forward.1}
  #allocation0 [shape = 'u32[]', space=smem, size = 0x4, offset = 0x4, fixed_abs, tag = 'smem constant byte address 0x4 - core index']
  #allocation1 [shape = 'u32[144,128]{1,0:T(1,128)}', space=vmem, size = 0x12000, scoped, tag = 'internal scratch']
  %s0 = inlined_call_operand.vmem [shape: f32[36,4], index: 0, kind: input, shape index: {}]
  %s1 = inlined_call_operand.vmem [shape: f32[36,32], index: 1, kind: input, shape index: {}]
  %s2 = inlined_call_operand.vmem [shape: f32[72,4], index: 2, kind: input, shape index: {}]
  %s3 = inlined_call_operand.vmem [shape: f32[36,36], index: 3, kind: input, shape index: {}]
  %s4 = inlined_call_operand.vmem [shape: f32[72,72], index: 4, kind: input, shape index: {}]
  %s5 = inlined_call_operand.vmem [shape: f32[72,36], index: 5, kind: input, shape index: {}]
  %s6 = inlined_call_operand.vmem [shape: f32[672,96], index: 6, kind: input, shape index: {}]
  %s7 = inlined_call_operand.hbm [shape: f32[1,1], index: 7, kind: output, shape index: {}]
  %s8 = sld [smem:[#allocation0]]
  $region38: #{forward.1} parent=0
    _
  %s10 = ssub.s32 1, %s8
  %s11 = scalar_select 0, %s10, %s8
  $region1: #{forward.1} parent=0
    #allocation2 [shape = 'u8[512]{0}', space=vmem, size = 0x400, scoped, tag = 'output window, operand 0, single buffered']
    #allocation3 [shape = 's32[1]{0}', space=sflag, size = 0x4, scoped, tag = 'scoped memory for forward.1']
    %12 = vsyncpa [#allocation3], 0
    // Predicated region
    $region2: #{forward.1} parent=1 // pred_check
      _
    $region3: #{forward.1} parent=1 // pred_check_branch
      %14 = sbr.rel (0) target = $region5
    $region4: #{forward.1} parent=1 // pred_region
      _
    $region5: #{forward.1} parent=1 // pred_fallthru
      _
    // Predicated region
    $region6: #{forward.1} parent=1 // pred_check
      _
    $region7: #{forward.1} parent=1 // pred_check_branch
      %16 = sbr.rel (0) target = $region9
    $region8: #{forward.1} parent=1 // pred_region
      _
    $region9: #{forward.1} parent=1 // pred_fallthru
      _
    // Predicated region
    $region10: #{forward.1} parent=1 // pred_check
      _
    $region11: #{forward.1} parent=1 // pred_check_branch
      %18 = sbr.rel (0) target = $region13
    $region12: #{forward.1} parent=1 // pred_region
      _
    $region13: #{forward.1} parent=1 // pred_fallthru
      _
    // Predicated region
    $region14: #{forward.1} parent=1 // pred_check
      _
    $region15: #{forward.1} parent=1 // pred_check_branch
      %20 = sbr.rel (0) target = $region17
    $region16: #{forward.1} parent=1 // pred_region
      _
    $region17: #{forward.1} parent=1 // pred_fallthru
      _
    // Predicated region
    $region18: #{forward.1} parent=1 // pred_check
      _
    $region19: #{forward.1} parent=1 // pred_check_branch
      %22 = sbr.rel (0) target = $region21
    $region20: #{forward.1} parent=1 // pred_region
      _
    $region21: #{forward.1} parent=1 // pred_fallthru
      _
    // Predicated region
    $region22: #{forward.1} parent=1 // pred_check
      _
    $region23: #{forward.1} parent=1 // pred_check_branch
      %24 = sbr.rel (0) target = $region25
    $region24: #{forward.1} parent=1 // pred_region
      _
    $region25: #{forward.1} parent=1 // pred_fallthru
      _
    // Predicated region
    $region26: #{forward.1} parent=1 // pred_check
      _
    $region27: #{forward.1} parent=1 // pred_check_branch
      %26 = sbr.rel (0) target = $region29
    $region28: #{forward.1} parent=1 // pred_region
      _
    $region29: #{forward.1} parent=1 // pred_fallthru
      _
    %v27 = vld [vmem:[%s6] sm:$0xff]
    %v28 = vld [vmem:[%s6 + $0x8] sm:$0x1]
    %v29 = vld [vmem:[%s6 + $0x10] sm:$0x1]
    %v30 = vld [vmem:[%s6 + $0x18] sm:$0x1]
    %v31 = vld [vmem:[%s6 + $0x20] sm:$0x1]
    %v32 = vld [vmem:[%s6 + $0x28] sm:$0x1]
    %v33 = vld [vmem:[%s6 + $0x30] sm:$0xff]
    %v34 = vld [vmem:[%s6 + $0x38] sm:$0xff]
    %v35 = vld [vmem:[%s6 + $0x40] sm:$0xff]
    %v36 = vld [vmem:[%s6 + $0x48] sm:$0xff]
    %v37 = vld [vmem:[%s6 + $0x50] sm:$0xff]
    %v38 = vld [vmem:[%s6 + $0x58] sm:$0xff]
    %v39 = vld [vmem:[%s6 + $0x60] sm:$0xff]
    %v40 = vld [vmem:[%s6 + $0x68] sm:$0xff]
    %v41 = vld [vmem:[%s6 + $0x70] sm:$0xff]
    %v42 = vld [vmem:[%s6 + $0x78] sm:$0xff]
    %v43 = vld [vmem:[%s6 + $0x80] sm:$0xff]
    %v44 = vld [vmem:[%s6 + $0x88] sm:$0xff]
    %v45 = vld [vmem:[%s6 + $0x90] sm:$0x1]
    %v46 = vld [vmem:[%s6 + $0x98] sm:$0x1]
    %v47 = vld [vmem:[%s6 + $0xa0] sm:$0x1]
    %v48 = vld [vmem:[%s6 + $0xa8] sm:$0x1]
    %v49 = vld [vmem:[%s6 + $0xb0] sm:$0x1]
    %v50 = vld [vmem:[%s6 + $0xb8] sm:$0x1]
    %v51 = vld [vmem:[%s6 + $0xc0] sm:$0x1]
    %v52 = vld [vmem:[%s6 + $0xc8] sm:$0x1]
    %v53 = vld [vmem:[%s6 + $0xd0] sm:$0xff]
    %v54 = vld [vmem:[%s6 + $0xd8] sm:$0xff]
    %v55 = vld [vmem:[%s6 + $0xe0] sm:$0xff]
    %v56 = vld [vmem:[%s6 + $0xe8] sm:$0xff]
    %v57 = vld [vmem:[%s6 + $0xf0] sm:$0xff]
    %v58 = vld [vmem:[%s6 + $0xf8] sm:$0xff]
    %v59 = vld [vmem:[%s6 + $0x100] sm:$0xff]
    %v60 = vld [vmem:[%s6 + $0x108] sm:$0xff]
    %v61 = vld [vmem:[%s6 + $0x110] sm:$0xff]
    %v62 = vld [vmem:[%s6 + $0x118] sm:$0xff]
    %v63 = vld [vmem:[%s6 + $0x120] sm:$0xff]
    %v64 = vld [vmem:[%s6 + $0x128] sm:$0xff]
    %v65 = vld [vmem:[%s6 + $0x130] sm:$0xff]
    %v66 = vld [vmem:[%s6 + $0x138] sm:$0xff]
    %v67 = vld [vmem:[%s6 + $0x140] sm:$0xff]
    %v68 = vld [vmem:[%s6 + $0x148] sm:$0xff]
    %v69 = vld [vmem:[%s6 + $0x150] sm:$0xff]
    %v70 = vld [vmem:[%s6 + $0x158] sm:$0xff]
    %v71 = vld [vmem:[%s6 + $0x160] sm:$0xff]
    %v72 = vld [vmem:[%s6 + $0x168] sm:$0xff]
    %v73 = vld [vmem:[%s6 + $0x170] sm:$0x1]
    %v74 = vld [vmem:[%s6 + $0x178] sm:$0x1]
    %v75 = vld [vmem:[%s6 + $0x180] sm:$0x1]
    %v76 = vld [vmem:[%s6 + $0x188] sm:$0x1]
    %v77 = vld [vmem:[%s6 + $0x190] sm:$0x1]
    %v78 = vld [vmem:[%s6 + $0x198] sm:$0x1]
    %v79 = vld [vmem:[%s6 + $0x1a0] sm:$0x1]
    %v80 = vld [vmem:[%s6 + $0x1a8] sm:$0x1]
    %v81 = vld [vmem:[%s6 + $0x1b0] sm:$0x1]
    %v82 = vld [vmem:[%s6 + $0x1b8] sm:$0x1]
    %v83 = vld [vmem:[%s6 + $0x1c0] sm:$0xff]
    %v84 = vld [vmem:[%s6 + $0x1c8] sm:$0xff]
    %v85 = vld [vmem:[%s6 + $0x1d0] sm:$0xff]
    %v86 = vld [vmem:[%s6 + $0x1d8] sm:$0xff]
    %v87 = vld [vmem:[%s6 + $0x1e0] sm:$0xff]
    %v88 = vld [vmem:[%s6 + $0x1e8] sm:$0xff]
    %v89 = vld [vmem:[%s6 + $0x1f0] sm:$0xff]
    %v90 = vld [vmem:[%s6 + $0x1f8] sm:$0xff]
    %v91 = vld [vmem:[%s6 + $0x200] sm:$0xff]
    %v92 = vld [vmem:[%s6 + $0x208] sm:$0xff]
    %v93 = vld [vmem:[%s6 + $0x210] sm:$0xff]
    %v94 = vld [vmem:[%s6 + $0x218] sm:$0xff]
    %v95 = vld [vmem:[%s6 + $0x220] sm:$0xff]
    %v96 = vld [vmem:[%s6 + $0x228] sm:$0xff]
    %v97 = vld [vmem:[%s6 + $0x230] sm:$0xff]
    %v98 = vld [vmem:[%s6 + $0x238] sm:$0xff]
    %v99 = vld [vmem:[%s6 + $0x240] sm:$0xff]
    %v100 = vld [vmem:[%s6 + $0x248] sm:$0xff]
    %v101 = vld [vmem:[%s6 + $0x250] sm:$0xff]
    %v102 = vld [vmem:[%s6 + $0x258] sm:$0xff]
    %v103 = vld [vmem:[%s6 + $0x260] sm:$0x1]
    %v104 = vld [vmem:[%s6 + $0x268] sm:$0x1]
    %v105 = vld [vmem:[%s6 + $0x270] sm:$0x1]
    %v106 = vld [vmem:[%s6 + $0x278] sm:$0xff]
    %v107 = vld [vmem:[%s6 + $0x280] sm:$0xff]
    %v108 = vld [vmem:[%s6 + $0x288] sm:$0xff]
    %v109 = vld [vmem:[%s6 + $0x290] sm:$0xff]
    %v110 = vld [vmem:[%s6 + $0x298] sm:$0xf]
    %v111 = vld [vmem:[%s0] sm:$0xff]
    %v112 = vld [vmem:[%s0 + $0x8] sm:$0xff]
    %v113 = vld [vmem:[%s0 + $0x10] sm:$0xff]
    %v114 = vld [vmem:[%s0 + $0x18] sm:$0xff]
    %v115 = vld [vmem:[%s0 + $0x20] sm:$0xf]
    %v116 = vld [vmem:[%s1] sm:$0xff]
    %v117 = vld [vmem:[%s1 + $0x8] sm:$0xff]
    %v118 = vld [vmem:[%s1 + $0x10] sm:$0xff]
    %v119 = vld [vmem:[%s1 + $0x18] sm:$0xff]
    %v120 = vld [vmem:[%s1 + $0x20] sm:$0xf]
    %vm121 = vcmask 31744
    %v123 = vsel %vm121, %v111, 0
    %v126 = vsel %vm121, %v112, 0
    %v129 = vsel %vm121, %v113, 0
    %v132 = vsel %vm121, %v114, 0
    %v135 = vsel %vm121, %v115, 0
    %vm137 = vcmask 1043456
    %v139 = vsel %vm137, %v110, 0
    %141 = vmatprep.subr.mxu0 0.0
    %142 = vmatpush1.msra.mxu0 %v139
    %143 = vmatprep.subr.mxu0 0.0
    %144 = vmatpush1.msra.mxu0 0.0
    %145 = vmatprep.subr.mxu0 0.0
    %146 = vmatpush1.msra.mxu0 0.0
    %147 = vmatprep.subr.mxu0 0.0
    %148 = vmatpush1.msra.mxu0 0.0
    %149 = vmatprep.subr.mxu0 0.0
    %150 = vmatpush1.msra.mxu0 0.0
    %151 = vmatprep.subr.mxu0 0.0
    %152 = vmatpush1.msra.mxu0 0.0
    %153 = vmatprep.subr.mxu0 0.0
    %154 = vmatpush1.msra.mxu0 0.0
    %155 = vmatprep.subr.mxu0 0.0
    %156 = vmatpush1.msra.mxu0 0.0
    %157 = vmatprep.subr.mxu0 0.0
    %158 = vmatpush1.msra.mxu0 0.0
    %159 = vmatprep.subr.mxu0 0.0
    %160 = vmatpush1.msra.mxu0 0.0
    %161 = vmatprep.subr.mxu0 0.0
    %162 = vmatpush1.msra.mxu0 0.0
    %163 = vmatprep.subr.mxu0 0.0
    %164 = vmatpush1.msra.mxu0 0.0
    %165 = vmatprep.subr.mxu0 0.0
    %166 = vmatpush1.msra.mxu0 0.0
    %167 = vmatprep.subr.mxu0 0.0
    %168 = vmatpush1.msra.mxu0 0.0
    %169 = vmatprep.subr.mxu0 0.0
    %170 = vmatpush1.msra.mxu0 0.0
    %171 = vmatprep.subr.mxu0 0.0
    %172 = vmatpush1.msra.mxu0 0.0
    %173 = vmatprep.subr.mxu0 0.0
    %174 = vmatpush1.msra.mxu0 0.0
    %175 = vmatprep.subr.mxu0 0.0
    %176 = vmatpush1.msra.mxu0 0.0
    %177 = vmatprep.subr.mxu0 0.0
    %178 = vmatpush1.msra.mxu0 0.0
    %179 = vmatprep.subr.mxu0 0.0
    %180 = vmatpush1.msra.mxu0 0.0
    %181 = vmatprep.subr.mxu0 0.0
    %182 = vmatpush1.msra.mxu0 0.0
    %183 = vmatprep.subr.mxu0 0.0
    %184 = vmatpush1.msra.mxu0 0.0
    %185 = vmatprep.subr.mxu0 0.0
    %186 = vmatpush1.msra.mxu0 0.0
    %187 = vmatprep.subr.mxu0 0.0
    %188 = vmatpush1.msra.mxu0 0.0
    %189 = vmatprep.subr.mxu0 0.0
    %190 = vmatpush1.msra.mxu0 0.0
    %191 = vmatprep.subr.mxu0 0.0
    %192 = vmatpush1.msra.mxu0 0.0
    %193 = vmatprep.subr.mxu0 0.0
    %194 = vmatpush1.msra.mxu0 0.0
    %195 = vmatprep.subr.mxu0 0.0
    %196 = vmatpush1.msra.mxu0 0.0
    %197 = vmatprep.subr.mxu0 0.0
    %198 = vmatpush1.msra.mxu0 0.0
    %199 = vmatprep.subr.mxu0 0.0
    %200 = vmatpush1.msra.mxu0 0.0
    %201 = vmatprep.subr.mxu0 0.0
    %202 = vmatpush1.msra.mxu0 0.0
    %203 = vmatprep.subr.mxu0 0.0
    %204 = vmatpush1.msra.mxu0 0.0
    %205 = vmatprep.mubr.f32.mxu0 0.0
    %206 = vmatmul.mubr.f32.gmra.mrb[0].mxu0 %v123
    %v207 = vpop.f32.mrb[0].mxu0
    %v208 = vadd.f32 %v116, %v207
    %v209 = vpop.f32.mrb[0].mxu0
    %210 = vmatprep.mubr.f32.mxu0 0.0
    %211 = vmatmul.mubr.f32.gmra.mrb[0].mxu0 %v126
    %v212 = vpop.f32.mrb[0].mxu0
    %v213 = vadd.f32 %v117, %v212
    %v214 = vpop.f32.mrb[0].mxu0
    %215 = vmatprep.mubr.f32.mxu0 0.0
    %216 = vmatmul.mubr.f32.gmra.mrb[0].mxu0 %v129
    %v217 = vpop.f32.mrb[0].mxu0
    %v218 = vadd.f32 %v118, %v217
    %v219 = vpop.f32.mrb[0].mxu0
    %220 = vmatprep.mubr.f32.mxu0 0.0
    %221 = vmatmul.mubr.f32.gmra.mrb[0].mxu0 %v132
    %v222 = vpop.f32.mrb[0].mxu0
    %v223 = vadd.f32 %v119, %v222
    %v224 = vpop.f32.mrb[0].mxu0
    %225 = vmatprep.mubr.f32.mxu0 0.0
    %226 = vmatmul.mubr.f32.gmra.mrb[0].mxu0 %v135
    %v227 = vpop.f32.mrb[0].mxu0
    %v228 = vadd.f32 %v120, %v227
    %v229 = vpop.f32.mrb[0].mxu0
    %230 = vdwg.mxu0
    %v231 = vld [vmem:[%s3] sm:$0xff]
    %v232 = vld [vmem:[%s3 + $0x8] sm:$0xff]
    %v233 = vld [vmem:[%s3 + $0x10] sm:$0xff]
    %v234 = vld [vmem:[%s3 + $0x18] sm:$0xff]
    %v235 = vld [vmem:[%s3 + $0x20] sm:$0xf]
    %v236 = vlaneseq
    %v237 = vshrl.u32 %v236, 7
    %v238 = vsub.s32 0, %v237
    %v239 = vrot.slane %v78, %v238
    %vm240 = vcmask 261120
    %v242 = vsel %vm240, %v208, 0
    %v245 = vsel %vm240, %v213, 0
    %v248 = vsel %vm240, %v218, 0
    %v251 = vsel %vm240, %v223, 0
    %v254 = vsel %vm240, %v228, 0
    %256 = vmatprep.subr.mxu0 0.0
    %257 = vmatpush1.msra.mxu0 %v99
    %258 = vmatprep.subr.mxu0 0.0
    %259 = vmatpush1.msra.mxu0 %v100
    %260 = vmatprep.subr.mxu0 0.0
    %261 = vmatpush1.msra.mxu0 %v101
    %262 = vmatprep.subr.mxu0 0.0
    %263 = vmatpush1.msra.mxu0 %v102
    %264 = vmatprep.subr.mxu0 0.0
    %265 = vmatpush1.msra.mxu0 0.0
    %266 = vmatprep.subr.mxu0 0.0
    %267 = vmatpush1.msra.mxu0 0.0
    %268 = vmatprep.subr.mxu0 0.0
    %269 = vmatpush1.msra.mxu0 0.0
    %270 = vmatprep.subr.mxu0 0.0
    %271 = vmatpush1.msra.mxu0 0.0
    %272 = vmatprep.subr.mxu0 0.0
    %273 = vmatpush1.msra.mxu0 0.0
    %274 = vmatprep.subr.mxu0 0.0
    %275 = vmatpush1.msra.mxu0 0.0
    %276 = vmatprep.subr.mxu0 0.0
    %277 = vmatpush1.msra.mxu0 0.0
    %278 = vmatprep.subr.mxu0 0.0
    %279 = vmatpush1.msra.mxu0 0.0
    %280 = vmatprep.subr.mxu0 0.0
    %281 = vmatpush1.msra.mxu0 0.0
    %282 = vmatprep.subr.mxu0 0.0
    %283 = vmatpush1.msra.mxu0 0.0
    %284 = vmatprep.subr.mxu0 0.0
    %285 = vmatpush1.msra.mxu0 0.0
    %286 = vmatprep.subr.mxu0 0.0
    %287 = vmatpush1.msra.mxu0 0.0
    %288 = vmatprep.subr.mxu0 0.0
    %289 = vmatpush1.msra.mxu0 0.0
    %290 = vmatprep.subr.mxu0 0.0
    %291 = vmatpush1.msra.mxu0 0.0
    %292 = vmatprep.subr.mxu0 0.0
    %293 = vmatpush1.msra.mxu0 0.0
    %294 = vmatprep.subr.mxu0 0.0
    %295 = vmatpush1.msra.mxu0 0.0
    %296 = vmatprep.subr.mxu0 0.0
    %297 = vmatpush1.msra.mxu0 0.0
    %298 = vmatprep.subr.mxu0 0.0
    %299 = vmatpush1.msra.mxu0 0.0
    %300 = vmatprep.subr.mxu0 0.0
    %301 = vmatpush1.msra.mxu0 0.0
    %302 = vmatprep.subr.mxu0 0.0
    %303 = vmatpush1.msra.mxu0 0.0
    %304 = vmatprep.subr.mxu0 0.0
    %305 = vmatpush1.msra.mxu0 0.0
    %306 = vmatprep.subr.mxu0 0.0
    %307 = vmatpush1.msra.mxu0 0.0
    %308 = vmatprep.subr.mxu0 0.0
    %309 = vmatpush1.msra.mxu0 0.0
    %310 = vmatprep.subr.mxu0 0.0
    %311 = vmatpush1.msra.mxu0 0.0
    %312 = vmatprep.subr.mxu0 0.0
    %313 = vmatpush1.msra.mxu0 0.0
    %314 = vmatprep.subr.mxu0 0.0
    %315 = vmatpush1.msra.mxu0 0.0
    %316 = vmatprep.subr.mxu0 0.0
    %317 = vmatpush1.msra.mxu0 0.0
    %318 = vmatprep.subr.mxu0 0.0
    %319 = vmatpush1.msra.mxu0 0.0
    %320 = vmatprep.mubr.f32.mxu0 0.0
    %321 = vmatmul.mubr.f32.gmra.mrb[0].mxu0 %v242
    %v322 = vpop.f32.mrb[0].mxu0
    %v323 = vadd.f32 %v239, %v322
    %v324 = vpop.f32.mrb[0].mxu0
    %325 = vmatprep.mubr.f32.mxu0 0.0
    %326 = vmatmul.mubr.f32.gmra.mrb[0].mxu0 %v245
    %v327 = vpop.f32.mrb[0].mxu0
    %v328 = vadd.f32 %v239, %v327
    %v329 = vpop.f32.mrb[0].mxu0
    %330 = vmatprep.mubr.f32.mxu0 0.0
    %331 = vmatmul.mubr.f32.gmra.mrb[0].mxu0 %v248
    %v332 = vpop.f32.mrb[0].mxu0
    %v333 = vadd.f32 %v239, %v332
    %v334 = vpop.f32.mrb[0].mxu0
    %335 = vmatprep.mubr.f32.mxu0 0.0
    %336 = vmatmul.mubr.f32.gmra.mrb[0].mxu0 %v251
    %v337 = vpop.f32.mrb[0].mxu0
    %v338 = vadd.f32 %v239, %v337
    %v339 = vpop.f32.mrb[0].mxu0
    %340 = vmatprep.mubr.f32.mxu0 0.0
    %341 = vmatmul.mubr.f32.gmra.mrb[0].mxu0 %v254
    %v342 = vpop.f32.mrb[0].mxu0
    %v343 = vadd.f32 %v239, %v342
    %v344 = vpop.f32.mrb[0].mxu0
    %345 = vdwg.mxu0
    %351 = vrot.lane.b32.xlu0 %v323, 96
    %v352 = vpop.permute.xlu0 %351
    %353 = vrot.lane.b32.xlu0 %v328, 96
    %v354 = vpop.permute.xlu0 %353
    %355 = vrot.lane.b32.xlu0 %v333, 96
    %v356 = vpop.permute.xlu0 %355
    %357 = vrot.lane.b32.xlu0 %v338, 96
    %v358 = vpop.permute.xlu0 %357
    %359 = vrot.lane.b32.xlu0 %v343, 96
    %v360 = vpop.permute.xlu0 %359
    %vm361 = vcmask 64512
    %v362 = vsel %vm361, %v323, 0
    %v364 = vsel %vm361, %v328, 0
    %v366 = vsel %vm361, %v333, 0
    %v368 = vsel %vm361, %v338, 0
    %v370 = vsel %vm361, %v343, 0
    %v372 = vsel %vm361, %v352, 0
    %v374 = vsel %vm361, %v354, 0
    %v376 = vsel %vm361, %v356, 0
    %v378 = vsel %vm361, %v358, 0
    %v380 = vsel %vm361, %v360, 0
    %382 = vmatprep.subr.mxu0 0.0
    %383 = vmatpush1.xpose.msra.mxu0 %v372
    %384 = vmatprep.subr.mxu0 0.0
    %385 = vmatpush1.xpose.msra.mxu0 %v374
    %386 = vmatprep.subr.mxu0 0.0
    %387 = vmatpush1.xpose.msra.mxu0 %v376
    %388 = vmatprep.subr.mxu0 0.0
    %389 = vmatpush1.xpose.msra.mxu0 %v378
    %390 = vmatprep.subr.mxu0 0.0
    %391 = vmatpush1.xpose.msra.mxu0 %v380
    %392 = vmatprep.subr.mxu0 0.0
    %393 = vmatpush1.xpose.msra.mxu0 0.0
    %394 = vmatprep.subr.mxu0 0.0
    %395 = vmatpush1.xpose.msra.mxu0 0.0
    %396 = vmatprep.subr.mxu0 0.0
    %397 = vmatpush1.xpose.msra.mxu0 0.0
    %398 = vmatprep.subr.mxu0 0.0
    %399 = vmatpush1.xpose.msra.mxu0 0.0
    %400 = vmatprep.subr.mxu0 0.0
    %401 = vmatpush1.xpose.msra.mxu0 0.0
    %402 = vmatprep.subr.mxu0 0.0
    %403 = vmatpush1.xpose.msra.mxu0 0.0
    %404 = vmatprep.subr.mxu0 0.0
    %405 = vmatpush1.xpose.msra.mxu0 0.0
    %406 = vmatprep.subr.mxu0 0.0
    %407 = vmatpush1.xpose.msra.mxu0 0.0
    %408 = vmatprep.subr.mxu0 0.0
    %409 = vmatpush1.xpose.msra.mxu0 0.0
    %410 = vmatprep.subr.mxu0 0.0
    %411 = vmatpush1.xpose.msra.mxu0 0.0
    %412 = vmatprep.subr.mxu0 0.0
    %413 = vmatpush1.xpose.msra.mxu0 0.0
    %414 = vmatprep.subr.mxu0 0.0
    %415 = vmatpush1.xpose.msra.mxu0 0.0
    %416 = vmatprep.subr.mxu0 0.0
    %417 = vmatpush1.xpose.msra.mxu0 0.0
    %418 = vmatprep.subr.mxu0 0.0
    %419 = vmatpush1.xpose.msra.mxu0 0.0
    %420 = vmatprep.subr.mxu0 0.0
    %421 = vmatpush1.xpose.msra.mxu0 0.0
    %422 = vmatprep.subr.mxu0 0.0
    %423 = vmatpush1.xpose.msra.mxu0 0.0
    %424 = vmatprep.subr.mxu0 0.0
    %425 = vmatpush1.xpose.msra.mxu0 0.0
    %426 = vmatprep.subr.mxu0 0.0
    %427 = vmatpush1.xpose.msra.mxu0 0.0
    %428 = vmatprep.subr.mxu0 0.0
    %429 = vmatpush1.xpose.msra.mxu0 0.0
    %430 = vmatprep.subr.mxu0 0.0
    %431 = vmatpush1.xpose.msra.mxu0 0.0
    %432 = vmatprep.subr.mxu0 0.0
    %433 = vmatpush1.xpose.msra.mxu0 0.0
    %434 = vmatprep.subr.mxu0 0.0
    %435 = vmatpush1.xpose.msra.mxu0 0.0
    %436 = vmatprep.subr.mxu0 0.0
    %437 = vmatpush1.xpose.msra.mxu0 0.0
    %438 = vmatprep.subr.mxu0 0.0
    %439 = vmatpush1.xpose.msra.mxu0 0.0
    %440 = vmatprep.subr.mxu0 0.0
    %441 = vmatpush1.xpose.msra.mxu0 0.0
    %442 = vmatprep.subr.mxu0 0.0
    %443 = vmatpush1.xpose.msra.mxu0 0.0
    %444 = vmatprep.subr.mxu0 0.0
    %445 = vmatpush1.xpose.msra.mxu0 0.0
    %446 = vmatprep.mubr.f32.mxu0 0.0
    %447 = vmatmul.mubr.f32.gmra.mrb[0].mxu0 %v362
    %v448 = vpop.f32.mrb[0].mxu0
    %v449 = vadd.f32 0.0, %v448
    %v450 = vpop.f32.mrb[0].mxu0
    %451 = vmatprep.mubr.f32.mxu0 0.0
    %452 = vmatmul.mubr.f32.gmra.mrb[0].mxu0 %v364
    %v453 = vpop.f32.mrb[0].mxu0
    %v454 = vadd.f32 0.0, %v453
    %v455 = vpop.f32.mrb[0].mxu0
    %456 = vmatprep.mubr.f32.mxu0 0.0
    %457 = vmatmul.mubr.f32.gmra.mrb[0].mxu0 %v366
    %v458 = vpop.f32.mrb[0].mxu0
    %v459 = vadd.f32 0.0, %v458
    %v460 = vpop.f32.mrb[0].mxu0
    %461 = vmatprep.mubr.f32.mxu0 0.0
    %462 = vmatmul.mubr.f32.gmra.mrb[0].mxu0 %v368
    %v463 = vpop.f32.mrb[0].mxu0
    %v464 = vadd.f32 0.0, %v463
    %v465 = vpop.f32.mrb[0].mxu0
    %466 = vmatprep.mubr.f32.mxu0 0.0
    %467 = vmatmul.mubr.f32.gmra.mrb[0].mxu0 %v370
    %v468 = vpop.f32.mrb[0].mxu0
    %v469 = vadd.f32 0.0, %v468
    %v470 = vpop.f32.mrb[0].mxu0
    %471 = vdwg.mxu0
    %v472 = vmul.f32 %v449, 0.35355338
    %v473 = vmul.f32 %v454, 0.35355338
    %v474 = vmul.f32 %v459, 0.35355338
    %v475 = vmul.f32 %v464, 0.35355338
    %v476 = vmul.f32 %v469, 0.35355338
    %v477 = vadd.f32 %v472, %v231
    %v478 = vadd.f32 %v473, %v232
    %v479 = vadd.f32 %v474, %v233
    %v480 = vadd.f32 %v475, %v234
    %v481 = vadd.f32 %v476, %v235
    %vm482 = vcmask 293888
    %v483 = vsel %vm482, %v477, -inf
    %484 = vmax.xlane.f32.xlu0 %v483
    %v485 = vpop.xlane.xlu0 %484
    %v486 = vsel %vm482, %v478, -inf
    %487 = vmax.xlane.f32.xlu0 %v486
    %v488 = vpop.xlane.xlu0 %487
    %v489 = vsel %vm482, %v479, -inf
    %490 = vmax.xlane.f32.xlu0 %v489
    %v491 = vpop.xlane.xlu0 %490
    %v492 = vsel %vm482, %v480, -inf
    %493 = vmax.xlane.f32.xlu0 %v492
    %v494 = vpop.xlane.xlu0 %493
    %vm495 = vcmask 289792
    %v496 = vsel %vm495, %v481, -inf
    %497 = vmax.xlane.f32.xlu0 %v496
    %v498 = vpop.xlane.xlu0 %497
    %v499 = vsub.f32 %v477, %v485
    %v500 = vsub.f32 %v478, %v488
    %v501 = vsub.f32 %v479, %v491
    %v502 = vsub.f32 %v480, %v494
    %v503 = vsub.f32 %v481, %v498
    %v504 = vmul.f32 %v499, 1.442695
    %v505 = vpow.pop %v504
    %v506 = vmul.f32 %v500, 1.442695
    %v507 = vpow.pop %v506
    %v508 = vmul.f32 %v501, 1.442695
    %v509 = vpow.pop %v508
    %v510 = vmul.f32 %v502, 1.442695
    %v511 = vpow.pop %v510
    %v512 = vmul.f32 %v503, 1.442695
    %v513 = vpow.pop %v512
    %v514 = vsel %vm482, %v505, 0.0
    %515 = vadd.xlane.f32.xlu0 %v514
    %v516 = vpop.xlane.xlu0 %515
    %v517 = vsel %vm482, %v507, 0.0
    %518 = vadd.xlane.f32.xlu0 %v517
    %v519 = vpop.xlane.xlu0 %518
    %v520 = vsel %vm482, %v509, 0.0
    %521 = vadd.xlane.f32.xlu0 %v520
    %v522 = vpop.xlane.xlu0 %521
    %v523 = vsel %vm482, %v511, 0.0
    %524 = vadd.xlane.f32.xlu0 %v523
    %v525 = vpop.xlane.xlu0 %524
    %v526 = vsel %vm495, %v513, 0.0
    %527 = vadd.xlane.f32.xlu0 %v526
    %v528 = vpop.xlane.xlu0 %527
    %v529 = vrcp.pop %v516
    %v530 = vrcp.pop %v519
    %v531 = vrcp.pop %v522
    %v532 = vrcp.pop %v525
    %v533 = vrcp.pop %v528
    %v534 = vmul.f32 %v505, %v529
    %v535 = vmul.f32 %v507, %v530
    %v536 = vmul.f32 %v509, %v531
    %v537 = vmul.f32 %v511, %v532
    %v538 = vmul.f32 %v513, %v533
    %539 = vrot.lane.b32.xlu0 %v323, 64
    %v540 = vpop.permute.xlu0 %539
    %541 = vrot.lane.b32.xlu0 %v328, 64
    %v542 = vpop.permute.xlu0 %541
    %543 = vrot.lane.b32.xlu0 %v333, 64
    %v544 = vpop.permute.xlu0 %543
    %545 = vrot.lane.b32.xlu0 %v338, 64
    %v546 = vpop.permute.xlu0 %545
    %547 = vrot.lane.b32.xlu0 %v343, 64
    %v548 = vpop.permute.xlu0 %547
    %v554 = vsel %vm482, %v534, 0
    %v557 = vsel %vm482, %v535, 0
    %v560 = vsel %vm482, %v536, 0
    %v563 = vsel %vm482, %v537, 0
    %v566 = vsel %vm482, %v538, 0
    %v568 = vsel %vm137, %v548, 0
    %570 = vmatprep.subr.mxu0 0.0
    %571 = vmatpush1.msra.mxu0 %v540
    %572 = vmatprep.subr.mxu0 0.0
    %573 = vmatpush1.msra.mxu0 %v542
    %574 = vmatprep.subr.mxu0 0.0
    %575 = vmatpush1.msra.mxu0 %v544
    %576 = vmatprep.subr.mxu0 0.0
    %577 = vmatpush1.msra.mxu0 %v546
    %578 = vmatprep.subr.mxu0 0.0
    %579 = vmatpush1.msra.mxu0 %v568
    %580 = vmatprep.subr.mxu0 0.0
    %581 = vmatpush1.msra.mxu0 0.0
    %582 = vmatprep.subr.mxu0 0.0
    %583 = vmatpush1.msra.mxu0 0.0
    %584 = vmatprep.subr.mxu0 0.0
    %585 = vmatpush1.msra.mxu0 0.0
    %586 = vmatprep.subr.mxu0 0.0
    %587 = vmatpush1.msra.mxu0 0.0
    %588 = vmatprep.subr.mxu0 0.0
    %589 = vmatpush1.msra.mxu0 0.0
    %590 = vmatprep.subr.mxu0 0.0
    %591 = vmatpush1.msra.mxu0 0.0
    %592 = vmatprep.subr.mxu0 0.0
    %593 = vmatpush1.msra.mxu0 0.0
    %594 = vmatprep.subr.mxu0 0.0
    %595 = vmatpush1.msra.mxu0 0.0
    %596 = vmatprep.subr.mxu0 0.0
    %597 = vmatpush1.msra.mxu0 0.0
    %598 = vmatprep.subr.mxu0 0.0
    %599 = vmatpush1.msra.mxu0 0.0
    %600 = vmatprep.subr.mxu0 0.0
    %601 = vmatpush1.msra.mxu0 0.0
    %602 = vmatprep.subr.mxu0 0.0
    %603 = vmatpush1.msra.mxu0 0.0
    %604 = vmatprep.subr.mxu0 0.0
    %605 = vmatpush1.msra.mxu0 0.0
    %606 = vmatprep.subr.mxu0 0.0
    %607 = vmatpush1.msra.mxu0 0.0
    %608 = vmatprep.subr.mxu0 0.0
    %609 = vmatpush1.msra.mxu0 0.0
    %610 = vmatprep.subr.mxu0 0.0
    %611 = vmatpush1.msra.mxu0 0.0
    %612 = vmatprep.subr.mxu0 0.0
    %613 = vmatpush1.msra.mxu0 0.0
    %614 = vmatprep.subr.mxu0 0.0
    %615 = vmatpush1.msra.mxu0 0.0
    %616 = vmatprep.subr.mxu0 0.0
    %617 = vmatpush1.msra.mxu0 0.0
    %618 = vmatprep.subr.mxu0 0.0
    %619 = vmatpush1.msra.mxu0 0.0
    %620 = vmatprep.subr.mxu0 0.0
    %621 = vmatpush1.msra.mxu0 0.0
    %622 = vmatprep.subr.mxu0 0.0
    %623 = vmatpush1.msra.mxu0 0.0
    %624 = vmatprep.subr.mxu0 0.0
    %625 = vmatpush1.msra.mxu0 0.0
    %626 = vmatprep.subr.mxu0 0.0
    %627 = vmatpush1.msra.mxu0 0.0
    %628 = vmatprep.subr.mxu0 0.0
    %629 = vmatpush1.msra.mxu0 0.0
    %630 = vmatprep.subr.mxu0 0.0
    %631 = vmatpush1.msra.mxu0 0.0
    %632 = vmatprep.subr.mxu0 0.0
    %633 = vmatpush1.msra.mxu0 0.0
    %634 = vmatprep.mubr.f32.mxu0 0.0
    %635 = vmatmul.mubr.f32.gmra.mrb[0].mxu0 %v554
    %v636 = vpop.f32.mrb[0].mxu0
    %v637 = vadd.f32 0.0, %v636
    %v638 = vpop.f32.mrb[0].mxu0
    %639 = vmatprep.mubr.f32.mxu0 0.0
    %640 = vmatmul.mubr.f32.gmra.mrb[0].mxu0 %v557
    %v641 = vpop.f32.mrb[0].mxu0
    %v642 = vadd.f32 0.0, %v641
    %v643 = vpop.f32.mrb[0].mxu0
    %644 = vmatprep.mubr.f32.mxu0 0.0
    %645 = vmatmul.mubr.f32.gmra.mrb[0].mxu0 %v560
    %v646 = vpop.f32.mrb[0].mxu0
    %v647 = vadd.f32 0.0, %v646
    %v648 = vpop.f32.mrb[0].mxu0
    %649 = vmatprep.mubr.f32.mxu0 0.0
    %650 = vmatmul.mubr.f32.gmra.mrb[0].mxu0 %v563
    %v651 = vpop.f32.mrb[0].mxu0
    %v652 = vadd.f32 0.0, %v651
    %v653 = vpop.f32.mrb[0].mxu0
    %654 = vmatprep.mubr.f32.mxu0 0.0
    %655 = vmatmul.mubr.f32.gmra.mrb[0].mxu0 %v566
    %v656 = vpop.f32.mrb[0].mxu0
    %v657 = vadd.f32 0.0, %v656
    %v658 = vpop.f32.mrb[0].mxu0
    %659 = vdwg.mxu0
    %660 = vrot.lane.b32.xlu0 %v323, 120
    %v661 = vpop.permute.xlu0 %660
    %662 = vrot.lane.b32.xlu0 %v328, 120
    %v663 = vpop.permute.xlu0 %662
    %664 = vrot.lane.b32.xlu0 %v333, 120
    %v665 = vpop.permute.xlu0 %664
    %666 = vrot.lane.b32.xlu0 %v338, 120
    %v667 = vpop.permute.xlu0 %666
    %668 = vrot.lane.b32.xlu0 %v343, 120
    %v669 = vpop.permute.xlu0 %668
    %670 = vrot.lane.b32.xlu0 %v323, 88
    %v671 = vpop.permute.xlu0 %670
    %672 = vrot.lane.b32.xlu0 %v328, 88
    %v673 = vpop.permute.xlu0 %672
    %674 = vrot.lane.b32.xlu0 %v333, 88
    %v675 = vpop.permute.xlu0 %674
    %676 = vrot.lane.b32.xlu0 %v338, 88
    %v677 = vpop.permute.xlu0 %676
    %678 = vrot.lane.b32.xlu0 %v343, 88
    %v679 = vpop.permute.xlu0 %678
    %v680 = vsel %vm361, %v661, 0
    %v682 = vsel %vm361, %v663, 0
    %v684 = vsel %vm361, %v665, 0
    %v686 = vsel %vm361, %v667, 0
    %v688 = vsel %vm361, %v669, 0
    %v690 = vsel %vm361, %v671, 0
    %v692 = vsel %vm361, %v673, 0
    %v694 = vsel %vm361, %v675, 0
    %v696 = vsel %vm361, %v677, 0
    %v698 = vsel %vm361, %v679, 0
    %700 = vmatprep.subr.mxu0 0.0
    %701 = vmatpush1.xpose.msra.mxu0 %v690
    %702 = vmatprep.subr.mxu0 0.0
    %703 = vmatpush1.xpose.msra.mxu0 %v692
    %704 = vmatprep.subr.mxu0 0.0
    %705 = vmatpush1.xpose.msra.mxu0 %v694
    %706 = vmatprep.subr.mxu0 0.0
    %707 = vmatpush1.xpose.msra.mxu0 %v696
    %708 = vmatprep.subr.mxu0 0.0
    %709 = vmatpush1.xpose.msra.mxu0 %v698
    %710 = vmatprep.subr.mxu0 0.0
    %711 = vmatpush1.xpose.msra.mxu0 0.0
    %712 = vmatprep.subr.mxu0 0.0
    %713 = vmatpush1.xpose.msra.mxu0 0.0
    %714 = vmatprep.subr.mxu0 0.0
    %715 = vmatpush1.xpose.msra.mxu0 0.0
    %716 = vmatprep.subr.mxu0 0.0
    %717 = vmatpush1.xpose.msra.mxu0 0.0
    %718 = vmatprep.subr.mxu0 0.0
    %719 = vmatpush1.xpose.msra.mxu0 0.0
    %720 = vmatprep.subr.mxu0 0.0
    %721 = vmatpush1.xpose.msra.mxu0 0.0
    %722 = vmatprep.subr.mxu0 0.0
    %723 = vmatpush1.xpose.msra.mxu0 0.0
    %724 = vmatprep.subr.mxu0 0.0
    %725 = vmatpush1.xpose.msra.mxu0 0.0
    %726 = vmatprep.subr.mxu0 0.0
    %727 = vmatpush1.xpose.msra.mxu0 0.0
    %728 = vmatprep.subr.mxu0 0.0
    %729 = vmatpush1.xpose.msra.mxu0 0.0
    %730 = vmatprep.subr.mxu0 0.0
    %731 = vmatpush1.xpose.msra.mxu0 0.0
    %732 = vmatprep.subr.mxu0 0.0
    %733 = vmatpush1.xpose.msra.mxu0 0.0
    %734 = vmatprep.subr.mxu0 0.0
    %735 = vmatpush1.xpose.msra.mxu0 0.0
    %736 = vmatprep.subr.mxu0 0.0
    %737 = vmatpush1.xpose.msra.mxu0 0.0
    %738 = vmatprep.subr.mxu0 0.0
    %739 = vmatpush1.xpose.msra.mxu0 0.0
    %740 = vmatprep.subr.mxu0 0.0
    %741 = vmatpush1.xpose.msra.mxu0 0.0
    %742 = vmatprep.subr.mxu0 0.0
    %743 = vmatpush1.xpose.msra.mxu0 0.0
    %744 = vmatprep.subr.mxu0 0.0
    %745 = vmatpush1.xpose.msra.mxu0 0.0
    %746 = vmatprep.subr.mxu0 0.0
    %747 = vmatpush1.xpose.msra.mxu0 0.0
    %748 = vmatprep.subr.mxu0 0.0
    %749 = vmatpush1.xpose.msra.mxu0 0.0
    %750 = vmatprep.subr.mxu0 0.0
    %751 = vmatpush1.xpose.msra.mxu0 0.0
    %752 = vmatprep.subr.mxu0 0.0
    %753 = vmatpush1.xpose.msra.mxu0 0.0
    %754 = vmatprep.subr.mxu0 0.0
    %755 = vmatpush1.xpose.msra.mxu0 0.0
    %756 = vmatprep.subr.mxu0 0.0
    %757 = vmatpush1.xpose.msra.mxu0 0.0
    %758 = vmatprep.subr.mxu0 0.0
    %759 = vmatpush1.xpose.msra.mxu0 0.0
    %760 = vmatprep.subr.mxu0 0.0
    %761 = vmatpush1.xpose.msra.mxu0 0.0
    %762 = vmatprep.subr.mxu0 0.0
    %763 = vmatpush1.xpose.msra.mxu0 0.0
    %764 = vmatprep.mubr.f32.mxu0 0.0
    %765 = vmatmul.mubr.f32.gmra.mrb[0].mxu0 %v680
    %v766 = vpop.f32.mrb[0].mxu0
    %v767 = vadd.f32 0.0, %v766
    %v768 = vpop.f32.mrb[0].mxu0
    %769 = vmatprep.mubr.f32.mxu0 0.0
    %770 = vmatmul.mubr.f32.gmra.mrb[0].mxu0 %v682
    %v771 = vpop.f32.mrb[0].mxu0
    %v772 = vadd.f32 0.0, %v771
    %v773 = vpop.f32.mrb[0].mxu0
    %774 = vmatprep.mubr.f32.mxu0 0.0
    %775 = vmatmul.mubr.f32.gmra.mrb[0].mxu0 %v684
    %v776 = vpop.f32.mrb[0].mxu0
    %v777 = vadd.f32 0.0, %v776
    %v778 = vpop.f32.mrb[0].mxu0
    %779 = vmatprep.mubr.f32.mxu0 0.0
    %780 = vmatmul.mubr.f32.gmra.mrb[0].mxu0 %v686
    %v781 = vpop.f32.mrb[0].mxu0
    %v782 = vadd.f32 0.0, %v781
    %v783 = vpop.f32.mrb[0].mxu0
    %784 = vmatprep.mubr.f32.mxu0 0.0
    %785 = vmatmul.mubr.f32.gmra.mrb[0].mxu0 %v688
    %v786 = vpop.f32.mrb[0].mxu0
    %v787 = vadd.f32 0.0, %v786
    %v788 = vpop.f32.mrb[0].mxu0
    %789 = vdwg.mxu0
    %v790 = vmul.f32 %v767, 0.35355338
    %v791 = vmul.f32 %v772, 0.35355338
    %v792 = vmul.f32 %v777, 0.35355338
    %v793 = vmul.f32 %v782, 0.35355338
    %v794 = vmul.f32 %v787, 0.35355338
    %v795 = vadd.f32 %v790, %v231
    %v796 = vadd.f32 %v791, %v232
    %v797 = vadd.f32 %v792, %v233
    %v798 = vadd.f32 %v793, %v234
    %v799 = vadd.f32 %v794, %v235
    %v800 = vsel %vm482, %v795, -inf
    %801 = vmax.xlane.f32.xlu0 %v800
    %v802 = vpop.xlane.xlu0 %801
    %v803 = vsel %vm482, %v796, -inf
    %804 = vmax.xlane.f32.xlu0 %v803
    %v805 = vpop.xlane.xlu0 %804
    %v806 = vsel %vm482, %v797, -inf
    %807 = vmax.xlane.f32.xlu0 %v806
    %v808 = vpop.xlane.xlu0 %807
    %v809 = vsel %vm482, %v798, -inf
    %810 = vmax.xlane.f32.xlu0 %v809
    %v811 = vpop.xlane.xlu0 %810
    %v812 = vsel %vm495, %v799, -inf
    %813 = vmax.xlane.f32.xlu0 %v812
    %v814 = vpop.xlane.xlu0 %813
    %v815 = vsub.f32 %v795, %v802
    %v816 = vsub.f32 %v796, %v805
    %v817 = vsub.f32 %v797, %v808
    %v818 = vsub.f32 %v798, %v811
    %v819 = vsub.f32 %v799, %v814
    %v820 = vmul.f32 %v815, 1.442695
    %v821 = vpow.pop %v820
    %v822 = vmul.f32 %v816, 1.442695
    %v823 = vpow.pop %v822
    %v824 = vmul.f32 %v817, 1.442695
    %v825 = vpow.pop %v824
    %v826 = vmul.f32 %v818, 1.442695
    %v827 = vpow.pop %v826
    %v828 = vmul.f32 %v819, 1.442695
    %v829 = vpow.pop %v828
    %v830 = vsel %vm482, %v821, 0.0
    %831 = vadd.xlane.f32.xlu0 %v830
    %v832 = vpop.xlane.xlu0 %831
    %v833 = vsel %vm482, %v823, 0.0
    %834 = vadd.xlane.f32.xlu0 %v833
    %v835 = vpop.xlane.xlu0 %834
    %v836 = vsel %vm482, %v825, 0.0
    %837 = vadd.xlane.f32.xlu0 %v836
    %v838 = vpop.xlane.xlu0 %837
    %v839 = vsel %vm482, %v827, 0.0
    %840 = vadd.xlane.f32.xlu0 %v839
    %v841 = vpop.xlane.xlu0 %840
    %v842 = vsel %vm495, %v829, 0.0
    %843 = vadd.xlane.f32.xlu0 %v842
    %v844 = vpop.xlane.xlu0 %843
    %v845 = vrcp.pop %v832
    %v846 = vrcp.pop %v835
    %v847 = vrcp.pop %v838
    %v848 = vrcp.pop %v841
    %v849 = vrcp.pop %v844
    %v850 = vmul.f32 %v821, %v845
    %v851 = vmul.f32 %v823, %v846
    %v852 = vmul.f32 %v825, %v847
    %v853 = vmul.f32 %v827, %v848
    %v854 = vmul.f32 %v829, %v849
    %855 = vrot.lane.b32.xlu0 %v323, 56
    %v856 = vpop.permute.xlu0 %855
    %857 = vrot.lane.b32.xlu0 %v328, 56
    %v858 = vpop.permute.xlu0 %857
    %859 = vrot.lane.b32.xlu0 %v333, 56
    %v860 = vpop.permute.xlu0 %859
    %861 = vrot.lane.b32.xlu0 %v338, 56
    %v862 = vpop.permute.xlu0 %861
    %863 = vrot.lane.b32.xlu0 %v343, 56
    %v864 = vpop.permute.xlu0 %863
    %v870 = vsel %vm482, %v850, 0
    %v873 = vsel %vm482, %v851, 0
    %v876 = vsel %vm482, %v852, 0
    %v879 = vsel %vm482, %v853, 0
    %v882 = vsel %vm482, %v854, 0
    %v884 = vsel %vm137, %v864, 0
    %886 = vmatprep.subr.mxu0 0.0
    %887 = vmatpush1.msra.mxu0 %v856
    %888 = vmatprep.subr.mxu0 0.0
    %889 = vmatpush1.msra.mxu0 %v858
    %890 = vmatprep.subr.mxu0 0.0
    %891 = vmatpush1.msra.mxu0 %v860
    %892 = vmatprep.subr.mxu0 0.0
    %893 = vmatpush1.msra.mxu0 %v862
    %894 = vmatprep.subr.mxu0 0.0
    %895 = vmatpush1.msra.mxu0 %v884
    %896 = vmatprep.subr.mxu0 0.0
    %897 = vmatpush1.msra.mxu0 0.0
    %898 = vmatprep.subr.mxu0 0.0
    %899 = vmatpush1.msra.mxu0 0.0
    %900 = vmatprep.subr.mxu0 0.0
    %901 = vmatpush1.msra.mxu0 0.0
    %902 = vmatprep.subr.mxu0 0.0
    %903 = vmatpush1.msra.mxu0 0.0
    %904 = vmatprep.subr.mxu0 0.0
    %905 = vmatpush1.msra.mxu0 0.0
    %906 = vmatprep.subr.mxu0 0.0
    %907 = vmatpush1.msra.mxu0 0.0
    %908 = vmatprep.subr.mxu0 0.0
    %909 = vmatpush1.msra.mxu0 0.0
    %910 = vmatprep.subr.mxu0 0.0
    %911 = vmatpush1.msra.mxu0 0.0
    %912 = vmatprep.subr.mxu0 0.0
    %913 = vmatpush1.msra.mxu0 0.0
    %914 = vmatprep.subr.mxu0 0.0
    %915 = vmatpush1.msra.mxu0 0.0
    %916 = vmatprep.subr.mxu0 0.0
    %917 = vmatpush1.msra.mxu0 0.0
    %918 = vmatprep.subr.mxu0 0.0
    %919 = vmatpush1.msra.mxu0 0.0
    %920 = vmatprep.subr.mxu0 0.0
    %921 = vmatpush1.msra.mxu0 0.0
    %922 = vmatprep.subr.mxu0 0.0
    %923 = vmatpush1.msra.mxu0 0.0
    %924 = vmatprep.subr.mxu0 0.0
    %925 = vmatpush1.msra.mxu0 0.0
    %926 = vmatprep.subr.mxu0 0.0
    %927 = vmatpush1.msra.mxu0 0.0
    %928 = vmatprep.subr.mxu0 0.0
    %929 = vmatpush1.msra.mxu0 0.0
    %930 = vmatprep.subr.mxu0 0.0
    %931 = vmatpush1.msra.mxu0 0.0
    %932 = vmatprep.subr.mxu0 0.0
    %933 = vmatpush1.msra.mxu0 0.0
    %934 = vmatprep.subr.mxu0 0.0
    %935 = vmatpush1.msra.mxu0 0.0
    %936 = vmatprep.subr.mxu0 0.0
    %937 = vmatpush1.msra.mxu0 0.0
    %938 = vmatprep.subr.mxu0 0.0
    %939 = vmatpush1.msra.mxu0 0.0
    %940 = vmatprep.subr.mxu0 0.0
    %941 = vmatpush1.msra.mxu0 0.0
    %942 = vmatprep.subr.mxu0 0.0
    %943 = vmatpush1.msra.mxu0 0.0
    %944 = vmatprep.subr.mxu0 0.0
    %945 = vmatpush1.msra.mxu0 0.0
    %946 = vmatprep.subr.mxu0 0.0
    %947 = vmatpush1.msra.mxu0 0.0
    %948 = vmatprep.subr.mxu0 0.0
    %949 = vmatpush1.msra.mxu0 0.0
    %950 = vmatprep.mubr.f32.mxu0 0.0
    %951 = vmatmul.mubr.f32.gmra.mrb[0].mxu0 %v870
    %v952 = vpop.f32.mrb[0].mxu0
    %v953 = vadd.f32 0.0, %v952
    %v954 = vpop.f32.mrb[0].mxu0
    %955 = vmatprep.mubr.f32.mxu0 0.0
    %956 = vmatmul.mubr.f32.gmra.mrb[0].mxu0 %v873
    %v957 = vpop.f32.mrb[0].mxu0
    %v958 = vadd.f32 0.0, %v957
    %v959 = vpop.f32.mrb[0].mxu0
    %960 = vmatprep.mubr.f32.mxu0 0.0
    %961 = vmatmul.mubr.f32.gmra.mrb[0].mxu0 %v876
    %v962 = vpop.f32.mrb[0].mxu0
    %v963 = vadd.f32 0.0, %v962
    %v964 = vpop.f32.mrb[0].mxu0
    %965 = vmatprep.mubr.f32.mxu0 0.0
    %966 = vmatmul.mubr.f32.gmra.mrb[0].mxu0 %v879
    %v967 = vpop.f32.mrb[0].mxu0
    %v968 = vadd.f32 0.0, %v967
    %v969 = vpop.f32.mrb[0].mxu0
    %970 = vmatprep.mubr.f32.mxu0 0.0
    %971 = vmatmul.mubr.f32.gmra.mrb[0].mxu0 %v882
    %v972 = vpop.f32.mrb[0].mxu0
    %v973 = vadd.f32 0.0, %v972
    %v974 = vpop.f32.mrb[0].mxu0
    %975 = vdwg.mxu0
    %v977 = vsel %vm361, %v953, 0
    %v980 = vsel %vm361, %v958, 0
    %v983 = vsel %vm361, %v963, 0
    %v986 = vsel %vm361, %v968, 0
    %v989 = vsel %vm361, %v973, 0
    %991 = vmatprep.subr.mxu0 0.0
    %992 = vmatpush1.msra.mxu0 %v96
    %993 = vmatprep.subr.mxu0 0.0
    %994 = vmatpush1.msra.mxu0 0.0
    %995 = vmatprep.subr.mxu0 0.0
    %996 = vmatpush1.msra.mxu0 0.0
    %997 = vmatprep.subr.mxu0 0.0
    %998 = vmatpush1.msra.mxu0 0.0
    %999 = vmatprep.subr.mxu0 0.0
    %1000 = vmatpush1.msra.mxu0 0.0
    %1001 = vmatprep.subr.mxu0 0.0
    %1002 = vmatpush1.msra.mxu0 0.0
    %1003 = vmatprep.subr.mxu0 0.0
    %1004 = vmatpush1.msra.mxu0 0.0
    %1005 = vmatprep.subr.mxu0 0.0
    %1006 = vmatpush1.msra.mxu0 0.0
    %1007 = vmatprep.subr.mxu0 0.0
    %1008 = vmatpush1.msra.mxu0 0.0
    %1009 = vmatprep.subr.mxu0 0.0
    %1010 = vmatpush1.msra.mxu0 0.0
    %1011 = vmatprep.subr.mxu0 0.0
    %1012 = vmatpush1.msra.mxu0 0.0
    %1013 = vmatprep.subr.mxu0 0.0
    %1014 = vmatpush1.msra.mxu0 0.0
    %1015 = vmatprep.subr.mxu0 0.0
    %1016 = vmatpush1.msra.mxu0 0.0
    %1017 = vmatprep.subr.mxu0 0.0
    %1018 = vmatpush1.msra.mxu0 0.0
    %1019 = vmatprep.subr.mxu0 0.0
    %1020 = vmatpush1.msra.mxu0 0.0
    %1021 = vmatprep.subr.mxu0 0.0
    %1022 = vmatpush1.msra.mxu0 0.0
    %1023 = vmatprep.subr.mxu0 0.0
    %1024 = vmatpush1.msra.mxu0 0.0
    %1025 = vmatprep.subr.mxu0 0.0
    %1026 = vmatpush1.msra.mxu0 0.0
    %1027 = vmatprep.subr.mxu0 0.0
    %1028 = vmatpush1.msra.mxu0 0.0
    %1029 = vmatprep.subr.mxu0 0.0
    %1030 = vmatpush1.msra.mxu0 0.0
    %1031 = vmatprep.subr.mxu0 0.0
    %1032 = vmatpush1.msra.mxu0 0.0
    %1033 = vmatprep.subr.mxu0 0.0
    %1034 = vmatpush1.msra.mxu0 0.0
    %1035 = vmatprep.subr.mxu0 0.0
    %1036 = vmatpush1.msra.mxu0 0.0
    %1037 = vmatprep.subr.mxu0 0.0
    %1038 = vmatpush1.msra.mxu0 0.0
    %1039 = vmatprep.subr.mxu0 0.0
    %1040 = vmatpush1.msra.mxu0 0.0
    %1041 = vmatprep.subr.mxu0 0.0
    %1042 = vmatpush1.msra.mxu0 0.0
    %1043 = vmatprep.subr.mxu0 0.0
    %1044 = vmatpush1.msra.mxu0 0.0
    %1045 = vmatprep.subr.mxu0 0.0
    %1046 = vmatpush1.msra.mxu0 0.0
    %1047 = vmatprep.subr.mxu0 0.0
    %1048 = vmatpush1.msra.mxu0 0.0
    %1049 = vmatprep.subr.mxu0 0.0
    %1050 = vmatpush1.msra.mxu0 0.0
    %1051 = vmatprep.subr.mxu0 0.0
    %1052 = vmatpush1.msra.mxu0 0.0
    %1053 = vmatprep.subr.mxu0 0.0
    %1054 = vmatpush1.msra.mxu0 0.0
    %1055 = vmatprep.mubr.f32.mxu0 0.0
    %1056 = vmatmul.mubr.f32.gmra.mrb[0].mxu0 %v977
    %v1057 = vpop.f32.mrb[0].mxu0
    %v1058 = vadd.f32 0.0, %v1057
    %v1059 = vpop.f32.mrb[0].mxu0
    %1060 = vmatprep.mubr.f32.mxu0 0.0
    %1061 = vmatmul.mubr.f32.gmra.mrb[0].mxu0 %v980
    %v1062 = vpop.f32.mrb[0].mxu0
    %v1063 = vadd.f32 0.0, %v1062
    %v1064 = vpop.f32.mrb[0].mxu0
    %1065 = vmatprep.mubr.f32.mxu0 0.0
    %1066 = vmatmul.mubr.f32.gmra.mrb[0].mxu0 %v983
    %v1067 = vpop.f32.mrb[0].mxu0
    %v1068 = vadd.f32 0.0, %v1067
    %v1069 = vpop.f32.mrb[0].mxu0
    %1070 = vmatprep.mubr.f32.mxu0 0.0
    %1071 = vmatmul.mubr.f32.gmra.mrb[0].mxu0 %v986
    %v1072 = vpop.f32.mrb[0].mxu0
    %v1073 = vadd.f32 0.0, %v1072
    %v1074 = vpop.f32.mrb[0].mxu0
    %1075 = vmatprep.mubr.f32.mxu0 0.0
    %1076 = vmatmul.mubr.f32.gmra.mrb[0].mxu0 %v989
    %v1077 = vpop.f32.mrb[0].mxu0
    %v1078 = vadd.f32 0.0, %v1077
    %v1079 = vpop.f32.mrb[0].mxu0
    %1080 = vdwg.mxu0
    %v1082 = vsel %vm361, %v637, 0
    %v1085 = vsel %vm361, %v642, 0
    %v1088 = vsel %vm361, %v647, 0
    %v1091 = vsel %vm361, %v652, 0
    %v1094 = vsel %vm361, %v657, 0
    %1096 = vmatprep.subr.mxu0 0.0
    %1097 = vmatpush1.msra.mxu0 %v95
    %1098 = vmatprep.subr.mxu0 0.0
    %1099 = vmatpush1.msra.mxu0 0.0
    %1100 = vmatprep.subr.mxu0 0.0
    %1101 = vmatpush1.msra.mxu0 0.0
    %1102 = vmatprep.subr.mxu0 0.0
    %1103 = vmatpush1.msra.mxu0 0.0
    %1104 = vmatprep.subr.mxu0 0.0
    %1105 = vmatpush1.msra.mxu0 0.0
    %1106 = vmatprep.subr.mxu0 0.0
    %1107 = vmatpush1.msra.mxu0 0.0
    %1108 = vmatprep.subr.mxu0 0.0
    %1109 = vmatpush1.msra.mxu0 0.0
    %1110 = vmatprep.subr.mxu0 0.0
    %1111 = vmatpush1.msra.mxu0 0.0
    %1112 = vmatprep.subr.mxu0 0.0
    %1113 = vmatpush1.msra.mxu0 0.0
    %1114 = vmatprep.subr.mxu0 0.0
    %1115 = vmatpush1.msra.mxu0 0.0
    %1116 = vmatprep.subr.mxu0 0.0
    %1117 = vmatpush1.msra.mxu0 0.0
    %1118 = vmatprep.subr.mxu0 0.0
    %1119 = vmatpush1.msra.mxu0 0.0
    %1120 = vmatprep.subr.mxu0 0.0
    %1121 = vmatpush1.msra.mxu0 0.0
    %1122 = vmatprep.subr.mxu0 0.0
    %1123 = vmatpush1.msra.mxu0 0.0
    %1124 = vmatprep.subr.mxu0 0.0
    %1125 = vmatpush1.msra.mxu0 0.0
    %1126 = vmatprep.subr.mxu0 0.0
    %1127 = vmatpush1.msra.mxu0 0.0
    %1128 = vmatprep.subr.mxu0 0.0
    %1129 = vmatpush1.msra.mxu0 0.0
    %1130 = vmatprep.subr.mxu0 0.0
    %1131 = vmatpush1.msra.mxu0 0.0
    %1132 = vmatprep.subr.mxu0 0.0
    %1133 = vmatpush1.msra.mxu0 0.0
    %1134 = vmatprep.subr.mxu0 0.0
    %1135 = vmatpush1.msra.mxu0 0.0
    %1136 = vmatprep.subr.mxu0 0.0
    %1137 = vmatpush1.msra.mxu0 0.0
    %1138 = vmatprep.subr.mxu0 0.0
    %1139 = vmatpush1.msra.mxu0 0.0
    %1140 = vmatprep.subr.mxu0 0.0
    %1141 = vmatpush1.msra.mxu0 0.0
    %1142 = vmatprep.subr.mxu0 0.0
    %1143 = vmatpush1.msra.mxu0 0.0
    %1144 = vmatprep.subr.mxu0 0.0
    %1145 = vmatpush1.msra.mxu0 0.0
    %1146 = vmatprep.subr.mxu0 0.0
    %1147 = vmatpush1.msra.mxu0 0.0
    %1148 = vmatprep.subr.mxu0 0.0
    %1149 = vmatpush1.msra.mxu0 0.0
    %1150 = vmatprep.subr.mxu0 0.0
    %1151 = vmatpush1.msra.mxu0 0.0
    %1152 = vmatprep.subr.mxu0 0.0
    %1153 = vmatpush1.msra.mxu0 0.0
    %1154 = vmatprep.subr.mxu0 0.0
    %1155 = vmatpush1.msra.mxu0 0.0
    %1156 = vmatprep.subr.mxu0 0.0
    %1157 = vmatpush1.msra.mxu0 0.0
    %1158 = vmatprep.subr.mxu0 0.0
    %1159 = vmatpush1.msra.mxu0 0.0
    %1160 = vmatprep.mubr.f32.mxu0 0.0
    %1161 = vmatmul.mubr.f32.gmra.mrb[0].mxu0 %v1082
    %v1162 = vpop.f32.mrb[0].mxu0
    %v1163 = vadd.f32 %v1058, %v1162
    %v1164 = vpop.f32.mrb[0].mxu0
    %1165 = vmatprep.mubr.f32.mxu0 0.0
    %1166 = vmatmul.mubr.f32.gmra.mrb[0].mxu0 %v1085
    %v1167 = vpop.f32.mrb[0].mxu0
    %v1168 = vadd.f32 %v1063, %v1167
    %v1169 = vpop.f32.mrb[0].mxu0
    %1170 = vmatprep.mubr.f32.mxu0 0.0
    %1171 = vmatmul.mubr.f32.gmra.mrb[0].mxu0 %v1088
    %v1172 = vpop.f32.mrb[0].mxu0
    %v1173 = vadd.f32 %v1068, %v1172
    %v1174 = vpop.f32.mrb[0].mxu0
    %1175 = vmatprep.mubr.f32.mxu0 0.0
    %1176 = vmatmul.mubr.f32.gmra.mrb[0].mxu0 %v1091
    %v1177 = vpop.f32.mrb[0].mxu0
    %v1178 = vadd.f32 %v1073, %v1177
    %v1179 = vpop.f32.mrb[0].mxu0
    %1180 = vmatprep.mubr.f32.mxu0 0.0
    %1181 = vmatmul.mubr.f32.gmra.mrb[0].mxu0 %v1094
    %v1182 = vpop.f32.mrb[0].mxu0
    %v1183 = vadd.f32 %v1078, %v1182
    %v1184 = vpop.f32.mrb[0].mxu0
    %1185 = vdwg.mxu0
    %1186 = vrot.lane.b32.xlu0 %v323, 112
    %v1187 = vpop.permute.xlu0 %1186
    %1188 = vrot.lane.b32.xlu0 %v328, 112
    %v1189 = vpop.permute.xlu0 %1188
    %1190 = vrot.lane.b32.xlu0 %v333, 112
    %v1191 = vpop.permute.xlu0 %1190
    %1192 = vrot.lane.b32.xlu0 %v338, 112
    %v1193 = vpop.permute.xlu0 %1192
    %1194 = vrot.lane.b32.xlu0 %v343, 112
    %v1195 = vpop.permute.xlu0 %1194
    %1196 = vrot.lane.b32.xlu0 %v323, 80
    %v1197 = vpop.permute.xlu0 %1196
    %1198 = vrot.lane.b32.xlu0 %v328, 80
    %v1199 = vpop.permute.xlu0 %1198
    %1200 = vrot.lane.b32.xlu0 %v333, 80
    %v1201 = vpop.permute.xlu0 %1200
    %1202 = vrot.lane.b32.xlu0 %v338, 80
    %v1203 = vpop.permute.xlu0 %1202
    %1204 = vrot.lane.b32.xlu0 %v343, 80
    %v1205 = vpop.permute.xlu0 %1204
    %v1206 = vsel %vm361, %v1187, 0
    %v1208 = vsel %vm361, %v1189, 0
    %v1210 = vsel %vm361, %v1191, 0
    %v1212 = vsel %vm361, %v1193, 0
    %v1214 = vsel %vm361, %v1195, 0
    %v1216 = vsel %vm361, %v1197, 0
    %v1218 = vsel %vm361, %v1199, 0
    %v1220 = vsel %vm361, %v1201, 0
    %v1222 = vsel %vm361, %v1203, 0
    %v1224 = vsel %vm361, %v1205, 0
    %1226 = vmatprep.subr.mxu0 0.0
    %1227 = vmatpush1.xpose.msra.mxu0 %v1216
    %1228 = vmatprep.subr.mxu0 0.0
    %1229 = vmatpush1.xpose.msra.mxu0 %v1218
    %1230 = vmatprep.subr.mxu0 0.0
    %1231 = vmatpush1.xpose.msra.mxu0 %v1220
    %1232 = vmatprep.subr.mxu0 0.0
    %1233 = vmatpush1.xpose.msra.mxu0 %v1222
    %1234 = vmatprep.subr.mxu0 0.0
    %1235 = vmatpush1.xpose.msra.mxu0 %v1224
    %1236 = vmatprep.subr.mxu0 0.0
    %1237 = vmatpush1.xpose.msra.mxu0 0.0
    %1238 = vmatprep.subr.mxu0 0.0
    %1239 = vmatpush1.xpose.msra.mxu0 0.0
    %1240 = vmatprep.subr.mxu0 0.0
    %1241 = vmatpush1.xpose.msra.mxu0 0.0
    %1242 = vmatprep.subr.mxu0 0.0
    %1243 = vmatpush1.xpose.msra.mxu0 0.0
    %1244 = vmatprep.subr.mxu0 0.0
    %1245 = vmatpush1.xpose.msra.mxu0 0.0
    %1246 = vmatprep.subr.mxu0 0.0
    %1247 = vmatpush1.xpose.msra.mxu0 0.0
    %1248 = vmatprep.subr.mxu0 0.0
    %1249 = vmatpush1.xpose.msra.mxu0 0.0
    %1250 = vmatprep.subr.mxu0 0.0
    %1251 = vmatpush1.xpose.msra.mxu0 0.0
    %1252 = vmatprep.subr.mxu0 0.0
    %1253 = vmatpush1.xpose.msra.mxu0 0.0
    %1254 = vmatprep.subr.mxu0 0.0
    %1255 = vmatpush1.xpose.msra.mxu0 0.0
    %1256 = vmatprep.subr.mxu0 0.0
    %1257 = vmatpush1.xpose.msra.mxu0 0.0
    %1258 = vmatprep.subr.mxu0 0.0
    %1259 = vmatpush1.xpose.msra.mxu0 0.0
    %1260 = vmatprep.subr.mxu0 0.0
    %1261 = vmatpush1.xpose.msra.mxu0 0.0
    %1262 = vmatprep.subr.mxu0 0.0
    %1263 = vmatpush1.xpose.msra.mxu0 0.0
    %1264 = vmatprep.subr.mxu0 0.0
    %1265 = vmatpush1.xpose.msra.mxu0 0.0
    %1266 = vmatprep.subr.mxu0 0.0
    %1267 = vmatpush1.xpose.msra.mxu0 0.0
    %1268 = vmatprep.subr.mxu0 0.0
    %1269 = vmatpush1.xpose.msra.mxu0 0.0
    %1270 = vmatprep.subr.mxu0 0.0
    %1271 = vmatpush1.xpose.msra.mxu0 0.0
    %1272 = vmatprep.subr.mxu0 0.0
    %1273 = vmatpush1.xpose.msra.mxu0 0.0
    %1274 = vmatprep.subr.mxu0 0.0
    %1275 = vmatpush1.xpose.msra.mxu0 0.0
    %1276 = vmatprep.subr.mxu0 0.0
    %1277 = vmatpush1.xpose.msra.mxu0 0.0
    %1278 = vmatprep.subr.mxu0 0.0
    %1279 = vmatpush1.xpose.msra.mxu0 0.0
    %1280 = vmatprep.subr.mxu0 0.0
    %1281 = vmatpush1.xpose.msra.mxu0 0.0
    %1282 = vmatprep.subr.mxu0 0.0
    %1283 = vmatpush1.xpose.msra.mxu0 0.0
    %1284 = vmatprep.subr.mxu0 0.0
    %1285 = vmatpush1.xpose.msra.mxu0 0.0
    %1286 = vmatprep.subr.mxu0 0.0
    %1287 = vmatpush1.xpose.msra.mxu0 0.0
    %1288 = vmatprep.subr.mxu0 0.0
    %1289 = vmatpush1.xpose.msra.mxu0 0.0
    %1290 = vmatprep.mubr.f32.mxu0 0.0
    %1291 = vmatmul.mubr.f32.gmra.mrb[0].mxu0 %v1206
    %v1292 = vpop.f32.mrb[0].mxu0
    %v1293 = vadd.f32 0.0, %v1292
    %v1294 = vpop.f32.mrb[0].mxu0
    %1295 = vmatprep.mubr.f32.mxu0 0.0
    %1296 = vmatmul.mubr.f32.gmra.mrb[0].mxu0 %v1208
    %v1297 = vpop.f32.mrb[0].mxu0
    %v1298 = vadd.f32 0.0, %v1297
    %v1299 = vpop.f32.mrb[0].mxu0
    %1300 = vmatprep.mubr.f32.mxu0 0.0
    %1301 = vmatmul.mubr.f32.gmra.mrb[0].mxu0 %v1210
    %v1302 = vpop.f32.mrb[0].mxu0
    %v1303 = vadd.f32 0.0, %v1302
    %v1304 = vpop.f32.mrb[0].mxu0
    %1305 = vmatprep.mubr.f32.mxu0 0.0
    %1306 = vmatmul.mubr.f32.gmra.mrb[0].mxu0 %v1212
    %v1307 = vpop.f32.mrb[0].mxu0
    %v1308 = vadd.f32 0.0, %v1307
    %v1309 = vpop.f32.mrb[0].mxu0
    %1310 = vmatprep.mubr.f32.mxu0 0.0
    %1311 = vmatmul.mubr.f32.gmra.mrb[0].mxu0 %v1214
    %v1312 = vpop.f32.mrb[0].mxu0
    %v1313 = vadd.f32 0.0, %v1312
    %v1314 = vpop.f32.mrb[0].mxu0
    %1315 = vdwg.mxu0
    %v1316 = vmul.f32 %v1293, 0.35355338
    %v1317 = vmul.f32 %v1298, 0.35355338
    %v1318 = vmul.f32 %v1303, 0.35355338
    %v1319 = vmul.f32 %v1308, 0.35355338
    %v1320 = vmul.f32 %v1313, 0.35355338
    %v1321 = vadd.f32 %v1316, %v231
    %v1322 = vadd.f32 %v1317, %v232
    %v1323 = vadd.f32 %v1318, %v233
    %v1324 = vadd.f32 %v1319, %v234
    %v1325 = vadd.f32 %v1320, %v235
    %v1326 = vsel %vm482, %v1321, -inf
    %1327 = vmax.xlane.f32.xlu0 %v1326
    %v1328 = vpop.xlane.xlu0 %1327
    %v1329 = vsel %vm482, %v1322, -inf
    %1330 = vmax.xlane.f32.xlu0 %v1329
    %v1331 = vpop.xlane.xlu0 %1330
    %v1332 = vsel %vm482, %v1323, -inf
    %1333 = vmax.xlane.f32.xlu0 %v1332
    %v1334 = vpop.xlane.xlu0 %1333
    %v1335 = vsel %vm482, %v1324, -inf
    %1336 = vmax.xlane.f32.xlu0 %v1335
    %v1337 = vpop.xlane.xlu0 %1336
    %v1338 = vsel %vm495, %v1325, -inf
    %1339 = vmax.xlane.f32.xlu0 %v1338
    %v1340 = vpop.xlane.xlu0 %1339
    %v1341 = vsub.f32 %v1321, %v1328
    %v1342 = vsub.f32 %v1322, %v1331
    %v1343 = vsub.f32 %v1323, %v1334
    %v1344 = vsub.f32 %v1324, %v1337
    %v1345 = vsub.f32 %v1325, %v1340
    %v1346 = vmul.f32 %v1341, 1.442695
    %v1347 = vpow.pop %v1346
    %v1348 = vmul.f32 %v1342, 1.442695
    %v1349 = vpow.pop %v1348
    %v1350 = vmul.f32 %v1343, 1.442695
    %v1351 = vpow.pop %v1350
    %v1352 = vmul.f32 %v1344, 1.442695
    %v1353 = vpow.pop %v1352
    %v1354 = vmul.f32 %v1345, 1.442695
    %v1355 = vpow.pop %v1354
    %v1356 = vsel %vm482, %v1347, 0.0
    %1357 = vadd.xlane.f32.xlu0 %v1356
    %v1358 = vpop.xlane.xlu0 %1357
    %v1359 = vsel %vm482, %v1349, 0.0
    %1360 = vadd.xlane.f32.xlu0 %v1359
    %v1361 = vpop.xlane.xlu0 %1360
    %v1362 = vsel %vm482, %v1351, 0.0
    %1363 = vadd.xlane.f32.xlu0 %v1362
    %v1364 = vpop.xlane.xlu0 %1363
    %v1365 = vsel %vm482, %v1353, 0.0
    %1366 = vadd.xlane.f32.xlu0 %v1365
    %v1367 = vpop.xlane.xlu0 %1366
    %v1368 = vsel %vm495, %v1355, 0.0
    %1369 = vadd.xlane.f32.xlu0 %v1368
    %v1370 = vpop.xlane.xlu0 %1369
    %v1371 = vrcp.pop %v1358
    %v1372 = vrcp.pop %v1361
    %v1373 = vrcp.pop %v1364
    %v1374 = vrcp.pop %v1367
    %v1375 = vrcp.pop %v1370
    %v1376 = vmul.f32 %v1347, %v1371
    %v1377 = vmul.f32 %v1349, %v1372
    %v1378 = vmul.f32 %v1351, %v1373
    %v1379 = vmul.f32 %v1353, %v1374
    %v1380 = vmul.f32 %v1355, %v1375
    %1381 = vrot.lane.b32.xlu0 %v323, 48
    %v1382 = vpop.permute.xlu0 %1381
    %1383 = vrot.lane.b32.xlu0 %v328, 48
    %v1384 = vpop.permute.xlu0 %1383
    %1385 = vrot.lane.b32.xlu0 %v333, 48
    %v1386 = vpop.permute.xlu0 %1385
    %1387 = vrot.lane.b32.xlu0 %v338, 48
    %v1388 = vpop.permute.xlu0 %1387
    %1389 = vrot.lane.b32.xlu0 %v343, 48
    %v1390 = vpop.permute.xlu0 %1389
    %v1396 = vsel %vm482, %v1376, 0
    %v1399 = vsel %vm482, %v1377, 0
    %v1402 = vsel %vm482, %v1378, 0
    %v1405 = vsel %vm482, %v1379, 0
    %v1408 = vsel %vm482, %v1380, 0
    %v1410 = vsel %vm137, %v1390, 0
    %1412 = vmatprep.subr.mxu0 0.0
    %1413 = vmatpush1.msra.mxu0 %v1382
    %1414 = vmatprep.subr.mxu0 0.0
    %1415 = vmatpush1.msra.mxu0 %v1384
    %1416 = vmatprep.subr.mxu0 0.0
    %1417 = vmatpush1.msra.mxu0 %v1386
    %1418 = vmatprep.subr.mxu0 0.0
    %1419 = vmatpush1.msra.mxu0 %v1388
    %1420 = vmatprep.subr.mxu0 0.0
    %1421 = vmatpush1.msra.mxu0 %v1410
    %1422 = vmatprep.subr.mxu0 0.0
    %1423 = vmatpush1.msra.mxu0 0.0
    %1424 = vmatprep.subr.mxu0 0.0
    %1425 = vmatpush1.msra.mxu0 0.0
    %1426 = vmatprep.subr.mxu0 0.0
    %1427 = vmatpush1.msra.mxu0 0.0
    %1428 = vmatprep.subr.mxu0 0.0
    %1429 = vmatpush1.msra.mxu0 0.0
    %1430 = vmatprep.subr.mxu0 0.0
    %1431 = vmatpush1.msra.mxu0 0.0
    %1432 = vmatprep.subr.mxu0 0.0
    %1433 = vmatpush1.msra.mxu0 0.0
    %1434 = vmatprep.subr.mxu0 0.0
    %1435 = vmatpush1.msra.mxu0 0.0
    %1436 = vmatprep.subr.mxu0 0.0
    %1437 = vmatpush1.msra.mxu0 0.0
    %1438 = vmatprep.subr.mxu0 0.0
    %1439 = vmatpush1.msra.mxu0 0.0
    %1440 = vmatprep.subr.mxu0 0.0
    %1441 = vmatpush1.msra.mxu0 0.0
    %1442 = vmatprep.subr.mxu0 0.0
    %1443 = vmatpush1.msra.mxu0 0.0
    %1444 = vmatprep.subr.mxu0 0.0
    %1445 = vmatpush1.msra.mxu0 0.0
    %1446 = vmatprep.subr.mxu0 0.0
    %1447 = vmatpush1.msra.mxu0 0.0
    %1448 = vmatprep.subr.mxu0 0.0
    %1449 = vmatpush1.msra.mxu0 0.0
    %1450 = vmatprep.subr.mxu0 0.0
    %1451 = vmatpush1.msra.mxu0 0.0
    %1452 = vmatprep.subr.mxu0 0.0
    %1453 = vmatpush1.msra.mxu0 0.0
    %1454 = vmatprep.subr.mxu0 0.0
    %1455 = vmatpush1.msra.mxu0 0.0
    %1456 = vmatprep.subr.mxu0 0.0
    %1457 = vmatpush1.msra.mxu0 0.0
    %1458 = vmatprep.subr.mxu0 0.0
    %1459 = vmatpush1.msra.mxu0 0.0
    %1460 = vmatprep.subr.mxu0 0.0
    %1461 = vmatpush1.msra.mxu0 0.0
    %1462 = vmatprep.subr.mxu0 0.0
    %1463 = vmatpush1.msra.mxu0 0.0
    %1464 = vmatprep.subr.mxu0 0.0
    %1465 = vmatpush1.msra.mxu0 0.0
    %1466 = vmatprep.subr.mxu0 0.0
    %1467 = vmatpush1.msra.mxu0 0.0
    %1468 = vmatprep.subr.mxu0 0.0
    %1469 = vmatpush1.msra.mxu0 0.0
    %1470 = vmatprep.subr.mxu0 0.0
    %1471 = vmatpush1.msra.mxu0 0.0
    %1472 = vmatprep.subr.mxu0 0.0
    %1473 = vmatpush1.msra.mxu0 0.0
    %1474 = vmatprep.subr.mxu0 0.0
    %1475 = vmatpush1.msra.mxu0 0.0
    %1476 = vmatprep.mubr.f32.mxu0 0.0
    %1477 = vmatmul.mubr.f32.gmra.mrb[0].mxu0 %v1396
    %v1478 = vpop.f32.mrb[0].mxu0
    %v1479 = vadd.f32 0.0, %v1478
    %v1480 = vpop.f32.mrb[0].mxu0
    %1481 = vmatprep.mubr.f32.mxu0 0.0
    %1482 = vmatmul.mubr.f32.gmra.mrb[0].mxu0 %v1399
    %v1483 = vpop.f32.mrb[0].mxu0
    %v1484 = vadd.f32 0.0, %v1483
    %v1485 = vpop.f32.mrb[0].mxu0
    %1486 = vmatprep.mubr.f32.mxu0 0.0
    %1487 = vmatmul.mubr.f32.gmra.mrb[0].mxu0 %v1402
    %v1488 = vpop.f32.mrb[0].mxu0
    %v1489 = vadd.f32 0.0, %v1488
    %v1490 = vpop.f32.mrb[0].mxu0
    %1491 = vmatprep.mubr.f32.mxu0 0.0
    %1492 = vmatmul.mubr.f32.gmra.mrb[0].mxu0 %v1405
    %v1493 = vpop.f32.mrb[0].mxu0
    %v1494 = vadd.f32 0.0, %v1493
    %v1495 = vpop.f32.mrb[0].mxu0
    %1496 = vmatprep.mubr.f32.mxu0 0.0
    %1497 = vmatmul.mubr.f32.gmra.mrb[0].mxu0 %v1408
    %v1498 = vpop.f32.mrb[0].mxu0
    %v1499 = vadd.f32 0.0, %v1498
    %v1500 = vpop.f32.mrb[0].mxu0
    %1501 = vdwg.mxu0
    %v1503 = vsel %vm361, %v1479, 0
    %v1506 = vsel %vm361, %v1484, 0
    %v1509 = vsel %vm361, %v1489, 0
    %v1512 = vsel %vm361, %v1494, 0
    %v1515 = vsel %vm361, %v1499, 0
    %1517 = vmatprep.subr.mxu0 0.0
    %1518 = vmatpush1.msra.mxu0 %v97
    %1519 = vmatprep.subr.mxu0 0.0
    %1520 = vmatpush1.msra.mxu0 0.0
    %1521 = vmatprep.subr.mxu0 0.0
    %1522 = vmatpush1.msra.mxu0 0.0
    %1523 = vmatprep.subr.mxu0 0.0
    %1524 = vmatpush1.msra.mxu0 0.0
    %1525 = vmatprep.subr.mxu0 0.0
    %1526 = vmatpush1.msra.mxu0 0.0
    %1527 = vmatprep.subr.mxu0 0.0
    %1528 = vmatpush1.msra.mxu0 0.0
    %1529 = vmatprep.subr.mxu0 0.0
    %1530 = vmatpush1.msra.mxu0 0.0
    %1531 = vmatprep.subr.mxu0 0.0
    %1532 = vmatpush1.msra.mxu0 0.0
    %1533 = vmatprep.subr.mxu0 0.0
    %1534 = vmatpush1.msra.mxu0 0.0
    %1535 = vmatprep.subr.mxu0 0.0
    %1536 = vmatpush1.msra.mxu0 0.0
    %1537 = vmatprep.subr.mxu0 0.0
    %1538 = vmatpush1.msra.mxu0 0.0
    %1539 = vmatprep.subr.mxu0 0.0
    %1540 = vmatpush1.msra.mxu0 0.0
    %1541 = vmatprep.subr.mxu0 0.0
    %1542 = vmatpush1.msra.mxu0 0.0
    %1543 = vmatprep.subr.mxu0 0.0
    %1544 = vmatpush1.msra.mxu0 0.0
    %1545 = vmatprep.subr.mxu0 0.0
    %1546 = vmatpush1.msra.mxu0 0.0
    %1547 = vmatprep.subr.mxu0 0.0
    %1548 = vmatpush1.msra.mxu0 0.0
    %1549 = vmatprep.subr.mxu0 0.0
    %1550 = vmatpush1.msra.mxu0 0.0
    %1551 = vmatprep.subr.mxu0 0.0
    %1552 = vmatpush1.msra.mxu0 0.0
    %1553 = vmatprep.subr.mxu0 0.0
    %1554 = vmatpush1.msra.mxu0 0.0
    %1555 = vmatprep.subr.mxu0 0.0
    %1556 = vmatpush1.msra.mxu0 0.0
    %1557 = vmatprep.subr.mxu0 0.0
    %1558 = vmatpush1.msra.mxu0 0.0
    %1559 = vmatprep.subr.mxu0 0.0
    %1560 = vmatpush1.msra.mxu0 0.0
    %1561 = vmatprep.subr.mxu0 0.0
    %1562 = vmatpush1.msra.mxu0 0.0
    %1563 = vmatprep.subr.mxu0 0.0
    %1564 = vmatpush1.msra.mxu0 0.0
    %1565 = vmatprep.subr.mxu0 0.0
    %1566 = vmatpush1.msra.mxu0 0.0
    %1567 = vmatprep.subr.mxu0 0.0
    %1568 = vmatpush1.msra.mxu0 0.0
    %1569 = vmatprep.subr.mxu0 0.0
    %1570 = vmatpush1.msra.mxu0 0.0
    %1571 = vmatprep.subr.mxu0 0.0
    %1572 = vmatpush1.msra.mxu0 0.0
    %1573 = vmatprep.subr.mxu0 0.0
    %1574 = vmatpush1.msra.mxu0 0.0
    %1575 = vmatprep.subr.mxu0 0.0
    %1576 = vmatpush1.msra.mxu0 0.0
    %1577 = vmatprep.subr.mxu0 0.0
    %1578 = vmatpush1.msra.mxu0 0.0
    %1579 = vmatprep.subr.mxu0 0.0
    %1580 = vmatpush1.msra.mxu0 0.0
    %1581 = vmatprep.mubr.f32.mxu0 0.0
    %1582 = vmatmul.mubr.f32.gmra.mrb[0].mxu0 %v1503
    %v1583 = vpop.f32.mrb[0].mxu0
    %v1584 = vadd.f32 0.0, %v1583
    %v1585 = vpop.f32.mrb[0].mxu0
    %1586 = vmatprep.mubr.f32.mxu0 0.0
    %1587 = vmatmul.mubr.f32.gmra.mrb[0].mxu0 %v1506
    %v1588 = vpop.f32.mrb[0].mxu0
    %v1589 = vadd.f32 0.0, %v1588
    %v1590 = vpop.f32.mrb[0].mxu0
    %1591 = vmatprep.mubr.f32.mxu0 0.0
    %1592 = vmatmul.mubr.f32.gmra.mrb[0].mxu0 %v1509
    %v1593 = vpop.f32.mrb[0].mxu0
    %v1594 = vadd.f32 0.0, %v1593
    %v1595 = vpop.f32.mrb[0].mxu0
    %1596 = vmatprep.mubr.f32.mxu0 0.0
    %1597 = vmatmul.mubr.f32.gmra.mrb[0].mxu0 %v1512
    %v1598 = vpop.f32.mrb[0].mxu0
    %v1599 = vadd.f32 0.0, %v1598
    %v1600 = vpop.f32.mrb[0].mxu0
    %1601 = vmatprep.mubr.f32.mxu0 0.0
    %1602 = vmatmul.mubr.f32.gmra.mrb[0].mxu0 %v1515
    %v1603 = vpop.f32.mrb[0].mxu0
    %v1604 = vadd.f32 0.0, %v1603
    %v1605 = vpop.f32.mrb[0].mxu0
    %1606 = vdwg.mxu0
    %v1607 = vadd.f32 %v1163, %v1584
    %v1608 = vadd.f32 %v1168, %v1589
    %v1609 = vadd.f32 %v1173, %v1594
    %v1610 = vadd.f32 %v1178, %v1599
    %v1611 = vadd.f32 %v1183, %v1604
    %1612 = vrot.lane.b32.xlu0 %v323, 104
    %v1613 = vpop.permute.xlu0 %1612
    %1614 = vrot.lane.b32.xlu0 %v328, 104
    %v1615 = vpop.permute.xlu0 %1614
    %1616 = vrot.lane.b32.xlu0 %v333, 104
    %v1617 = vpop.permute.xlu0 %1616
    %1618 = vrot.lane.b32.xlu0 %v338, 104
    %v1619 = vpop.permute.xlu0 %1618
    %1620 = vrot.lane.b32.xlu0 %v343, 104
    %v1621 = vpop.permute.xlu0 %1620
    %1622 = vrot.lane.b32.xlu0 %v323, 72
    %v1623 = vpop.permute.xlu0 %1622
    %1624 = vrot.lane.b32.xlu0 %v328, 72
    %v1625 = vpop.permute.xlu0 %1624
    %1626 = vrot.lane.b32.xlu0 %v333, 72
    %v1627 = vpop.permute.xlu0 %1626
    %1628 = vrot.lane.b32.xlu0 %v338, 72
    %v1629 = vpop.permute.xlu0 %1628
    %1630 = vrot.lane.b32.xlu0 %v343, 72
    %v1631 = vpop.permute.xlu0 %1630
    %v1632 = vsel %vm361, %v1613, 0
    %v1634 = vsel %vm361, %v1615, 0
    %v1636 = vsel %vm361, %v1617, 0
    %v1638 = vsel %vm361, %v1619, 0
    %v1640 = vsel %vm361, %v1621, 0
    %v1642 = vsel %vm361, %v1623, 0
    %v1644 = vsel %vm361, %v1625, 0
    %v1646 = vsel %vm361, %v1627, 0
    %v1648 = vsel %vm361, %v1629, 0
    %v1650 = vsel %vm361, %v1631, 0
    %1652 = vmatprep.subr.mxu0 0.0
    %1653 = vmatpush1.xpose.msra.mxu0 %v1642
    %1654 = vmatprep.subr.mxu0 0.0
    %1655 = vmatpush1.xpose.msra.mxu0 %v1644
    %1656 = vmatprep.subr.mxu0 0.0
    %1657 = vmatpush1.xpose.msra.mxu0 %v1646
    %1658 = vmatprep.subr.mxu0 0.0
    %1659 = vmatpush1.xpose.msra.mxu0 %v1648
    %1660 = vmatprep.subr.mxu0 0.0
    %1661 = vmatpush1.xpose.msra.mxu0 %v1650
    %1662 = vmatprep.subr.mxu0 0.0
    %1663 = vmatpush1.xpose.msra.mxu0 0.0
    %1664 = vmatprep.subr.mxu0 0.0
    %1665 = vmatpush1.xpose.msra.mxu0 0.0
    %1666 = vmatprep.subr.mxu0 0.0
    %1667 = vmatpush1.xpose.msra.mxu0 0.0
    %1668 = vmatprep.subr.mxu0 0.0
    %1669 = vmatpush1.xpose.msra.mxu0 0.0
    %1670 = vmatprep.subr.mxu0 0.0
    %1671 = vmatpush1.xpose.msra.mxu0 0.0
    %1672 = vmatprep.subr.mxu0 0.0
    %1673 = vmatpush1.xpose.msra.mxu0 0.0
    %1674 = vmatprep.subr.mxu0 0.0
    %1675 = vmatpush1.xpose.msra.mxu0 0.0
    %1676 = vmatprep.subr.mxu0 0.0
    %1677 = vmatpush1.xpose.msra.mxu0 0.0
    %1678 = vmatprep.subr.mxu0 0.0
    %1679 = vmatpush1.xpose.msra.mxu0 0.0
    %1680 = vmatprep.subr.mxu0 0.0
    %1681 = vmatpush1.xpose.msra.mxu0 0.0
    %1682 = vmatprep.subr.mxu0 0.0
    %1683 = vmatpush1.xpose.msra.mxu0 0.0
    %1684 = vmatprep.subr.mxu0 0.0
    %1685 = vmatpush1.xpose.msra.mxu0 0.0
    %1686 = vmatprep.subr.mxu0 0.0
    %1687 = vmatpush1.xpose.msra.mxu0 0.0
    %1688 = vmatprep.subr.mxu0 0.0
    %1689 = vmatpush1.xpose.msra.mxu0 0.0
    %1690 = vmatprep.subr.mxu0 0.0
    %1691 = vmatpush1.xpose.msra.mxu0 0.0
    %1692 = vmatprep.subr.mxu0 0.0
    %1693 = vmatpush1.xpose.msra.mxu0 0.0
    %1694 = vmatprep.subr.mxu0 0.0
    %1695 = vmatpush1.xpose.msra.mxu0 0.0
    %1696 = vmatprep.subr.mxu0 0.0
    %1697 = vmatpush1.xpose.msra.mxu0 0.0
    %1698 = vmatprep.subr.mxu0 0.0
    %1699 = vmatpush1.xpose.msra.mxu0 0.0
    %1700 = vmatprep.subr.mxu0 0.0
    %1701 = vmatpush1.xpose.msra.mxu0 0.0
    %1702 = vmatprep.subr.mxu0 0.0
    %1703 = vmatpush1.xpose.msra.mxu0 0.0
    %1704 = vmatprep.subr.mxu0 0.0
    %1705 = vmatpush1.xpose.msra.mxu0 0.0
    %1706 = vmatprep.subr.mxu0 0.0
    %1707 = vmatpush1.xpose.msra.mxu0 0.0
    %1708 = vmatprep.subr.mxu0 0.0
    %1709 = vmatpush1.xpose.msra.mxu0 0.0
    %1710 = vmatprep.subr.mxu0 0.0
    %1711 = vmatpush1.xpose.msra.mxu0 0.0
    %1712 = vmatprep.subr.mxu0 0.0
    %1713 = vmatpush1.xpose.msra.mxu0 0.0
    %1714 = vmatprep.subr.mxu0 0.0
    %1715 = vmatpush1.xpose.msra.mxu0 0.0
    %1716 = vmatprep.mubr.f32.mxu0 0.0
    %1717 = vmatmul.mubr.f32.gmra.mrb[0].mxu0 %v1632
    %v1718 = vpop.f32.mrb[0].mxu0
    %v1719 = vadd.f32 0.0, %v1718
    %v1720 = vpop.f32.mrb[0].mxu0
    %1721 = vmatprep.mubr.f32.mxu0 0.0
    %1722 = vmatmul.mubr.f32.gmra.mrb[0].mxu0 %v1634
    %v1723 = vpop.f32.mrb[0].mxu0
    %v1724 = vadd.f32 0.0, %v1723
    %v1725 = vpop.f32.mrb[0].mxu0
    %1726 = vmatprep.mubr.f32.mxu0 0.0
    %1727 = vmatmul.mubr.f32.gmra.mrb[0].mxu0 %v1636
    %v1728 = vpop.f32.mrb[0].mxu0
    %v1729 = vadd.f32 0.0, %v1728
    %v1730 = vpop.f32.mrb[0].mxu0
    %1731 = vmatprep.mubr.f32.mxu0 0.0
    %1732 = vmatmul.mubr.f32.gmra.mrb[0].mxu0 %v1638
    %v1733 = vpop.f32.mrb[0].mxu0
    %v1734 = vadd.f32 0.0, %v1733
    %v1735 = vpop.f32.mrb[0].mxu0
    %1736 = vmatprep.mubr.f32.mxu0 0.0
    %1737 = vmatmul.mubr.f32.gmra.mrb[0].mxu0 %v1640
    %v1738 = vpop.f32.mrb[0].mxu0
    %v1739 = vadd.f32 0.0, %v1738
    %v1740 = vpop.f32.mrb[0].mxu0
    %1741 = vdwg.mxu0
    %v1742 = vmul.f32 %v1719, 0.35355338
    %v1743 = vmul.f32 %v1724, 0.35355338
    %v1744 = vmul.f32 %v1729, 0.35355338
    %v1745 = vmul.f32 %v1734, 0.35355338
    %v1746 = vmul.f32 %v1739, 0.35355338
    %v1747 = vadd.f32 %v1742, %v231
    %v1748 = vadd.f32 %v1743, %v232
    %v1749 = vadd.f32 %v1744, %v233
    %v1750 = vadd.f32 %v1745, %v234
    %v1751 = vadd.f32 %v1746, %v235
    %v1752 = vsel %vm482, %v1747, -inf
    %1753 = vmax.xlane.f32.xlu0 %v1752
    %v1754 = vpop.xlane.xlu0 %1753
    %v1755 = vsel %vm482, %v1748, -inf
    %1756 = vmax.xlane.f32.xlu0 %v1755
    %v1757 = vpop.xlane.xlu0 %1756
    %v1758 = vsel %vm482, %v1749, -inf
    %1759 = vmax.xlane.f32.xlu0 %v1758
    %v1760 = vpop.xlane.xlu0 %1759
    %v1761 = vsel %vm482, %v1750, -inf
    %1762 = vmax.xlane.f32.xlu0 %v1761
    %v1763 = vpop.xlane.xlu0 %1762
    %v1764 = vsel %vm495, %v1751, -inf
    %1765 = vmax.xlane.f32.xlu0 %v1764
    %v1766 = vpop.xlane.xlu0 %1765
    %v1767 = vsub.f32 %v1747, %v1754
    %v1768 = vsub.f32 %v1748, %v1757
    %v1769 = vsub.f32 %v1749, %v1760
    %v1770 = vsub.f32 %v1750, %v1763
    %v1771 = vsub.f32 %v1751, %v1766
    %v1772 = vmul.f32 %v1767, 1.442695
    %v1773 = vpow.pop %v1772
    %v1774 = vmul.f32 %v1768, 1.442695
    %v1775 = vpow.pop %v1774
    %v1776 = vmul.f32 %v1769, 1.442695
    %v1777 = vpow.pop %v1776
    %v1778 = vmul.f32 %v1770, 1.442695
    %v1779 = vpow.pop %v1778
    %v1780 = vmul.f32 %v1771, 1.442695
    %v1781 = vpow.pop %v1780
    %v1782 = vsel %vm482, %v1773, 0.0
    %1783 = vadd.xlane.f32.xlu0 %v1782
    %v1784 = vpop.xlane.xlu0 %1783
    %v1785 = vsel %vm482, %v1775, 0.0
    %1786 = vadd.xlane.f32.xlu0 %v1785
    %v1787 = vpop.xlane.xlu0 %1786
    %v1788 = vsel %vm482, %v1777, 0.0
    %1789 = vadd.xlane.f32.xlu0 %v1788
    %v1790 = vpop.xlane.xlu0 %1789
    %v1791 = vsel %vm482, %v1779, 0.0
    %1792 = vadd.xlane.f32.xlu0 %v1791
    %v1793 = vpop.xlane.xlu0 %1792
    %v1794 = vsel %vm495, %v1781, 0.0
    %1795 = vadd.xlane.f32.xlu0 %v1794
    %v1796 = vpop.xlane.xlu0 %1795
    %v1797 = vrcp.pop %v1784
    %v1798 = vrcp.pop %v1787
    %v1799 = vrcp.pop %v1790
    %v1800 = vrcp.pop %v1793
    %v1801 = vrcp.pop %v1796
    %v1802 = vmul.f32 %v1773, %v1797
    %v1803 = vmul.f32 %v1775, %v1798
    %v1804 = vmul.f32 %v1777, %v1799
    %v1805 = vmul.f32 %v1779, %v1800
    %v1806 = vmul.f32 %v1781, %v1801
    %1807 = vrot.lane.b32.xlu0 %v323, 40
    %v1808 = vpop.permute.xlu0 %1807
    %1809 = vrot.lane.b32.xlu0 %v328, 40
    %v1810 = vpop.permute.xlu0 %1809
    %1811 = vrot.lane.b32.xlu0 %v333, 40
    %v1812 = vpop.permute.xlu0 %1811
    %1813 = vrot.lane.b32.xlu0 %v338, 40
    %v1814 = vpop.permute.xlu0 %1813
    %1815 = vrot.lane.b32.xlu0 %v343, 40
    %v1816 = vpop.permute.xlu0 %1815
    %v1822 = vsel %vm482, %v1802, 0
    %v1825 = vsel %vm482, %v1803, 0
    %v1828 = vsel %vm482, %v1804, 0
    %v1831 = vsel %vm482, %v1805, 0
    %v1834 = vsel %vm482, %v1806, 0
    %v1836 = vsel %vm137, %v1816, 0
    %1838 = vmatprep.subr.mxu0 0.0
    %1839 = vmatpush1.msra.mxu0 %v1808
    %1840 = vmatprep.subr.mxu0 0.0
    %1841 = vmatpush1.msra.mxu0 %v1810
    %1842 = vmatprep.subr.mxu0 0.0
    %1843 = vmatpush1.msra.mxu0 %v1812
    %1844 = vmatprep.subr.mxu0 0.0
    %1845 = vmatpush1.msra.mxu0 %v1814
    %1846 = vmatprep.subr.mxu0 0.0
    %1847 = vmatpush1.msra.mxu0 %v1836
    %1848 = vmatprep.subr.mxu0 0.0
    %1849 = vmatpush1.msra.mxu0 0.0
    %1850 = vmatprep.subr.mxu0 0.0
    %1851 = vmatpush1.msra.mxu0 0.0
    %1852 = vmatprep.subr.mxu0 0.0
    %1853 = vmatpush1.msra.mxu0 0.0
    %1854 = vmatprep.subr.mxu0 0.0
    %1855 = vmatpush1.msra.mxu0 0.0
    %1856 = vmatprep.subr.mxu0 0.0
    %1857 = vmatpush1.msra.mxu0 0.0
    %1858 = vmatprep.subr.mxu0 0.0
    %1859 = vmatpush1.msra.mxu0 0.0
    %1860 = vmatprep.subr.mxu0 0.0
    %1861 = vmatpush1.msra.mxu0 0.0
    %1862 = vmatprep.subr.mxu0 0.0
    %1863 = vmatpush1.msra.mxu0 0.0
    %1864 = vmatprep.subr.mxu0 0.0
    %1865 = vmatpush1.msra.mxu0 0.0
    %1866 = vmatprep.subr.mxu0 0.0
    %1867 = vmatpush1.msra.mxu0 0.0
    %1868 = vmatprep.subr.mxu0 0.0
    %1869 = vmatpush1.msra.mxu0 0.0
    %1870 = vmatprep.subr.mxu0 0.0
    %1871 = vmatpush1.msra.mxu0 0.0
    %1872 = vmatprep.subr.mxu0 0.0
    %1873 = vmatpush1.msra.mxu0 0.0
    %1874 = vmatprep.subr.mxu0 0.0
    %1875 = vmatpush1.msra.mxu0 0.0
    %1876 = vmatprep.subr.mxu0 0.0
    %1877 = vmatpush1.msra.mxu0 0.0
    %1878 = vmatprep.subr.mxu0 0.0
    %1879 = vmatpush1.msra.mxu0 0.0
    %1880 = vmatprep.subr.mxu0 0.0
    %1881 = vmatpush1.msra.mxu0 0.0
    %1882 = vmatprep.subr.mxu0 0.0
    %1883 = vmatpush1.msra.mxu0 0.0
    %1884 = vmatprep.subr.mxu0 0.0
    %1885 = vmatpush1.msra.mxu0 0.0
    %1886 = vmatprep.subr.mxu0 0.0
    %1887 = vmatpush1.msra.mxu0 0.0
    %1888 = vmatprep.subr.mxu0 0.0
    %1889 = vmatpush1.msra.mxu0 0.0
    %1890 = vmatprep.subr.mxu0 0.0
    %1891 = vmatpush1.msra.mxu0 0.0
    %1892 = vmatprep.subr.mxu0 0.0
    %1893 = vmatpush1.msra.mxu0 0.0
    %1894 = vmatprep.subr.mxu0 0.0
    %1895 = vmatpush1.msra.mxu0 0.0
    %1896 = vmatprep.subr.mxu0 0.0
    %1897 = vmatpush1.msra.mxu0 0.0
    %1898 = vmatprep.subr.mxu0 0.0
    %1899 = vmatpush1.msra.mxu0 0.0
    %1900 = vmatprep.subr.mxu0 0.0
    %1901 = vmatpush1.msra.mxu0 0.0
    %1902 = vmatprep.mubr.f32.mxu0 0.0
    %1903 = vmatmul.mubr.f32.gmra.mrb[0].mxu0 %v1822
    %v1904 = vpop.f32.mrb[0].mxu0
    %v1905 = vadd.f32 0.0, %v1904
    %v1906 = vpop.f32.mrb[0].mxu0
    %1907 = vmatprep.mubr.f32.mxu0 0.0
    %1908 = vmatmul.mubr.f32.gmra.mrb[0].mxu0 %v1825
    %v1909 = vpop.f32.mrb[0].mxu0
    %v1910 = vadd.f32 0.0, %v1909
    %v1911 = vpop.f32.mrb[0].mxu0
    %1912 = vmatprep.mubr.f32.mxu0 0.0
    %1913 = vmatmul.mubr.f32.gmra.mrb[0].mxu0 %v1828
    %v1914 = vpop.f32.mrb[0].mxu0
    %v1915 = vadd.f32 0.0, %v1914
    %v1916 = vpop.f32.mrb[0].mxu0
    %1917 = vmatprep.mubr.f32.mxu0 0.0
    %1918 = vmatmul.mubr.f32.gmra.mrb[0].mxu0 %v1831
    %v1919 = vpop.f32.mrb[0].mxu0
    %v1920 = vadd.f32 0.0, %v1919
    %v1921 = vpop.f32.mrb[0].mxu0
    %1922 = vmatprep.mubr.f32.mxu0 0.0
    %1923 = vmatmul.mubr.f32.gmra.mrb[0].mxu0 %v1834
    %v1924 = vpop.f32.mrb[0].mxu0
    %v1925 = vadd.f32 0.0, %v1924
    %v1926 = vpop.f32.mrb[0].mxu0
    %1927 = vdwg.mxu0
    %v1929 = vsel %vm361, %v1905, 0
    %v1932 = vsel %vm361, %v1910, 0
    %v1935 = vsel %vm361, %v1915, 0
    %v1938 = vsel %vm361, %v1920, 0
    %v1941 = vsel %vm361, %v1925, 0
    %1943 = vmatprep.subr.mxu0 0.0
    %1944 = vmatpush1.msra.mxu0 %v98
    %1945 = vmatprep.subr.mxu0 0.0
    %1946 = vmatpush1.msra.mxu0 0.0
    %1947 = vmatprep.subr.mxu0 0.0
    %1948 = vmatpush1.msra.mxu0 0.0
    %1949 = vmatprep.subr.mxu0 0.0
    %1950 = vmatpush1.msra.mxu0 0.0
    %1951 = vmatprep.subr.mxu0 0.0
    %1952 = vmatpush1.msra.mxu0 0.0
    %1953 = vmatprep.subr.mxu0 0.0
    %1954 = vmatpush1.msra.mxu0 0.0
    %1955 = vmatprep.subr.mxu0 0.0
    %1956 = vmatpush1.msra.mxu0 0.0
    %1957 = vmatprep.subr.mxu0 0.0
    %1958 = vmatpush1.msra.mxu0 0.0
    %1959 = vmatprep.subr.mxu0 0.0
    %1960 = vmatpush1.msra.mxu0 0.0
    %1961 = vmatprep.subr.mxu0 0.0
    %1962 = vmatpush1.msra.mxu0 0.0
    %1963 = vmatprep.subr.mxu0 0.0
    %1964 = vmatpush1.msra.mxu0 0.0
    %1965 = vmatprep.subr.mxu0 0.0
    %1966 = vmatpush1.msra.mxu0 0.0
    %1967 = vmatprep.subr.mxu0 0.0
    %1968 = vmatpush1.msra.mxu0 0.0
    %1969 = vmatprep.subr.mxu0 0.0
    %1970 = vmatpush1.msra.mxu0 0.0
    %1971 = vmatprep.subr.mxu0 0.0
    %1972 = vmatpush1.msra.mxu0 0.0
    %1973 = vmatprep.subr.mxu0 0.0
    %1974 = vmatpush1.msra.mxu0 0.0
    %1975 = vmatprep.subr.mxu0 0.0
    %1976 = vmatpush1.msra.mxu0 0.0
    %1977 = vmatprep.subr.mxu0 0.0
    %1978 = vmatpush1.msra.mxu0 0.0
    %1979 = vmatprep.subr.mxu0 0.0
    %1980 = vmatpush1.msra.mxu0 0.0
    %1981 = vmatprep.subr.mxu0 0.0
    %1982 = vmatpush1.msra.mxu0 0.0
    %1983 = vmatprep.subr.mxu0 0.0
    %1984 = vmatpush1.msra.mxu0 0.0
    %1985 = vmatprep.subr.mxu0 0.0
    %1986 = vmatpush1.msra.mxu0 0.0
    %1987 = vmatprep.subr.mxu0 0.0
    %1988 = vmatpush1.msra.mxu0 0.0
    %1989 = vmatprep.subr.mxu0 0.0
    %1990 = vmatpush1.msra.mxu0 0.0
    %1991 = vmatprep.subr.mxu0 0.0
    %1992 = vmatpush1.msra.mxu0 0.0
    %1993 = vmatprep.subr.mxu0 0.0
    %1994 = vmatpush1.msra.mxu0 0.0
    %1995 = vmatprep.subr.mxu0 0.0
    %1996 = vmatpush1.msra.mxu0 0.0
    %1997 = vmatprep.subr.mxu0 0.0
    %1998 = vmatpush1.msra.mxu0 0.0
    %1999 = vmatprep.subr.mxu0 0.0
    %2000 = vmatpush1.msra.mxu0 0.0
    %2001 = vmatprep.subr.mxu0 0.0
    %2002 = vmatpush1.msra.mxu0 0.0
    %2003 = vmatprep.subr.mxu0 0.0
    %2004 = vmatpush1.msra.mxu0 0.0
    %2005 = vmatprep.subr.mxu0 0.0
    %2006 = vmatpush1.msra.mxu0 0.0
    %2007 = vmatprep.mubr.f32.mxu0 0.0
    %2008 = vmatmul.mubr.f32.gmra.mrb[0].mxu0 %v1929
    %v2009 = vpop.f32.mrb[0].mxu0
    %v2010 = vadd.f32 0.0, %v2009
    %v2011 = vpop.f32.mrb[0].mxu0
    %2012 = vmatprep.mubr.f32.mxu0 0.0
    %2013 = vmatmul.mubr.f32.gmra.mrb[0].mxu0 %v1932
    %v2014 = vpop.f32.mrb[0].mxu0
    %v2015 = vadd.f32 0.0, %v2014
    %v2016 = vpop.f32.mrb[0].mxu0
    %2017 = vmatprep.mubr.f32.mxu0 0.0
    %2018 = vmatmul.mubr.f32.gmra.mrb[0].mxu0 %v1935
    %v2019 = vpop.f32.mrb[0].mxu0
    %v2020 = vadd.f32 0.0, %v2019
    %v2021 = vpop.f32.mrb[0].mxu0
    %2022 = vmatprep.mubr.f32.mxu0 0.0
    %2023 = vmatmul.mubr.f32.gmra.mrb[0].mxu0 %v1938
    %v2024 = vpop.f32.mrb[0].mxu0
    %v2025 = vadd.f32 0.0, %v2024
    %v2026 = vpop.f32.mrb[0].mxu0
    %2027 = vmatprep.mubr.f32.mxu0 0.0
    %2028 = vmatmul.mubr.f32.gmra.mrb[0].mxu0 %v1941
    %v2029 = vpop.f32.mrb[0].mxu0
    %v2030 = vadd.f32 0.0, %v2029
    %v2031 = vpop.f32.mrb[0].mxu0
    %2032 = vdwg.mxu0
    %v2033 = vadd.f32 %v1607, %v2010
    %v2034 = vadd.f32 %v1608, %v2015
    %v2035 = vadd.f32 %v1609, %v2020
    %v2036 = vadd.f32 %v1610, %v2025
    %v2037 = vadd.f32 %v1611, %v2030
    %v2038 = vlaneseq
    %v2039 = vshrl.u32 %v2038, 7
    %v2040 = vsub.s32 0, %v2039
    %v2041 = vrot.slane %v77, %v2040
    %v2042 = vadd.f32 %v2033, %v2041
    %v2043 = vadd.f32 %v2034, %v2041
    %v2044 = vadd.f32 %v2035, %v2041
    %v2045 = vadd.f32 %v2036, %v2041
    %v2046 = vadd.f32 %v2037, %v2041
    %v2047 = vadd.f32 %v208, %v2042
    %v2048 = vadd.f32 %v213, %v2043
    %v2049 = vadd.f32 %v218, %v2044
    %v2050 = vadd.f32 %v223, %v2045
    %v2051 = vadd.f32 %v228, %v2046
    %v2052 = vsel %vm240, %v2047, 0.0
    %2053 = vadd.xlane.f32.xlu0 %v2052
    %v2054 = vpop.xlane.xlu0 %2053
    %v2055 = vsel %vm240, %v2048, 0.0
    %2056 = vadd.xlane.f32.xlu0 %v2055
    %v2057 = vpop.xlane.xlu0 %2056
    %v2058 = vsel %vm240, %v2049, 0.0
    %2059 = vadd.xlane.f32.xlu0 %v2058
    %v2060 = vpop.xlane.xlu0 %2059
    %v2061 = vsel %vm240, %v2050, 0.0
    %2062 = vadd.xlane.f32.xlu0 %v2061
    %v2063 = vpop.xlane.xlu0 %2062
    %vm2064 = vcmask 257024
    %v2065 = vsel %vm2064, %v2051, 0.0
    %2066 = vadd.xlane.f32.xlu0 %v2065
    %v2067 = vpop.xlane.xlu0 %2066
    %v2068 = vrcp.pop 32.0
    %v2069 = vmul.f32 %v2054, %v2068
    %v2070 = vmul.f32 %v2057, %v2068
    %v2071 = vmul.f32 %v2060, %v2068
    %v2072 = vmul.f32 %v2063, %v2068
    %v2073 = vmul.f32 %v2067, %v2068
    %v2074 = vsub.f32 %v2047, %v2069
    %v2075 = vsub.f32 %v2048, %v2070
    %v2076 = vsub.f32 %v2049, %v2071
    %v2077 = vsub.f32 %v2050, %v2072
    %v2078 = vsub.f32 %v2051, %v2073
    %v2079 = vmul.f32 %v2074, %v2074
    %v2080 = vmul.f32 %v2075, %v2075
    %v2081 = vmul.f32 %v2076, %v2076
    %v2082 = vmul.f32 %v2077, %v2077
    %v2083 = vmul.f32 %v2078, %v2078
    %v2084 = vsel %vm240, %v2079, 0.0
    %2085 = vadd.xlane.f32.xlu0 %v2084
    %v2086 = vpop.xlane.xlu0 %2085
    %v2087 = vsel %vm240, %v2080, 0.0
    %2088 = vadd.xlane.f32.xlu0 %v2087
    %v2089 = vpop.xlane.xlu0 %2088
    %v2090 = vsel %vm240, %v2081, 0.0
    %2091 = vadd.xlane.f32.xlu0 %v2090
    %v2092 = vpop.xlane.xlu0 %2091
    %v2093 = vsel %vm240, %v2082, 0.0
    %2094 = vadd.xlane.f32.xlu0 %v2093
    %v2095 = vpop.xlane.xlu0 %2094
    %v2096 = vsel %vm2064, %v2083, 0.0
    %2097 = vadd.xlane.f32.xlu0 %v2096
    %v2098 = vpop.xlane.xlu0 %2097
    %v2099 = vmul.f32 %v2086, %v2068
    %v2100 = vmul.f32 %v2089, %v2068
    %v2101 = vmul.f32 %v2092, %v2068
    %v2102 = vmul.f32 %v2095, %v2068
    %v2103 = vmul.f32 %v2098, %v2068
    %v2104 = vadd.f32 %v2099, 1e-05
    %v2105 = vadd.f32 %v2100, 1e-05
    %v2106 = vadd.f32 %v2101, 1e-05
    %v2107 = vadd.f32 %v2102, 1e-05
    %v2108 = vadd.f32 %v2103, 1e-05
    %v2109 = vrsqrt.pop %v2104
    %v2110 = vrsqrt.pop %v2105
    %v2111 = vrsqrt.pop %v2106
    %v2112 = vrsqrt.pop %v2107
    %v2113 = vrsqrt.pop %v2108
    %v2114 = vmul.f32 %v2074, %v2109
    %v2115 = vmul.f32 %v2075, %v2110
    %v2116 = vmul.f32 %v2076, %v2111
    %v2117 = vmul.f32 %v2077, %v2112
    %v2118 = vmul.f32 %v2078, %v2113
    %v2119 = vlaneseq
    %v2120 = vshrl.u32 %v2119, 7
    %v2121 = vsub.s32 0, %v2120
    %v2122 = vrot.slane %v80, %v2121
    %v2123 = vmul.f32 %v2114, %v2122
    %v2124 = vmul.f32 %v2115, %v2122
    %v2125 = vmul.f32 %v2116, %v2122
    %v2126 = vmul.f32 %v2117, %v2122
    %v2127 = vmul.f32 %v2118, %v2122
    %v2128 = vlaneseq
    %v2129 = vshrl.u32 %v2128, 7
    %v2130 = vsub.s32 0, %v2129
    %v2131 = vrot.slane %v79, %v2130
    %v2132 = vadd.f32 %v2123, %v2131
    %v2133 = vadd.f32 %v2124, %v2131
    %v2134 = vadd.f32 %v2125, %v2131
    %v2135 = vadd.f32 %v2126, %v2131
    %v2136 = vadd.f32 %v2127, %v2131
    %v2137 = vlaneseq
    %v2138 = vshrl.u32 %v2137, 7
    %v2139 = vsub.s32 0, %v2138
    %v2140 = vrot.slane %v75, %v2139
    %v2142 = vsel %vm240, %v2132, 0
    %v2145 = vsel %vm240, %v2133, 0
    %v2148 = vsel %vm240, %v2134, 0
    %v2151 = vsel %vm240, %v2135, 0
    %v2154 = vsel %vm240, %v2136, 0
    %2156 = vmatprep.subr.mxu0 0.0
    %2157 = vmatpush1.msra.mxu0 %v83
    %2158 = vmatprep.subr.mxu0 0.0
    %2159 = vmatpush1.msra.mxu0 %v84
    %2160 = vmatprep.subr.mxu0 0.0
    %2161 = vmatpush1.msra.mxu0 %v85
    %2162 = vmatprep.subr.mxu0 0.0
    %2163 = vmatpush1.msra.mxu0 %v86
    %2164 = vmatprep.subr.mxu0 0.0
    %2165 = vmatpush1.msra.mxu0 0.0
    %2166 = vmatprep.subr.mxu0 0.0
    %2167 = vmatpush1.msra.mxu0 0.0
    %2168 = vmatprep.subr.mxu0 0.0
    %2169 = vmatpush1.msra.mxu0 0.0
    %2170 = vmatprep.subr.mxu0 0.0
    %2171 = vmatpush1.msra.mxu0 0.0
    %2172 = vmatprep.subr.mxu0 0.0
    %2173 = vmatpush1.msra.mxu0 0.0
    %2174 = vmatprep.subr.mxu0 0.0
    %2175 = vmatpush1.msra.mxu0 0.0
    %2176 = vmatprep.subr.mxu0 0.0
    %2177 = vmatpush1.msra.mxu0 0.0
    %2178 = vmatprep.subr.mxu0 0.0
    %2179 = vmatpush1.msra.mxu0 0.0
    %2180 = vmatprep.subr.mxu0 0.0
    %2181 = vmatpush1.msra.mxu0 0.0
    %2182 = vmatprep.subr.mxu0 0.0
    %2183 = vmatpush1.msra.mxu0 0.0
    %2184 = vmatprep.subr.mxu0 0.0
    %2185 = vmatpush1.msra.mxu0 0.0
    %2186 = vmatprep.subr.mxu0 0.0
    %2187 = vmatpush1.msra.mxu0 0.0
    %2188 = vmatprep.subr.mxu0 0.0
    %2189 = vmatpush1.msra.mxu0 0.0
    %2190 = vmatprep.subr.mxu0 0.0
    %2191 = vmatpush1.msra.mxu0 0.0
    %2192 = vmatprep.subr.mxu0 0.0
    %2193 = vmatpush1.msra.mxu0 0.0
    %2194 = vmatprep.subr.mxu0 0.0
    %2195 = vmatpush1.msra.mxu0 0.0
    %2196 = vmatprep.subr.mxu0 0.0
    %2197 = vmatpush1.msra.mxu0 0.0
    %2198 = vmatprep.subr.mxu0 0.0
    %2199 = vmatpush1.msra.mxu0 0.0
    %2200 = vmatprep.subr.mxu0 0.0
    %2201 = vmatpush1.msra.mxu0 0.0
    %2202 = vmatprep.subr.mxu0 0.0
    %2203 = vmatpush1.msra.mxu0 0.0
    %2204 = vmatprep.subr.mxu0 0.0
    %2205 = vmatpush1.msra.mxu0 0.0
    %2206 = vmatprep.subr.mxu0 0.0
    %2207 = vmatpush1.msra.mxu0 0.0
    %2208 = vmatprep.subr.mxu0 0.0
    %2209 = vmatpush1.msra.mxu0 0.0
    %2210 = vmatprep.subr.mxu0 0.0
    %2211 = vmatpush1.msra.mxu0 0.0
    %2212 = vmatprep.subr.mxu0 0.0
    %2213 = vmatpush1.msra.mxu0 0.0
    %2214 = vmatprep.subr.mxu0 0.0
    %2215 = vmatpush1.msra.mxu0 0.0
    %2216 = vmatprep.subr.mxu0 0.0
    %2217 = vmatpush1.msra.mxu0 0.0
    %2218 = vmatprep.subr.mxu0 0.0
    %2219 = vmatpush1.msra.mxu0 0.0
    %2220 = vmatprep.mubr.f32.mxu0 0.0
    %2221 = vmatmul.mubr.f32.gmra.mrb[0].mxu0 %v2142
    %v2222 = vpop.f32.mrb[0].mxu0
    %v2223 = vadd.f32 %v2140, %v2222
    %v2224 = vpop.f32.mrb[0].mxu0
    %2225 = vmatprep.mubr.f32.mxu0 0.0
    %2226 = vmatmul.mubr.f32.gmra.mrb[0].mxu0 %v2145
    %v2227 = vpop.f32.mrb[0].mxu0
    %v2228 = vadd.f32 %v2140, %v2227
    %v2229 = vpop.f32.mrb[0].mxu0
    %2230 = vmatprep.mubr.f32.mxu0 0.0
    %2231 = vmatmul.mubr.f32.gmra.mrb[0].mxu0 %v2148
    %v2232 = vpop.f32.mrb[0].mxu0
    %v2233 = vadd.f32 %v2140, %v2232
    %v2234 = vpop.f32.mrb[0].mxu0
    %2235 = vmatprep.mubr.f32.mxu0 0.0
    %2236 = vmatmul.mubr.f32.gmra.mrb[0].mxu0 %v2151
    %v2237 = vpop.f32.mrb[0].mxu0
    %v2238 = vadd.f32 %v2140, %v2237
    %v2239 = vpop.f32.mrb[0].mxu0
    %2240 = vmatprep.mubr.f32.mxu0 0.0
    %2241 = vmatmul.mubr.f32.gmra.mrb[0].mxu0 %v2154
    %v2242 = vpop.f32.mrb[0].mxu0
    %v2243 = vadd.f32 %v2140, %v2242
    %v2244 = vpop.f32.mrb[0].mxu0
    %2245 = vdwg.mxu0
    %v2246 = vmul.f32 %v2223, %v2223
    %v2247 = vmul.f32 %v2228, %v2228
    %v2248 = vmul.f32 %v2233, %v2233
    %v2249 = vmul.f32 %v2238, %v2238
    %v2250 = vmul.f32 %v2243, %v2243
    %v2251 = vmul.f32 %v2223, %v2246
    %v2252 = vmul.f32 %v2228, %v2247
    %v2253 = vmul.f32 %v2233, %v2248
    %v2254 = vmul.f32 %v2238, %v2249
    %v2255 = vmul.f32 %v2243, %v2250
    %v2256 = vmul.f32 %v2251, 0.044715
    %v2257 = vmul.f32 %v2252, 0.044715
    %v2258 = vmul.f32 %v2253, 0.044715
    %v2259 = vmul.f32 %v2254, 0.044715
    %v2260 = vmul.f32 %v2255, 0.044715
    %v2261 = vadd.f32 %v2223, %v2256
    %v2262 = vadd.f32 %v2228, %v2257
    %v2263 = vadd.f32 %v2233, %v2258
    %v2264 = vadd.f32 %v2238, %v2259
    %v2265 = vadd.f32 %v2243, %v2260
    %v2266 = vmul.f32 %v2261, 0.7978846
    %v2267 = vmul.f32 %v2262, 0.7978846
    %v2268 = vmul.f32 %v2263, 0.7978846
    %v2269 = vmul.f32 %v2264, 0.7978846
    %v2270 = vmul.f32 %v2265, 0.7978846
    %v2271 = vtanh.pop %v2266
    %v2272 = vtanh.pop %v2267
    %v2273 = vtanh.pop %v2268
    %v2274 = vtanh.pop %v2269
    %v2275 = vtanh.pop %v2270
    %v2276 = vadd.f32 %v2271, 1.0
    %v2277 = vadd.f32 %v2272, 1.0
    %v2278 = vadd.f32 %v2273, 1.0
    %v2279 = vadd.f32 %v2274, 1.0
    %v2280 = vadd.f32 %v2275, 1.0
    %v2281 = vmul.f32 %v2276, 0.5
    %v2282 = vmul.f32 %v2277, 0.5
    %v2283 = vmul.f32 %v2278, 0.5
    %v2284 = vmul.f32 %v2279, 0.5
    %v2285 = vmul.f32 %v2280, 0.5
    %v2286 = vmul.f32 %v2223, %v2281
    %v2287 = vmul.f32 %v2228, %v2282
    %v2288 = vmul.f32 %v2233, %v2283
    %v2289 = vmul.f32 %v2238, %v2284
    %v2290 = vmul.f32 %v2243, %v2285
    %v2291 = vlaneseq
    %v2292 = vshrl.u32 %v2291, 7
    %v2293 = vsub.s32 0, %v2292
    %v2294 = vrot.slane %v76, %v2293
    %vm2295 = vcmask 523264
    %v2297 = vsel %vm2295, %v2286, 0
    %v2300 = vsel %vm2295, %v2287, 0
    %v2303 = vsel %vm2295, %v2288, 0
    %v2306 = vsel %vm2295, %v2289, 0
    %v2309 = vsel %vm2295, %v2290, 0
    %2311 = vmatprep.subr.mxu0 0.0
    %2312 = vmatpush1.msra.mxu0 %v87
    %2313 = vmatprep.subr.mxu0 0.0
    %2314 = vmatpush1.msra.mxu0 %v88
    %2315 = vmatprep.subr.mxu0 0.0
    %2316 = vmatpush1.msra.mxu0 %v89
    %2317 = vmatprep.subr.mxu0 0.0
    %2318 = vmatpush1.msra.mxu0 %v90
    %2319 = vmatprep.subr.mxu0 0.0
    %2320 = vmatpush1.msra.mxu0 %v91
    %2321 = vmatprep.subr.mxu0 0.0
    %2322 = vmatpush1.msra.mxu0 %v92
    %2323 = vmatprep.subr.mxu0 0.0
    %2324 = vmatpush1.msra.mxu0 %v93
    %2325 = vmatprep.subr.mxu0 0.0
    %2326 = vmatpush1.msra.mxu0 %v94
    %2327 = vmatprep.subr.mxu0 0.0
    %2328 = vmatpush1.msra.mxu0 0.0
    %2329 = vmatprep.subr.mxu0 0.0
    %2330 = vmatpush1.msra.mxu0 0.0
    %2331 = vmatprep.subr.mxu0 0.0
    %2332 = vmatpush1.msra.mxu0 0.0
    %2333 = vmatprep.subr.mxu0 0.0
    %2334 = vmatpush1.msra.mxu0 0.0
    %2335 = vmatprep.subr.mxu0 0.0
    %2336 = vmatpush1.msra.mxu0 0.0
    %2337 = vmatprep.subr.mxu0 0.0
    %2338 = vmatpush1.msra.mxu0 0.0
    %2339 = vmatprep.subr.mxu0 0.0
    %2340 = vmatpush1.msra.mxu0 0.0
    %2341 = vmatprep.subr.mxu0 0.0
    %2342 = vmatpush1.msra.mxu0 0.0
    %2343 = vmatprep.subr.mxu0 0.0
    %2344 = vmatpush1.msra.mxu0 0.0
    %2345 = vmatprep.subr.mxu0 0.0
    %2346 = vmatpush1.msra.mxu0 0.0
    %2347 = vmatprep.subr.mxu0 0.0
    %2348 = vmatpush1.msra.mxu0 0.0
    %2349 = vmatprep.subr.mxu0 0.0
    %2350 = vmatpush1.msra.mxu0 0.0
    %2351 = vmatprep.subr.mxu0 0.0
    %2352 = vmatpush1.msra.mxu0 0.0
    %2353 = vmatprep.subr.mxu0 0.0
    %2354 = vmatpush1.msra.mxu0 0.0
    %2355 = vmatprep.subr.mxu0 0.0
    %2356 = vmatpush1.msra.mxu0 0.0
    %2357 = vmatprep.subr.mxu0 0.0
    %2358 = vmatpush1.msra.mxu0 0.0
    %2359 = vmatprep.subr.mxu0 0.0
    %2360 = vmatpush1.msra.mxu0 0.0
    %2361 = vmatprep.subr.mxu0 0.0
    %2362 = vmatpush1.msra.mxu0 0.0
    %2363 = vmatprep.subr.mxu0 0.0
    %2364 = vmatpush1.msra.mxu0 0.0
    %2365 = vmatprep.subr.mxu0 0.0
    %2366 = vmatpush1.msra.mxu0 0.0
    %2367 = vmatprep.subr.mxu0 0.0
    %2368 = vmatpush1.msra.mxu0 0.0
    %2369 = vmatprep.subr.mxu0 0.0
    %2370 = vmatpush1.msra.mxu0 0.0
    %2371 = vmatprep.subr.mxu0 0.0
    %2372 = vmatpush1.msra.mxu0 0.0
    %2373 = vmatprep.subr.mxu0 0.0
    %2374 = vmatpush1.msra.mxu0 0.0
    %2375 = vmatprep.mubr.f32.mxu0 0.0
    %2376 = vmatmul.mubr.f32.gmra.mrb[0].mxu0 %v2297
    %v2377 = vpop.f32.mrb[0].mxu0
    %v2378 = vadd.f32 %v2294, %v2377
    %v2379 = vpop.f32.mrb[0].mxu0
    %2380 = vmatprep.mubr.f32.mxu0 0.0
    %2381 = vmatmul.mubr.f32.gmra.mrb[0].mxu0 %v2300
    %v2382 = vpop.f32.mrb[0].mxu0
    %v2383 = vadd.f32 %v2294, %v2382
    %v2384 = vpop.f32.mrb[0].mxu0
    %2385 = vmatprep.mubr.f32.mxu0 0.0
    %2386 = vmatmul.mubr.f32.gmra.mrb[0].mxu0 %v2303
    %v2387 = vpop.f32.mrb[0].mxu0
    %v2388 = vadd.f32 %v2294, %v2387
    %v2389 = vpop.f32.mrb[0].mxu0
    %2390 = vmatprep.mubr.f32.mxu0 0.0
    %2391 = vmatmul.mubr.f32.gmra.mrb[0].mxu0 %v2306
    %v2392 = vpop.f32.mrb[0].mxu0
    %v2393 = vadd.f32 %v2294, %v2392
    %v2394 = vpop.f32.mrb[0].mxu0
    %2395 = vmatprep.mubr.f32.mxu0 0.0
    %2396 = vmatmul.mubr.f32.gmra.mrb[0].mxu0 %v2309
    %v2397 = vpop.f32.mrb[0].mxu0
    %v2398 = vadd.f32 %v2294, %v2397
    %v2399 = vpop.f32.mrb[0].mxu0
    %2400 = vdwg.mxu0
    %v2401 = vadd.f32 %v2132, %v2378
    %v2402 = vadd.f32 %v2133, %v2383
    %v2403 = vadd.f32 %v2134, %v2388
    %v2404 = vadd.f32 %v2135, %v2393
    %v2405 = vadd.f32 %v2136, %v2398
    %v2406 = vsel %vm240, %v2401, 0.0
    %2407 = vadd.xlane.f32.xlu0 %v2406
    %v2408 = vpop.xlane.xlu0 %2407
    %v2409 = vsel %vm240, %v2402, 0.0
    %2410 = vadd.xlane.f32.xlu0 %v2409
    %v2411 = vpop.xlane.xlu0 %2410
    %v2412 = vsel %vm240, %v2403, 0.0
    %2413 = vadd.xlane.f32.xlu0 %v2412
    %v2414 = vpop.xlane.xlu0 %2413
    %v2415 = vsel %vm240, %v2404, 0.0
    %2416 = vadd.xlane.f32.xlu0 %v2415
    %v2417 = vpop.xlane.xlu0 %2416
    %v2418 = vsel %vm2064, %v2405, 0.0
    %2419 = vadd.xlane.f32.xlu0 %v2418
    %v2420 = vpop.xlane.xlu0 %2419
    %v2421 = vmul.f32 %v2408, %v2068
    %v2422 = vmul.f32 %v2411, %v2068
    %v2423 = vmul.f32 %v2414, %v2068
    %v2424 = vmul.f32 %v2417, %v2068
    %v2425 = vmul.f32 %v2420, %v2068
    %v2426 = vsub.f32 %v2401, %v2421
    %v2427 = vsub.f32 %v2402, %v2422
    %v2428 = vsub.f32 %v2403, %v2423
    %v2429 = vsub.f32 %v2404, %v2424
    %v2430 = vsub.f32 %v2405, %v2425
    %v2431 = vmul.f32 %v2426, %v2426
    %v2432 = vmul.f32 %v2427, %v2427
    %v2433 = vmul.f32 %v2428, %v2428
    %v2434 = vmul.f32 %v2429, %v2429
    %v2435 = vmul.f32 %v2430, %v2430
    %v2436 = vsel %vm240, %v2431, 0.0
    %2437 = vadd.xlane.f32.xlu0 %v2436
    %v2438 = vpop.xlane.xlu0 %2437
    %v2439 = vsel %vm240, %v2432, 0.0
    %2440 = vadd.xlane.f32.xlu0 %v2439
    %v2441 = vpop.xlane.xlu0 %2440
    %v2442 = vsel %vm240, %v2433, 0.0
    %2443 = vadd.xlane.f32.xlu0 %v2442
    %v2444 = vpop.xlane.xlu0 %2443
    %v2445 = vsel %vm240, %v2434, 0.0
    %2446 = vadd.xlane.f32.xlu0 %v2445
    %v2447 = vpop.xlane.xlu0 %2446
    %v2448 = vsel %vm2064, %v2435, 0.0
    %2449 = vadd.xlane.f32.xlu0 %v2448
    %v2450 = vpop.xlane.xlu0 %2449
    %v2451 = vmul.f32 %v2438, %v2068
    %v2452 = vmul.f32 %v2441, %v2068
    %v2453 = vmul.f32 %v2444, %v2068
    %v2454 = vmul.f32 %v2447, %v2068
    %v2455 = vmul.f32 %v2450, %v2068
    %v2456 = vadd.f32 %v2451, 1e-05
    %v2457 = vadd.f32 %v2452, 1e-05
    %v2458 = vadd.f32 %v2453, 1e-05
    %v2459 = vadd.f32 %v2454, 1e-05
    %v2460 = vadd.f32 %v2455, 1e-05
    %v2461 = vrsqrt.pop %v2456
    %v2462 = vrsqrt.pop %v2457
    %v2463 = vrsqrt.pop %v2458
    %v2464 = vrsqrt.pop %v2459
    %v2465 = vrsqrt.pop %v2460
    %v2466 = vmul.f32 %v2426, %v2461
    %v2467 = vmul.f32 %v2427, %v2462
    %v2468 = vmul.f32 %v2428, %v2463
    %v2469 = vmul.f32 %v2429, %v2464
    %v2470 = vmul.f32 %v2430, %v2465
    %v2471 = vlaneseq
    %v2472 = vshrl.u32 %v2471, 7
    %v2473 = vsub.s32 0, %v2472
    %v2474 = vrot.slane %v82, %v2473
    %v2475 = vmul.f32 %v2466, %v2474
    %v2476 = vmul.f32 %v2467, %v2474
    %v2477 = vmul.f32 %v2468, %v2474
    %v2478 = vmul.f32 %v2469, %v2474
    %v2479 = vmul.f32 %v2470, %v2474
    %v2480 = vlaneseq
    %v2481 = vshrl.u32 %v2480, 7
    %v2482 = vsub.s32 0, %v2481
    %v2483 = vrot.slane %v81, %v2482
    %v2484 = vadd.f32 %v2475, %v2483
    %v2485 = vadd.f32 %v2476, %v2483
    %v2486 = vadd.f32 %v2477, %v2483
    %v2487 = vadd.f32 %v2478, %v2483
    %v2488 = vadd.f32 %v2479, %v2483
    %v2489 = vsel %vm240, %v2484, 0.0
    %2490 = vadd.xlane.f32.xlu0 %v2489
    %v2491 = vpop.xlane.xlu0 %2490
    %v2492 = vsel %vm240, %v2485, 0.0
    %2493 = vadd.xlane.f32.xlu0 %v2492
    %v2494 = vpop.xlane.xlu0 %2493
    %v2495 = vsel %vm240, %v2486, 0.0
    %2496 = vadd.xlane.f32.xlu0 %v2495
    %v2497 = vpop.xlane.xlu0 %2496
    %v2498 = vsel %vm240, %v2487, 0.0
    %2499 = vadd.xlane.f32.xlu0 %v2498
    %v2500 = vpop.xlane.xlu0 %2499
    %v2501 = vsel %vm2064, %v2488, 0.0
    %2502 = vadd.xlane.f32.xlu0 %v2501
    %v2503 = vpop.xlane.xlu0 %2502
    %v2504 = vmul.f32 %v2491, %v2068
    %v2505 = vmul.f32 %v2494, %v2068
    %v2506 = vmul.f32 %v2497, %v2068
    %v2507 = vmul.f32 %v2500, %v2068
    %v2508 = vmul.f32 %v2503, %v2068
    %v2509 = vsub.f32 %v2484, %v2504
    %v2510 = vsub.f32 %v2485, %v2505
    %v2511 = vsub.f32 %v2486, %v2506
    %v2512 = vsub.f32 %v2487, %v2507
    %v2513 = vsub.f32 %v2488, %v2508
    %v2514 = vmul.f32 %v2509, %v2509
    %v2515 = vmul.f32 %v2510, %v2510
    %v2516 = vmul.f32 %v2511, %v2511
    %v2517 = vmul.f32 %v2512, %v2512
    %v2518 = vmul.f32 %v2513, %v2513
    %v2519 = vsel %vm240, %v2514, 0.0
    %2520 = vadd.xlane.f32.xlu0 %v2519
    %v2521 = vpop.xlane.xlu0 %2520
    %v2522 = vsel %vm240, %v2515, 0.0
    %2523 = vadd.xlane.f32.xlu0 %v2522
    %v2524 = vpop.xlane.xlu0 %2523
    %v2525 = vsel %vm240, %v2516, 0.0
    %2526 = vadd.xlane.f32.xlu0 %v2525
    %v2527 = vpop.xlane.xlu0 %2526
    %v2528 = vsel %vm240, %v2517, 0.0
    %2529 = vadd.xlane.f32.xlu0 %v2528
    %v2530 = vpop.xlane.xlu0 %2529
    %v2531 = vsel %vm2064, %v2518, 0.0
    %2532 = vadd.xlane.f32.xlu0 %v2531
    %v2533 = vpop.xlane.xlu0 %2532
    %v2534 = vmul.f32 %v2521, %v2068
    %v2535 = vmul.f32 %v2524, %v2068
    %v2536 = vmul.f32 %v2527, %v2068
    %v2537 = vmul.f32 %v2530, %v2068
    %v2538 = vmul.f32 %v2533, %v2068
    %v2539 = vadd.f32 %v2534, 1e-05
    %v2540 = vadd.f32 %v2535, 1e-05
    %v2541 = vadd.f32 %v2536, 1e-05
    %v2542 = vadd.f32 %v2537, 1e-05
    %v2543 = vadd.f32 %v2538, 1e-05
    %v2544 = vrsqrt.pop %v2539
    %v2545 = vrsqrt.pop %v2540
    %v2546 = vrsqrt.pop %v2541
    %v2547 = vrsqrt.pop %v2542
    %v2548 = vrsqrt.pop %v2543
    %v2549 = vmul.f32 %v2509, %v2544
    %v2550 = vmul.f32 %v2510, %v2545
    %v2551 = vmul.f32 %v2511, %v2546
    %v2552 = vmul.f32 %v2512, %v2547
    %v2553 = vmul.f32 %v2513, %v2548
    %v2554 = vlaneseq
    %v2555 = vshrl.u32 %v2554, 7
    %v2556 = vsub.s32 0, %v2555
    %v2557 = vrot.slane %v104, %v2556
    %v2558 = vmul.f32 %v2549, %v2557
    %v2559 = vmul.f32 %v2550, %v2557
    %v2560 = vmul.f32 %v2551, %v2557
    %v2561 = vmul.f32 %v2552, %v2557
    %v2562 = vmul.f32 %v2553, %v2557
    %v2563 = vlaneseq
    %v2564 = vshrl.u32 %v2563, 7
    %v2565 = vsub.s32 0, %v2564
    %v2566 = vrot.slane %v103, %v2565
    %v2567 = vadd.f32 %v2558, %v2566
    %v2568 = vadd.f32 %v2559, %v2566
    %v2569 = vadd.f32 %v2560, %v2566
    %v2570 = vadd.f32 %v2561, %v2566
    %v2571 = vadd.f32 %v2562, %v2566
    %v2572 = vld [vmem:[%s5] sm:$0xff]
    %v2573 = vld [vmem:[%s5 + $0x8] sm:$0xff]
    %v2574 = vld [vmem:[%s5 + $0x10] sm:$0xff]
    %v2575 = vld [vmem:[%s5 + $0x18] sm:$0xff]
    %v2576 = vld [vmem:[%s5 + $0x20] sm:$0xff]
    %v2577 = vld [vmem:[%s5 + $0x28] sm:$0xff]
    %v2578 = vld [vmem:[%s5 + $0x30] sm:$0xff]
    %v2579 = vld [vmem:[%s5 + $0x38] sm:$0xff]
    %v2580 = vld [vmem:[%s5 + $0x40] sm:$0xff]
    %v2582 = vsel %vm482, %v2572, 0
    %v2585 = vsel %vm482, %v2573, 0
    %v2588 = vsel %vm482, %v2574, 0
    %v2591 = vsel %vm482, %v2575, 0
    %v2594 = vsel %vm482, %v2576, 0
    %v2597 = vsel %vm482, %v2577, 0
    %v2600 = vsel %vm482, %v2578, 0
    %v2603 = vsel %vm482, %v2579, 0
    %v2606 = vsel %vm482, %v2580, 0
    %v2609 = vsel %vm137, %v2571, 0
    %2611 = vmatprep.subr.mxu0 0.0
    %2612 = vmatpush1.msra.mxu0 %v2567
    %2613 = vmatprep.subr.mxu0 0.0
    %2614 = vmatpush1.msra.mxu0 %v2568
    %2615 = vmatprep.subr.mxu0 0.0
    %2616 = vmatpush1.msra.mxu0 %v2569
    %2617 = vmatprep.subr.mxu0 0.0
    %2618 = vmatpush1.msra.mxu0 %v2570
    %2619 = vmatprep.subr.mxu0 0.0
    %2620 = vmatpush1.msra.mxu0 %v2609
    %2621 = vmatprep.subr.mxu0 0.0
    %2622 = vmatpush1.msra.mxu0 0.0
    %2623 = vmatprep.subr.mxu0 0.0
    %2624 = vmatpush1.msra.mxu0 0.0
    %2625 = vmatprep.subr.mxu0 0.0
    %2626 = vmatpush1.msra.mxu0 0.0
    %2627 = vmatprep.subr.mxu0 0.0
    %2628 = vmatpush1.msra.mxu0 0.0
    %2629 = vmatprep.subr.mxu0 0.0
    %2630 = vmatpush1.msra.mxu0 0.0
    %2631 = vmatprep.subr.mxu0 0.0
    %2632 = vmatpush1.msra.mxu0 0.0
    %2633 = vmatprep.subr.mxu0 0.0
    %2634 = vmatpush1.msra.mxu0 0.0
    %2635 = vmatprep.subr.mxu0 0.0
    %2636 = vmatpush1.msra.mxu0 0.0
    %2637 = vmatprep.subr.mxu0 0.0
    %2638 = vmatpush1.msra.mxu0 0.0
    %2639 = vmatprep.subr.mxu0 0.0
    %2640 = vmatpush1.msra.mxu0 0.0
    %2641 = vmatprep.subr.mxu0 0.0
    %2642 = vmatpush1.msra.mxu0 0.0
    %2643 = vmatprep.subr.mxu0 0.0
    %2644 = vmatpush1.msra.mxu0 0.0
    %2645 = vmatprep.subr.mxu0 0.0
    %2646 = vmatpush1.msra.mxu0 0.0
    %2647 = vmatprep.subr.mxu0 0.0
    %2648 = vmatpush1.msra.mxu0 0.0
    %2649 = vmatprep.subr.mxu0 0.0
    %2650 = vmatpush1.msra.mxu0 0.0
    %2651 = vmatprep.subr.mxu0 0.0
    %2652 = vmatpush1.msra.mxu0 0.0
    %2653 = vmatprep.subr.mxu0 0.0
    %2654 = vmatpush1.msra.mxu0 0.0
    %2655 = vmatprep.subr.mxu0 0.0
    %2656 = vmatpush1.msra.mxu0 0.0
    %2657 = vmatprep.subr.mxu0 0.0
    %2658 = vmatpush1.msra.mxu0 0.0
    %2659 = vmatprep.subr.mxu0 0.0
    %2660 = vmatpush1.msra.mxu0 0.0
    %2661 = vmatprep.subr.mxu0 0.0
    %2662 = vmatpush1.msra.mxu0 0.0
    %2663 = vmatprep.subr.mxu0 0.0
    %2664 = vmatpush1.msra.mxu0 0.0
    %2665 = vmatprep.subr.mxu0 0.0
    %2666 = vmatpush1.msra.mxu0 0.0
    %2667 = vmatprep.subr.mxu0 0.0
    %2668 = vmatpush1.msra.mxu0 0.0
    %2669 = vmatprep.subr.mxu0 0.0
    %2670 = vmatpush1.msra.mxu0 0.0
    %2671 = vmatprep.subr.mxu0 0.0
    %2672 = vmatpush1.msra.mxu0 0.0
    %2673 = vmatprep.subr.mxu0 0.0
    %2674 = vmatpush1.msra.mxu0 0.0
    %2675 = vmatprep.mubr.f32.mxu0 0.0
    %2676 = vmatmul.mubr.f32.gmra.mrb[0].mxu0 %v2582
    %v2677 = vpop.f32.mrb[0].mxu0
    %v2678 = vadd.f32 0.0, %v2677
    %v2679 = vpop.f32.mrb[0].mxu0
    %2680 = vmatprep.mubr.f32.mxu0 0.0
    %2681 = vmatmul.mubr.f32.gmra.mrb[0].mxu0 %v2585
    %v2682 = vpop.f32.mrb[0].mxu0
    %v2683 = vadd.f32 0.0, %v2682
    %v2684 = vpop.f32.mrb[0].mxu0
    %2685 = vmatprep.mubr.f32.mxu0 0.0
    %2686 = vmatmul.mubr.f32.gmra.mrb[0].mxu0 %v2588
    %v2687 = vpop.f32.mrb[0].mxu0
    %v2688 = vadd.f32 0.0, %v2687
    %v2689 = vpop.f32.mrb[0].mxu0
    %2690 = vmatprep.mubr.f32.mxu0 0.0
    %2691 = vmatmul.mubr.f32.gmra.mrb[0].mxu0 %v2591
    %v2692 = vpop.f32.mrb[0].mxu0
    %v2693 = vadd.f32 0.0, %v2692
    %v2694 = vpop.f32.mrb[0].mxu0
    %2695 = vmatprep.mubr.f32.mxu0 0.0
    %2696 = vmatmul.mubr.f32.gmra.mrb[0].mxu0 %v2594
    %v2697 = vpop.f32.mrb[0].mxu0
    %v2698 = vadd.f32 0.0, %v2697
    %v2699 = vpop.f32.mrb[0].mxu0
    %2700 = vmatprep.mubr.f32.mxu0 0.0
    %2701 = vmatmul.mubr.f32.gmra.mrb[0].mxu0 %v2597
    %v2702 = vpop.f32.mrb[0].mxu0
    %v2703 = vadd.f32 0.0, %v2702
    %v2704 = vpop.f32.mrb[0].mxu0
    %2705 = vmatprep.mubr.f32.mxu0 0.0
    %2706 = vmatmul.mubr.f32.gmra.mrb[0].mxu0 %v2600
    %v2707 = vpop.f32.mrb[0].mxu0
    %v2708 = vadd.f32 0.0, %v2707
    %v2709 = vpop.f32.mrb[0].mxu0
    %2710 = vmatprep.mubr.f32.mxu0 0.0
    %2711 = vmatmul.mubr.f32.gmra.mrb[0].mxu0 %v2603
    %v2712 = vpop.f32.mrb[0].mxu0
    %v2713 = vadd.f32 0.0, %v2712
    %v2714 = vpop.f32.mrb[0].mxu0
    %2715 = vmatprep.mubr.f32.mxu0 0.0
    %2716 = vmatmul.mubr.f32.gmra.mrb[0].mxu0 %v2606
    %v2717 = vpop.f32.mrb[0].mxu0
    %v2718 = vadd.f32 0.0, %v2717
    %v2719 = vpop.f32.mrb[0].mxu0
    %2720 = vdwg.mxu0
    %v2721 = vld [vmem:[%s4] sm:$0xff]
    %v2722 = vld [vmem:[%s4 + $0x8] sm:$0xff]
    %v2723 = vld [vmem:[%s4 + $0x10] sm:$0xff]
    %v2724 = vld [vmem:[%s4 + $0x18] sm:$0xff]
    %v2725 = vld [vmem:[%s4 + $0x20] sm:$0xff]
    %v2726 = vld [vmem:[%s4 + $0x28] sm:$0xff]
    %v2727 = vld [vmem:[%s4 + $0x30] sm:$0xff]
    %v2728 = vld [vmem:[%s4 + $0x38] sm:$0xff]
    %v2729 = vld [vmem:[%s4 + $0x40] sm:$0xff]
    %v2730 = vlaneseq
    %v2731 = vshrl.u32 %v2730, 7
    %v2732 = vsub.s32 0, %v2731
    %v2733 = vrot.slane %v52, %v2732
    %v2735 = vsel %vm240, %v2678, 0
    %v2738 = vsel %vm240, %v2683, 0
    %v2741 = vsel %vm240, %v2688, 0
    %v2744 = vsel %vm240, %v2693, 0
    %v2747 = vsel %vm240, %v2698, 0
    %v2750 = vsel %vm240, %v2703, 0
    %v2753 = vsel %vm240, %v2708, 0
    %v2756 = vsel %vm240, %v2713, 0
    %v2759 = vsel %vm240, %v2718, 0
    %2761 = vmatprep.subr.mxu0 0.0
    %2762 = vmatpush1.msra.mxu0 %v57
    %2763 = vmatprep.subr.mxu0 0.0
    %2764 = vmatpush1.msra.mxu0 %v58
    %2765 = vmatprep.subr.mxu0 0.0
    %2766 = vmatpush1.msra.mxu0 %v59
    %2767 = vmatprep.subr.mxu0 0.0
    %2768 = vmatpush1.msra.mxu0 %v60
    %2769 = vmatprep.subr.mxu0 0.0
    %2770 = vmatpush1.msra.mxu0 0.0
    %2771 = vmatprep.subr.mxu0 0.0
    %2772 = vmatpush1.msra.mxu0 0.0
    %2773 = vmatprep.subr.mxu0 0.0
    %2774 = vmatpush1.msra.mxu0 0.0
    %2775 = vmatprep.subr.mxu0 0.0
    %2776 = vmatpush1.msra.mxu0 0.0
    %2777 = vmatprep.subr.mxu0 0.0
    %2778 = vmatpush1.msra.mxu0 0.0
    %2779 = vmatprep.subr.mxu0 0.0
    %2780 = vmatpush1.msra.mxu0 0.0
    %2781 = vmatprep.subr.mxu0 0.0
    %2782 = vmatpush1.msra.mxu0 0.0
    %2783 = vmatprep.subr.mxu0 0.0
    %2784 = vmatpush1.msra.mxu0 0.0
    %2785 = vmatprep.subr.mxu0 0.0
    %2786 = vmatpush1.msra.mxu0 0.0
    %2787 = vmatprep.subr.mxu0 0.0
    %2788 = vmatpush1.msra.mxu0 0.0
    %2789 = vmatprep.subr.mxu0 0.0
    %2790 = vmatpush1.msra.mxu0 0.0
    %2791 = vmatprep.subr.mxu0 0.0
    %2792 = vmatpush1.msra.mxu0 0.0
    %2793 = vmatprep.subr.mxu0 0.0
    %2794 = vmatpush1.msra.mxu0 0.0
    %2795 = vmatprep.subr.mxu0 0.0
    %2796 = vmatpush1.msra.mxu0 0.0
    %2797 = vmatprep.subr.mxu0 0.0
    %2798 = vmatpush1.msra.mxu0 0.0
    %2799 = vmatprep.subr.mxu0 0.0
    %2800 = vmatpush1.msra.mxu0 0.0
    %2801 = vmatprep.subr.mxu0 0.0
    %2802 = vmatpush1.msra.mxu0 0.0
    %2803 = vmatprep.subr.mxu0 0.0
    %2804 = vmatpush1.msra.mxu0 0.0
    %2805 = vmatprep.subr.mxu0 0.0
    %2806 = vmatpush1.msra.mxu0 0.0
    %2807 = vmatprep.subr.mxu0 0.0
    %2808 = vmatpush1.msra.mxu0 0.0
    %2809 = vmatprep.subr.mxu0 0.0
    %2810 = vmatpush1.msra.mxu0 0.0
    %2811 = vmatprep.subr.mxu0 0.0
    %2812 = vmatpush1.msra.mxu0 0.0
    %2813 = vmatprep.subr.mxu0 0.0
    %2814 = vmatpush1.msra.mxu0 0.0
    %2815 = vmatprep.subr.mxu0 0.0
    %2816 = vmatpush1.msra.mxu0 0.0
    %2817 = vmatprep.subr.mxu0 0.0
    %2818 = vmatpush1.msra.mxu0 0.0
    %2819 = vmatprep.subr.mxu0 0.0
    %2820 = vmatpush1.msra.mxu0 0.0
    %2821 = vmatprep.subr.mxu0 0.0
    %2822 = vmatpush1.msra.mxu0 0.0
    %2823 = vmatprep.subr.mxu0 0.0
    %2824 = vmatpush1.msra.mxu0 0.0
    %2825 = vmatprep.mubr.f32.mxu0 0.0
    %2826 = vmatmul.mubr.f32.gmra.mrb[0].mxu0 %v2735
    %v2827 = vpop.f32.mrb[0].mxu0
    %v2828 = vadd.f32 %v2733, %v2827
    %v2829 = vpop.f32.mrb[0].mxu0
    %2830 = vmatprep.mubr.f32.mxu0 0.0
    %2831 = vmatmul.mubr.f32.gmra.mrb[0].mxu0 %v2738
    %v2832 = vpop.f32.mrb[0].mxu0
    %v2833 = vadd.f32 %v2733, %v2832
    %v2834 = vpop.f32.mrb[0].mxu0
    %2835 = vmatprep.mubr.f32.mxu0 0.0
    %2836 = vmatmul.mubr.f32.gmra.mrb[0].mxu0 %v2741
    %v2837 = vpop.f32.mrb[0].mxu0
    %v2838 = vadd.f32 %v2733, %v2837
    %v2839 = vpop.f32.mrb[0].mxu0
    %2840 = vmatprep.mubr.f32.mxu0 0.0
    %2841 = vmatmul.mubr.f32.gmra.mrb[0].mxu0 %v2744
    %v2842 = vpop.f32.mrb[0].mxu0
    %v2843 = vadd.f32 %v2733, %v2842
    %v2844 = vpop.f32.mrb[0].mxu0
    %2845 = vmatprep.mubr.f32.mxu0 0.0
    %2846 = vmatmul.mubr.f32.gmra.mrb[0].mxu0 %v2747
    %v2847 = vpop.f32.mrb[0].mxu0
    %v2848 = vadd.f32 %v2733, %v2847
    %v2849 = vpop.f32.mrb[0].mxu0
    %2850 = vmatprep.mubr.f32.mxu0 0.0
    %2851 = vmatmul.mubr.f32.gmra.mrb[0].mxu0 %v2750
    %v2852 = vpop.f32.mrb[0].mxu0
    %v2853 = vadd.f32 %v2733, %v2852
    %v2854 = vpop.f32.mrb[0].mxu0
    %2855 = vmatprep.mubr.f32.mxu0 0.0
    %2856 = vmatmul.mubr.f32.gmra.mrb[0].mxu0 %v2753
    %v2857 = vpop.f32.mrb[0].mxu0
    %v2858 = vadd.f32 %v2733, %v2857
    %v2859 = vpop.f32.mrb[0].mxu0
    %2860 = vmatprep.mubr.f32.mxu0 0.0
    %2861 = vmatmul.mubr.f32.gmra.mrb[0].mxu0 %v2756
    %v2862 = vpop.f32.mrb[0].mxu0
    %v2863 = vadd.f32 %v2733, %v2862
    %v2864 = vpop.f32.mrb[0].mxu0
    %2865 = vmatprep.mubr.f32.mxu0 0.0
    %2866 = vmatmul.mubr.f32.gmra.mrb[0].mxu0 %v2759
    %v2867 = vpop.f32.mrb[0].mxu0
    %v2868 = vadd.f32 %v2733, %v2867
    %v2869 = vpop.f32.mrb[0].mxu0
    %2870 = vdwg.mxu0
    %2880 = vrot.lane.b32.xlu0 %v2828, 96
    %v2881 = vpop.permute.xlu0 %2880
    %2882 = vrot.lane.b32.xlu0 %v2833, 96
    %v2883 = vpop.permute.xlu0 %2882
    %2884 = vrot.lane.b32.xlu0 %v2838, 96
    %v2885 = vpop.permute.xlu0 %2884
    %2886 = vrot.lane.b32.xlu0 %v2843, 96
    %v2887 = vpop.permute.xlu0 %2886
    %2888 = vrot.lane.b32.xlu0 %v2848, 96
    %v2889 = vpop.permute.xlu0 %2888
    %2890 = vrot.lane.b32.xlu0 %v2853, 96
    %v2891 = vpop.permute.xlu0 %2890
    %2892 = vrot.lane.b32.xlu0 %v2858, 96
    %v2893 = vpop.permute.xlu0 %2892
    %2894 = vrot.lane.b32.xlu0 %v2863, 96
    %v2895 = vpop.permute.xlu0 %2894
    %2896 = vrot.lane.b32.xlu0 %v2868, 96
    %v2897 = vpop.permute.xlu0 %2896
    %v2898 = vsel %vm361, %v2828, 0
    %v2900 = vsel %vm361, %v2833, 0
    %v2902 = vsel %vm361, %v2838, 0
    %v2904 = vsel %vm361, %v2843, 0
    %v2906 = vsel %vm361, %v2848, 0
    %v2908 = vsel %vm361, %v2853, 0
    %v2910 = vsel %vm361, %v2858, 0
    %v2912 = vsel %vm361, %v2863, 0
    %v2914 = vsel %vm361, %v2868, 0
    %v2916 = vsel %vm361, %v2881, 0
    %v2918 = vsel %vm361, %v2883, 0
    %v2920 = vsel %vm361, %v2885, 0
    %v2922 = vsel %vm361, %v2887, 0
    %v2924 = vsel %vm361, %v2889, 0
    %v2926 = vsel %vm361, %v2891, 0
    %v2928 = vsel %vm361, %v2893, 0
    %v2930 = vsel %vm361, %v2895, 0
    %v2932 = vsel %vm361, %v2897, 0
    %2934 = vmatprep.subr.mxu0 0.0
    %2935 = vmatpush1.xpose.msra.mxu0 %v2916
    %2936 = vmatprep.subr.mxu0 0.0
    %2937 = vmatpush1.xpose.msra.mxu0 %v2918
    %2938 = vmatprep.subr.mxu0 0.0
    %2939 = vmatpush1.xpose.msra.mxu0 %v2920
    %2940 = vmatprep.subr.mxu0 0.0
    %2941 = vmatpush1.xpose.msra.mxu0 %v2922
    %2942 = vmatprep.subr.mxu0 0.0
    %2943 = vmatpush1.xpose.msra.mxu0 %v2924
    %2944 = vmatprep.subr.mxu0 0.0
    %2945 = vmatpush1.xpose.msra.mxu0 %v2926
    %2946 = vmatprep.subr.mxu0 0.0
    %2947 = vmatpush1.xpose.msra.mxu0 %v2928
    %2948 = vmatprep.subr.mxu0 0.0
    %2949 = vmatpush1.xpose.msra.mxu0 %v2930
    %2950 = vmatprep.subr.mxu0 0.0
    %2951 = vmatpush1.xpose.msra.mxu0 %v2932
    %2952 = vmatprep.subr.mxu0 0.0
    %2953 = vmatpush1.xpose.msra.mxu0 0.0
    %2954 = vmatprep.subr.mxu0 0.0
    %2955 = vmatpush1.xpose.msra.mxu0 0.0
    %2956 = vmatprep.subr.mxu0 0.0
    %2957 = vmatpush1.xpose.msra.mxu0 0.0
    %2958 = vmatprep.subr.mxu0 0.0
    %2959 = vmatpush1.xpose.msra.mxu0 0.0
    %2960 = vmatprep.subr.mxu0 0.0
    %2961 = vmatpush1.xpose.msra.mxu0 0.0
    %2962 = vmatprep.subr.mxu0 0.0
    %2963 = vmatpush1.xpose.msra.mxu0 0.0
    %2964 = vmatprep.subr.mxu0 0.0
    %2965 = vmatpush1.xpose.msra.mxu0 0.0
    %2966 = vmatprep.subr.mxu0 0.0
    %2967 = vmatpush1.xpose.msra.mxu0 0.0
    %2968 = vmatprep.subr.mxu0 0.0
    %2969 = vmatpush1.xpose.msra.mxu0 0.0
    %2970 = vmatprep.subr.mxu0 0.0
    %2971 = vmatpush1.xpose.msra.mxu0 0.0
    %2972 = vmatprep.subr.mxu0 0.0
    %2973 = vmatpush1.xpose.msra.mxu0 0.0
    %2974 = vmatprep.subr.mxu0 0.0
    %2975 = vmatpush1.xpose.msra.mxu0 0.0
    %2976 = vmatprep.subr.mxu0 0.0
    %2977 = vmatpush1.xpose.msra.mxu0 0.0
    %2978 = vmatprep.subr.mxu0 0.0
    %2979 = vmatpush1.xpose.msra.mxu0 0.0
    %2980 = vmatprep.subr.mxu0 0.0
    %2981 = vmatpush1.xpose.msra.mxu0 0.0
    %2982 = vmatprep.subr.mxu0 0.0
    %2983 = vmatpush1.xpose.msra.mxu0 0.0
    %2984 = vmatprep.subr.mxu0 0.0
    %2985 = vmatpush1.xpose.msra.mxu0 0.0
    %2986 = vmatprep.subr.mxu0 0.0
    %2987 = vmatpush1.xpose.msra.mxu0 0.0
    %2988 = vmatprep.subr.mxu0 0.0
    %2989 = vmatpush1.xpose.msra.mxu0 0.0
    %2990 = vmatprep.subr.mxu0 0.0
    %2991 = vmatpush1.xpose.msra.mxu0 0.0
    %2992 = vmatprep.subr.mxu0 0.0
    %2993 = vmatpush1.xpose.msra.mxu0 0.0
    %2994 = vmatprep.subr.mxu0 0.0
    %2995 = vmatpush1.xpose.msra.mxu0 0.0
    %2996 = vmatprep.subr.mxu0 0.0
    %2997 = vmatpush1.xpose.msra.mxu0 0.0
    %2998 = vmatprep.mubr.f32.mxu0 0.0
    %2999 = vmatmul.mubr.f32.gmra.mrb[0].mxu0 %v2898
    %v3000 = vpop.f32.mrb[0].mxu0
    %v3001 = vadd.f32 0.0, %v3000
    %v3002 = vpop.f32.mrb[0].mxu0
    %3003 = vmatprep.mubr.f32.mxu0 0.0
    %3004 = vmatmul.mubr.f32.gmra.mrb[0].mxu0 %v2900
    %v3005 = vpop.f32.mrb[0].mxu0
    %v3006 = vadd.f32 0.0, %v3005
    %v3007 = vpop.f32.mrb[0].mxu0
    %3008 = vmatprep.mubr.f32.mxu0 0.0
    %3009 = vmatmul.mubr.f32.gmra.mrb[0].mxu0 %v2902
    %v3010 = vpop.f32.mrb[0].mxu0
    %v3011 = vadd.f32 0.0, %v3010
    %v3012 = vpop.f32.mrb[0].mxu0
    %3013 = vmatprep.mubr.f32.mxu0 0.0
    %3014 = vmatmul.mubr.f32.gmra.mrb[0].mxu0 %v2904
    %v3015 = vpop.f32.mrb[0].mxu0
    %v3016 = vadd.f32 0.0, %v3015
    %v3017 = vpop.f32.mrb[0].mxu0
    %3018 = vmatprep.mubr.f32.mxu0 0.0
    %3019 = vmatmul.mubr.f32.gmra.mrb[0].mxu0 %v2906
    %v3020 = vpop.f32.mrb[0].mxu0
    %v3021 = vadd.f32 0.0, %v3020
    %v3022 = vpop.f32.mrb[0].mxu0
    %3023 = vmatprep.mubr.f32.mxu0 0.0
    %3024 = vmatmul.mubr.f32.gmra.mrb[0].mxu0 %v2908
    %v3025 = vpop.f32.mrb[0].mxu0
    %v3026 = vadd.f32 0.0, %v3025
    %v3027 = vpop.f32.mrb[0].mxu0
    %3028 = vmatprep.mubr.f32.mxu0 0.0
    %3029 = vmatmul.mubr.f32.gmra.mrb[0].mxu0 %v2910
    %v3030 = vpop.f32.mrb[0].mxu0
    %v3031 = vadd.f32 0.0, %v3030
    %v3032 = vpop.f32.mrb[0].mxu0
    %3033 = vmatprep.mubr.f32.mxu0 0.0
    %3034 = vmatmul.mubr.f32.gmra.mrb[0].mxu0 %v2912
    %v3035 = vpop.f32.mrb[0].mxu0
    %v3036 = vadd.f32 0.0, %v3035
    %v3037 = vpop.f32.mrb[0].mxu0
    %3038 = vmatprep.mubr.f32.mxu0 0.0
    %3039 = vmatmul.mubr.f32.gmra.mrb[0].mxu0 %v2914
    %v3040 = vpop.f32.mrb[0].mxu0
    %v3041 = vadd.f32 0.0, %v3040
    %v3042 = vpop.f32.mrb[0].mxu0
    %3043 = vdwg.mxu0
    %v3044 = vmul.f32 %v3001, 0.35355338
    %v3045 = vmul.f32 %v3006, 0.35355338
    %v3046 = vmul.f32 %v3011, 0.35355338
    %v3047 = vmul.f32 %v3016, 0.35355338
    %v3048 = vmul.f32 %v3021, 0.35355338
    %v3049 = vmul.f32 %v3026, 0.35355338
    %v3050 = vmul.f32 %v3031, 0.35355338
    %v3051 = vmul.f32 %v3036, 0.35355338
    %v3052 = vmul.f32 %v3041, 0.35355338
    %v3053 = vadd.f32 %v3044, %v2721
    %v3054 = vadd.f32 %v3045, %v2722
    %v3055 = vadd.f32 %v3046, %v2723
    %v3056 = vadd.f32 %v3047, %v2724
    %v3057 = vadd.f32 %v3048, %v2725
    %v3058 = vadd.f32 %v3049, %v2726
    %v3059 = vadd.f32 %v3050, %v2727
    %v3060 = vadd.f32 %v3051, %v2728
    %v3061 = vadd.f32 %v3052, %v2729
    %vm3062 = vcmask 588800
    %v3063 = vsel %vm3062, %v3053, -inf
    %3064 = vmax.xlane.f32.xlu0 %v3063
    %v3065 = vpop.xlane.xlu0 %3064
    %v3066 = vsel %vm3062, %v3054, -inf
    %3067 = vmax.xlane.f32.xlu0 %v3066
    %v3068 = vpop.xlane.xlu0 %3067
    %v3069 = vsel %vm3062, %v3055, -inf
    %3070 = vmax.xlane.f32.xlu0 %v3069
    %v3071 = vpop.xlane.xlu0 %3070
    %v3072 = vsel %vm3062, %v3056, -inf
    %3073 = vmax.xlane.f32.xlu0 %v3072
    %v3074 = vpop.xlane.xlu0 %3073
    %v3075 = vsel %vm3062, %v3057, -inf
    %3076 = vmax.xlane.f32.xlu0 %v3075
    %v3077 = vpop.xlane.xlu0 %3076
    %v3078 = vsel %vm3062, %v3058, -inf
    %3079 = vmax.xlane.f32.xlu0 %v3078
    %v3080 = vpop.xlane.xlu0 %3079
    %v3081 = vsel %vm3062, %v3059, -inf
    %3082 = vmax.xlane.f32.xlu0 %v3081
    %v3083 = vpop.xlane.xlu0 %3082
    %v3084 = vsel %vm3062, %v3060, -inf
    %3085 = vmax.xlane.f32.xlu0 %v3084
    %v3086 = vpop.xlane.xlu0 %3085
    %v3087 = vsel %vm3062, %v3061, -inf
    %3088 = vmax.xlane.f32.xlu0 %v3087
    %v3089 = vpop.xlane.xlu0 %3088
    %v3090 = vsub.f32 %v3053, %v3065
    %v3091 = vsub.f32 %v3054, %v3068
    %v3092 = vsub.f32 %v3055, %v3071
    %v3093 = vsub.f32 %v3056, %v3074
    %v3094 = vsub.f32 %v3057, %v3077
    %v3095 = vsub.f32 %v3058, %v3080
    %v3096 = vsub.f32 %v3059, %v3083
    %v3097 = vsub.f32 %v3060, %v3086
    %v3098 = vsub.f32 %v3061, %v3089
    %v3099 = vmul.f32 %v3090, 1.442695
    %v3100 = vpow.pop %v3099
    %v3101 = vmul.f32 %v3091, 1.442695
    %v3102 = vpow.pop %v3101
    %v3103 = vmul.f32 %v3092, 1.442695
    %v3104 = vpow.pop %v3103
    %v3105 = vmul.f32 %v3093, 1.442695
    %v3106 = vpow.pop %v3105
    %v3107 = vmul.f32 %v3094, 1.442695
    %v3108 = vpow.pop %v3107
    %v3109 = vmul.f32 %v3095, 1.442695
    %v3110 = vpow.pop %v3109
    %v3111 = vmul.f32 %v3096, 1.442695
    %v3112 = vpow.pop %v3111
    %v3113 = vmul.f32 %v3097, 1.442695
    %v3114 = vpow.pop %v3113
    %v3115 = vmul.f32 %v3098, 1.442695
    %v3116 = vpow.pop %v3115
    %v3117 = vsel %vm3062, %v3100, 0.0
    %3118 = vadd.xlane.f32.xlu0 %v3117
    %v3119 = vpop.xlane.xlu0 %3118
    %v3120 = vsel %vm3062, %v3102, 0.0
    %3121 = vadd.xlane.f32.xlu0 %v3120
    %v3122 = vpop.xlane.xlu0 %3121
    %v3123 = vsel %vm3062, %v3104, 0.0
    %3124 = vadd.xlane.f32.xlu0 %v3123
    %v3125 = vpop.xlane.xlu0 %3124
    %v3126 = vsel %vm3062, %v3106, 0.0
    %3127 = vadd.xlane.f32.xlu0 %v3126
    %v3128 = vpop.xlane.xlu0 %3127
    %v3129 = vsel %vm3062, %v3108, 0.0
    %3130 = vadd.xlane.f32.xlu0 %v3129
    %v3131 = vpop.xlane.xlu0 %3130
    %v3132 = vsel %vm3062, %v3110, 0.0
    %3133 = vadd.xlane.f32.xlu0 %v3132
    %v3134 = vpop.xlane.xlu0 %3133
    %v3135 = vsel %vm3062, %v3112, 0.0
    %3136 = vadd.xlane.f32.xlu0 %v3135
    %v3137 = vpop.xlane.xlu0 %3136
    %v3138 = vsel %vm3062, %v3114, 0.0
    %3139 = vadd.xlane.f32.xlu0 %v3138
    %v3140 = vpop.xlane.xlu0 %3139
    %v3141 = vsel %vm3062, %v3116, 0.0
    %3142 = vadd.xlane.f32.xlu0 %v3141
    %v3143 = vpop.xlane.xlu0 %3142
    %v3144 = vrcp.pop %v3119
    %v3145 = vrcp.pop %v3122
    %v3146 = vrcp.pop %v3125
    %v3147 = vrcp.pop %v3128
    %v3148 = vrcp.pop %v3131
    %v3149 = vrcp.pop %v3134
    %v3150 = vrcp.pop %v3137
    %v3151 = vrcp.pop %v3140
    %v3152 = vrcp.pop %v3143
    %v3153 = vmul.f32 %v3100, %v3144
    %v3154 = vmul.f32 %v3102, %v3145
    %v3155 = vmul.f32 %v3104, %v3146
    %v3156 = vmul.f32 %v3106, %v3147
    %v3157 = vmul.f32 %v3108, %v3148
    %v3158 = vmul.f32 %v3110, %v3149
    %v3159 = vmul.f32 %v3112, %v3150
    %v3160 = vmul.f32 %v3114, %v3151
    %v3161 = vmul.f32 %v3116, %v3152
    %3162 = vrot.lane.b32.xlu0 %v2828, 64
    %v3163 = vpop.permute.xlu0 %3162
    %3164 = vrot.lane.b32.xlu0 %v2833, 64
    %v3165 = vpop.permute.xlu0 %3164
    %3166 = vrot.lane.b32.xlu0 %v2838, 64
    %v3167 = vpop.permute.xlu0 %3166
    %3168 = vrot.lane.b32.xlu0 %v2843, 64
    %v3169 = vpop.permute.xlu0 %3168
    %3170 = vrot.lane.b32.xlu0 %v2848, 64
    %v3171 = vpop.permute.xlu0 %3170
    %3172 = vrot.lane.b32.xlu0 %v2853, 64
    %v3173 = vpop.permute.xlu0 %3172
    %3174 = vrot.lane.b32.xlu0 %v2858, 64
    %v3175 = vpop.permute.xlu0 %3174
    %3176 = vrot.lane.b32.xlu0 %v2863, 64
    %v3177 = vpop.permute.xlu0 %3176
    %3178 = vrot.lane.b32.xlu0 %v2868, 64
    %v3179 = vpop.permute.xlu0 %3178
    %v3190 = vsel %vm3062, %v3153, 0
    %v3193 = vsel %vm3062, %v3154, 0
    %v3196 = vsel %vm3062, %v3155, 0
    %v3199 = vsel %vm3062, %v3156, 0
    %v3202 = vsel %vm3062, %v3157, 0
    %v3205 = vsel %vm3062, %v3158, 0
    %v3208 = vsel %vm3062, %v3159, 0
    %v3211 = vsel %vm3062, %v3160, 0
    %v3214 = vsel %vm3062, %v3161, 0
    %3216 = vmatprep.subr.mxu0 0.0
    %3217 = vmatpush1.msra.mxu0 %v3163
    %3218 = vmatprep.subr.mxu0 0.0
    %3219 = vmatpush1.msra.mxu0 %v3165
    %3220 = vmatprep.subr.mxu0 0.0
    %3221 = vmatpush1.msra.mxu0 %v3167
    %3222 = vmatprep.subr.mxu0 0.0
    %3223 = vmatpush1.msra.mxu0 %v3169
    %3224 = vmatprep.subr.mxu0 0.0
    %3225 = vmatpush1.msra.mxu0 %v3171
    %3226 = vmatprep.subr.mxu0 0.0
    %3227 = vmatpush1.msra.mxu0 %v3173
    %3228 = vmatprep.subr.mxu0 0.0
    %3229 = vmatpush1.msra.mxu0 %v3175
    %3230 = vmatprep.subr.mxu0 0.0
    %3231 = vmatpush1.msra.mxu0 %v3177
    %3232 = vmatprep.subr.mxu0 0.0
    %3233 = vmatpush1.msra.mxu0 %v3179
    %3234 = vmatprep.subr.mxu0 0.0
    %3235 = vmatpush1.msra.mxu0 0.0
    %3236 = vmatprep.subr.mxu0 0.0
    %3237 = vmatpush1.msra.mxu0 0.0
    %3238 = vmatprep.subr.mxu0 0.0
    %3239 = vmatpush1.msra.mxu0 0.0
    %3240 = vmatprep.subr.mxu0 0.0
    %3241 = vmatpush1.msra.mxu0 0.0
    %3242 = vmatprep.subr.mxu0 0.0
    %3243 = vmatpush1.msra.mxu0 0.0
    %3244 = vmatprep.subr.mxu0 0.0
    %3245 = vmatpush1.msra.mxu0 0.0
    %3246 = vmatprep.subr.mxu0 0.0
    %3247 = vmatpush1.msra.mxu0 0.0
    %3248 = vmatprep.subr.mxu0 0.0
    %3249 = vmatpush1.msra.mxu0 0.0
    %3250 = vmatprep.subr.mxu0 0.0
    %3251 = vmatpush1.msra.mxu0 0.0
    %3252 = vmatprep.subr.mxu0 0.0
    %3253 = vmatpush1.msra.mxu0 0.0
    %3254 = vmatprep.subr.mxu0 0.0
    %3255 = vmatpush1.msra.mxu0 0.0
    %3256 = vmatprep.subr.mxu0 0.0
    %3257 = vmatpush1.msra.mxu0 0.0
    %3258 = vmatprep.subr.mxu0 0.0
    %3259 = vmatpush1.msra.mxu0 0.0
    %3260 = vmatprep.subr.mxu0 0.0
    %3261 = vmatpush1.msra.mxu0 0.0
    %3262 = vmatprep.subr.mxu0 0.0
    %3263 = vmatpush1.msra.mxu0 0.0
    %3264 = vmatprep.subr.mxu0 0.0
    %3265 = vmatpush1.msra.mxu0 0.0
    %3266 = vmatprep.subr.mxu0 0.0
    %3267 = vmatpush1.msra.mxu0 0.0
    %3268 = vmatprep.subr.mxu0 0.0
    %3269 = vmatpush1.msra.mxu0 0.0
    %3270 = vmatprep.subr.mxu0 0.0
    %3271 = vmatpush1.msra.mxu0 0.0
    %3272 = vmatprep.subr.mxu0 0.0
    %3273 = vmatpush1.msra.mxu0 0.0
    %3274 = vmatprep.subr.mxu0 0.0
    %3275 = vmatpush1.msra.mxu0 0.0
    %3276 = vmatprep.subr.mxu0 0.0
    %3277 = vmatpush1.msra.mxu0 0.0
    %3278 = vmatprep.subr.mxu0 0.0
    %3279 = vmatpush1.msra.mxu0 0.0
    %3280 = vmatprep.mubr.f32.mxu0 0.0
    %3281 = vmatmul.mubr.f32.gmra.mrb[0].mxu0 %v3190
    %v3282 = vpop.f32.mrb[0].mxu0
    %v3283 = vadd.f32 0.0, %v3282
    %v3284 = vpop.f32.mrb[0].mxu0
    %3285 = vmatprep.mubr.f32.mxu0 0.0
    %3286 = vmatmul.mubr.f32.gmra.mrb[0].mxu0 %v3193
    %v3287 = vpop.f32.mrb[0].mxu0
    %v3288 = vadd.f32 0.0, %v3287
    %v3289 = vpop.f32.mrb[0].mxu0
    %3290 = vmatprep.mubr.f32.mxu0 0.0
    %3291 = vmatmul.mubr.f32.gmra.mrb[0].mxu0 %v3196
    %v3292 = vpop.f32.mrb[0].mxu0
    %v3293 = vadd.f32 0.0, %v3292
    %v3294 = vpop.f32.mrb[0].mxu0
    %3295 = vmatprep.mubr.f32.mxu0 0.0
    %3296 = vmatmul.mubr.f32.gmra.mrb[0].mxu0 %v3199
    %v3297 = vpop.f32.mrb[0].mxu0
    %v3298 = vadd.f32 0.0, %v3297
    %v3299 = vpop.f32.mrb[0].mxu0
    %3300 = vmatprep.mubr.f32.mxu0 0.0
    %3301 = vmatmul.mubr.f32.gmra.mrb[0].mxu0 %v3202
    %v3302 = vpop.f32.mrb[0].mxu0
    %v3303 = vadd.f32 0.0, %v3302
    %v3304 = vpop.f32.mrb[0].mxu0
    %3305 = vmatprep.mubr.f32.mxu0 0.0
    %3306 = vmatmul.mubr.f32.gmra.mrb[0].mxu0 %v3205
    %v3307 = vpop.f32.mrb[0].mxu0
    %v3308 = vadd.f32 0.0, %v3307
    %v3309 = vpop.f32.mrb[0].mxu0
    %3310 = vmatprep.mubr.f32.mxu0 0.0
    %3311 = vmatmul.mubr.f32.gmra.mrb[0].mxu0 %v3208
    %v3312 = vpop.f32.mrb[0].mxu0
    %v3313 = vadd.f32 0.0, %v3312
    %v3314 = vpop.f32.mrb[0].mxu0
    %3315 = vmatprep.mubr.f32.mxu0 0.0
    %3316 = vmatmul.mubr.f32.gmra.mrb[0].mxu0 %v3211
    %v3317 = vpop.f32.mrb[0].mxu0
    %v3318 = vadd.f32 0.0, %v3317
    %v3319 = vpop.f32.mrb[0].mxu0
    %3320 = vmatprep.mubr.f32.mxu0 0.0
    %3321 = vmatmul.mubr.f32.gmra.mrb[0].mxu0 %v3214
    %v3322 = vpop.f32.mrb[0].mxu0
    %v3323 = vadd.f32 0.0, %v3322
    %v3324 = vpop.f32.mrb[0].mxu0
    %3325 = vdwg.mxu0
    %3326 = vrot.lane.b32.xlu0 %v2828, 120
    %v3327 = vpop.permute.xlu0 %3326
    %3328 = vrot.lane.b32.xlu0 %v2833, 120
    %v3329 = vpop.permute.xlu0 %3328
    %3330 = vrot.lane.b32.xlu0 %v2838, 120
    %v3331 = vpop.permute.xlu0 %3330
    %3332 = vrot.lane.b32.xlu0 %v2843, 120
    %v3333 = vpop.permute.xlu0 %3332
    %3334 = vrot.lane.b32.xlu0 %v2848, 120
    %v3335 = vpop.permute.xlu0 %3334
    %3336 = vrot.lane.b32.xlu0 %v2853, 120
    %v3337 = vpop.permute.xlu0 %3336
    %3338 = vrot.lane.b32.xlu0 %v2858, 120
    %v3339 = vpop.permute.xlu0 %3338
    %3340 = vrot.lane.b32.xlu0 %v2863, 120
    %v3341 = vpop.permute.xlu0 %3340
    %3342 = vrot.lane.b32.xlu0 %v2868, 120
    %v3343 = vpop.permute.xlu0 %3342
    %3344 = vrot.lane.b32.xlu0 %v2828, 88
    %v3345 = vpop.permute.xlu0 %3344
    %3346 = vrot.lane.b32.xlu0 %v2833, 88
    %v3347 = vpop.permute.xlu0 %3346
    %3348 = vrot.lane.b32.xlu0 %v2838, 88
    %v3349 = vpop.permute.xlu0 %3348
    %3350 = vrot.lane.b32.xlu0 %v2843, 88
    %v3351 = vpop.permute.xlu0 %3350
    %3352 = vrot.lane.b32.xlu0 %v2848, 88
    %v3353 = vpop.permute.xlu0 %3352
    %3354 = vrot.lane.b32.xlu0 %v2853, 88
    %v3355 = vpop.permute.xlu0 %3354
    %3356 = vrot.lane.b32.xlu0 %v2858, 88
    %v3357 = vpop.permute.xlu0 %3356
    %3358 = vrot.lane.b32.xlu0 %v2863, 88
    %v3359 = vpop.permute.xlu0 %3358
    %3360 = vrot.lane.b32.xlu0 %v2868, 88
    %v3361 = vpop.permute.xlu0 %3360
    %v3362 = vsel %vm361, %v3327, 0
    %v3364 = vsel %vm361, %v3329, 0
    %v3366 = vsel %vm361, %v3331, 0
    %v3368 = vsel %vm361, %v3333, 0
    %v3370 = vsel %vm361, %v3335, 0
    %v3372 = vsel %vm361, %v3337, 0
    %v3374 = vsel %vm361, %v3339, 0
    %v3376 = vsel %vm361, %v3341, 0
    %v3378 = vsel %vm361, %v3343, 0
    %v3380 = vsel %vm361, %v3345, 0
    %v3382 = vsel %vm361, %v3347, 0
    %v3384 = vsel %vm361, %v3349, 0
    %v3386 = vsel %vm361, %v3351, 0
    %v3388 = vsel %vm361, %v3353, 0
    %v3390 = vsel %vm361, %v3355, 0
    %v3392 = vsel %vm361, %v3357, 0
    %v3394 = vsel %vm361, %v3359, 0
    %v3396 = vsel %vm361, %v3361, 0
    %3398 = vmatprep.subr.mxu0 0.0
    %3399 = vmatpush1.xpose.msra.mxu0 %v3380
    %3400 = vmatprep.subr.mxu0 0.0
    %3401 = vmatpush1.xpose.msra.mxu0 %v3382
    %3402 = vmatprep.subr.mxu0 0.0
    %3403 = vmatpush1.xpose.msra.mxu0 %v3384
    %3404 = vmatprep.subr.mxu0 0.0
    %3405 = vmatpush1.xpose.msra.mxu0 %v3386
    %3406 = vmatprep.subr.mxu0 0.0
    %3407 = vmatpush1.xpose.msra.mxu0 %v3388
    %3408 = vmatprep.subr.mxu0 0.0
    %3409 = vmatpush1.xpose.msra.mxu0 %v3390
    %3410 = vmatprep.subr.mxu0 0.0
    %3411 = vmatpush1.xpose.msra.mxu0 %v3392
    %3412 = vmatprep.subr.mxu0 0.0
    %3413 = vmatpush1.xpose.msra.mxu0 %v3394
    %3414 = vmatprep.subr.mxu0 0.0
    %3415 = vmatpush1.xpose.msra.mxu0 %v3396
    %3416 = vmatprep.subr.mxu0 0.0
    %3417 = vmatpush1.xpose.msra.mxu0 0.0
    %3418 = vmatprep.subr.mxu0 0.0
    %3419 = vmatpush1.xpose.msra.mxu0 0.0
    %3420 = vmatprep.subr.mxu0 0.0
    %3421 = vmatpush1.xpose.msra.mxu0 0.0
    %3422 = vmatprep.subr.mxu0 0.0
    %3423 = vmatpush1.xpose.msra.mxu0 0.0
    %3424 = vmatprep.subr.mxu0 0.0
    %3425 = vmatpush1.xpose.msra.mxu0 0.0
    %3426 = vmatprep.subr.mxu0 0.0
    %3427 = vmatpush1.xpose.msra.mxu0 0.0
    %3428 = vmatprep.subr.mxu0 0.0
    %3429 = vmatpush1.xpose.msra.mxu0 0.0
    %3430 = vmatprep.subr.mxu0 0.0
    %3431 = vmatpush1.xpose.msra.mxu0 0.0
    %3432 = vmatprep.subr.mxu0 0.0
    %3433 = vmatpush1.xpose.msra.mxu0 0.0
    %3434 = vmatprep.subr.mxu0 0.0
    %3435 = vmatpush1.xpose.msra.mxu0 0.0
    %3436 = vmatprep.subr.mxu0 0.0
    %3437 = vmatpush1.xpose.msra.mxu0 0.0
    %3438 = vmatprep.subr.mxu0 0.0
    %3439 = vmatpush1.xpose.msra.mxu0 0.0
    %3440 = vmatprep.subr.mxu0 0.0
    %3441 = vmatpush1.xpose.msra.mxu0 0.0
    %3442 = vmatprep.subr.mxu0 0.0
    %3443 = vmatpush1.xpose.msra.mxu0 0.0
    %3444 = vmatprep.subr.mxu0 0.0
    %3445 = vmatpush1.xpose.msra.mxu0 0.0
    %3446 = vmatprep.subr.mxu0 0.0
    %3447 = vmatpush1.xpose.msra.mxu0 0.0
    %3448 = vmatprep.subr.mxu0 0.0
    %3449 = vmatpush1.xpose.msra.mxu0 0.0
    %3450 = vmatprep.subr.mxu0 0.0
    %3451 = vmatpush1.xpose.msra.mxu0 0.0
    %3452 = vmatprep.subr.mxu0 0.0
    %3453 = vmatpush1.xpose.msra.mxu0 0.0
    %3454 = vmatprep.subr.mxu0 0.0
    %3455 = vmatpush1.xpose.msra.mxu0 0.0
    %3456 = vmatprep.subr.mxu0 0.0
    %3457 = vmatpush1.xpose.msra.mxu0 0.0
    %3458 = vmatprep.subr.mxu0 0.0
    %3459 = vmatpush1.xpose.msra.mxu0 0.0
    %3460 = vmatprep.subr.mxu0 0.0
    %3461 = vmatpush1.xpose.msra.mxu0 0.0
    %3462 = vmatprep.mubr.f32.mxu0 0.0
    %3463 = vmatmul.mubr.f32.gmra.mrb[0].mxu0 %v3362
    %v3464 = vpop.f32.mrb[0].mxu0
    %v3465 = vadd.f32 0.0, %v3464
    %v3466 = vpop.f32.mrb[0].mxu0
    %3467 = vmatprep.mubr.f32.mxu0 0.0
    %3468 = vmatmul.mubr.f32.gmra.mrb[0].mxu0 %v3364
    %v3469 = vpop.f32.mrb[0].mxu0
    %v3470 = vadd.f32 0.0, %v3469
    %v3471 = vpop.f32.mrb[0].mxu0
    %3472 = vmatprep.mubr.f32.mxu0 0.0
    %3473 = vmatmul.mubr.f32.gmra.mrb[0].mxu0 %v3366
    %v3474 = vpop.f32.mrb[0].mxu0
    %v3475 = vadd.f32 0.0, %v3474
    %v3476 = vpop.f32.mrb[0].mxu0
    %3477 = vmatprep.mubr.f32.mxu0 0.0
    %3478 = vmatmul.mubr.f32.gmra.mrb[0].mxu0 %v3368
    %v3479 = vpop.f32.mrb[0].mxu0
    %v3480 = vadd.f32 0.0, %v3479
    %v3481 = vpop.f32.mrb[0].mxu0
    %3482 = vmatprep.mubr.f32.mxu0 0.0
    %3483 = vmatmul.mubr.f32.gmra.mrb[0].mxu0 %v3370
    %v3484 = vpop.f32.mrb[0].mxu0
    %v3485 = vadd.f32 0.0, %v3484
    %v3486 = vpop.f32.mrb[0].mxu0
    %3487 = vmatprep.mubr.f32.mxu0 0.0
    %3488 = vmatmul.mubr.f32.gmra.mrb[0].mxu0 %v3372
    %v3489 = vpop.f32.mrb[0].mxu0
    %v3490 = vadd.f32 0.0, %v3489
    %v3491 = vpop.f32.mrb[0].mxu0
    %3492 = vmatprep.mubr.f32.mxu0 0.0
    %3493 = vmatmul.mubr.f32.gmra.mrb[0].mxu0 %v3374
    %v3494 = vpop.f32.mrb[0].mxu0
    %v3495 = vadd.f32 0.0, %v3494
    %v3496 = vpop.f32.mrb[0].mxu0
    %3497 = vmatprep.mubr.f32.mxu0 0.0
    %3498 = vmatmul.mubr.f32.gmra.mrb[0].mxu0 %v3376
    %v3499 = vpop.f32.mrb[0].mxu0
    %v3500 = vadd.f32 0.0, %v3499
    %v3501 = vpop.f32.mrb[0].mxu0
    %3502 = vmatprep.mubr.f32.mxu0 0.0
    %3503 = vmatmul.mubr.f32.gmra.mrb[0].mxu0 %v3378
    %v3504 = vpop.f32.mrb[0].mxu0
    %v3505 = vadd.f32 0.0, %v3504
    %v3506 = vpop.f32.mrb[0].mxu0
    %3507 = vdwg.mxu0
    %v3508 = vmul.f32 %v3465, 0.35355338
    %v3509 = vmul.f32 %v3470, 0.35355338
    %v3510 = vmul.f32 %v3475, 0.35355338
    %v3511 = vmul.f32 %v3480, 0.35355338
    %v3512 = vmul.f32 %v3485, 0.35355338
    %v3513 = vmul.f32 %v3490, 0.35355338
    %v3514 = vmul.f32 %v3495, 0.35355338
    %v3515 = vmul.f32 %v3500, 0.35355338
    %v3516 = vmul.f32 %v3505, 0.35355338
    %v3517 = vadd.f32 %v3508, %v2721
    %v3518 = vadd.f32 %v3509, %v2722
    %v3519 = vadd.f32 %v3510, %v2723
    %v3520 = vadd.f32 %v3511, %v2724
    %v3521 = vadd.f32 %v3512, %v2725
    %v3522 = vadd.f32 %v3513, %v2726
    %v3523 = vadd.f32 %v3514, %v2727
    %v3524 = vadd.f32 %v3515, %v2728
    %v3525 = vadd.f32 %v3516, %v2729
    %v3526 = vsel %vm3062, %v3517, -inf
    %3527 = vmax.xlane.f32.xlu0 %v3526
    %v3528 = vpop.xlane.xlu0 %3527
    %v3529 = vsel %vm3062, %v3518, -inf
    %3530 = vmax.xlane.f32.xlu0 %v3529
    %v3531 = vpop.xlane.xlu0 %3530
    %v3532 = vsel %vm3062, %v3519, -inf
    %3533 = vmax.xlane.f32.xlu0 %v3532
    %v3534 = vpop.xlane.xlu0 %3533
    %v3535 = vsel %vm3062, %v3520, -inf
    %3536 = vmax.xlane.f32.xlu0 %v3535
    %v3537 = vpop.xlane.xlu0 %3536
    %v3538 = vsel %vm3062, %v3521, -inf
    %3539 = vmax.xlane.f32.xlu0 %v3538
    %v3540 = vpop.xlane.xlu0 %3539
    %v3541 = vsel %vm3062, %v3522, -inf
    %3542 = vmax.xlane.f32.xlu0 %v3541
    %v3543 = vpop.xlane.xlu0 %3542
    %v3544 = vsel %vm3062, %v3523, -inf
    %3545 = vmax.xlane.f32.xlu0 %v3544
    %v3546 = vpop.xlane.xlu0 %3545
    %v3547 = vsel %vm3062, %v3524, -inf
    %3548 = vmax.xlane.f32.xlu0 %v3547
    %v3549 = vpop.xlane.xlu0 %3548
    %v3550 = vsel %vm3062, %v3525, -inf
    %3551 = vmax.xlane.f32.xlu0 %v3550
    %v3552 = vpop.xlane.xlu0 %3551
    %v3553 = vsub.f32 %v3517, %v3528
    %v3554 = vsub.f32 %v3518, %v3531
    %v3555 = vsub.f32 %v3519, %v3534
    %v3556 = vsub.f32 %v3520, %v3537
    %v3557 = vsub.f32 %v3521, %v3540
    %v3558 = vsub.f32 %v3522, %v3543
    %v3559 = vsub.f32 %v3523, %v3546
    %v3560 = vsub.f32 %v3524, %v3549
    %v3561 = vsub.f32 %v3525, %v3552
    %v3562 = vmul.f32 %v3553, 1.442695
    %v3563 = vpow.pop %v3562
    %v3564 = vmul.f32 %v3554, 1.442695
    %v3565 = vpow.pop %v3564
    %v3566 = vmul.f32 %v3555, 1.442695
    %v3567 = vpow.pop %v3566
    %v3568 = vmul.f32 %v3556, 1.442695
    %v3569 = vpow.pop %v3568
    %v3570 = vmul.f32 %v3557, 1.442695
    %v3571 = vpow.pop %v3570
    %v3572 = vmul.f32 %v3558, 1.442695
    %v3573 = vpow.pop %v3572
    %v3574 = vmul.f32 %v3559, 1.442695
    %v3575 = vpow.pop %v3574
    %v3576 = vmul.f32 %v3560, 1.442695
    %v3577 = vpow.pop %v3576
    %v3578 = vmul.f32 %v3561, 1.442695
    %v3579 = vpow.pop %v3578
    %v3580 = vsel %vm3062, %v3563, 0.0
    %3581 = vadd.xlane.f32.xlu0 %v3580
    %v3582 = vpop.xlane.xlu0 %3581
    %v3583 = vsel %vm3062, %v3565, 0.0
    %3584 = vadd.xlane.f32.xlu0 %v3583
    %v3585 = vpop.xlane.xlu0 %3584
    %v3586 = vsel %vm3062, %v3567, 0.0
    %3587 = vadd.xlane.f32.xlu0 %v3586
    %v3588 = vpop.xlane.xlu0 %3587
    %v3589 = vsel %vm3062, %v3569, 0.0
    %3590 = vadd.xlane.f32.xlu0 %v3589
    %v3591 = vpop.xlane.xlu0 %3590
    %v3592 = vsel %vm3062, %v3571, 0.0
    %3593 = vadd.xlane.f32.xlu0 %v3592
    %v3594 = vpop.xlane.xlu0 %3593
    %v3595 = vsel %vm3062, %v3573, 0.0
    %3596 = vadd.xlane.f32.xlu0 %v3595
    %v3597 = vpop.xlane.xlu0 %3596
    %v3598 = vsel %vm3062, %v3575, 0.0
    %3599 = vadd.xlane.f32.xlu0 %v3598
    %v3600 = vpop.xlane.xlu0 %3599
    %v3601 = vsel %vm3062, %v3577, 0.0
    %3602 = vadd.xlane.f32.xlu0 %v3601
    %v3603 = vpop.xlane.xlu0 %3602
    %v3604 = vsel %vm3062, %v3579, 0.0
    %3605 = vadd.xlane.f32.xlu0 %v3604
    %v3606 = vpop.xlane.xlu0 %3605
    %v3607 = vrcp.pop %v3582
    %v3608 = vrcp.pop %v3585
    %v3609 = vrcp.pop %v3588
    %v3610 = vrcp.pop %v3591
    %v3611 = vrcp.pop %v3594
    %v3612 = vrcp.pop %v3597
    %v3613 = vrcp.pop %v3600
    %v3614 = vrcp.pop %v3603
    %v3615 = vrcp.pop %v3606
    %v3616 = vmul.f32 %v3563, %v3607
    %v3617 = vmul.f32 %v3565, %v3608
    %v3618 = vmul.f32 %v3567, %v3609
    %v3619 = vmul.f32 %v3569, %v3610
    %v3620 = vmul.f32 %v3571, %v3611
    %v3621 = vmul.f32 %v3573, %v3612
    %v3622 = vmul.f32 %v3575, %v3613
    %v3623 = vmul.f32 %v3577, %v3614
    %v3624 = vmul.f32 %v3579, %v3615
    %3625 = vrot.lane.b32.xlu0 %v2828, 56
    %v3626 = vpop.permute.xlu0 %3625
    %3627 = vrot.lane.b32.xlu0 %v2833, 56
    %v3628 = vpop.permute.xlu0 %3627
    %3629 = vrot.lane.b32.xlu0 %v2838, 56
    %v3630 = vpop.permute.xlu0 %3629
    %3631 = vrot.lane.b32.xlu0 %v2843, 56
    %v3632 = vpop.permute.xlu0 %3631
    %3633 = vrot.lane.b32.xlu0 %v2848, 56
    %v3634 = vpop.permute.xlu0 %3633
    %3635 = vrot.lane.b32.xlu0 %v2853, 56
    %v3636 = vpop.permute.xlu0 %3635
    %3637 = vrot.lane.b32.xlu0 %v2858, 56
    %v3638 = vpop.permute.xlu0 %3637
    %3639 = vrot.lane.b32.xlu0 %v2863, 56
    %v3640 = vpop.permute.xlu0 %3639
    %3641 = vrot.lane.b32.xlu0 %v2868, 56
    %v3642 = vpop.permute.xlu0 %3641
    %v3653 = vsel %vm3062, %v3616, 0
    %v3656 = vsel %vm3062, %v3617, 0
    %v3659 = vsel %vm3062, %v3618, 0
    %v3662 = vsel %vm3062, %v3619, 0
    %v3665 = vsel %vm3062, %v3620, 0
    %v3668 = vsel %vm3062, %v3621, 0
    %v3671 = vsel %vm3062, %v3622, 0
    %v3674 = vsel %vm3062, %v3623, 0
    %v3677 = vsel %vm3062, %v3624, 0
    %3679 = vmatprep.subr.mxu0 0.0
    %3680 = vmatpush1.msra.mxu0 %v3626
    %3681 = vmatprep.subr.mxu0 0.0
    %3682 = vmatpush1.msra.mxu0 %v3628
    %3683 = vmatprep.subr.mxu0 0.0
    %3684 = vmatpush1.msra.mxu0 %v3630
    %3685 = vmatprep.subr.mxu0 0.0
    %3686 = vmatpush1.msra.mxu0 %v3632
    %3687 = vmatprep.subr.mxu0 0.0
    %3688 = vmatpush1.msra.mxu0 %v3634
    %3689 = vmatprep.subr.mxu0 0.0
    %3690 = vmatpush1.msra.mxu0 %v3636
    %3691 = vmatprep.subr.mxu0 0.0
    %3692 = vmatpush1.msra.mxu0 %v3638
    %3693 = vmatprep.subr.mxu0 0.0
    %3694 = vmatpush1.msra.mxu0 %v3640
    %3695 = vmatprep.subr.mxu0 0.0
    %3696 = vmatpush1.msra.mxu0 %v3642
    %3697 = vmatprep.subr.mxu0 0.0
    %3698 = vmatpush1.msra.mxu0 0.0
    %3699 = vmatprep.subr.mxu0 0.0
    %3700 = vmatpush1.msra.mxu0 0.0
    %3701 = vmatprep.subr.mxu0 0.0
    %3702 = vmatpush1.msra.mxu0 0.0
    %3703 = vmatprep.subr.mxu0 0.0
    %3704 = vmatpush1.msra.mxu0 0.0
    %3705 = vmatprep.subr.mxu0 0.0
    %3706 = vmatpush1.msra.mxu0 0.0
    %3707 = vmatprep.subr.mxu0 0.0
    %3708 = vmatpush1.msra.mxu0 0.0
    %3709 = vmatprep.subr.mxu0 0.0
    %3710 = vmatpush1.msra.mxu0 0.0
    %3711 = vmatprep.subr.mxu0 0.0
    %3712 = vmatpush1.msra.mxu0 0.0
    %3713 = vmatprep.subr.mxu0 0.0
    %3714 = vmatpush1.msra.mxu0 0.0
    %3715 = vmatprep.subr.mxu0 0.0
    %3716 = vmatpush1.msra.mxu0 0.0
    %3717 = vmatprep.subr.mxu0 0.0
    %3718 = vmatpush1.msra.mxu0 0.0
    %3719 = vmatprep.subr.mxu0 0.0
    %3720 = vmatpush1.msra.mxu0 0.0
    %3721 = vmatprep.subr.mxu0 0.0
    %3722 = vmatpush1.msra.mxu0 0.0
    %3723 = vmatprep.subr.mxu0 0.0
    %3724 = vmatpush1.msra.mxu0 0.0
    %3725 = vmatprep.subr.mxu0 0.0
    %3726 = vmatpush1.msra.mxu0 0.0
    %3727 = vmatprep.subr.mxu0 0.0
    %3728 = vmatpush1.msra.mxu0 0.0
    %3729 = vmatprep.subr.mxu0 0.0
    %3730 = vmatpush1.msra.mxu0 0.0
    %3731 = vmatprep.subr.mxu0 0.0
    %3732 = vmatpush1.msra.mxu0 0.0
    %3733 = vmatprep.subr.mxu0 0.0
    %3734 = vmatpush1.msra.mxu0 0.0
    %3735 = vmatprep.subr.mxu0 0.0
    %3736 = vmatpush1.msra.mxu0 0.0
    %3737 = vmatprep.subr.mxu0 0.0
    %3738 = vmatpush1.msra.mxu0 0.0
    %3739 = vmatprep.subr.mxu0 0.0
    %3740 = vmatpush1.msra.mxu0 0.0
    %3741 = vmatprep.subr.mxu0 0.0
    %3742 = vmatpush1.msra.mxu0 0.0
    %3743 = vmatprep.mubr.f32.mxu0 0.0
    %3744 = vmatmul.mubr.f32.gmra.mrb[0].mxu0 %v3653
    %v3745 = vpop.f32.mrb[0].mxu0
    %v3746 = vadd.f32 0.0, %v3745
    %v3747 = vpop.f32.mrb[0].mxu0
    %3748 = vmatprep.mubr.f32.mxu0 0.0
    %3749 = vmatmul.mubr.f32.gmra.mrb[0].mxu0 %v3656
    %v3750 = vpop.f32.mrb[0].mxu0
    %v3751 = vadd.f32 0.0, %v3750
    %v3752 = vpop.f32.mrb[0].mxu0
    %3753 = vmatprep.mubr.f32.mxu0 0.0
    %3754 = vmatmul.mubr.f32.gmra.mrb[0].mxu0 %v3659
    %v3755 = vpop.f32.mrb[0].mxu0
    %v3756 = vadd.f32 0.0, %v3755
    %v3757 = vpop.f32.mrb[0].mxu0
    %3758 = vmatprep.mubr.f32.mxu0 0.0
    %3759 = vmatmul.mubr.f32.gmra.mrb[0].mxu0 %v3662
    %v3760 = vpop.f32.mrb[0].mxu0
    %v3761 = vadd.f32 0.0, %v3760
    %v3762 = vpop.f32.mrb[0].mxu0
    %3763 = vmatprep.mubr.f32.mxu0 0.0
    %3764 = vmatmul.mubr.f32.gmra.mrb[0].mxu0 %v3665
    %v3765 = vpop.f32.mrb[0].mxu0
    %v3766 = vadd.f32 0.0, %v3765
    %v3767 = vpop.f32.mrb[0].mxu0
    %3768 = vmatprep.mubr.f32.mxu0 0.0
    %3769 = vmatmul.mubr.f32.gmra.mrb[0].mxu0 %v3668
    %v3770 = vpop.f32.mrb[0].mxu0
    %v3771 = vadd.f32 0.0, %v3770
    %v3772 = vpop.f32.mrb[0].mxu0
    %3773 = vmatprep.mubr.f32.mxu0 0.0
    %3774 = vmatmul.mubr.f32.gmra.mrb[0].mxu0 %v3671
    %v3775 = vpop.f32.mrb[0].mxu0
    %v3776 = vadd.f32 0.0, %v3775
    %v3777 = vpop.f32.mrb[0].mxu0
    %3778 = vmatprep.mubr.f32.mxu0 0.0
    %3779 = vmatmul.mubr.f32.gmra.mrb[0].mxu0 %v3674
    %v3780 = vpop.f32.mrb[0].mxu0
    %v3781 = vadd.f32 0.0, %v3780
    %v3782 = vpop.f32.mrb[0].mxu0
    %3783 = vmatprep.mubr.f32.mxu0 0.0
    %3784 = vmatmul.mubr.f32.gmra.mrb[0].mxu0 %v3677
    %v3785 = vpop.f32.mrb[0].mxu0
    %v3786 = vadd.f32 0.0, %v3785
    %v3787 = vpop.f32.mrb[0].mxu0
    %3788 = vdwg.mxu0
    %v3790 = vsel %vm361, %v3746, 0
    %v3793 = vsel %vm361, %v3751, 0
    %v3796 = vsel %vm361, %v3756, 0
    %v3799 = vsel %vm361, %v3761, 0
    %v3802 = vsel %vm361, %v3766, 0
    %v3805 = vsel %vm361, %v3771, 0
    %v3808 = vsel %vm361, %v3776, 0
    %v3811 = vsel %vm361, %v3781, 0
    %v3814 = vsel %vm361, %v3786, 0
    %3816 = vmatprep.subr.mxu0 0.0
    %3817 = vmatpush1.msra.mxu0 %v54
    %3818 = vmatprep.subr.mxu0 0.0
    %3819 = vmatpush1.msra.mxu0 0.0
    %3820 = vmatprep.subr.mxu0 0.0
    %3821 = vmatpush1.msra.mxu0 0.0
    %3822 = vmatprep.subr.mxu0 0.0
    %3823 = vmatpush1.msra.mxu0 0.0
    %3824 = vmatprep.subr.mxu0 0.0
    %3825 = vmatpush1.msra.mxu0 0.0
    %3826 = vmatprep.subr.mxu0 0.0
    %3827 = vmatpush1.msra.mxu0 0.0
    %3828 = vmatprep.subr.mxu0 0.0
    %3829 = vmatpush1.msra.mxu0 0.0
    %3830 = vmatprep.subr.mxu0 0.0
    %3831 = vmatpush1.msra.mxu0 0.0
    %3832 = vmatprep.subr.mxu0 0.0
    %3833 = vmatpush1.msra.mxu0 0.0
    %3834 = vmatprep.subr.mxu0 0.0
    %3835 = vmatpush1.msra.mxu0 0.0
    %3836 = vmatprep.subr.mxu0 0.0
    %3837 = vmatpush1.msra.mxu0 0.0
    %3838 = vmatprep.subr.mxu0 0.0
    %3839 = vmatpush1.msra.mxu0 0.0
    %3840 = vmatprep.subr.mxu0 0.0
    %3841 = vmatpush1.msra.mxu0 0.0
    %3842 = vmatprep.subr.mxu0 0.0
    %3843 = vmatpush1.msra.mxu0 0.0
    %3844 = vmatprep.subr.mxu0 0.0
    %3845 = vmatpush1.msra.mxu0 0.0
    %3846 = vmatprep.subr.mxu0 0.0
    %3847 = vmatpush1.msra.mxu0 0.0
    %3848 = vmatprep.subr.mxu0 0.0
    %3849 = vmatpush1.msra.mxu0 0.0
    %3850 = vmatprep.subr.mxu0 0.0
    %3851 = vmatpush1.msra.mxu0 0.0
    %3852 = vmatprep.subr.mxu0 0.0
    %3853 = vmatpush1.msra.mxu0 0.0
    %3854 = vmatprep.subr.mxu0 0.0
    %3855 = vmatpush1.msra.mxu0 0.0
    %3856 = vmatprep.subr.mxu0 0.0
    %3857 = vmatpush1.msra.mxu0 0.0
    %3858 = vmatprep.subr.mxu0 0.0
    %3859 = vmatpush1.msra.mxu0 0.0
    %3860 = vmatprep.subr.mxu0 0.0
    %3861 = vmatpush1.msra.mxu0 0.0
    %3862 = vmatprep.subr.mxu0 0.0
    %3863 = vmatpush1.msra.mxu0 0.0
    %3864 = vmatprep.subr.mxu0 0.0
    %3865 = vmatpush1.msra.mxu0 0.0
    %3866 = vmatprep.subr.mxu0 0.0
    %3867 = vmatpush1.msra.mxu0 0.0
    %3868 = vmatprep.subr.mxu0 0.0
    %3869 = vmatpush1.msra.mxu0 0.0
    %3870 = vmatprep.subr.mxu0 0.0
    %3871 = vmatpush1.msra.mxu0 0.0
    %3872 = vmatprep.subr.mxu0 0.0
    %3873 = vmatpush1.msra.mxu0 0.0
    %3874 = vmatprep.subr.mxu0 0.0
    %3875 = vmatpush1.msra.mxu0 0.0
    %3876 = vmatprep.subr.mxu0 0.0
    %3877 = vmatpush1.msra.mxu0 0.0
    %3878 = vmatprep.subr.mxu0 0.0
    %3879 = vmatpush1.msra.mxu0 0.0
    %3880 = vmatprep.mubr.f32.mxu0 0.0
    %3881 = vmatmul.mubr.f32.gmra.mrb[0].mxu0 %v3790
    %v3882 = vpop.f32.mrb[0].mxu0
    %v3883 = vadd.f32 0.0, %v3882
    %v3884 = vpop.f32.mrb[0].mxu0
    %3885 = vmatprep.mubr.f32.mxu0 0.0
    %3886 = vmatmul.mubr.f32.gmra.mrb[0].mxu0 %v3793
    %v3887 = vpop.f32.mrb[0].mxu0
    %v3888 = vadd.f32 0.0, %v3887
    %v3889 = vpop.f32.mrb[0].mxu0
    %3890 = vmatprep.mubr.f32.mxu0 0.0
    %3891 = vmatmul.mubr.f32.gmra.mrb[0].mxu0 %v3796
    %v3892 = vpop.f32.mrb[0].mxu0
    %v3893 = vadd.f32 0.0, %v3892
    %v3894 = vpop.f32.mrb[0].mxu0
    %3895 = vmatprep.mubr.f32.mxu0 0.0
    %3896 = vmatmul.mubr.f32.gmra.mrb[0].mxu0 %v3799
    %v3897 = vpop.f32.mrb[0].mxu0
    %v3898 = vadd.f32 0.0, %v3897
    %v3899 = vpop.f32.mrb[0].mxu0
    %3900 = vmatprep.mubr.f32.mxu0 0.0
    %3901 = vmatmul.mubr.f32.gmra.mrb[0].mxu0 %v3802
    %v3902 = vpop.f32.mrb[0].mxu0
    %v3903 = vadd.f32 0.0, %v3902
    %v3904 = vpop.f32.mrb[0].mxu0
    %3905 = vmatprep.mubr.f32.mxu0 0.0
    %3906 = vmatmul.mubr.f32.gmra.mrb[0].mxu0 %v3805
    %v3907 = vpop.f32.mrb[0].mxu0
    %v3908 = vadd.f32 0.0, %v3907
    %v3909 = vpop.f32.mrb[0].mxu0
    %3910 = vmatprep.mubr.f32.mxu0 0.0
    %3911 = vmatmul.mubr.f32.gmra.mrb[0].mxu0 %v3808
    %v3912 = vpop.f32.mrb[0].mxu0
    %v3913 = vadd.f32 0.0, %v3912
    %v3914 = vpop.f32.mrb[0].mxu0
    %3915 = vmatprep.mubr.f32.mxu0 0.0
    %3916 = vmatmul.mubr.f32.gmra.mrb[0].mxu0 %v3811
    %v3917 = vpop.f32.mrb[0].mxu0
    %v3918 = vadd.f32 0.0, %v3917
    %v3919 = vpop.f32.mrb[0].mxu0
    %3920 = vmatprep.mubr.f32.mxu0 0.0
    %3921 = vmatmul.mubr.f32.gmra.mrb[0].mxu0 %v3814
    %v3922 = vpop.f32.mrb[0].mxu0
    %v3923 = vadd.f32 0.0, %v3922
    %v3924 = vpop.f32.mrb[0].mxu0
    %3925 = vdwg.mxu0
    %v3927 = vsel %vm361, %v3283, 0
    %v3930 = vsel %vm361, %v3288, 0
    %v3933 = vsel %vm361, %v3293, 0
    %v3936 = vsel %vm361, %v3298, 0
    %v3939 = vsel %vm361, %v3303, 0
    %v3942 = vsel %vm361, %v3308, 0
    %v3945 = vsel %vm361, %v3313, 0
    %v3948 = vsel %vm361, %v3318, 0
    %v3951 = vsel %vm361, %v3323, 0
    %3953 = vmatprep.subr.mxu0 0.0
    %3954 = vmatpush1.msra.mxu0 %v53
    %3955 = vmatprep.subr.mxu0 0.0
    %3956 = vmatpush1.msra.mxu0 0.0
    %3957 = vmatprep.subr.mxu0 0.0
    %3958 = vmatpush1.msra.mxu0 0.0
    %3959 = vmatprep.subr.mxu0 0.0
    %3960 = vmatpush1.msra.mxu0 0.0
    %3961 = vmatprep.subr.mxu0 0.0
    %3962 = vmatpush1.msra.mxu0 0.0
    %3963 = vmatprep.subr.mxu0 0.0
    %3964 = vmatpush1.msra.mxu0 0.0
    %3965 = vmatprep.subr.mxu0 0.0
    %3966 = vmatpush1.msra.mxu0 0.0
    %3967 = vmatprep.subr.mxu0 0.0
    %3968 = vmatpush1.msra.mxu0 0.0
    %3969 = vmatprep.subr.mxu0 0.0
    %3970 = vmatpush1.msra.mxu0 0.0
    %3971 = vmatprep.subr.mxu0 0.0
    %3972 = vmatpush1.msra.mxu0 0.0
    %3973 = vmatprep.subr.mxu0 0.0
    %3974 = vmatpush1.msra.mxu0 0.0
    %3975 = vmatprep.subr.mxu0 0.0
    %3976 = vmatpush1.msra.mxu0 0.0
    %3977 = vmatprep.subr.mxu0 0.0
    %3978 = vmatpush1.msra.mxu0 0.0
    %3979 = vmatprep.subr.mxu0 0.0
    %3980 = vmatpush1.msra.mxu0 0.0
    %3981 = vmatprep.subr.mxu0 0.0
    %3982 = vmatpush1.msra.mxu0 0.0
    %3983 = vmatprep.subr.mxu0 0.0
    %3984 = vmatpush1.msra.mxu0 0.0
    %3985 = vmatprep.subr.mxu0 0.0
    %3986 = vmatpush1.msra.mxu0 0.0
    %3987 = vmatprep.subr.mxu0 0.0
    %3988 = vmatpush1.msra.mxu0 0.0
    %3989 = vmatprep.subr.mxu0 0.0
    %3990 = vmatpush1.msra.mxu0 0.0
    %3991 = vmatprep.subr.mxu0 0.0
    %3992 = vmatpush1.msra.mxu0 0.0
    %3993 = vmatprep.subr.mxu0 0.0
    %3994 = vmatpush1.msra.mxu0 0.0
    %3995 = vmatprep.subr.mxu0 0.0
    %3996 = vmatpush1.msra.mxu0 0.0
    %3997 = vmatprep.subr.mxu0 0.0
    %3998 = vmatpush1.msra.mxu0 0.0
    %3999 = vmatprep.subr.mxu0 0.0
    %4000 = vmatpush1.msra.mxu0 0.0
    %4001 = vmatprep.subr.mxu0 0.0
    %4002 = vmatpush1.msra.mxu0 0.0
    %4003 = vmatprep.subr.mxu0 0.0
    %4004 = vmatpush1.msra.mxu0 0.0
    %4005 = vmatprep.subr.mxu0 0.0
    %4006 = vmatpush1.msra.mxu0 0.0
    %4007 = vmatprep.subr.mxu0 0.0
    %4008 = vmatpush1.msra.mxu0 0.0
    %4009 = vmatprep.subr.mxu0 0.0
    %4010 = vmatpush1.msra.mxu0 0.0
    %4011 = vmatprep.subr.mxu0 0.0
    %4012 = vmatpush1.msra.mxu0 0.0
    %4013 = vmatprep.subr.mxu0 0.0
    %4014 = vmatpush1.msra.mxu0 0.0
    %4015 = vmatprep.subr.mxu0 0.0
    %4016 = vmatpush1.msra.mxu0 0.0
    %4017 = vmatprep.mubr.f32.mxu0 0.0
    %4018 = vmatmul.mubr.f32.gmra.mrb[0].mxu0 %v3927
    %v4019 = vpop.f32.mrb[0].mxu0
    %v4020 = vadd.f32 %v3883, %v4019
    %v4021 = vpop.f32.mrb[0].mxu0
    %4022 = vmatprep.mubr.f32.mxu0 0.0
    %4023 = vmatmul.mubr.f32.gmra.mrb[0].mxu0 %v3930
    %v4024 = vpop.f32.mrb[0].mxu0
    %v4025 = vadd.f32 %v3888, %v4024
    %v4026 = vpop.f32.mrb[0].mxu0
    %4027 = vmatprep.mubr.f32.mxu0 0.0
    %4028 = vmatmul.mubr.f32.gmra.mrb[0].mxu0 %v3933
    %v4029 = vpop.f32.mrb[0].mxu0
    %v4030 = vadd.f32 %v3893, %v4029
    %v4031 = vpop.f32.mrb[0].mxu0
    %4032 = vmatprep.mubr.f32.mxu0 0.0
    %4033 = vmatmul.mubr.f32.gmra.mrb[0].mxu0 %v3936
    %v4034 = vpop.f32.mrb[0].mxu0
    %v4035 = vadd.f32 %v3898, %v4034
    %v4036 = vpop.f32.mrb[0].mxu0
    %4037 = vmatprep.mubr.f32.mxu0 0.0
    %4038 = vmatmul.mubr.f32.gmra.mrb[0].mxu0 %v3939
    %v4039 = vpop.f32.mrb[0].mxu0
    %v4040 = vadd.f32 %v3903, %v4039
    %v4041 = vpop.f32.mrb[0].mxu0
    %4042 = vmatprep.mubr.f32.mxu0 0.0
    %4043 = vmatmul.mubr.f32.gmra.mrb[0].mxu0 %v3942
    %v4044 = vpop.f32.mrb[0].mxu0
    %v4045 = vadd.f32 %v3908, %v4044
    %v4046 = vpop.f32.mrb[0].mxu0
    %4047 = vmatprep.mubr.f32.mxu0 0.0
    %4048 = vmatmul.mubr.f32.gmra.mrb[0].mxu0 %v3945
    %v4049 = vpop.f32.mrb[0].mxu0
    %v4050 = vadd.f32 %v3913, %v4049
    %v4051 = vpop.f32.mrb[0].mxu0
    %4052 = vmatprep.mubr.f32.mxu0 0.0
    %4053 = vmatmul.mubr.f32.gmra.mrb[0].mxu0 %v3948
    %v4054 = vpop.f32.mrb[0].mxu0
    %v4055 = vadd.f32 %v3918, %v4054
    %v4056 = vpop.f32.mrb[0].mxu0
    %4057 = vmatprep.mubr.f32.mxu0 0.0
    %4058 = vmatmul.mubr.f32.gmra.mrb[0].mxu0 %v3951
    %v4059 = vpop.f32.mrb[0].mxu0
    %v4060 = vadd.f32 %v3923, %v4059
    %v4061 = vpop.f32.mrb[0].mxu0
    %4062 = vdwg.mxu0
    %4063 = vrot.lane.b32.xlu0 %v2828, 112
    %v4064 = vpop.permute.xlu0 %4063
    %4065 = vrot.lane.b32.xlu0 %v2833, 112
    %v4066 = vpop.permute.xlu0 %4065
    %4067 = vrot.lane.b32.xlu0 %v2838, 112
    %v4068 = vpop.permute.xlu0 %4067
    %4069 = vrot.lane.b32.xlu0 %v2843, 112
    %v4070 = vpop.permute.xlu0 %4069
    %4071 = vrot.lane.b32.xlu0 %v2848, 112
    %v4072 = vpop.permute.xlu0 %4071
    %4073 = vrot.lane.b32.xlu0 %v2853, 112
    %v4074 = vpop.permute.xlu0 %4073
    %4075 = vrot.lane.b32.xlu0 %v2858, 112
    %v4076 = vpop.permute.xlu0 %4075
    %4077 = vrot.lane.b32.xlu0 %v2863, 112
    %v4078 = vpop.permute.xlu0 %4077
    %4079 = vrot.lane.b32.xlu0 %v2868, 112
    %v4080 = vpop.permute.xlu0 %4079
    %4081 = vrot.lane.b32.xlu0 %v2828, 80
    %v4082 = vpop.permute.xlu0 %4081
    %4083 = vrot.lane.b32.xlu0 %v2833, 80
    %v4084 = vpop.permute.xlu0 %4083
    %4085 = vrot.lane.b32.xlu0 %v2838, 80
    %v4086 = vpop.permute.xlu0 %4085
    %4087 = vrot.lane.b32.xlu0 %v2843, 80
    %v4088 = vpop.permute.xlu0 %4087
    %4089 = vrot.lane.b32.xlu0 %v2848, 80
    %v4090 = vpop.permute.xlu0 %4089
    %4091 = vrot.lane.b32.xlu0 %v2853, 80
    %v4092 = vpop.permute.xlu0 %4091
    %4093 = vrot.lane.b32.xlu0 %v2858, 80
    %v4094 = vpop.permute.xlu0 %4093
    %4095 = vrot.lane.b32.xlu0 %v2863, 80
    %v4096 = vpop.permute.xlu0 %4095
    %4097 = vrot.lane.b32.xlu0 %v2868, 80
    %v4098 = vpop.permute.xlu0 %4097
    %v4099 = vsel %vm361, %v4064, 0
    %v4101 = vsel %vm361, %v4066, 0
    %v4103 = vsel %vm361, %v4068, 0
    %v4105 = vsel %vm361, %v4070, 0
    %v4107 = vsel %vm361, %v4072, 0
    %v4109 = vsel %vm361, %v4074, 0
    %v4111 = vsel %vm361, %v4076, 0
    %v4113 = vsel %vm361, %v4078, 0
    %v4115 = vsel %vm361, %v4080, 0
    %v4117 = vsel %vm361, %v4082, 0
    %v4119 = vsel %vm361, %v4084, 0
    %v4121 = vsel %vm361, %v4086, 0
    %v4123 = vsel %vm361, %v4088, 0
    %v4125 = vsel %vm361, %v4090, 0
    %v4127 = vsel %vm361, %v4092, 0
    %v4129 = vsel %vm361, %v4094, 0
    %v4131 = vsel %vm361, %v4096, 0
    %v4133 = vsel %vm361, %v4098, 0
    %4135 = vmatprep.subr.mxu0 0.0
    %4136 = vmatpush1.xpose.msra.mxu0 %v4117
    %4137 = vmatprep.subr.mxu0 0.0
    %4138 = vmatpush1.xpose.msra.mxu0 %v4119
    %4139 = vmatprep.subr.mxu0 0.0
    %4140 = vmatpush1.xpose.msra.mxu0 %v4121
    %4141 = vmatprep.subr.mxu0 0.0
    %4142 = vmatpush1.xpose.msra.mxu0 %v4123
    %4143 = vmatprep.subr.mxu0 0.0
    %4144 = vmatpush1.xpose.msra.mxu0 %v4125
    %4145 = vmatprep.subr.mxu0 0.0
    %4146 = vmatpush1.xpose.msra.mxu0 %v4127
    %4147 = vmatprep.subr.mxu0 0.0
    %4148 = vmatpush1.xpose.msra.mxu0 %v4129
    %4149 = vmatprep.subr.mxu0 0.0
    %4150 = vmatpush1.xpose.msra.mxu0 %v4131
    %4151 = vmatprep.subr.mxu0 0.0
    %4152 = vmatpush1.xpose.msra.mxu0 %v4133
    %4153 = vmatprep.subr.mxu0 0.0
    %4154 = vmatpush1.xpose.msra.mxu0 0.0
    %4155 = vmatprep.subr.mxu0 0.0
    %4156 = vmatpush1.xpose.msra.mxu0 0.0
    %4157 = vmatprep.subr.mxu0 0.0
    %4158 = vmatpush1.xpose.msra.mxu0 0.0
    %4159 = vmatprep.subr.mxu0 0.0
    %4160 = vmatpush1.xpose.msra.mxu0 0.0
    %4161 = vmatprep.subr.mxu0 0.0
    %4162 = vmatpush1.xpose.msra.mxu0 0.0
    %4163 = vmatprep.subr.mxu0 0.0
    %4164 = vmatpush1.xpose.msra.mxu0 0.0
    %4165 = vmatprep.subr.mxu0 0.0
    %4166 = vmatpush1.xpose.msra.mxu0 0.0
    %4167 = vmatprep.subr.mxu0 0.0
    %4168 = vmatpush1.xpose.msra.mxu0 0.0
    %4169 = vmatprep.subr.mxu0 0.0
    %4170 = vmatpush1.xpose.msra.mxu0 0.0
    %4171 = vmatprep.subr.mxu0 0.0
    %4172 = vmatpush1.xpose.msra.mxu0 0.0
    %4173 = vmatprep.subr.mxu0 0.0
    %4174 = vmatpush1.xpose.msra.mxu0 0.0
    %4175 = vmatprep.subr.mxu0 0.0
    %4176 = vmatpush1.xpose.msra.mxu0 0.0
    %4177 = vmatprep.subr.mxu0 0.0
    %4178 = vmatpush1.xpose.msra.mxu0 0.0
    %4179 = vmatprep.subr.mxu0 0.0
    %4180 = vmatpush1.xpose.msra.mxu0 0.0
    %4181 = vmatprep.subr.mxu0 0.0
    %4182 = vmatpush1.xpose.msra.mxu0 0.0
    %4183 = vmatprep.subr.mxu0 0.0
    %4184 = vmatpush1.xpose.msra.mxu0 0.0
    %4185 = vmatprep.subr.mxu0 0.0
    %4186 = vmatpush1.xpose.msra.mxu0 0.0
    %4187 = vmatprep.subr.mxu0 0.0
    %4188 = vmatpush1.xpose.msra.mxu0 0.0
    %4189 = vmatprep.subr.mxu0 0.0
    %4190 = vmatpush1.xpose.msra.mxu0 0.0
    %4191 = vmatprep.subr.mxu0 0.0
    %4192 = vmatpush1.xpose.msra.mxu0 0.0
    %4193 = vmatprep.subr.mxu0 0.0
    %4194 = vmatpush1.xpose.msra.mxu0 0.0
    %4195 = vmatprep.subr.mxu0 0.0
    %4196 = vmatpush1.xpose.msra.mxu0 0.0
    %4197 = vmatprep.subr.mxu0 0.0
    %4198 = vmatpush1.xpose.msra.mxu0 0.0
    %4199 = vmatprep.mubr.f32.mxu0 0.0
    %4200 = vmatmul.mubr.f32.gmra.mrb[0].mxu0 %v4099
    %v4201 = vpop.f32.mrb[0].mxu0
    %v4202 = vadd.f32 0.0, %v4201
    %v4203 = vpop.f32.mrb[0].mxu0
    %4204 = vmatprep.mubr.f32.mxu0 0.0
    %4205 = vmatmul.mubr.f32.gmra.mrb[0].mxu0 %v4101
    %v4206 = vpop.f32.mrb[0].mxu0
    %v4207 = vadd.f32 0.0, %v4206
    %v4208 = vpop.f32.mrb[0].mxu0
    %4209 = vmatprep.mubr.f32.mxu0 0.0
    %4210 = vmatmul.mubr.f32.gmra.mrb[0].mxu0 %v4103
    %v4211 = vpop.f32.mrb[0].mxu0
    %v4212 = vadd.f32 0.0, %v4211
    %v4213 = vpop.f32.mrb[0].mxu0
    %4214 = vmatprep.mubr.f32.mxu0 0.0
    %4215 = vmatmul.mubr.f32.gmra.mrb[0].mxu0 %v4105
    %v4216 = vpop.f32.mrb[0].mxu0
    %v4217 = vadd.f32 0.0, %v4216
    %v4218 = vpop.f32.mrb[0].mxu0
    %4219 = vmatprep.mubr.f32.mxu0 0.0
    %4220 = vmatmul.mubr.f32.gmra.mrb[0].mxu0 %v4107
    %v4221 = vpop.f32.mrb[0].mxu0
    %v4222 = vadd.f32 0.0, %v4221
    %v4223 = vpop.f32.mrb[0].mxu0
    %4224 = vmatprep.mubr.f32.mxu0 0.0
    %4225 = vmatmul.mubr.f32.gmra.mrb[0].mxu0 %v4109
    %v4226 = vpop.f32.mrb[0].mxu0
    %v4227 = vadd.f32 0.0, %v4226
    %v4228 = vpop.f32.mrb[0].mxu0
    %4229 = vmatprep.mubr.f32.mxu0 0.0
    %4230 = vmatmul.mubr.f32.gmra.mrb[0].mxu0 %v4111
    %v4231 = vpop.f32.mrb[0].mxu0
    %v4232 = vadd.f32 0.0, %v4231
    %v4233 = vpop.f32.mrb[0].mxu0
    %4234 = vmatprep.mubr.f32.mxu0 0.0
    %4235 = vmatmul.mubr.f32.gmra.mrb[0].mxu0 %v4113
    %v4236 = vpop.f32.mrb[0].mxu0
    %v4237 = vadd.f32 0.0, %v4236
    %v4238 = vpop.f32.mrb[0].mxu0
    %4239 = vmatprep.mubr.f32.mxu0 0.0
    %4240 = vmatmul.mubr.f32.gmra.mrb[0].mxu0 %v4115
    %v4241 = vpop.f32.mrb[0].mxu0
    %v4242 = vadd.f32 0.0, %v4241
    %v4243 = vpop.f32.mrb[0].mxu0
    %4244 = vdwg.mxu0
    %v4245 = vmul.f32 %v4202, 0.35355338
    %v4246 = vmul.f32 %v4207, 0.35355338
    %v4247 = vmul.f32 %v4212, 0.35355338
    %v4248 = vmul.f32 %v4217, 0.35355338
    %v4249 = vmul.f32 %v4222, 0.35355338
    %v4250 = vmul.f32 %v4227, 0.35355338
    %v4251 = vmul.f32 %v4232, 0.35355338
    %v4252 = vmul.f32 %v4237, 0.35355338
    %v4253 = vmul.f32 %v4242, 0.35355338
    %v4254 = vadd.f32 %v4245, %v2721
    %v4255 = vadd.f32 %v4246, %v2722
    %v4256 = vadd.f32 %v4247, %v2723
    %v4257 = vadd.f32 %v4248, %v2724
    %v4258 = vadd.f32 %v4249, %v2725
    %v4259 = vadd.f32 %v4250, %v2726
    %v4260 = vadd.f32 %v4251, %v2727
    %v4261 = vadd.f32 %v4252, %v2728
    %v4262 = vadd.f32 %v4253, %v2729
    %v4263 = vsel %vm3062, %v4254, -inf
    %4264 = vmax.xlane.f32.xlu0 %v4263
    %v4265 = vpop.xlane.xlu0 %4264
    %v4266 = vsel %vm3062, %v4255, -inf
    %4267 = vmax.xlane.f32.xlu0 %v4266
    %v4268 = vpop.xlane.xlu0 %4267
    %v4269 = vsel %vm3062, %v4256, -inf
    %4270 = vmax.xlane.f32.xlu0 %v4269
    %v4271 = vpop.xlane.xlu0 %4270
    %v4272 = vsel %vm3062, %v4257, -inf
    %4273 = vmax.xlane.f32.xlu0 %v4272
    %v4274 = vpop.xlane.xlu0 %4273
    %v4275 = vsel %vm3062, %v4258, -inf
    %4276 = vmax.xlane.f32.xlu0 %v4275
    %v4277 = vpop.xlane.xlu0 %4276
    %v4278 = vsel %vm3062, %v4259, -inf
    %4279 = vmax.xlane.f32.xlu0 %v4278
    %v4280 = vpop.xlane.xlu0 %4279
    %v4281 = vsel %vm3062, %v4260, -inf
    %4282 = vmax.xlane.f32.xlu0 %v4281
    %v4283 = vpop.xlane.xlu0 %4282
    %v4284 = vsel %vm3062, %v4261, -inf
    %4285 = vmax.xlane.f32.xlu0 %v4284
    %v4286 = vpop.xlane.xlu0 %4285
    %v4287 = vsel %vm3062, %v4262, -inf
    %4288 = vmax.xlane.f32.xlu0 %v4287
    %v4289 = vpop.xlane.xlu0 %4288
    %v4290 = vsub.f32 %v4254, %v4265
    %v4291 = vsub.f32 %v4255, %v4268
    %v4292 = vsub.f32 %v4256, %v4271
    %v4293 = vsub.f32 %v4257, %v4274
    %v4294 = vsub.f32 %v4258, %v4277
    %v4295 = vsub.f32 %v4259, %v4280
    %v4296 = vsub.f32 %v4260, %v4283
    %v4297 = vsub.f32 %v4261, %v4286
    %v4298 = vsub.f32 %v4262, %v4289
    %v4299 = vmul.f32 %v4290, 1.442695
    %v4300 = vpow.pop %v4299
    %v4301 = vmul.f32 %v4291, 1.442695
    %v4302 = vpow.pop %v4301
    %v4303 = vmul.f32 %v4292, 1.442695
    %v4304 = vpow.pop %v4303
    %v4305 = vmul.f32 %v4293, 1.442695
    %v4306 = vpow.pop %v4305
    %v4307 = vmul.f32 %v4294, 1.442695
    %v4308 = vpow.pop %v4307
    %v4309 = vmul.f32 %v4295, 1.442695
    %v4310 = vpow.pop %v4309
    %v4311 = vmul.f32 %v4296, 1.442695
    %v4312 = vpow.pop %v4311
    %v4313 = vmul.f32 %v4297, 1.442695
    %v4314 = vpow.pop %v4313
    %v4315 = vmul.f32 %v4298, 1.442695
    %v4316 = vpow.pop %v4315
    %v4317 = vsel %vm3062, %v4300, 0.0
    %4318 = vadd.xlane.f32.xlu0 %v4317
    %v4319 = vpop.xlane.xlu0 %4318
    %v4320 = vsel %vm3062, %v4302, 0.0
    %4321 = vadd.xlane.f32.xlu0 %v4320
    %v4322 = vpop.xlane.xlu0 %4321
    %v4323 = vsel %vm3062, %v4304, 0.0
    %4324 = vadd.xlane.f32.xlu0 %v4323
    %v4325 = vpop.xlane.xlu0 %4324
    %v4326 = vsel %vm3062, %v4306, 0.0
    %4327 = vadd.xlane.f32.xlu0 %v4326
    %v4328 = vpop.xlane.xlu0 %4327
    %v4329 = vsel %vm3062, %v4308, 0.0
    %4330 = vadd.xlane.f32.xlu0 %v4329
    %v4331 = vpop.xlane.xlu0 %4330
    %v4332 = vsel %vm3062, %v4310, 0.0
    %4333 = vadd.xlane.f32.xlu0 %v4332
    %v4334 = vpop.xlane.xlu0 %4333
    %v4335 = vsel %vm3062, %v4312, 0.0
    %4336 = vadd.xlane.f32.xlu0 %v4335
    %v4337 = vpop.xlane.xlu0 %4336
    %v4338 = vsel %vm3062, %v4314, 0.0
    %4339 = vadd.xlane.f32.xlu0 %v4338
    %v4340 = vpop.xlane.xlu0 %4339
    %v4341 = vsel %vm3062, %v4316, 0.0
    %4342 = vadd.xlane.f32.xlu0 %v4341
    %v4343 = vpop.xlane.xlu0 %4342
    %v4344 = vrcp.pop %v4319
    %v4345 = vrcp.pop %v4322
    %v4346 = vrcp.pop %v4325
    %v4347 = vrcp.pop %v4328
    %v4348 = vrcp.pop %v4331
    %v4349 = vrcp.pop %v4334
    %v4350 = vrcp.pop %v4337
    %v4351 = vrcp.pop %v4340
    %v4352 = vrcp.pop %v4343
    %v4353 = vmul.f32 %v4300, %v4344
    %v4354 = vmul.f32 %v4302, %v4345
    %v4355 = vmul.f32 %v4304, %v4346
    %v4356 = vmul.f32 %v4306, %v4347
    %v4357 = vmul.f32 %v4308, %v4348
    %v4358 = vmul.f32 %v4310, %v4349
    %v4359 = vmul.f32 %v4312, %v4350
    %v4360 = vmul.f32 %v4314, %v4351
    %v4361 = vmul.f32 %v4316, %v4352
    %4362 = vrot.lane.b32.xlu0 %v2828, 48
    %v4363 = vpop.permute.xlu0 %4362
    %4364 = vrot.lane.b32.xlu0 %v2833, 48
    %v4365 = vpop.permute.xlu0 %4364
    %4366 = vrot.lane.b32.xlu0 %v2838, 48
    %v4367 = vpop.permute.xlu0 %4366
    %4368 = vrot.lane.b32.xlu0 %v2843, 48
    %v4369 = vpop.permute.xlu0 %4368
    %4370 = vrot.lane.b32.xlu0 %v2848, 48
    %v4371 = vpop.permute.xlu0 %4370
    %4372 = vrot.lane.b32.xlu0 %v2853, 48
    %v4373 = vpop.permute.xlu0 %4372
    %4374 = vrot.lane.b32.xlu0 %v2858, 48
    %v4375 = vpop.permute.xlu0 %4374
    %4376 = vrot.lane.b32.xlu0 %v2863, 48
    %v4377 = vpop.permute.xlu0 %4376
    %4378 = vrot.lane.b32.xlu0 %v2868, 48
    %v4379 = vpop.permute.xlu0 %4378
    %v4390 = vsel %vm3062, %v4353, 0
    %v4393 = vsel %vm3062, %v4354, 0
    %v4396 = vsel %vm3062, %v4355, 0
    %v4399 = vsel %vm3062, %v4356, 0
    %v4402 = vsel %vm3062, %v4357, 0
    %v4405 = vsel %vm3062, %v4358, 0
    %v4408 = vsel %vm3062, %v4359, 0
    %v4411 = vsel %vm3062, %v4360, 0
    %v4414 = vsel %vm3062, %v4361, 0
    %4416 = vmatprep.subr.mxu0 0.0
    %4417 = vmatpush1.msra.mxu0 %v4363
    %4418 = vmatprep.subr.mxu0 0.0
    %4419 = vmatpush1.msra.mxu0 %v4365
    %4420 = vmatprep.subr.mxu0 0.0
    %4421 = vmatpush1.msra.mxu0 %v4367
    %4422 = vmatprep.subr.mxu0 0.0
    %4423 = vmatpush1.msra.mxu0 %v4369
    %4424 = vmatprep.subr.mxu0 0.0
    %4425 = vmatpush1.msra.mxu0 %v4371
    %4426 = vmatprep.subr.mxu0 0.0
    %4427 = vmatpush1.msra.mxu0 %v4373
    %4428 = vmatprep.subr.mxu0 0.0
    %4429 = vmatpush1.msra.mxu0 %v4375
    %4430 = vmatprep.subr.mxu0 0.0
    %4431 = vmatpush1.msra.mxu0 %v4377
    %4432 = vmatprep.subr.mxu0 0.0
    %4433 = vmatpush1.msra.mxu0 %v4379
    %4434 = vmatprep.subr.mxu0 0.0
    %4435 = vmatpush1.msra.mxu0 0.0
    %4436 = vmatprep.subr.mxu0 0.0
    %4437 = vmatpush1.msra.mxu0 0.0
    %4438 = vmatprep.subr.mxu0 0.0
    %4439 = vmatpush1.msra.mxu0 0.0
    %4440 = vmatprep.subr.mxu0 0.0
    %4441 = vmatpush1.msra.mxu0 0.0
    %4442 = vmatprep.subr.mxu0 0.0
    %4443 = vmatpush1.msra.mxu0 0.0
    %4444 = vmatprep.subr.mxu0 0.0
    %4445 = vmatpush1.msra.mxu0 0.0
    %4446 = vmatprep.subr.mxu0 0.0
    %4447 = vmatpush1.msra.mxu0 0.0
    %4448 = vmatprep.subr.mxu0 0.0
    %4449 = vmatpush1.msra.mxu0 0.0
    %4450 = vmatprep.subr.mxu0 0.0
    %4451 = vmatpush1.msra.mxu0 0.0
    %4452 = vmatprep.subr.mxu0 0.0
    %4453 = vmatpush1.msra.mxu0 0.0
    %4454 = vmatprep.subr.mxu0 0.0
    %4455 = vmatpush1.msra.mxu0 0.0
    %4456 = vmatprep.subr.mxu0 0.0
    %4457 = vmatpush1.msra.mxu0 0.0
    %4458 = vmatprep.subr.mxu0 0.0
    %4459 = vmatpush1.msra.mxu0 0.0
    %4460 = vmatprep.subr.mxu0 0.0
    %4461 = vmatpush1.msra.mxu0 0.0
    %4462 = vmatprep.subr.mxu0 0.0
    %4463 = vmatpush1.msra.mxu0 0.0
    %4464 = vmatprep.subr.mxu0 0.0
    %4465 = vmatpush1.msra.mxu0 0.0
    %4466 = vmatprep.subr.mxu0 0.0
    %4467 = vmatpush1.msra.mxu0 0.0
    %4468 = vmatprep.subr.mxu0 0.0
    %4469 = vmatpush1.msra.mxu0 0.0
    %4470 = vmatprep.subr.mxu0 0.0
    %4471 = vmatpush1.msra.mxu0 0.0
    %4472 = vmatprep.subr.mxu0 0.0
    %4473 = vmatpush1.msra.mxu0 0.0
    %4474 = vmatprep.subr.mxu0 0.0
    %4475 = vmatpush1.msra.mxu0 0.0
    %4476 = vmatprep.subr.mxu0 0.0
    %4477 = vmatpush1.msra.mxu0 0.0
    %4478 = vmatprep.subr.mxu0 0.0
    %4479 = vmatpush1.msra.mxu0 0.0
    %4480 = vmatprep.mubr.f32.mxu0 0.0
    %4481 = vmatmul.mubr.f32.gmra.mrb[0].mxu0 %v4390
    %v4482 = vpop.f32.mrb[0].mxu0
    %v4483 = vadd.f32 0.0, %v4482
    %v4484 = vpop.f32.mrb[0].mxu0
    %4485 = vmatprep.mubr.f32.mxu0 0.0
    %4486 = vmatmul.mubr.f32.gmra.mrb[0].mxu0 %v4393
    %v4487 = vpop.f32.mrb[0].mxu0
    %v4488 = vadd.f32 0.0, %v4487
    %v4489 = vpop.f32.mrb[0].mxu0
    %4490 = vmatprep.mubr.f32.mxu0 0.0
    %4491 = vmatmul.mubr.f32.gmra.mrb[0].mxu0 %v4396
    %v4492 = vpop.f32.mrb[0].mxu0
    %v4493 = vadd.f32 0.0, %v4492
    %v4494 = vpop.f32.mrb[0].mxu0
    %4495 = vmatprep.mubr.f32.mxu0 0.0
    %4496 = vmatmul.mubr.f32.gmra.mrb[0].mxu0 %v4399
    %v4497 = vpop.f32.mrb[0].mxu0
    %v4498 = vadd.f32 0.0, %v4497
    %v4499 = vpop.f32.mrb[0].mxu0
    %4500 = vmatprep.mubr.f32.mxu0 0.0
    %4501 = vmatmul.mubr.f32.gmra.mrb[0].mxu0 %v4402
    %v4502 = vpop.f32.mrb[0].mxu0
    %v4503 = vadd.f32 0.0, %v4502
    %v4504 = vpop.f32.mrb[0].mxu0
    %4505 = vmatprep.mubr.f32.mxu0 0.0
    %4506 = vmatmul.mubr.f32.gmra.mrb[0].mxu0 %v4405
    %v4507 = vpop.f32.mrb[0].mxu0
    %v4508 = vadd.f32 0.0, %v4507
    %v4509 = vpop.f32.mrb[0].mxu0
    %4510 = vmatprep.mubr.f32.mxu0 0.0
    %4511 = vmatmul.mubr.f32.gmra.mrb[0].mxu0 %v4408
    %v4512 = vpop.f32.mrb[0].mxu0
    %v4513 = vadd.f32 0.0, %v4512
    %v4514 = vpop.f32.mrb[0].mxu0
    %4515 = vmatprep.mubr.f32.mxu0 0.0
    %4516 = vmatmul.mubr.f32.gmra.mrb[0].mxu0 %v4411
    %v4517 = vpop.f32.mrb[0].mxu0
    %v4518 = vadd.f32 0.0, %v4517
    %v4519 = vpop.f32.mrb[0].mxu0
    %4520 = vmatprep.mubr.f32.mxu0 0.0
    %4521 = vmatmul.mubr.f32.gmra.mrb[0].mxu0 %v4414
    %v4522 = vpop.f32.mrb[0].mxu0
    %v4523 = vadd.f32 0.0, %v4522
    %v4524 = vpop.f32.mrb[0].mxu0
    %4525 = vdwg.mxu0
    %v4527 = vsel %vm361, %v4483, 0
    %v4530 = vsel %vm361, %v4488, 0
    %v4533 = vsel %vm361, %v4493, 0
    %v4536 = vsel %vm361, %v4498, 0
    %v4539 = vsel %vm361, %v4503, 0
    %v4542 = vsel %vm361, %v4508, 0
    %v4545 = vsel %vm361, %v4513, 0
    %v4548 = vsel %vm361, %v4518, 0
    %v4551 = vsel %vm361, %v4523, 0
    %4553 = vmatprep.subr.mxu0 0.0
    %4554 = vmatpush1.msra.mxu0 %v55
    %4555 = vmatprep.subr.mxu0 0.0
    %4556 = vmatpush1.msra.mxu0 0.0
    %4557 = vmatprep.subr.mxu0 0.0
    %4558 = vmatpush1.msra.mxu0 0.0
    %4559 = vmatprep.subr.mxu0 0.0
    %4560 = vmatpush1.msra.mxu0 0.0
    %4561 = vmatprep.subr.mxu0 0.0
    %4562 = vmatpush1.msra.mxu0 0.0
    %4563 = vmatprep.subr.mxu0 0.0
    %4564 = vmatpush1.msra.mxu0 0.0
    %4565 = vmatprep.subr.mxu0 0.0
    %4566 = vmatpush1.msra.mxu0 0.0
    %4567 = vmatprep.subr.mxu0 0.0
    %4568 = vmatpush1.msra.mxu0 0.0
    %4569 = vmatprep.subr.mxu0 0.0
    %4570 = vmatpush1.msra.mxu0 0.0
    %4571 = vmatprep.subr.mxu0 0.0
    %4572 = vmatpush1.msra.mxu0 0.0
    %4573 = vmatprep.subr.mxu0 0.0
    %4574 = vmatpush1.msra.mxu0 0.0
    %4575 = vmatprep.subr.mxu0 0.0
    %4576 = vmatpush1.msra.mxu0 0.0
    %4577 = vmatprep.subr.mxu0 0.0
    %4578 = vmatpush1.msra.mxu0 0.0
    %4579 = vmatprep.subr.mxu0 0.0
    %4580 = vmatpush1.msra.mxu0 0.0
    %4581 = vmatprep.subr.mxu0 0.0
    %4582 = vmatpush1.msra.mxu0 0.0
    %4583 = vmatprep.subr.mxu0 0.0
    %4584 = vmatpush1.msra.mxu0 0.0
    %4585 = vmatprep.subr.mxu0 0.0
    %4586 = vmatpush1.msra.mxu0 0.0
    %4587 = vmatprep.subr.mxu0 0.0
    %4588 = vmatpush1.msra.mxu0 0.0
    %4589 = vmatprep.subr.mxu0 0.0
    %4590 = vmatpush1.msra.mxu0 0.0
    %4591 = vmatprep.subr.mxu0 0.0
    %4592 = vmatpush1.msra.mxu0 0.0
    %4593 = vmatprep.subr.mxu0 0.0
    %4594 = vmatpush1.msra.mxu0 0.0
    %4595 = vmatprep.subr.mxu0 0.0
    %4596 = vmatpush1.msra.mxu0 0.0
    %4597 = vmatprep.subr.mxu0 0.0
    %4598 = vmatpush1.msra.mxu0 0.0
    %4599 = vmatprep.subr.mxu0 0.0
    %4600 = vmatpush1.msra.mxu0 0.0
    %4601 = vmatprep.subr.mxu0 0.0
    %4602 = vmatpush1.msra.mxu0 0.0
    %4603 = vmatprep.subr.mxu0 0.0
    %4604 = vmatpush1.msra.mxu0 0.0
    %4605 = vmatprep.subr.mxu0 0.0
    %4606 = vmatpush1.msra.mxu0 0.0
    %4607 = vmatprep.subr.mxu0 0.0
    %4608 = vmatpush1.msra.mxu0 0.0
    %4609 = vmatprep.subr.mxu0 0.0
    %4610 = vmatpush1.msra.mxu0 0.0
    %4611 = vmatprep.subr.mxu0 0.0
    %4612 = vmatpush1.msra.mxu0 0.0
    %4613 = vmatprep.subr.mxu0 0.0
    %4614 = vmatpush1.msra.mxu0 0.0
    %4615 = vmatprep.subr.mxu0 0.0
    %4616 = vmatpush1.msra.mxu0 0.0
    %4617 = vmatprep.mubr.f32.mxu0 0.0
    %4618 = vmatmul.mubr.f32.gmra.mrb[0].mxu0 %v4527
    %v4619 = vpop.f32.mrb[0].mxu0
    %v4620 = vadd.f32 0.0, %v4619
    %v4621 = vpop.f32.mrb[0].mxu0
    %4622 = vmatprep.mubr.f32.mxu0 0.0
    %4623 = vmatmul.mubr.f32.gmra.mrb[0].mxu0 %v4530
    %v4624 = vpop.f32.mrb[0].mxu0
    %v4625 = vadd.f32 0.0, %v4624
    %v4626 = vpop.f32.mrb[0].mxu0
    %4627 = vmatprep.mubr.f32.mxu0 0.0
    %4628 = vmatmul.mubr.f32.gmra.mrb[0].mxu0 %v4533
    %v4629 = vpop.f32.mrb[0].mxu0
    %v4630 = vadd.f32 0.0, %v4629
    %v4631 = vpop.f32.mrb[0].mxu0
    %4632 = vmatprep.mubr.f32.mxu0 0.0
    %4633 = vmatmul.mubr.f32.gmra.mrb[0].mxu0 %v4536
    %v4634 = vpop.f32.mrb[0].mxu0
    %v4635 = vadd.f32 0.0, %v4634
    %v4636 = vpop.f32.mrb[0].mxu0
    %4637 = vmatprep.mubr.f32.mxu0 0.0
    %4638 = vmatmul.mubr.f32.gmra.mrb[0].mxu0 %v4539
    %v4639 = vpop.f32.mrb[0].mxu0
    %v4640 = vadd.f32 0.0, %v4639
    %v4641 = vpop.f32.mrb[0].mxu0
    %4642 = vmatprep.mubr.f32.mxu0 0.0
    %4643 = vmatmul.mubr.f32.gmra.mrb[0].mxu0 %v4542
    %v4644 = vpop.f32.mrb[0].mxu0
    %v4645 = vadd.f32 0.0, %v4644
    %v4646 = vpop.f32.mrb[0].mxu0
    %4647 = vmatprep.mubr.f32.mxu0 0.0
    %4648 = vmatmul.mubr.f32.gmra.mrb[0].mxu0 %v4545
    %v4649 = vpop.f32.mrb[0].mxu0
    %v4650 = vadd.f32 0.0, %v4649
    %v4651 = vpop.f32.mrb[0].mxu0
    %4652 = vmatprep.mubr.f32.mxu0 0.0
    %4653 = vmatmul.mubr.f32.gmra.mrb[0].mxu0 %v4548
    %v4654 = vpop.f32.mrb[0].mxu0
    %v4655 = vadd.f32 0.0, %v4654
    %v4656 = vpop.f32.mrb[0].mxu0
    %4657 = vmatprep.mubr.f32.mxu0 0.0
    %4658 = vmatmul.mubr.f32.gmra.mrb[0].mxu0 %v4551
    %v4659 = vpop.f32.mrb[0].mxu0
    %v4660 = vadd.f32 0.0, %v4659
    %v4661 = vpop.f32.mrb[0].mxu0
    %4662 = vdwg.mxu0
    %v4663 = vadd.f32 %v4020, %v4620
    %v4664 = vadd.f32 %v4025, %v4625
    %v4665 = vadd.f32 %v4030, %v4630
    %v4666 = vadd.f32 %v4035, %v4635
    %v4667 = vadd.f32 %v4040, %v4640
    %v4668 = vadd.f32 %v4045, %v4645
    %v4669 = vadd.f32 %v4050, %v4650
    %v4670 = vadd.f32 %v4055, %v4655
    %v4671 = vadd.f32 %v4060, %v4660
    %4672 = vrot.lane.b32.xlu0 %v2828, 104
    %v4673 = vpop.permute.xlu0 %4672
    %4674 = vrot.lane.b32.xlu0 %v2833, 104
    %v4675 = vpop.permute.xlu0 %4674
    %4676 = vrot.lane.b32.xlu0 %v2838, 104
    %v4677 = vpop.permute.xlu0 %4676
    %4678 = vrot.lane.b32.xlu0 %v2843, 104
    %v4679 = vpop.permute.xlu0 %4678
    %4680 = vrot.lane.b32.xlu0 %v2848, 104
    %v4681 = vpop.permute.xlu0 %4680
    %4682 = vrot.lane.b32.xlu0 %v2853, 104
    %v4683 = vpop.permute.xlu0 %4682
    %4684 = vrot.lane.b32.xlu0 %v2858, 104
    %v4685 = vpop.permute.xlu0 %4684
    %4686 = vrot.lane.b32.xlu0 %v2863, 104
    %v4687 = vpop.permute.xlu0 %4686
    %4688 = vrot.lane.b32.xlu0 %v2868, 104
    %v4689 = vpop.permute.xlu0 %4688
    %4690 = vrot.lane.b32.xlu0 %v2828, 72
    %v4691 = vpop.permute.xlu0 %4690
    %4692 = vrot.lane.b32.xlu0 %v2833, 72
    %v4693 = vpop.permute.xlu0 %4692
    %4694 = vrot.lane.b32.xlu0 %v2838, 72
    %v4695 = vpop.permute.xlu0 %4694
    %4696 = vrot.lane.b32.xlu0 %v2843, 72
    %v4697 = vpop.permute.xlu0 %4696
    %4698 = vrot.lane.b32.xlu0 %v2848, 72
    %v4699 = vpop.permute.xlu0 %4698
    %4700 = vrot.lane.b32.xlu0 %v2853, 72
    %v4701 = vpop.permute.xlu0 %4700
    %4702 = vrot.lane.b32.xlu0 %v2858, 72
    %v4703 = vpop.permute.xlu0 %4702
    %4704 = vrot.lane.b32.xlu0 %v2863, 72
    %v4705 = vpop.permute.xlu0 %4704
    %4706 = vrot.lane.b32.xlu0 %v2868, 72
    %v4707 = vpop.permute.xlu0 %4706
    %v4708 = vsel %vm361, %v4673, 0
    %v4710 = vsel %vm361, %v4675, 0
    %v4712 = vsel %vm361, %v4677, 0
    %v4714 = vsel %vm361, %v4679, 0
    %v4716 = vsel %vm361, %v4681, 0
    %v4718 = vsel %vm361, %v4683, 0
    %v4720 = vsel %vm361, %v4685, 0
    %v4722 = vsel %vm361, %v4687, 0
    %v4724 = vsel %vm361, %v4689, 0
    %v4726 = vsel %vm361, %v4691, 0
    %v4728 = vsel %vm361, %v4693, 0
    %v4730 = vsel %vm361, %v4695, 0
    %v4732 = vsel %vm361, %v4697, 0
    %v4734 = vsel %vm361, %v4699, 0
    %v4736 = vsel %vm361, %v4701, 0
    %v4738 = vsel %vm361, %v4703, 0
    %v4740 = vsel %vm361, %v4705, 0
    %v4742 = vsel %vm361, %v4707, 0
    %4744 = vmatprep.subr.mxu0 0.0
    %4745 = vmatpush1.xpose.msra.mxu0 %v4726
    %4746 = vmatprep.subr.mxu0 0.0
    %4747 = vmatpush1.xpose.msra.mxu0 %v4728
    %4748 = vmatprep.subr.mxu0 0.0
    %4749 = vmatpush1.xpose.msra.mxu0 %v4730
    %4750 = vmatprep.subr.mxu0 0.0
    %4751 = vmatpush1.xpose.msra.mxu0 %v4732
    %4752 = vmatprep.subr.mxu0 0.0
    %4753 = vmatpush1.xpose.msra.mxu0 %v4734
    %4754 = vmatprep.subr.mxu0 0.0
    %4755 = vmatpush1.xpose.msra.mxu0 %v4736
    %4756 = vmatprep.subr.mxu0 0.0
    %4757 = vmatpush1.xpose.msra.mxu0 %v4738
    %4758 = vmatprep.subr.mxu0 0.0
    %4759 = vmatpush1.xpose.msra.mxu0 %v4740
    %4760 = vmatprep.subr.mxu0 0.0
    %4761 = vmatpush1.xpose.msra.mxu0 %v4742
    %4762 = vmatprep.subr.mxu0 0.0
    %4763 = vmatpush1.xpose.msra.mxu0 0.0
    %4764 = vmatprep.subr.mxu0 0.0
    %4765 = vmatpush1.xpose.msra.mxu0 0.0
    %4766 = vmatprep.subr.mxu0 0.0
    %4767 = vmatpush1.xpose.msra.mxu0 0.0
    %4768 = vmatprep.subr.mxu0 0.0
    %4769 = vmatpush1.xpose.msra.mxu0 0.0
    %4770 = vmatprep.subr.mxu0 0.0
    %4771 = vmatpush1.xpose.msra.mxu0 0.0
    %4772 = vmatprep.subr.mxu0 0.0
    %4773 = vmatpush1.xpose.msra.mxu0 0.0
    %4774 = vmatprep.subr.mxu0 0.0
    %4775 = vmatpush1.xpose.msra.mxu0 0.0
    %4776 = vmatprep.subr.mxu0 0.0
    %4777 = vmatpush1.xpose.msra.mxu0 0.0
    %4778 = vmatprep.subr.mxu0 0.0
    %4779 = vmatpush1.xpose.msra.mxu0 0.0
    %4780 = vmatprep.subr.mxu0 0.0
    %4781 = vmatpush1.xpose.msra.mxu0 0.0
    %4782 = vmatprep.subr.mxu0 0.0
    %4783 = vmatpush1.xpose.msra.mxu0 0.0
    %4784 = vmatprep.subr.mxu0 0.0
    %4785 = vmatpush1.xpose.msra.mxu0 0.0
    %4786 = vmatprep.subr.mxu0 0.0
    %4787 = vmatpush1.xpose.msra.mxu0 0.0
    %4788 = vmatprep.subr.mxu0 0.0
    %4789 = vmatpush1.xpose.msra.mxu0 0.0
    %4790 = vmatprep.subr.mxu0 0.0
    %4791 = vmatpush1.xpose.msra.mxu0 0.0
    %4792 = vmatprep.subr.mxu0 0.0
    %4793 = vmatpush1.xpose.msra.mxu0 0.0
    %4794 = vmatprep.subr.mxu0 0.0
    %4795 = vmatpush1.xpose.msra.mxu0 0.0
    %4796 = vmatprep.subr.mxu0 0.0
    %4797 = vmatpush1.xpose.msra.mxu0 0.0
    %4798 = vmatprep.subr.mxu0 0.0
    %4799 = vmatpush1.xpose.msra.mxu0 0.0
    %4800 = vmatprep.subr.mxu0 0.0
    %4801 = vmatpush1.xpose.msra.mxu0 0.0
    %4802 = vmatprep.subr.mxu0 0.0
    %4803 = vmatpush1.xpose.msra.mxu0 0.0
    %4804 = vmatprep.subr.mxu0 0.0
    %4805 = vmatpush1.xpose.msra.mxu0 0.0
    %4806 = vmatprep.subr.mxu0 0.0
    %4807 = vmatpush1.xpose.msra.mxu0 0.0
    %4808 = vmatprep.mubr.f32.mxu0 0.0
    %4809 = vmatmul.mubr.f32.gmra.mrb[0].mxu0 %v4708
    %v4810 = vpop.f32.mrb[0].mxu0
    %v4811 = vadd.f32 0.0, %v4810
    %v4812 = vpop.f32.mrb[0].mxu0
    %4813 = vmatprep.mubr.f32.mxu0 0.0
    %4814 = vmatmul.mubr.f32.gmra.mrb[0].mxu0 %v4710
    %v4815 = vpop.f32.mrb[0].mxu0
    %v4816 = vadd.f32 0.0, %v4815
    %v4817 = vpop.f32.mrb[0].mxu0
    %4818 = vmatprep.mubr.f32.mxu0 0.0
    %4819 = vmatmul.mubr.f32.gmra.mrb[0].mxu0 %v4712
    %v4820 = vpop.f32.mrb[0].mxu0
    %v4821 = vadd.f32 0.0, %v4820
    %v4822 = vpop.f32.mrb[0].mxu0
    %4823 = vmatprep.mubr.f32.mxu0 0.0
    %4824 = vmatmul.mubr.f32.gmra.mrb[0].mxu0 %v4714
    %v4825 = vpop.f32.mrb[0].mxu0
    %v4826 = vadd.f32 0.0, %v4825
    %v4827 = vpop.f32.mrb[0].mxu0
    %4828 = vmatprep.mubr.f32.mxu0 0.0
    %4829 = vmatmul.mubr.f32.gmra.mrb[0].mxu0 %v4716
    %v4830 = vpop.f32.mrb[0].mxu0
    %v4831 = vadd.f32 0.0, %v4830
    %v4832 = vpop.f32.mrb[0].mxu0
    %4833 = vmatprep.mubr.f32.mxu0 0.0
    %4834 = vmatmul.mubr.f32.gmra.mrb[0].mxu0 %v4718
    %v4835 = vpop.f32.mrb[0].mxu0
    %v4836 = vadd.f32 0.0, %v4835
    %v4837 = vpop.f32.mrb[0].mxu0
    %4838 = vmatprep.mubr.f32.mxu0 0.0
    %4839 = vmatmul.mubr.f32.gmra.mrb[0].mxu0 %v4720
    %v4840 = vpop.f32.mrb[0].mxu0
    %v4841 = vadd.f32 0.0, %v4840
    %v4842 = vpop.f32.mrb[0].mxu0
    %4843 = vmatprep.mubr.f32.mxu0 0.0
    %4844 = vmatmul.mubr.f32.gmra.mrb[0].mxu0 %v4722
    %v4845 = vpop.f32.mrb[0].mxu0
    %v4846 = vadd.f32 0.0, %v4845
    %v4847 = vpop.f32.mrb[0].mxu0
    %4848 = vmatprep.mubr.f32.mxu0 0.0
    %4849 = vmatmul.mubr.f32.gmra.mrb[0].mxu0 %v4724
    %v4850 = vpop.f32.mrb[0].mxu0
    %v4851 = vadd.f32 0.0, %v4850
    %v4852 = vpop.f32.mrb[0].mxu0
    %4853 = vdwg.mxu0
    %v4854 = vmul.f32 %v4811, 0.35355338
    %v4855 = vmul.f32 %v4816, 0.35355338
    %v4856 = vmul.f32 %v4821, 0.35355338
    %v4857 = vmul.f32 %v4826, 0.35355338
    %v4858 = vmul.f32 %v4831, 0.35355338
    %v4859 = vmul.f32 %v4836, 0.35355338
    %v4860 = vmul.f32 %v4841, 0.35355338
    %v4861 = vmul.f32 %v4846, 0.35355338
    %v4862 = vmul.f32 %v4851, 0.35355338
    %v4863 = vadd.f32 %v4854, %v2721
    %v4864 = vadd.f32 %v4855, %v2722
    %v4865 = vadd.f32 %v4856, %v2723
    %v4866 = vadd.f32 %v4857, %v2724
    %v4867 = vadd.f32 %v4858, %v2725
    %v4868 = vadd.f32 %v4859, %v2726
    %v4869 = vadd.f32 %v4860, %v2727
    %v4870 = vadd.f32 %v4861, %v2728
    %v4871 = vadd.f32 %v4862, %v2729
    %v4872 = vsel %vm3062, %v4863, -inf
    %4873 = vmax.xlane.f32.xlu0 %v4872
    %v4874 = vpop.xlane.xlu0 %4873
    %v4875 = vsel %vm3062, %v4864, -inf
    %4876 = vmax.xlane.f32.xlu0 %v4875
    %v4877 = vpop.xlane.xlu0 %4876
    %v4878 = vsel %vm3062, %v4865, -inf
    %4879 = vmax.xlane.f32.xlu0 %v4878
    %v4880 = vpop.xlane.xlu0 %4879
    %v4881 = vsel %vm3062, %v4866, -inf
    %4882 = vmax.xlane.f32.xlu0 %v4881
    %v4883 = vpop.xlane.xlu0 %4882
    %v4884 = vsel %vm3062, %v4867, -inf
    %4885 = vmax.xlane.f32.xlu0 %v4884
    %v4886 = vpop.xlane.xlu0 %4885
    %v4887 = vsel %vm3062, %v4868, -inf
    %4888 = vmax.xlane.f32.xlu0 %v4887
    %v4889 = vpop.xlane.xlu0 %4888
    %v4890 = vsel %vm3062, %v4869, -inf
    %4891 = vmax.xlane.f32.xlu0 %v4890
    %v4892 = vpop.xlane.xlu0 %4891
    %v4893 = vsel %vm3062, %v4870, -inf
    %4894 = vmax.xlane.f32.xlu0 %v4893
    %v4895 = vpop.xlane.xlu0 %4894
    %v4896 = vsel %vm3062, %v4871, -inf
    %4897 = vmax.xlane.f32.xlu0 %v4896
    %v4898 = vpop.xlane.xlu0 %4897
    %v4899 = vsub.f32 %v4863, %v4874
    %v4900 = vsub.f32 %v4864, %v4877
    %v4901 = vsub.f32 %v4865, %v4880
    %v4902 = vsub.f32 %v4866, %v4883
    %v4903 = vsub.f32 %v4867, %v4886
    %v4904 = vsub.f32 %v4868, %v4889
    %v4905 = vsub.f32 %v4869, %v4892
    %v4906 = vsub.f32 %v4870, %v4895
    %v4907 = vsub.f32 %v4871, %v4898
    %v4908 = vmul.f32 %v4899, 1.442695
    %v4909 = vpow.pop %v4908
    %v4910 = vmul.f32 %v4900, 1.442695
    %v4911 = vpow.pop %v4910
    %v4912 = vmul.f32 %v4901, 1.442695
    %v4913 = vpow.pop %v4912
    %v4914 = vmul.f32 %v4902, 1.442695
    %v4915 = vpow.pop %v4914
    %v4916 = vmul.f32 %v4903, 1.442695
    %v4917 = vpow.pop %v4916
    %v4918 = vmul.f32 %v4904, 1.442695
    %v4919 = vpow.pop %v4918
    %v4920 = vmul.f32 %v4905, 1.442695
    %v4921 = vpow.pop %v4920
    %v4922 = vmul.f32 %v4906, 1.442695
    %v4923 = vpow.pop %v4922
    %v4924 = vmul.f32 %v4907, 1.442695
    %v4925 = vpow.pop %v4924
    %v4926 = vsel %vm3062, %v4909, 0.0
    %4927 = vadd.xlane.f32.xlu0 %v4926
    %v4928 = vpop.xlane.xlu0 %4927
    %v4929 = vsel %vm3062, %v4911, 0.0
    %4930 = vadd.xlane.f32.xlu0 %v4929
    %v4931 = vpop.xlane.xlu0 %4930
    %v4932 = vsel %vm3062, %v4913, 0.0
    %4933 = vadd.xlane.f32.xlu0 %v4932
    %v4934 = vpop.xlane.xlu0 %4933
    %v4935 = vsel %vm3062, %v4915, 0.0
    %4936 = vadd.xlane.f32.xlu0 %v4935
    %v4937 = vpop.xlane.xlu0 %4936
    %v4938 = vsel %vm3062, %v4917, 0.0
    %4939 = vadd.xlane.f32.xlu0 %v4938
    %v4940 = vpop.xlane.xlu0 %4939
    %v4941 = vsel %vm3062, %v4919, 0.0
    %4942 = vadd.xlane.f32.xlu0 %v4941
    %v4943 = vpop.xlane.xlu0 %4942
    %v4944 = vsel %vm3062, %v4921, 0.0
    %4945 = vadd.xlane.f32.xlu0 %v4944
    %v4946 = vpop.xlane.xlu0 %4945
    %v4947 = vsel %vm3062, %v4923, 0.0
    %4948 = vadd.xlane.f32.xlu0 %v4947
    %v4949 = vpop.xlane.xlu0 %4948
    %v4950 = vsel %vm3062, %v4925, 0.0
    %4951 = vadd.xlane.f32.xlu0 %v4950
    %v4952 = vpop.xlane.xlu0 %4951
    %v4953 = vrcp.pop %v4928
    %v4954 = vrcp.pop %v4931
    %v4955 = vrcp.pop %v4934
    %v4956 = vrcp.pop %v4937
    %v4957 = vrcp.pop %v4940
    %v4958 = vrcp.pop %v4943
    %v4959 = vrcp.pop %v4946
    %v4960 = vrcp.pop %v4949
    %v4961 = vrcp.pop %v4952
    %v4962 = vmul.f32 %v4909, %v4953
    %v4963 = vmul.f32 %v4911, %v4954
    %v4964 = vmul.f32 %v4913, %v4955
    %v4965 = vmul.f32 %v4915, %v4956
    %v4966 = vmul.f32 %v4917, %v4957
    %v4967 = vmul.f32 %v4919, %v4958
    %v4968 = vmul.f32 %v4921, %v4959
    %v4969 = vmul.f32 %v4923, %v4960
    %v4970 = vmul.f32 %v4925, %v4961
    %4971 = vrot.lane.b32.xlu0 %v2828, 40
    %v4972 = vpop.permute.xlu0 %4971
    %4973 = vrot.lane.b32.xlu0 %v2833, 40
    %v4974 = vpop.permute.xlu0 %4973
    %4975 = vrot.lane.b32.xlu0 %v2838, 40
    %v4976 = vpop.permute.xlu0 %4975
    %4977 = vrot.lane.b32.xlu0 %v2843, 40
    %v4978 = vpop.permute.xlu0 %4977
    %4979 = vrot.lane.b32.xlu0 %v2848, 40
    %v4980 = vpop.permute.xlu0 %4979
    %4981 = vrot.lane.b32.xlu0 %v2853, 40
    %v4982 = vpop.permute.xlu0 %4981
    %4983 = vrot.lane.b32.xlu0 %v2858, 40
    %v4984 = vpop.permute.xlu0 %4983
    %4985 = vrot.lane.b32.xlu0 %v2863, 40
    %v4986 = vpop.permute.xlu0 %4985
    %4987 = vrot.lane.b32.xlu0 %v2868, 40
    %v4988 = vpop.permute.xlu0 %4987
    %v4999 = vsel %vm3062, %v4962, 0
    %v5002 = vsel %vm3062, %v4963, 0
    %v5005 = vsel %vm3062, %v4964, 0
    %v5008 = vsel %vm3062, %v4965, 0
    %v5011 = vsel %vm3062, %v4966, 0
    %v5014 = vsel %vm3062, %v4967, 0
    %v5017 = vsel %vm3062, %v4968, 0
    %v5020 = vsel %vm3062, %v4969, 0
    %v5023 = vsel %vm3062, %v4970, 0
    %5025 = vmatprep.subr.mxu0 0.0
    %5026 = vmatpush1.msra.mxu0 %v4972
    %5027 = vmatprep.subr.mxu0 0.0
    %5028 = vmatpush1.msra.mxu0 %v4974
    %5029 = vmatprep.subr.mxu0 0.0
    %5030 = vmatpush1.msra.mxu0 %v4976
    %5031 = vmatprep.subr.mxu0 0.0
    %5032 = vmatpush1.msra.mxu0 %v4978
    %5033 = vmatprep.subr.mxu0 0.0
    %5034 = vmatpush1.msra.mxu0 %v4980
    %5035 = vmatprep.subr.mxu0 0.0
    %5036 = vmatpush1.msra.mxu0 %v4982
    %5037 = vmatprep.subr.mxu0 0.0
    %5038 = vmatpush1.msra.mxu0 %v4984
    %5039 = vmatprep.subr.mxu0 0.0
    %5040 = vmatpush1.msra.mxu0 %v4986
    %5041 = vmatprep.subr.mxu0 0.0
    %5042 = vmatpush1.msra.mxu0 %v4988
    %5043 = vmatprep.subr.mxu0 0.0
    %5044 = vmatpush1.msra.mxu0 0.0
    %5045 = vmatprep.subr.mxu0 0.0
    %5046 = vmatpush1.msra.mxu0 0.0
    %5047 = vmatprep.subr.mxu0 0.0
    %5048 = vmatpush1.msra.mxu0 0.0
    %5049 = vmatprep.subr.mxu0 0.0
    %5050 = vmatpush1.msra.mxu0 0.0
    %5051 = vmatprep.subr.mxu0 0.0
    %5052 = vmatpush1.msra.mxu0 0.0
    %5053 = vmatprep.subr.mxu0 0.0
    %5054 = vmatpush1.msra.mxu0 0.0
    %5055 = vmatprep.subr.mxu0 0.0
    %5056 = vmatpush1.msra.mxu0 0.0
    %5057 = vmatprep.subr.mxu0 0.0
    %5058 = vmatpush1.msra.mxu0 0.0
    %5059 = vmatprep.subr.mxu0 0.0
    %5060 = vmatpush1.msra.mxu0 0.0
    %5061 = vmatprep.subr.mxu0 0.0
    %5062 = vmatpush1.msra.mxu0 0.0
    %5063 = vmatprep.subr.mxu0 0.0
    %5064 = vmatpush1.msra.mxu0 0.0
    %5065 = vmatprep.subr.mxu0 0.0
    %5066 = vmatpush1.msra.mxu0 0.0
    %5067 = vmatprep.subr.mxu0 0.0
    %5068 = vmatpush1.msra.mxu0 0.0
    %5069 = vmatprep.subr.mxu0 0.0
    %5070 = vmatpush1.msra.mxu0 0.0
    %5071 = vmatprep.subr.mxu0 0.0
    %5072 = vmatpush1.msra.mxu0 0.0
    %5073 = vmatprep.subr.mxu0 0.0
    %5074 = vmatpush1.msra.mxu0 0.0
    %5075 = vmatprep.subr.mxu0 0.0
    %5076 = vmatpush1.msra.mxu0 0.0
    %5077 = vmatprep.subr.mxu0 0.0
    %5078 = vmatpush1.msra.mxu0 0.0
    %5079 = vmatprep.subr.mxu0 0.0
    %5080 = vmatpush1.msra.mxu0 0.0
    %5081 = vmatprep.subr.mxu0 0.0
    %5082 = vmatpush1.msra.mxu0 0.0
    %5083 = vmatprep.subr.mxu0 0.0
    %5084 = vmatpush1.msra.mxu0 0.0
    %5085 = vmatprep.subr.mxu0 0.0
    %5086 = vmatpush1.msra.mxu0 0.0
    %5087 = vmatprep.subr.mxu0 0.0
    %5088 = vmatpush1.msra.mxu0 0.0
    %5089 = vmatprep.mubr.f32.mxu0 0.0
    %5090 = vmatmul.mubr.f32.gmra.mrb[0].mxu0 %v4999
    %v5091 = vpop.f32.mrb[0].mxu0
    %v5092 = vadd.f32 0.0, %v5091
    %v5093 = vpop.f32.mrb[0].mxu0
    %5094 = vmatprep.mubr.f32.mxu0 0.0
    %5095 = vmatmul.mubr.f32.gmra.mrb[0].mxu0 %v5002
    %v5096 = vpop.f32.mrb[0].mxu0
    %v5097 = vadd.f32 0.0, %v5096
    %v5098 = vpop.f32.mrb[0].mxu0
    %5099 = vmatprep.mubr.f32.mxu0 0.0
    %5100 = vmatmul.mubr.f32.gmra.mrb[0].mxu0 %v5005
    %v5101 = vpop.f32.mrb[0].mxu0
    %v5102 = vadd.f32 0.0, %v5101
    %v5103 = vpop.f32.mrb[0].mxu0
    %5104 = vmatprep.mubr.f32.mxu0 0.0
    %5105 = vmatmul.mubr.f32.gmra.mrb[0].mxu0 %v5008
    %v5106 = vpop.f32.mrb[0].mxu0
    %v5107 = vadd.f32 0.0, %v5106
    %v5108 = vpop.f32.mrb[0].mxu0
    %5109 = vmatprep.mubr.f32.mxu0 0.0
    %5110 = vmatmul.mubr.f32.gmra.mrb[0].mxu0 %v5011
    %v5111 = vpop.f32.mrb[0].mxu0
    %v5112 = vadd.f32 0.0, %v5111
    %v5113 = vpop.f32.mrb[0].mxu0
    %5114 = vmatprep.mubr.f32.mxu0 0.0
    %5115 = vmatmul.mubr.f32.gmra.mrb[0].mxu0 %v5014
    %v5116 = vpop.f32.mrb[0].mxu0
    %v5117 = vadd.f32 0.0, %v5116
    %v5118 = vpop.f32.mrb[0].mxu0
    %5119 = vmatprep.mubr.f32.mxu0 0.0
    %5120 = vmatmul.mubr.f32.gmra.mrb[0].mxu0 %v5017
    %v5121 = vpop.f32.mrb[0].mxu0
    %v5122 = vadd.f32 0.0, %v5121
    %v5123 = vpop.f32.mrb[0].mxu0
    %5124 = vmatprep.mubr.f32.mxu0 0.0
    %5125 = vmatmul.mubr.f32.gmra.mrb[0].mxu0 %v5020
    %v5126 = vpop.f32.mrb[0].mxu0
    %v5127 = vadd.f32 0.0, %v5126
    %v5128 = vpop.f32.mrb[0].mxu0
    %5129 = vmatprep.mubr.f32.mxu0 0.0
    %5130 = vmatmul.mubr.f32.gmra.mrb[0].mxu0 %v5023
    %v5131 = vpop.f32.mrb[0].mxu0
    %v5132 = vadd.f32 0.0, %v5131
    %v5133 = vpop.f32.mrb[0].mxu0
    %5134 = vdwg.mxu0
    %v5136 = vsel %vm361, %v5092, 0
    %v5139 = vsel %vm361, %v5097, 0
    %v5142 = vsel %vm361, %v5102, 0
    %v5145 = vsel %vm361, %v5107, 0
    %v5148 = vsel %vm361, %v5112, 0
    %v5151 = vsel %vm361, %v5117, 0
    %v5154 = vsel %vm361, %v5122, 0
    %v5157 = vsel %vm361, %v5127, 0
    %v5160 = vsel %vm361, %v5132, 0
    %5162 = vmatprep.subr.mxu0 0.0
    %5163 = vmatpush1.msra.mxu0 %v56
    %5164 = vmatprep.subr.mxu0 0.0
    %5165 = vmatpush1.msra.mxu0 0.0
    %5166 = vmatprep.subr.mxu0 0.0
    %5167 = vmatpush1.msra.mxu0 0.0
    %5168 = vmatprep.subr.mxu0 0.0
    %5169 = vmatpush1.msra.mxu0 0.0
    %5170 = vmatprep.subr.mxu0 0.0
    %5171 = vmatpush1.msra.mxu0 0.0
    %5172 = vmatprep.subr.mxu0 0.0
    %5173 = vmatpush1.msra.mxu0 0.0
    %5174 = vmatprep.subr.mxu0 0.0
    %5175 = vmatpush1.msra.mxu0 0.0
    %5176 = vmatprep.subr.mxu0 0.0
    %5177 = vmatpush1.msra.mxu0 0.0
    %5178 = vmatprep.subr.mxu0 0.0
    %5179 = vmatpush1.msra.mxu0 0.0
    %5180 = vmatprep.subr.mxu0 0.0
    %5181 = vmatpush1.msra.mxu0 0.0
    %5182 = vmatprep.subr.mxu0 0.0
    %5183 = vmatpush1.msra.mxu0 0.0
    %5184 = vmatprep.subr.mxu0 0.0
    %5185 = vmatpush1.msra.mxu0 0.0
    %5186 = vmatprep.subr.mxu0 0.0
    %5187 = vmatpush1.msra.mxu0 0.0
    %5188 = vmatprep.subr.mxu0 0.0
    %5189 = vmatpush1.msra.mxu0 0.0
    %5190 = vmatprep.subr.mxu0 0.0
    %5191 = vmatpush1.msra.mxu0 0.0
    %5192 = vmatprep.subr.mxu0 0.0
    %5193 = vmatpush1.msra.mxu0 0.0
    %5194 = vmatprep.subr.mxu0 0.0
    %5195 = vmatpush1.msra.mxu0 0.0
    %5196 = vmatprep.subr.mxu0 0.0
    %5197 = vmatpush1.msra.mxu0 0.0
    %5198 = vmatprep.subr.mxu0 0.0
    %5199 = vmatpush1.msra.mxu0 0.0
    %5200 = vmatprep.subr.mxu0 0.0
    %5201 = vmatpush1.msra.mxu0 0.0
    %5202 = vmatprep.subr.mxu0 0.0
    %5203 = vmatpush1.msra.mxu0 0.0
    %5204 = vmatprep.subr.mxu0 0.0
    %5205 = vmatpush1.msra.mxu0 0.0
    %5206 = vmatprep.subr.mxu0 0.0
    %5207 = vmatpush1.msra.mxu0 0.0
    %5208 = vmatprep.subr.mxu0 0.0
    %5209 = vmatpush1.msra.mxu0 0.0
    %5210 = vmatprep.subr.mxu0 0.0
    %5211 = vmatpush1.msra.mxu0 0.0
    %5212 = vmatprep.subr.mxu0 0.0
    %5213 = vmatpush1.msra.mxu0 0.0
    %5214 = vmatprep.subr.mxu0 0.0
    %5215 = vmatpush1.msra.mxu0 0.0
    %5216 = vmatprep.subr.mxu0 0.0
    %5217 = vmatpush1.msra.mxu0 0.0
    %5218 = vmatprep.subr.mxu0 0.0
    %5219 = vmatpush1.msra.mxu0 0.0
    %5220 = vmatprep.subr.mxu0 0.0
    %5221 = vmatpush1.msra.mxu0 0.0
    %5222 = vmatprep.subr.mxu0 0.0
    %5223 = vmatpush1.msra.mxu0 0.0
    %5224 = vmatprep.subr.mxu0 0.0
    %5225 = vmatpush1.msra.mxu0 0.0
    %5226 = vmatprep.mubr.f32.mxu0 0.0
    %5227 = vmatmul.mubr.f32.gmra.mrb[0].mxu0 %v5136
    %v5228 = vpop.f32.mrb[0].mxu0
    %v5229 = vadd.f32 0.0, %v5228
    %v5230 = vpop.f32.mrb[0].mxu0
    %5231 = vmatprep.mubr.f32.mxu0 0.0
    %5232 = vmatmul.mubr.f32.gmra.mrb[0].mxu0 %v5139
    %v5233 = vpop.f32.mrb[0].mxu0
    %v5234 = vadd.f32 0.0, %v5233
    %v5235 = vpop.f32.mrb[0].mxu0
    %5236 = vmatprep.mubr.f32.mxu0 0.0
    %5237 = vmatmul.mubr.f32.gmra.mrb[0].mxu0 %v5142
    %v5238 = vpop.f32.mrb[0].mxu0
    %v5239 = vadd.f32 0.0, %v5238
    %v5240 = vpop.f32.mrb[0].mxu0
    %5241 = vmatprep.mubr.f32.mxu0 0.0
    %5242 = vmatmul.mubr.f32.gmra.mrb[0].mxu0 %v5145
    %v5243 = vpop.f32.mrb[0].mxu0
    %v5244 = vadd.f32 0.0, %v5243
    %v5245 = vpop.f32.mrb[0].mxu0
    %5246 = vmatprep.mubr.f32.mxu0 0.0
    %5247 = vmatmul.mubr.f32.gmra.mrb[0].mxu0 %v5148
    %v5248 = vpop.f32.mrb[0].mxu0
    %v5249 = vadd.f32 0.0, %v5248
    %v5250 = vpop.f32.mrb[0].mxu0
    %5251 = vmatprep.mubr.f32.mxu0 0.0
    %5252 = vmatmul.mubr.f32.gmra.mrb[0].mxu0 %v5151
    %v5253 = vpop.f32.mrb[0].mxu0
    %v5254 = vadd.f32 0.0, %v5253
    %v5255 = vpop.f32.mrb[0].mxu0
    %5256 = vmatprep.mubr.f32.mxu0 0.0
    %5257 = vmatmul.mubr.f32.gmra.mrb[0].mxu0 %v5154
    %v5258 = vpop.f32.mrb[0].mxu0
    %v5259 = vadd.f32 0.0, %v5258
    %v5260 = vpop.f32.mrb[0].mxu0
    %5261 = vmatprep.mubr.f32.mxu0 0.0
    %5262 = vmatmul.mubr.f32.gmra.mrb[0].mxu0 %v5157
    %v5263 = vpop.f32.mrb[0].mxu0
    %v5264 = vadd.f32 0.0, %v5263
    %v5265 = vpop.f32.mrb[0].mxu0
    %5266 = vmatprep.mubr.f32.mxu0 0.0
    %5267 = vmatmul.mubr.f32.gmra.mrb[0].mxu0 %v5160
    %v5268 = vpop.f32.mrb[0].mxu0
    %v5269 = vadd.f32 0.0, %v5268
    %v5270 = vpop.f32.mrb[0].mxu0
    %5271 = vdwg.mxu0
    %v5272 = vadd.f32 %v4663, %v5229
    %v5273 = vadd.f32 %v4664, %v5234
    %v5274 = vadd.f32 %v4665, %v5239
    %v5275 = vadd.f32 %v4666, %v5244
    %v5276 = vadd.f32 %v4667, %v5249
    %v5277 = vadd.f32 %v4668, %v5254
    %v5278 = vadd.f32 %v4669, %v5259
    %v5279 = vadd.f32 %v4670, %v5264
    %v5280 = vadd.f32 %v4671, %v5269
    %v5281 = vlaneseq
    %v5282 = vshrl.u32 %v5281, 7
    %v5283 = vsub.s32 0, %v5282
    %v5284 = vrot.slane %v51, %v5283
    %v5285 = vadd.f32 %v5272, %v5284
    %v5286 = vadd.f32 %v5273, %v5284
    %v5287 = vadd.f32 %v5274, %v5284
    %v5288 = vadd.f32 %v5275, %v5284
    %v5289 = vadd.f32 %v5276, %v5284
    %v5290 = vadd.f32 %v5277, %v5284
    %v5291 = vadd.f32 %v5278, %v5284
    %v5292 = vadd.f32 %v5279, %v5284
    %v5293 = vadd.f32 %v5280, %v5284
    %v5294 = vadd.f32 %v2678, %v5285
    %v5295 = vadd.f32 %v2683, %v5286
    %v5296 = vadd.f32 %v2688, %v5287
    %v5297 = vadd.f32 %v2693, %v5288
    %v5298 = vadd.f32 %v2698, %v5289
    %v5299 = vadd.f32 %v2703, %v5290
    %v5300 = vadd.f32 %v2708, %v5291
    %v5301 = vadd.f32 %v2713, %v5292
    %v5302 = vadd.f32 %v2718, %v5293
    %v5303 = vsel %vm240, %v5294, 0.0
    %5304 = vadd.xlane.f32.xlu0 %v5303
    %v5305 = vpop.xlane.xlu0 %5304
    %v5306 = vsel %vm240, %v5295, 0.0
    %5307 = vadd.xlane.f32.xlu0 %v5306
    %v5308 = vpop.xlane.xlu0 %5307
    %v5309 = vsel %vm240, %v5296, 0.0
    %5310 = vadd.xlane.f32.xlu0 %v5309
    %v5311 = vpop.xlane.xlu0 %5310
    %v5312 = vsel %vm240, %v5297, 0.0
    %5313 = vadd.xlane.f32.xlu0 %v5312
    %v5314 = vpop.xlane.xlu0 %5313
    %v5315 = vsel %vm240, %v5298, 0.0
    %5316 = vadd.xlane.f32.xlu0 %v5315
    %v5317 = vpop.xlane.xlu0 %5316
    %v5318 = vsel %vm240, %v5299, 0.0
    %5319 = vadd.xlane.f32.xlu0 %v5318
    %v5320 = vpop.xlane.xlu0 %5319
    %v5321 = vsel %vm240, %v5300, 0.0
    %5322 = vadd.xlane.f32.xlu0 %v5321
    %v5323 = vpop.xlane.xlu0 %5322
    %v5324 = vsel %vm240, %v5301, 0.0
    %5325 = vadd.xlane.f32.xlu0 %v5324
    %v5326 = vpop.xlane.xlu0 %5325
    %v5327 = vsel %vm240, %v5302, 0.0
    %5328 = vadd.xlane.f32.xlu0 %v5327
    %v5329 = vpop.xlane.xlu0 %5328
    %v5330 = vmul.f32 %v5305, %v2068
    %v5331 = vmul.f32 %v5308, %v2068
    %v5332 = vmul.f32 %v5311, %v2068
    %v5333 = vmul.f32 %v5314, %v2068
    %v5334 = vmul.f32 %v5317, %v2068
    %v5335 = vmul.f32 %v5320, %v2068
    %v5336 = vmul.f32 %v5323, %v2068
    %v5337 = vmul.f32 %v5326, %v2068
    %v5338 = vmul.f32 %v5329, %v2068
    %v5339 = vsub.f32 %v5294, %v5330
    %v5340 = vsub.f32 %v5295, %v5331
    %v5341 = vsub.f32 %v5296, %v5332
    %v5342 = vsub.f32 %v5297, %v5333
    %v5343 = vsub.f32 %v5298, %v5334
    %v5344 = vsub.f32 %v5299, %v5335
    %v5345 = vsub.f32 %v5300, %v5336
    %v5346 = vsub.f32 %v5301, %v5337
    %v5347 = vsub.f32 %v5302, %v5338
    %v5348 = vmul.f32 %v5339, %v5339
    %v5349 = vmul.f32 %v5340, %v5340
    %v5350 = vmul.f32 %v5341, %v5341
    %v5351 = vmul.f32 %v5342, %v5342
    %v5352 = vmul.f32 %v5343, %v5343
    %v5353 = vmul.f32 %v5344, %v5344
    %v5354 = vmul.f32 %v5345, %v5345
    %v5355 = vmul.f32 %v5346, %v5346
    %v5356 = vmul.f32 %v5347, %v5347
    %v5357 = vsel %vm240, %v5348, 0.0
    %5358 = vadd.xlane.f32.xlu0 %v5357
    %v5359 = vpop.xlane.xlu0 %5358
    %v5360 = vsel %vm240, %v5349, 0.0
    %5361 = vadd.xlane.f32.xlu0 %v5360
    %v5362 = vpop.xlane.xlu0 %5361
    %v5363 = vsel %vm240, %v5350, 0.0
    %5364 = vadd.xlane.f32.xlu0 %v5363
    %v5365 = vpop.xlane.xlu0 %5364
    %v5366 = vsel %vm240, %v5351, 0.0
    %5367 = vadd.xlane.f32.xlu0 %v5366
    %v5368 = vpop.xlane.xlu0 %5367
    %v5369 = vsel %vm240, %v5352, 0.0
    %5370 = vadd.xlane.f32.xlu0 %v5369
    %v5371 = vpop.xlane.xlu0 %5370
    %v5372 = vsel %vm240, %v5353, 0.0
    %5373 = vadd.xlane.f32.xlu0 %v5372
    %v5374 = vpop.xlane.xlu0 %5373
    %v5375 = vsel %vm240, %v5354, 0.0
    %5376 = vadd.xlane.f32.xlu0 %v5375
    %v5377 = vpop.xlane.xlu0 %5376
    %v5378 = vsel %vm240, %v5355, 0.0
    %5379 = vadd.xlane.f32.xlu0 %v5378
    %v5380 = vpop.xlane.xlu0 %5379
    %v5381 = vsel %vm240, %v5356, 0.0
    %5382 = vadd.xlane.f32.xlu0 %v5381
    %v5383 = vpop.xlane.xlu0 %5382
    %v5384 = vmul.f32 %v5359, %v2068
    %v5385 = vmul.f32 %v5362, %v2068
    %v5386 = vmul.f32 %v5365, %v2068
    %v5387 = vmul.f32 %v5368, %v2068
    %v5388 = vmul.f32 %v5371, %v2068
    %v5389 = vmul.f32 %v5374, %v2068
    %v5390 = vmul.f32 %v5377, %v2068
    %v5391 = vmul.f32 %v5380, %v2068
    %v5392 = vmul.f32 %v5383, %v2068
    %v5393 = vadd.f32 %v5384, 1e-05
    %v5394 = vadd.f32 %v5385, 1e-05
    %v5395 = vadd.f32 %v5386, 1e-05
    %v5396 = vadd.f32 %v5387, 1e-05
    %v5397 = vadd.f32 %v5388, 1e-05
    %v5398 = vadd.f32 %v5389, 1e-05
    %v5399 = vadd.f32 %v5390, 1e-05
    %v5400 = vadd.f32 %v5391, 1e-05
    %v5401 = vadd.f32 %v5392, 1e-05
    %v5402 = vrsqrt.pop %v5393
    %v5403 = vrsqrt.pop %v5394
    %v5404 = vrsqrt.pop %v5395
    %v5405 = vrsqrt.pop %v5396
    %v5406 = vrsqrt.pop %v5397
    %v5407 = vrsqrt.pop %v5398
    %v5408 = vrsqrt.pop %v5399
    %v5409 = vrsqrt.pop %v5400
    %v5410 = vrsqrt.pop %v5401
    %v5411 = vmul.f32 %v5339, %v5402
    %v5412 = vmul.f32 %v5340, %v5403
    %v5413 = vmul.f32 %v5341, %v5404
    %v5414 = vmul.f32 %v5342, %v5405
    %v5415 = vmul.f32 %v5343, %v5406
    %v5416 = vmul.f32 %v5344, %v5407
    %v5417 = vmul.f32 %v5345, %v5408
    %v5418 = vmul.f32 %v5346, %v5409
    %v5419 = vmul.f32 %v5347, %v5410
    %v5420 = vlaneseq
    %v5421 = vshrl.u32 %v5420, 7
    %v5422 = vsub.s32 0, %v5421
    %v5423 = vrot.slane %v46, %v5422
    %v5424 = vmul.f32 %v5411, %v5423
    %v5425 = vmul.f32 %v5412, %v5423
    %v5426 = vmul.f32 %v5413, %v5423
    %v5427 = vmul.f32 %v5414, %v5423
    %v5428 = vmul.f32 %v5415, %v5423
    %v5429 = vmul.f32 %v5416, %v5423
    %v5430 = vmul.f32 %v5417, %v5423
    %v5431 = vmul.f32 %v5418, %v5423
    %v5432 = vmul.f32 %v5419, %v5423
    %v5433 = vlaneseq
    %v5434 = vshrl.u32 %v5433, 7
    %v5435 = vsub.s32 0, %v5434
    %v5436 = vrot.slane %v45, %v5435
    %v5437 = vadd.f32 %v5424, %v5436
    %v5438 = vadd.f32 %v5425, %v5436
    %v5439 = vadd.f32 %v5426, %v5436
    %v5440 = vadd.f32 %v5427, %v5436
    %v5441 = vadd.f32 %v5428, %v5436
    %v5442 = vadd.f32 %v5429, %v5436
    %v5443 = vadd.f32 %v5430, %v5436
    %v5444 = vadd.f32 %v5431, %v5436
    %v5445 = vadd.f32 %v5432, %v5436
    %v5446 = vlaneseq
    %v5447 = vshrl.u32 %v5446, 7
    %v5448 = vsub.s32 0, %v5447
    %v5449 = vrot.slane %v32, %v5448
    %v5451 = vsel %vm240, %v5437, 0
    %v5454 = vsel %vm240, %v5438, 0
    %v5457 = vsel %vm240, %v5439, 0
    %v5460 = vsel %vm240, %v5440, 0
    %v5463 = vsel %vm240, %v5441, 0
    %v5466 = vsel %vm240, %v5442, 0
    %v5469 = vsel %vm240, %v5443, 0
    %v5472 = vsel %vm240, %v5444, 0
    %v5475 = vsel %vm240, %v5445, 0
    %5477 = vmatprep.subr.mxu0 0.0
    %5478 = vmatpush1.msra.mxu0 %v41
    %5479 = vmatprep.subr.mxu0 0.0
    %5480 = vmatpush1.msra.mxu0 %v42
    %5481 = vmatprep.subr.mxu0 0.0
    %5482 = vmatpush1.msra.mxu0 %v43
    %5483 = vmatprep.subr.mxu0 0.0
    %5484 = vmatpush1.msra.mxu0 %v44
    %5485 = vmatprep.subr.mxu0 0.0
    %5486 = vmatpush1.msra.mxu0 0.0
    %5487 = vmatprep.subr.mxu0 0.0
    %5488 = vmatpush1.msra.mxu0 0.0
    %5489 = vmatprep.subr.mxu0 0.0
    %5490 = vmatpush1.msra.mxu0 0.0
    %5491 = vmatprep.subr.mxu0 0.0
    %5492 = vmatpush1.msra.mxu0 0.0
    %5493 = vmatprep.subr.mxu0 0.0
    %5494 = vmatpush1.msra.mxu0 0.0
    %5495 = vmatprep.subr.mxu0 0.0
    %5496 = vmatpush1.msra.mxu0 0.0
    %5497 = vmatprep.subr.mxu0 0.0
    %5498 = vmatpush1.msra.mxu0 0.0
    %5499 = vmatprep.subr.mxu0 0.0
    %5500 = vmatpush1.msra.mxu0 0.0
    %5501 = vmatprep.subr.mxu0 0.0
    %5502 = vmatpush1.msra.mxu0 0.0
    %5503 = vmatprep.subr.mxu0 0.0
    %5504 = vmatpush1.msra.mxu0 0.0
    %5505 = vmatprep.subr.mxu0 0.0
    %5506 = vmatpush1.msra.mxu0 0.0
    %5507 = vmatprep.subr.mxu0 0.0
    %5508 = vmatpush1.msra.mxu0 0.0
    %5509 = vmatprep.subr.mxu0 0.0
    %5510 = vmatpush1.msra.mxu0 0.0
    %5511 = vmatprep.subr.mxu0 0.0
    %5512 = vmatpush1.msra.mxu0 0.0
    %5513 = vmatprep.subr.mxu0 0.0
    %5514 = vmatpush1.msra.mxu0 0.0
    %5515 = vmatprep.subr.mxu0 0.0
    %5516 = vmatpush1.msra.mxu0 0.0
    %5517 = vmatprep.subr.mxu0 0.0
    %5518 = vmatpush1.msra.mxu0 0.0
    %5519 = vmatprep.subr.mxu0 0.0
    %5520 = vmatpush1.msra.mxu0 0.0
    %5521 = vmatprep.subr.mxu0 0.0
    %5522 = vmatpush1.msra.mxu0 0.0
    %5523 = vmatprep.subr.mxu0 0.0
    %5524 = vmatpush1.msra.mxu0 0.0
    %5525 = vmatprep.subr.mxu0 0.0
    %5526 = vmatpush1.msra.mxu0 0.0
    %5527 = vmatprep.subr.mxu0 0.0
    %5528 = vmatpush1.msra.mxu0 0.0
    %5529 = vmatprep.subr.mxu0 0.0
    %5530 = vmatpush1.msra.mxu0 0.0
    %5531 = vmatprep.subr.mxu0 0.0
    %5532 = vmatpush1.msra.mxu0 0.0
    %5533 = vmatprep.subr.mxu0 0.0
    %5534 = vmatpush1.msra.mxu0 0.0
    %5535 = vmatprep.subr.mxu0 0.0
    %5536 = vmatpush1.msra.mxu0 0.0
    %5537 = vmatprep.subr.mxu0 0.0
    %5538 = vmatpush1.msra.mxu0 0.0
    %5539 = vmatprep.subr.mxu0 0.0
    %5540 = vmatpush1.msra.mxu0 0.0
    %5541 = vmatprep.mubr.f32.mxu0 0.0
    %5542 = vmatmul.mubr.f32.gmra.mrb[0].mxu0 %v5451
    %v5543 = vpop.f32.mrb[0].mxu0
    %v5544 = vadd.f32 %v5449, %v5543
    %v5545 = vpop.f32.mrb[0].mxu0
    %5546 = vmatprep.mubr.f32.mxu0 0.0
    %5547 = vmatmul.mubr.f32.gmra.mrb[0].mxu0 %v5454
    %v5548 = vpop.f32.mrb[0].mxu0
    %v5549 = vadd.f32 %v5449, %v5548
    %v5550 = vpop.f32.mrb[0].mxu0
    %5551 = vmatprep.mubr.f32.mxu0 0.0
    %5552 = vmatmul.mubr.f32.gmra.mrb[0].mxu0 %v5457
    %v5553 = vpop.f32.mrb[0].mxu0
    %v5554 = vadd.f32 %v5449, %v5553
    %v5555 = vpop.f32.mrb[0].mxu0
    %5556 = vmatprep.mubr.f32.mxu0 0.0
    %5557 = vmatmul.mubr.f32.gmra.mrb[0].mxu0 %v5460
    %v5558 = vpop.f32.mrb[0].mxu0
    %v5559 = vadd.f32 %v5449, %v5558
    %v5560 = vpop.f32.mrb[0].mxu0
    %5561 = vmatprep.mubr.f32.mxu0 0.0
    %5562 = vmatmul.mubr.f32.gmra.mrb[0].mxu0 %v5463
    %v5563 = vpop.f32.mrb[0].mxu0
    %v5564 = vadd.f32 %v5449, %v5563
    %v5565 = vpop.f32.mrb[0].mxu0
    %5566 = vmatprep.mubr.f32.mxu0 0.0
    %5567 = vmatmul.mubr.f32.gmra.mrb[0].mxu0 %v5466
    %v5568 = vpop.f32.mrb[0].mxu0
    %v5569 = vadd.f32 %v5449, %v5568
    %v5570 = vpop.f32.mrb[0].mxu0
    %5571 = vmatprep.mubr.f32.mxu0 0.0
    %5572 = vmatmul.mubr.f32.gmra.mrb[0].mxu0 %v5469
    %v5573 = vpop.f32.mrb[0].mxu0
    %v5574 = vadd.f32 %v5449, %v5573
    %v5575 = vpop.f32.mrb[0].mxu0
    %5576 = vmatprep.mubr.f32.mxu0 0.0
    %5577 = vmatmul.mubr.f32.gmra.mrb[0].mxu0 %v5472
    %v5578 = vpop.f32.mrb[0].mxu0
    %v5579 = vadd.f32 %v5449, %v5578
    %v5580 = vpop.f32.mrb[0].mxu0
    %5581 = vmatprep.mubr.f32.mxu0 0.0
    %5582 = vmatmul.mubr.f32.gmra.mrb[0].mxu0 %v5475
    %v5583 = vpop.f32.mrb[0].mxu0
    %v5584 = vadd.f32 %v5449, %v5583
    %v5585 = vpop.f32.mrb[0].mxu0
    %5586 = vdwg.mxu0
    %v5587 = vlaneseq
    %v5588 = vshrl.u32 %v5587, 7
    %v5589 = vsub.s32 0, %v5588
    %v5590 = vrot.slane %v30, %v5589
    %v5592 = vsel %vm240, %v27, 0
    %5594 = vmatprep.subr.mxu0 0.0
    %5595 = vmatpush1.msra.mxu0 %v33
    %5596 = vmatprep.subr.mxu0 0.0
    %5597 = vmatpush1.msra.mxu0 %v34
    %5598 = vmatprep.subr.mxu0 0.0
    %5599 = vmatpush1.msra.mxu0 %v35
    %5600 = vmatprep.subr.mxu0 0.0
    %5601 = vmatpush1.msra.mxu0 %v36
    %5602 = vmatprep.subr.mxu0 0.0
    %5603 = vmatpush1.msra.mxu0 0.0
    %5604 = vmatprep.subr.mxu0 0.0
    %5605 = vmatpush1.msra.mxu0 0.0
    %5606 = vmatprep.subr.mxu0 0.0
    %5607 = vmatpush1.msra.mxu0 0.0
    %5608 = vmatprep.subr.mxu0 0.0
    %5609 = vmatpush1.msra.mxu0 0.0
    %5610 = vmatprep.subr.mxu0 0.0
    %5611 = vmatpush1.msra.mxu0 0.0
    %5612 = vmatprep.subr.mxu0 0.0
    %5613 = vmatpush1.msra.mxu0 0.0
    %5614 = vmatprep.subr.mxu0 0.0
    %5615 = vmatpush1.msra.mxu0 0.0
    %5616 = vmatprep.subr.mxu0 0.0
    %5617 = vmatpush1.msra.mxu0 0.0
    %5618 = vmatprep.subr.mxu0 0.0
    %5619 = vmatpush1.msra.mxu0 0.0
    %5620 = vmatprep.subr.mxu0 0.0
    %5621 = vmatpush1.msra.mxu0 0.0
    %5622 = vmatprep.subr.mxu0 0.0
    %5623 = vmatpush1.msra.mxu0 0.0
    %5624 = vmatprep.subr.mxu0 0.0
    %5625 = vmatpush1.msra.mxu0 0.0
    %5626 = vmatprep.subr.mxu0 0.0
    %5627 = vmatpush1.msra.mxu0 0.0
    %5628 = vmatprep.subr.mxu0 0.0
    %5629 = vmatpush1.msra.mxu0 0.0
    %5630 = vmatprep.subr.mxu0 0.0
    %5631 = vmatpush1.msra.mxu0 0.0
    %5632 = vmatprep.subr.mxu0 0.0
    %5633 = vmatpush1.msra.mxu0 0.0
    %5634 = vmatprep.subr.mxu0 0.0
    %5635 = vmatpush1.msra.mxu0 0.0
    %5636 = vmatprep.subr.mxu0 0.0
    %5637 = vmatpush1.msra.mxu0 0.0
    %5638 = vmatprep.subr.mxu0 0.0
    %5639 = vmatpush1.msra.mxu0 0.0
    %5640 = vmatprep.subr.mxu0 0.0
    %5641 = vmatpush1.msra.mxu0 0.0
    %5642 = vmatprep.subr.mxu0 0.0
    %5643 = vmatpush1.msra.mxu0 0.0
    %5644 = vmatprep.subr.mxu0 0.0
    %5645 = vmatpush1.msra.mxu0 0.0
    %5646 = vmatprep.subr.mxu0 0.0
    %5647 = vmatpush1.msra.mxu0 0.0
    %5648 = vmatprep.subr.mxu0 0.0
    %5649 = vmatpush1.msra.mxu0 0.0
    %5650 = vmatprep.subr.mxu0 0.0
    %5651 = vmatpush1.msra.mxu0 0.0
    %5652 = vmatprep.subr.mxu0 0.0
    %5653 = vmatpush1.msra.mxu0 0.0
    %5654 = vmatprep.subr.mxu0 0.0
    %5655 = vmatpush1.msra.mxu0 0.0
    %5656 = vmatprep.subr.mxu0 0.0
    %5657 = vmatpush1.msra.mxu0 0.0
    %5658 = vmatprep.mubr.f32.mxu0 0.0
    %5659 = vmatmul.mubr.f32.gmra.mrb[0].mxu0 %v5592
    %v5660 = vpop.f32.mrb[0].mxu0
    %v5661 = vadd.f32 %v5590, %v5660
    %v5662 = vpop.f32.mrb[0].mxu0
    %5663 = vdwg.mxu0
    %v5665 = vsel %vm361, %v5544, 0
    %v5668 = vsel %vm361, %v5549, 0
    %v5671 = vsel %vm361, %v5554, 0
    %v5674 = vsel %vm361, %v5559, 0
    %v5677 = vsel %vm361, %v5564, 0
    %v5680 = vsel %vm361, %v5569, 0
    %v5683 = vsel %vm361, %v5574, 0
    %v5686 = vsel %vm361, %v5579, 0
    %v5689 = vsel %vm361, %v5584, 0
    %v5692 = vsel %vm361, %v5661, 0
    %5694 = vmatprep.subr.mxu0 0.0
    %5695 = vmatpush1.xpose.msra.mxu0 %v5692
    %5696 = vmatprep.subr.mxu0 0.0
    %5697 = vmatpush1.xpose.msra.mxu0 0.0
    %5698 = vmatprep.subr.mxu0 0.0
    %5699 = vmatpush1.xpose.msra.mxu0 0.0
    %5700 = vmatprep.subr.mxu0 0.0
    %5701 = vmatpush1.xpose.msra.mxu0 0.0
    %5702 = vmatprep.subr.mxu0 0.0
    %5703 = vmatpush1.xpose.msra.mxu0 0.0
    %5704 = vmatprep.subr.mxu0 0.0
    %5705 = vmatpush1.xpose.msra.mxu0 0.0
    %5706 = vmatprep.subr.mxu0 0.0
    %5707 = vmatpush1.xpose.msra.mxu0 0.0
    %5708 = vmatprep.subr.mxu0 0.0
    %5709 = vmatpush1.xpose.msra.mxu0 0.0
    %5710 = vmatprep.subr.mxu0 0.0
    %5711 = vmatpush1.xpose.msra.mxu0 0.0
    %5712 = vmatprep.subr.mxu0 0.0
    %5713 = vmatpush1.xpose.msra.mxu0 0.0
    %5714 = vmatprep.subr.mxu0 0.0
    %5715 = vmatpush1.xpose.msra.mxu0 0.0
    %5716 = vmatprep.subr.mxu0 0.0
    %5717 = vmatpush1.xpose.msra.mxu0 0.0
    %5718 = vmatprep.subr.mxu0 0.0
    %5719 = vmatpush1.xpose.msra.mxu0 0.0
    %5720 = vmatprep.subr.mxu0 0.0
    %5721 = vmatpush1.xpose.msra.mxu0 0.0
    %5722 = vmatprep.subr.mxu0 0.0
    %5723 = vmatpush1.xpose.msra.mxu0 0.0
    %5724 = vmatprep.subr.mxu0 0.0
    %5725 = vmatpush1.xpose.msra.mxu0 0.0
    %5726 = vmatprep.subr.mxu0 0.0
    %5727 = vmatpush1.xpose.msra.mxu0 0.0
    %5728 = vmatprep.subr.mxu0 0.0
    %5729 = vmatpush1.xpose.msra.mxu0 0.0
    %5730 = vmatprep.subr.mxu0 0.0
    %5731 = vmatpush1.xpose.msra.mxu0 0.0
    %5732 = vmatprep.subr.mxu0 0.0
    %5733 = vmatpush1.xpose.msra.mxu0 0.0
    %5734 = vmatprep.subr.mxu0 0.0
    %5735 = vmatpush1.xpose.msra.mxu0 0.0
    %5736 = vmatprep.subr.mxu0 0.0
    %5737 = vmatpush1.xpose.msra.mxu0 0.0
    %5738 = vmatprep.subr.mxu0 0.0
    %5739 = vmatpush1.xpose.msra.mxu0 0.0
    %5740 = vmatprep.subr.mxu0 0.0
    %5741 = vmatpush1.xpose.msra.mxu0 0.0
    %5742 = vmatprep.subr.mxu0 0.0
    %5743 = vmatpush1.xpose.msra.mxu0 0.0
    %5744 = vmatprep.subr.mxu0 0.0
    %5745 = vmatpush1.xpose.msra.mxu0 0.0
    %5746 = vmatprep.subr.mxu0 0.0
    %5747 = vmatpush1.xpose.msra.mxu0 0.0
    %5748 = vmatprep.subr.mxu0 0.0
    %5749 = vmatpush1.xpose.msra.mxu0 0.0
    %5750 = vmatprep.subr.mxu0 0.0
    %5751 = vmatpush1.xpose.msra.mxu0 0.0
    %5752 = vmatprep.subr.mxu0 0.0
    %5753 = vmatpush1.xpose.msra.mxu0 0.0
    %5754 = vmatprep.subr.mxu0 0.0
    %5755 = vmatpush1.xpose.msra.mxu0 0.0
    %5756 = vmatprep.subr.mxu0 0.0
    %5757 = vmatpush1.xpose.msra.mxu0 0.0
    %5758 = vmatprep.mubr.f32.mxu0 0.0
    %5759 = vmatmul.mubr.f32.gmra.mrb[0].mxu0 %v5665
    %v5760 = vpop.f32.mrb[0].mxu0
    %v5761 = vadd.f32 0.0, %v5760
    %v5762 = vpop.f32.mrb[0].mxu0
    %5763 = vmatprep.mubr.f32.mxu0 0.0
    %5764 = vmatmul.mubr.f32.gmra.mrb[0].mxu0 %v5668
    %v5765 = vpop.f32.mrb[0].mxu0
    %v5766 = vadd.f32 0.0, %v5765
    %v5767 = vpop.f32.mrb[0].mxu0
    %5768 = vmatprep.mubr.f32.mxu0 0.0
    %5769 = vmatmul.mubr.f32.gmra.mrb[0].mxu0 %v5671
    %v5770 = vpop.f32.mrb[0].mxu0
    %v5771 = vadd.f32 0.0, %v5770
    %v5772 = vpop.f32.mrb[0].mxu0
    %5773 = vmatprep.mubr.f32.mxu0 0.0
    %5774 = vmatmul.mubr.f32.gmra.mrb[0].mxu0 %v5674
    %v5775 = vpop.f32.mrb[0].mxu0
    %v5776 = vadd.f32 0.0, %v5775
    %v5777 = vpop.f32.mrb[0].mxu0
    %5778 = vmatprep.mubr.f32.mxu0 0.0
    %5779 = vmatmul.mubr.f32.gmra.mrb[0].mxu0 %v5677
    %v5780 = vpop.f32.mrb[0].mxu0
    %v5781 = vadd.f32 0.0, %v5780
    %v5782 = vpop.f32.mrb[0].mxu0
    %5783 = vmatprep.mubr.f32.mxu0 0.0
    %5784 = vmatmul.mubr.f32.gmra.mrb[0].mxu0 %v5680
    %v5785 = vpop.f32.mrb[0].mxu0
    %v5786 = vadd.f32 0.0, %v5785
    %v5787 = vpop.f32.mrb[0].mxu0
    %5788 = vmatprep.mubr.f32.mxu0 0.0
    %5789 = vmatmul.mubr.f32.gmra.mrb[0].mxu0 %v5683
    %v5790 = vpop.f32.mrb[0].mxu0
    %v5791 = vadd.f32 0.0, %v5790
    %v5792 = vpop.f32.mrb[0].mxu0
    %5793 = vmatprep.mubr.f32.mxu0 0.0
    %5794 = vmatmul.mubr.f32.gmra.mrb[0].mxu0 %v5686
    %v5795 = vpop.f32.mrb[0].mxu0
    %v5796 = vadd.f32 0.0, %v5795
    %v5797 = vpop.f32.mrb[0].mxu0
    %5798 = vmatprep.mubr.f32.mxu0 0.0
    %5799 = vmatmul.mubr.f32.gmra.mrb[0].mxu0 %v5689
    %v5800 = vpop.f32.mrb[0].mxu0
    %v5801 = vadd.f32 0.0, %v5800
    %v5802 = vpop.f32.mrb[0].mxu0
    %5803 = vdwg.mxu0
    %v5804 = vmul.f32 %v5761, 0.35355338
    %v5805 = vmul.f32 %v5766, 0.35355338
    %v5806 = vmul.f32 %v5771, 0.35355338
    %v5807 = vmul.f32 %v5776, 0.35355338
    %v5808 = vmul.f32 %v5781, 0.35355338
    %v5809 = vmul.f32 %v5786, 0.35355338
    %v5810 = vmul.f32 %v5791, 0.35355338
    %v5811 = vmul.f32 %v5796, 0.35355338
    %v5812 = vmul.f32 %v5801, 0.35355338
    %v5813 = vsel %vm361, %v5804, -inf
    %5814 = vmax.xlane.f32.xlu0 %v5813
    %v5815 = vpop.xlane.xlu0 %5814
    %v5816 = vsel %vm361, %v5805, -inf
    %5817 = vmax.xlane.f32.xlu0 %v5816
    %v5818 = vpop.xlane.xlu0 %5817
    %v5819 = vsel %vm361, %v5806, -inf
    %5820 = vmax.xlane.f32.xlu0 %v5819
    %v5821 = vpop.xlane.xlu0 %5820
    %v5822 = vsel %vm361, %v5807, -inf
    %5823 = vmax.xlane.f32.xlu0 %v5822
    %v5824 = vpop.xlane.xlu0 %5823
    %v5825 = vsel %vm361, %v5808, -inf
    %5826 = vmax.xlane.f32.xlu0 %v5825
    %v5827 = vpop.xlane.xlu0 %5826
    %v5828 = vsel %vm361, %v5809, -inf
    %5829 = vmax.xlane.f32.xlu0 %v5828
    %v5830 = vpop.xlane.xlu0 %5829
    %v5831 = vsel %vm361, %v5810, -inf
    %5832 = vmax.xlane.f32.xlu0 %v5831
    %v5833 = vpop.xlane.xlu0 %5832
    %v5834 = vsel %vm361, %v5811, -inf
    %5835 = vmax.xlane.f32.xlu0 %v5834
    %v5836 = vpop.xlane.xlu0 %5835
    %v5837 = vsel %vm361, %v5812, -inf
    %5838 = vmax.xlane.f32.xlu0 %v5837
    %v5839 = vpop.xlane.xlu0 %5838
    %v5840 = vsub.f32 %v5804, %v5815
    %v5841 = vsub.f32 %v5805, %v5818
    %v5842 = vsub.f32 %v5806, %v5821
    %v5843 = vsub.f32 %v5807, %v5824
    %v5844 = vsub.f32 %v5808, %v5827
    %v5845 = vsub.f32 %v5809, %v5830
    %v5846 = vsub.f32 %v5810, %v5833
    %v5847 = vsub.f32 %v5811, %v5836
    %v5848 = vsub.f32 %v5812, %v5839
    %v5849 = vmul.f32 %v5840, 1.442695
    %v5850 = vpow.pop %v5849
    %v5851 = vmul.f32 %v5841, 1.442695
    %v5852 = vpow.pop %v5851
    %v5853 = vmul.f32 %v5842, 1.442695
    %v5854 = vpow.pop %v5853
    %v5855 = vmul.f32 %v5843, 1.442695
    %v5856 = vpow.pop %v5855
    %v5857 = vmul.f32 %v5844, 1.442695
    %v5858 = vpow.pop %v5857
    %v5859 = vmul.f32 %v5845, 1.442695
    %v5860 = vpow.pop %v5859
    %v5861 = vmul.f32 %v5846, 1.442695
    %v5862 = vpow.pop %v5861
    %v5863 = vmul.f32 %v5847, 1.442695
    %v5864 = vpow.pop %v5863
    %v5865 = vmul.f32 %v5848, 1.442695
    %v5866 = vpow.pop %v5865
    %v5867 = vsel %vm361, %v5850, 0.0
    %5868 = vadd.xlane.f32.xlu0 %v5867
    %v5869 = vpop.xlane.xlu0 %5868
    %v5870 = vsel %vm361, %v5852, 0.0
    %5871 = vadd.xlane.f32.xlu0 %v5870
    %v5872 = vpop.xlane.xlu0 %5871
    %v5873 = vsel %vm361, %v5854, 0.0
    %5874 = vadd.xlane.f32.xlu0 %v5873
    %v5875 = vpop.xlane.xlu0 %5874
    %v5876 = vsel %vm361, %v5856, 0.0
    %5877 = vadd.xlane.f32.xlu0 %v5876
    %v5878 = vpop.xlane.xlu0 %5877
    %v5879 = vsel %vm361, %v5858, 0.0
    %5880 = vadd.xlane.f32.xlu0 %v5879
    %v5881 = vpop.xlane.xlu0 %5880
    %v5882 = vsel %vm361, %v5860, 0.0
    %5883 = vadd.xlane.f32.xlu0 %v5882
    %v5884 = vpop.xlane.xlu0 %5883
    %v5885 = vsel %vm361, %v5862, 0.0
    %5886 = vadd.xlane.f32.xlu0 %v5885
    %v5887 = vpop.xlane.xlu0 %5886
    %v5888 = vsel %vm361, %v5864, 0.0
    %5889 = vadd.xlane.f32.xlu0 %v5888
    %v5890 = vpop.xlane.xlu0 %5889
    %v5891 = vsel %vm361, %v5866, 0.0
    %5892 = vadd.xlane.f32.xlu0 %v5891
    %v5893 = vpop.xlane.xlu0 %5892
    %v5894 = vrcp.pop %v5869
    %v5895 = vrcp.pop %v5872
    %v5896 = vrcp.pop %v5875
    %v5897 = vrcp.pop %v5878
    %v5898 = vrcp.pop %v5881
    %v5899 = vrcp.pop %v5884
    %v5900 = vrcp.pop %v5887
    %v5901 = vrcp.pop %v5890
    %v5902 = vrcp.pop %v5893
    %v5903 = vmul.f32 %v5850, %v5894
    %v5904 = vmul.f32 %v5852, %v5895
    %v5905 = vmul.f32 %v5854, %v5896
    %v5906 = vmul.f32 %v5856, %v5897
    %v5907 = vmul.f32 %v5858, %v5898
    %v5908 = vmul.f32 %v5860, %v5899
    %v5909 = vmul.f32 %v5862, %v5900
    %v5910 = vmul.f32 %v5864, %v5901
    %v5911 = vmul.f32 %v5866, %v5902
    %5912 = vrot.lane.b32.xlu0 %v5661, 96
    %v5913 = vpop.permute.xlu0 %5912
    %v5916 = vsel %vm361, %v5903, 0
    %v5919 = vsel %vm361, %v5904, 0
    %v5922 = vsel %vm361, %v5905, 0
    %v5925 = vsel %vm361, %v5906, 0
    %v5928 = vsel %vm361, %v5907, 0
    %v5931 = vsel %vm361, %v5908, 0
    %v5934 = vsel %vm361, %v5909, 0
    %v5937 = vsel %vm361, %v5910, 0
    %v5940 = vsel %vm361, %v5911, 0
    %5942 = vmatprep.subr.mxu0 0.0
    %5943 = vmatpush1.msra.mxu0 %v5913
    %5944 = vmatprep.subr.mxu0 0.0
    %5945 = vmatpush1.msra.mxu0 0.0
    %5946 = vmatprep.subr.mxu0 0.0
    %5947 = vmatpush1.msra.mxu0 0.0
    %5948 = vmatprep.subr.mxu0 0.0
    %5949 = vmatpush1.msra.mxu0 0.0
    %5950 = vmatprep.subr.mxu0 0.0
    %5951 = vmatpush1.msra.mxu0 0.0
    %5952 = vmatprep.subr.mxu0 0.0
    %5953 = vmatpush1.msra.mxu0 0.0
    %5954 = vmatprep.subr.mxu0 0.0
    %5955 = vmatpush1.msra.mxu0 0.0
    %5956 = vmatprep.subr.mxu0 0.0
    %5957 = vmatpush1.msra.mxu0 0.0
    %5958 = vmatprep.subr.mxu0 0.0
    %5959 = vmatpush1.msra.mxu0 0.0
    %5960 = vmatprep.subr.mxu0 0.0
    %5961 = vmatpush1.msra.mxu0 0.0
    %5962 = vmatprep.subr.mxu0 0.0
    %5963 = vmatpush1.msra.mxu0 0.0
    %5964 = vmatprep.subr.mxu0 0.0
    %5965 = vmatpush1.msra.mxu0 0.0
    %5966 = vmatprep.subr.mxu0 0.0
    %5967 = vmatpush1.msra.mxu0 0.0
    %5968 = vmatprep.subr.mxu0 0.0
    %5969 = vmatpush1.msra.mxu0 0.0
    %5970 = vmatprep.subr.mxu0 0.0
    %5971 = vmatpush1.msra.mxu0 0.0
    %5972 = vmatprep.subr.mxu0 0.0
    %5973 = vmatpush1.msra.mxu0 0.0
    %5974 = vmatprep.subr.mxu0 0.0
    %5975 = vmatpush1.msra.mxu0 0.0
    %5976 = vmatprep.subr.mxu0 0.0
    %5977 = vmatpush1.msra.mxu0 0.0
    %5978 = vmatprep.subr.mxu0 0.0
    %5979 = vmatpush1.msra.mxu0 0.0
    %5980 = vmatprep.subr.mxu0 0.0
    %5981 = vmatpush1.msra.mxu0 0.0
    %5982 = vmatprep.subr.mxu0 0.0
    %5983 = vmatpush1.msra.mxu0 0.0
    %5984 = vmatprep.subr.mxu0 0.0
    %5985 = vmatpush1.msra.mxu0 0.0
    %5986 = vmatprep.subr.mxu0 0.0
    %5987 = vmatpush1.msra.mxu0 0.0
    %5988 = vmatprep.subr.mxu0 0.0
    %5989 = vmatpush1.msra.mxu0 0.0
    %5990 = vmatprep.subr.mxu0 0.0
    %5991 = vmatpush1.msra.mxu0 0.0
    %5992 = vmatprep.subr.mxu0 0.0
    %5993 = vmatpush1.msra.mxu0 0.0
    %5994 = vmatprep.subr.mxu0 0.0
    %5995 = vmatpush1.msra.mxu0 0.0
    %5996 = vmatprep.subr.mxu0 0.0
    %5997 = vmatpush1.msra.mxu0 0.0
    %5998 = vmatprep.subr.mxu0 0.0
    %5999 = vmatpush1.msra.mxu0 0.0
    %6000 = vmatprep.subr.mxu0 0.0
    %6001 = vmatpush1.msra.mxu0 0.0
    %6002 = vmatprep.subr.mxu0 0.0
    %6003 = vmatpush1.msra.mxu0 0.0
    %6004 = vmatprep.subr.mxu0 0.0
    %6005 = vmatpush1.msra.mxu0 0.0
    %6006 = vmatprep.mubr.f32.mxu0 0.0
    %6007 = vmatmul.mubr.f32.gmra.mrb[0].mxu0 %v5916
    %v6008 = vpop.f32.mrb[0].mxu0
    %v6009 = vadd.f32 0.0, %v6008
    %v6010 = vpop.f32.mrb[0].mxu0
    %6011 = vmatprep.mubr.f32.mxu0 0.0
    %6012 = vmatmul.mubr.f32.gmra.mrb[0].mxu0 %v5919
    %v6013 = vpop.f32.mrb[0].mxu0
    %v6014 = vadd.f32 0.0, %v6013
    %v6015 = vpop.f32.mrb[0].mxu0
    %6016 = vmatprep.mubr.f32.mxu0 0.0
    %6017 = vmatmul.mubr.f32.gmra.mrb[0].mxu0 %v5922
    %v6018 = vpop.f32.mrb[0].mxu0
    %v6019 = vadd.f32 0.0, %v6018
    %v6020 = vpop.f32.mrb[0].mxu0
    %6021 = vmatprep.mubr.f32.mxu0 0.0
    %6022 = vmatmul.mubr.f32.gmra.mrb[0].mxu0 %v5925
    %v6023 = vpop.f32.mrb[0].mxu0
    %v6024 = vadd.f32 0.0, %v6023
    %v6025 = vpop.f32.mrb[0].mxu0
    %6026 = vmatprep.mubr.f32.mxu0 0.0
    %6027 = vmatmul.mubr.f32.gmra.mrb[0].mxu0 %v5928
    %v6028 = vpop.f32.mrb[0].mxu0
    %v6029 = vadd.f32 0.0, %v6028
    %v6030 = vpop.f32.mrb[0].mxu0
    %6031 = vmatprep.mubr.f32.mxu0 0.0
    %6032 = vmatmul.mubr.f32.gmra.mrb[0].mxu0 %v5931
    %v6033 = vpop.f32.mrb[0].mxu0
    %v6034 = vadd.f32 0.0, %v6033
    %v6035 = vpop.f32.mrb[0].mxu0
    %6036 = vmatprep.mubr.f32.mxu0 0.0
    %6037 = vmatmul.mubr.f32.gmra.mrb[0].mxu0 %v5934
    %v6038 = vpop.f32.mrb[0].mxu0
    %v6039 = vadd.f32 0.0, %v6038
    %v6040 = vpop.f32.mrb[0].mxu0
    %6041 = vmatprep.mubr.f32.mxu0 0.0
    %6042 = vmatmul.mubr.f32.gmra.mrb[0].mxu0 %v5937
    %v6043 = vpop.f32.mrb[0].mxu0
    %v6044 = vadd.f32 0.0, %v6043
    %v6045 = vpop.f32.mrb[0].mxu0
    %6046 = vmatprep.mubr.f32.mxu0 0.0
    %6047 = vmatmul.mubr.f32.gmra.mrb[0].mxu0 %v5940
    %v6048 = vpop.f32.mrb[0].mxu0
    %v6049 = vadd.f32 0.0, %v6048
    %v6050 = vpop.f32.mrb[0].mxu0
    %6051 = vdwg.mxu0
    %6052 = vrot.lane.b32.xlu0 %v5544, 120
    %v6053 = vpop.permute.xlu0 %6052
    %6054 = vrot.lane.b32.xlu0 %v5549, 120
    %v6055 = vpop.permute.xlu0 %6054
    %6056 = vrot.lane.b32.xlu0 %v5554, 120
    %v6057 = vpop.permute.xlu0 %6056
    %6058 = vrot.lane.b32.xlu0 %v5559, 120
    %v6059 = vpop.permute.xlu0 %6058
    %6060 = vrot.lane.b32.xlu0 %v5564, 120
    %v6061 = vpop.permute.xlu0 %6060
    %6062 = vrot.lane.b32.xlu0 %v5569, 120
    %v6063 = vpop.permute.xlu0 %6062
    %6064 = vrot.lane.b32.xlu0 %v5574, 120
    %v6065 = vpop.permute.xlu0 %6064
    %6066 = vrot.lane.b32.xlu0 %v5579, 120
    %v6067 = vpop.permute.xlu0 %6066
    %6068 = vrot.lane.b32.xlu0 %v5584, 120
    %v6069 = vpop.permute.xlu0 %6068
    %6070 = vrot.lane.b32.xlu0 %v5661, 120
    %v6071 = vpop.permute.xlu0 %6070
    %v6072 = vsel %vm361, %v6053, 0
    %v6074 = vsel %vm361, %v6055, 0
    %v6076 = vsel %vm361, %v6057, 0
    %v6078 = vsel %vm361, %v6059, 0
    %v6080 = vsel %vm361, %v6061, 0
    %v6082 = vsel %vm361, %v6063, 0
    %v6084 = vsel %vm361, %v6065, 0
    %v6086 = vsel %vm361, %v6067, 0
    %v6088 = vsel %vm361, %v6069, 0
    %v6090 = vsel %vm361, %v6071, 0
    %6092 = vmatprep.subr.mxu0 0.0
    %6093 = vmatpush1.xpose.msra.mxu0 %v6090
    %6094 = vmatprep.subr.mxu0 0.0
    %6095 = vmatpush1.xpose.msra.mxu0 0.0
    %6096 = vmatprep.subr.mxu0 0.0
    %6097 = vmatpush1.xpose.msra.mxu0 0.0
    %6098 = vmatprep.subr.mxu0 0.0
    %6099 = vmatpush1.xpose.msra.mxu0 0.0
    %6100 = vmatprep.subr.mxu0 0.0
    %6101 = vmatpush1.xpose.msra.mxu0 0.0
    %6102 = vmatprep.subr.mxu0 0.0
    %6103 = vmatpush1.xpose.msra.mxu0 0.0
    %6104 = vmatprep.subr.mxu0 0.0
    %6105 = vmatpush1.xpose.msra.mxu0 0.0
    %6106 = vmatprep.subr.mxu0 0.0
    %6107 = vmatpush1.xpose.msra.mxu0 0.0
    %6108 = vmatprep.subr.mxu0 0.0
    %6109 = vmatpush1.xpose.msra.mxu0 0.0
    %6110 = vmatprep.subr.mxu0 0.0
    %6111 = vmatpush1.xpose.msra.mxu0 0.0
    %6112 = vmatprep.subr.mxu0 0.0
    %6113 = vmatpush1.xpose.msra.mxu0 0.0
    %6114 = vmatprep.subr.mxu0 0.0
    %6115 = vmatpush1.xpose.msra.mxu0 0.0
    %6116 = vmatprep.subr.mxu0 0.0
    %6117 = vmatpush1.xpose.msra.mxu0 0.0
    %6118 = vmatprep.subr.mxu0 0.0
    %6119 = vmatpush1.xpose.msra.mxu0 0.0
    %6120 = vmatprep.subr.mxu0 0.0
    %6121 = vmatpush1.xpose.msra.mxu0 0.0
    %6122 = vmatprep.subr.mxu0 0.0
    %6123 = vmatpush1.xpose.msra.mxu0 0.0
    %6124 = vmatprep.subr.mxu0 0.0
    %6125 = vmatpush1.xpose.msra.mxu0 0.0
    %6126 = vmatprep.subr.mxu0 0.0
    %6127 = vmatpush1.xpose.msra.mxu0 0.0
    %6128 = vmatprep.subr.mxu0 0.0
    %6129 = vmatpush1.xpose.msra.mxu0 0.0
    %6130 = vmatprep.subr.mxu0 0.0
    %6131 = vmatpush1.xpose.msra.mxu0 0.0
    %6132 = vmatprep.subr.mxu0 0.0
    %6133 = vmatpush1.xpose.msra.mxu0 0.0
    %6134 = vmatprep.subr.mxu0 0.0
    %6135 = vmatpush1.xpose.msra.mxu0 0.0
    %6136 = vmatprep.subr.mxu0 0.0
    %6137 = vmatpush1.xpose.msra.mxu0 0.0
    %6138 = vmatprep.subr.mxu0 0.0
    %6139 = vmatpush1.xpose.msra.mxu0 0.0
    %6140 = vmatprep.subr.mxu0 0.0
    %6141 = vmatpush1.xpose.msra.mxu0 0.0
    %6142 = vmatprep.subr.mxu0 0.0
    %6143 = vmatpush1.xpose.msra.mxu0 0.0
    %6144 = vmatprep.subr.mxu0 0.0
    %6145 = vmatpush1.xpose.msra.mxu0 0.0
    %6146 = vmatprep.subr.mxu0 0.0
    %6147 = vmatpush1.xpose.msra.mxu0 0.0
    %6148 = vmatprep.subr.mxu0 0.0
    %6149 = vmatpush1.xpose.msra.mxu0 0.0
    %6150 = vmatprep.subr.mxu0 0.0
    %6151 = vmatpush1.xpose.msra.mxu0 0.0
    %6152 = vmatprep.subr.mxu0 0.0
    %6153 = vmatpush1.xpose.msra.mxu0 0.0
    %6154 = vmatprep.subr.mxu0 0.0
    %6155 = vmatpush1.xpose.msra.mxu0 0.0
    %6156 = vmatprep.mubr.f32.mxu0 0.0
    %6157 = vmatmul.mubr.f32.gmra.mrb[0].mxu0 %v6072
    %v6158 = vpop.f32.mrb[0].mxu0
    %v6159 = vadd.f32 0.0, %v6158
    %v6160 = vpop.f32.mrb[0].mxu0
    %6161 = vmatprep.mubr.f32.mxu0 0.0
    %6162 = vmatmul.mubr.f32.gmra.mrb[0].mxu0 %v6074
    %v6163 = vpop.f32.mrb[0].mxu0
    %v6164 = vadd.f32 0.0, %v6163
    %v6165 = vpop.f32.mrb[0].mxu0
    %6166 = vmatprep.mubr.f32.mxu0 0.0
    %6167 = vmatmul.mubr.f32.gmra.mrb[0].mxu0 %v6076
    %v6168 = vpop.f32.mrb[0].mxu0
    %v6169 = vadd.f32 0.0, %v6168
    %v6170 = vpop.f32.mrb[0].mxu0
    %6171 = vmatprep.mubr.f32.mxu0 0.0
    %6172 = vmatmul.mubr.f32.gmra.mrb[0].mxu0 %v6078
    %v6173 = vpop.f32.mrb[0].mxu0
    %v6174 = vadd.f32 0.0, %v6173
    %v6175 = vpop.f32.mrb[0].mxu0
    %6176 = vmatprep.mubr.f32.mxu0 0.0
    %6177 = vmatmul.mubr.f32.gmra.mrb[0].mxu0 %v6080
    %v6178 = vpop.f32.mrb[0].mxu0
    %v6179 = vadd.f32 0.0, %v6178
    %v6180 = vpop.f32.mrb[0].mxu0
    %6181 = vmatprep.mubr.f32.mxu0 0.0
    %6182 = vmatmul.mubr.f32.gmra.mrb[0].mxu0 %v6082
    %v6183 = vpop.f32.mrb[0].mxu0
    %v6184 = vadd.f32 0.0, %v6183
    %v6185 = vpop.f32.mrb[0].mxu0
    %6186 = vmatprep.mubr.f32.mxu0 0.0
    %6187 = vmatmul.mubr.f32.gmra.mrb[0].mxu0 %v6084
    %v6188 = vpop.f32.mrb[0].mxu0
    %v6189 = vadd.f32 0.0, %v6188
    %v6190 = vpop.f32.mrb[0].mxu0
    %6191 = vmatprep.mubr.f32.mxu0 0.0
    %6192 = vmatmul.mubr.f32.gmra.mrb[0].mxu0 %v6086
    %v6193 = vpop.f32.mrb[0].mxu0
    %v6194 = vadd.f32 0.0, %v6193
    %v6195 = vpop.f32.mrb[0].mxu0
    %6196 = vmatprep.mubr.f32.mxu0 0.0
    %6197 = vmatmul.mubr.f32.gmra.mrb[0].mxu0 %v6088
    %v6198 = vpop.f32.mrb[0].mxu0
    %v6199 = vadd.f32 0.0, %v6198
    %v6200 = vpop.f32.mrb[0].mxu0
    %6201 = vdwg.mxu0
    %v6202 = vmul.f32 %v6159, 0.35355338
    %v6203 = vmul.f32 %v6164, 0.35355338
    %v6204 = vmul.f32 %v6169, 0.35355338
    %v6205 = vmul.f32 %v6174, 0.35355338
    %v6206 = vmul.f32 %v6179, 0.35355338
    %v6207 = vmul.f32 %v6184, 0.35355338
    %v6208 = vmul.f32 %v6189, 0.35355338
    %v6209 = vmul.f32 %v6194, 0.35355338
    %v6210 = vmul.f32 %v6199, 0.35355338
    %v6211 = vsel %vm361, %v6202, -inf
    %6212 = vmax.xlane.f32.xlu0 %v6211
    %v6213 = vpop.xlane.xlu0 %6212
    %v6214 = vsel %vm361, %v6203, -inf
    %6215 = vmax.xlane.f32.xlu0 %v6214
    %v6216 = vpop.xlane.xlu0 %6215
    %v6217 = vsel %vm361, %v6204, -inf
    %6218 = vmax.xlane.f32.xlu0 %v6217
    %v6219 = vpop.xlane.xlu0 %6218
    %v6220 = vsel %vm361, %v6205, -inf
    %6221 = vmax.xlane.f32.xlu0 %v6220
    %v6222 = vpop.xlane.xlu0 %6221
    %v6223 = vsel %vm361, %v6206, -inf
    %6224 = vmax.xlane.f32.xlu0 %v6223
    %v6225 = vpop.xlane.xlu0 %6224
    %v6226 = vsel %vm361, %v6207, -inf
    %6227 = vmax.xlane.f32.xlu0 %v6226
    %v6228 = vpop.xlane.xlu0 %6227
    %v6229 = vsel %vm361, %v6208, -inf
    %6230 = vmax.xlane.f32.xlu0 %v6229
    %v6231 = vpop.xlane.xlu0 %6230
    %v6232 = vsel %vm361, %v6209, -inf
    %6233 = vmax.xlane.f32.xlu0 %v6232
    %v6234 = vpop.xlane.xlu0 %6233
    %v6235 = vsel %vm361, %v6210, -inf
    %6236 = vmax.xlane.f32.xlu0 %v6235
    %v6237 = vpop.xlane.xlu0 %6236
    %v6238 = vsub.f32 %v6202, %v6213
    %v6239 = vsub.f32 %v6203, %v6216
    %v6240 = vsub.f32 %v6204, %v6219
    %v6241 = vsub.f32 %v6205, %v6222
    %v6242 = vsub.f32 %v6206, %v6225
    %v6243 = vsub.f32 %v6207, %v6228
    %v6244 = vsub.f32 %v6208, %v6231
    %v6245 = vsub.f32 %v6209, %v6234
    %v6246 = vsub.f32 %v6210, %v6237
    %v6247 = vmul.f32 %v6238, 1.442695
    %v6248 = vpow.pop %v6247
    %v6249 = vmul.f32 %v6239, 1.442695
    %v6250 = vpow.pop %v6249
    %v6251 = vmul.f32 %v6240, 1.442695
    %v6252 = vpow.pop %v6251
    %v6253 = vmul.f32 %v6241, 1.442695
    %v6254 = vpow.pop %v6253
    %v6255 = vmul.f32 %v6242, 1.442695
    %v6256 = vpow.pop %v6255
    %v6257 = vmul.f32 %v6243, 1.442695
    %v6258 = vpow.pop %v6257
    %v6259 = vmul.f32 %v6244, 1.442695
    %v6260 = vpow.pop %v6259
    %v6261 = vmul.f32 %v6245, 1.442695
    %v6262 = vpow.pop %v6261
    %v6263 = vmul.f32 %v6246, 1.442695
    %v6264 = vpow.pop %v6263
    %v6265 = vsel %vm361, %v6248, 0.0
    %6266 = vadd.xlane.f32.xlu0 %v6265
    %v6267 = vpop.xlane.xlu0 %6266
    %v6268 = vsel %vm361, %v6250, 0.0
    %6269 = vadd.xlane.f32.xlu0 %v6268
    %v6270 = vpop.xlane.xlu0 %6269
    %v6271 = vsel %vm361, %v6252, 0.0
    %6272 = vadd.xlane.f32.xlu0 %v6271
    %v6273 = vpop.xlane.xlu0 %6272
    %v6274 = vsel %vm361, %v6254, 0.0
    %6275 = vadd.xlane.f32.xlu0 %v6274
    %v6276 = vpop.xlane.xlu0 %6275
    %v6277 = vsel %vm361, %v6256, 0.0
    %6278 = vadd.xlane.f32.xlu0 %v6277
    %v6279 = vpop.xlane.xlu0 %6278
    %v6280 = vsel %vm361, %v6258, 0.0
    %6281 = vadd.xlane.f32.xlu0 %v6280
    %v6282 = vpop.xlane.xlu0 %6281
    %v6283 = vsel %vm361, %v6260, 0.0
    %6284 = vadd.xlane.f32.xlu0 %v6283
    %v6285 = vpop.xlane.xlu0 %6284
    %v6286 = vsel %vm361, %v6262, 0.0
    %6287 = vadd.xlane.f32.xlu0 %v6286
    %v6288 = vpop.xlane.xlu0 %6287
    %v6289 = vsel %vm361, %v6264, 0.0
    %6290 = vadd.xlane.f32.xlu0 %v6289
    %v6291 = vpop.xlane.xlu0 %6290
    %v6292 = vrcp.pop %v6267
    %v6293 = vrcp.pop %v6270
    %v6294 = vrcp.pop %v6273
    %v6295 = vrcp.pop %v6276
    %v6296 = vrcp.pop %v6279
    %v6297 = vrcp.pop %v6282
    %v6298 = vrcp.pop %v6285
    %v6299 = vrcp.pop %v6288
    %v6300 = vrcp.pop %v6291
    %v6301 = vmul.f32 %v6248, %v6292
    %v6302 = vmul.f32 %v6250, %v6293
    %v6303 = vmul.f32 %v6252, %v6294
    %v6304 = vmul.f32 %v6254, %v6295
    %v6305 = vmul.f32 %v6256, %v6296
    %v6306 = vmul.f32 %v6258, %v6297
    %v6307 = vmul.f32 %v6260, %v6298
    %v6308 = vmul.f32 %v6262, %v6299
    %v6309 = vmul.f32 %v6264, %v6300
    %6310 = vrot.lane.b32.xlu0 %v5661, 88
    %v6311 = vpop.permute.xlu0 %6310
    %v6314 = vsel %vm361, %v6301, 0
    %v6317 = vsel %vm361, %v6302, 0
    %v6320 = vsel %vm361, %v6303, 0
    %v6323 = vsel %vm361, %v6304, 0
    %v6326 = vsel %vm361, %v6305, 0
    %v6329 = vsel %vm361, %v6306, 0
    %v6332 = vsel %vm361, %v6307, 0
    %v6335 = vsel %vm361, %v6308, 0
    %v6338 = vsel %vm361, %v6309, 0
    %6340 = vmatprep.subr.mxu0 0.0
    %6341 = vmatpush1.msra.mxu0 %v6311
    %6342 = vmatprep.subr.mxu0 0.0
    %6343 = vmatpush1.msra.mxu0 0.0
    %6344 = vmatprep.subr.mxu0 0.0
    %6345 = vmatpush1.msra.mxu0 0.0
    %6346 = vmatprep.subr.mxu0 0.0
    %6347 = vmatpush1.msra.mxu0 0.0
    %6348 = vmatprep.subr.mxu0 0.0
    %6349 = vmatpush1.msra.mxu0 0.0
    %6350 = vmatprep.subr.mxu0 0.0
    %6351 = vmatpush1.msra.mxu0 0.0
    %6352 = vmatprep.subr.mxu0 0.0
    %6353 = vmatpush1.msra.mxu0 0.0
    %6354 = vmatprep.subr.mxu0 0.0
    %6355 = vmatpush1.msra.mxu0 0.0
    %6356 = vmatprep.subr.mxu0 0.0
    %6357 = vmatpush1.msra.mxu0 0.0
    %6358 = vmatprep.subr.mxu0 0.0
    %6359 = vmatpush1.msra.mxu0 0.0
    %6360 = vmatprep.subr.mxu0 0.0
    %6361 = vmatpush1.msra.mxu0 0.0
    %6362 = vmatprep.subr.mxu0 0.0
    %6363 = vmatpush1.msra.mxu0 0.0
    %6364 = vmatprep.subr.mxu0 0.0
    %6365 = vmatpush1.msra.mxu0 0.0
    %6366 = vmatprep.subr.mxu0 0.0
    %6367 = vmatpush1.msra.mxu0 0.0
    %6368 = vmatprep.subr.mxu0 0.0
    %6369 = vmatpush1.msra.mxu0 0.0
    %6370 = vmatprep.subr.mxu0 0.0
    %6371 = vmatpush1.msra.mxu0 0.0
    %6372 = vmatprep.subr.mxu0 0.0
    %6373 = vmatpush1.msra.mxu0 0.0
    %6374 = vmatprep.subr.mxu0 0.0
    %6375 = vmatpush1.msra.mxu0 0.0
    %6376 = vmatprep.subr.mxu0 0.0
    %6377 = vmatpush1.msra.mxu0 0.0
    %6378 = vmatprep.subr.mxu0 0.0
    %6379 = vmatpush1.msra.mxu0 0.0
    %6380 = vmatprep.subr.mxu0 0.0
    %6381 = vmatpush1.msra.mxu0 0.0
    %6382 = vmatprep.subr.mxu0 0.0
    %6383 = vmatpush1.msra.mxu0 0.0
    %6384 = vmatprep.subr.mxu0 0.0
    %6385 = vmatpush1.msra.mxu0 0.0
    %6386 = vmatprep.subr.mxu0 0.0
    %6387 = vmatpush1.msra.mxu0 0.0
    %6388 = vmatprep.subr.mxu0 0.0
    %6389 = vmatpush1.msra.mxu0 0.0
    %6390 = vmatprep.subr.mxu0 0.0
    %6391 = vmatpush1.msra.mxu0 0.0
    %6392 = vmatprep.subr.mxu0 0.0
    %6393 = vmatpush1.msra.mxu0 0.0
    %6394 = vmatprep.subr.mxu0 0.0
    %6395 = vmatpush1.msra.mxu0 0.0
    %6396 = vmatprep.subr.mxu0 0.0
    %6397 = vmatpush1.msra.mxu0 0.0
    %6398 = vmatprep.subr.mxu0 0.0
    %6399 = vmatpush1.msra.mxu0 0.0
    %6400 = vmatprep.subr.mxu0 0.0
    %6401 = vmatpush1.msra.mxu0 0.0
    %6402 = vmatprep.subr.mxu0 0.0
    %6403 = vmatpush1.msra.mxu0 0.0
    %6404 = vmatprep.mubr.f32.mxu0 0.0
    %6405 = vmatmul.mubr.f32.gmra.mrb[0].mxu0 %v6314
    %v6406 = vpop.f32.mrb[0].mxu0
    %v6407 = vadd.f32 0.0, %v6406
    %v6408 = vpop.f32.mrb[0].mxu0
    %6409 = vmatprep.mubr.f32.mxu0 0.0
    %6410 = vmatmul.mubr.f32.gmra.mrb[0].mxu0 %v6317
    %v6411 = vpop.f32.mrb[0].mxu0
    %v6412 = vadd.f32 0.0, %v6411
    %v6413 = vpop.f32.mrb[0].mxu0
    %6414 = vmatprep.mubr.f32.mxu0 0.0
    %6415 = vmatmul.mubr.f32.gmra.mrb[0].mxu0 %v6320
    %v6416 = vpop.f32.mrb[0].mxu0
    %v6417 = vadd.f32 0.0, %v6416
    %v6418 = vpop.f32.mrb[0].mxu0
    %6419 = vmatprep.mubr.f32.mxu0 0.0
    %6420 = vmatmul.mubr.f32.gmra.mrb[0].mxu0 %v6323
    %v6421 = vpop.f32.mrb[0].mxu0
    %v6422 = vadd.f32 0.0, %v6421
    %v6423 = vpop.f32.mrb[0].mxu0
    %6424 = vmatprep.mubr.f32.mxu0 0.0
    %6425 = vmatmul.mubr.f32.gmra.mrb[0].mxu0 %v6326
    %v6426 = vpop.f32.mrb[0].mxu0
    %v6427 = vadd.f32 0.0, %v6426
    %v6428 = vpop.f32.mrb[0].mxu0
    %6429 = vmatprep.mubr.f32.mxu0 0.0
    %6430 = vmatmul.mubr.f32.gmra.mrb[0].mxu0 %v6329
    %v6431 = vpop.f32.mrb[0].mxu0
    %v6432 = vadd.f32 0.0, %v6431
    %v6433 = vpop.f32.mrb[0].mxu0
    %6434 = vmatprep.mubr.f32.mxu0 0.0
    %6435 = vmatmul.mubr.f32.gmra.mrb[0].mxu0 %v6332
    %v6436 = vpop.f32.mrb[0].mxu0
    %v6437 = vadd.f32 0.0, %v6436
    %v6438 = vpop.f32.mrb[0].mxu0
    %6439 = vmatprep.mubr.f32.mxu0 0.0
    %6440 = vmatmul.mubr.f32.gmra.mrb[0].mxu0 %v6335
    %v6441 = vpop.f32.mrb[0].mxu0
    %v6442 = vadd.f32 0.0, %v6441
    %v6443 = vpop.f32.mrb[0].mxu0
    %6444 = vmatprep.mubr.f32.mxu0 0.0
    %6445 = vmatmul.mubr.f32.gmra.mrb[0].mxu0 %v6338
    %v6446 = vpop.f32.mrb[0].mxu0
    %v6447 = vadd.f32 0.0, %v6446
    %v6448 = vpop.f32.mrb[0].mxu0
    %6449 = vdwg.mxu0
    %v6451 = vsel %vm361, %v6407, 0
    %v6454 = vsel %vm361, %v6412, 0
    %v6457 = vsel %vm361, %v6417, 0
    %v6460 = vsel %vm361, %v6422, 0
    %v6463 = vsel %vm361, %v6427, 0
    %v6466 = vsel %vm361, %v6432, 0
    %v6469 = vsel %vm361, %v6437, 0
    %v6472 = vsel %vm361, %v6442, 0
    %v6475 = vsel %vm361, %v6447, 0
    %6477 = vmatprep.subr.mxu0 0.0
    %6478 = vmatpush1.msra.mxu0 %v38
    %6479 = vmatprep.subr.mxu0 0.0
    %6480 = vmatpush1.msra.mxu0 0.0
    %6481 = vmatprep.subr.mxu0 0.0
    %6482 = vmatpush1.msra.mxu0 0.0
    %6483 = vmatprep.subr.mxu0 0.0
    %6484 = vmatpush1.msra.mxu0 0.0
    %6485 = vmatprep.subr.mxu0 0.0
    %6486 = vmatpush1.msra.mxu0 0.0
    %6487 = vmatprep.subr.mxu0 0.0
    %6488 = vmatpush1.msra.mxu0 0.0
    %6489 = vmatprep.subr.mxu0 0.0
    %6490 = vmatpush1.msra.mxu0 0.0
    %6491 = vmatprep.subr.mxu0 0.0
    %6492 = vmatpush1.msra.mxu0 0.0
    %6493 = vmatprep.subr.mxu0 0.0
    %6494 = vmatpush1.msra.mxu0 0.0
    %6495 = vmatprep.subr.mxu0 0.0
    %6496 = vmatpush1.msra.mxu0 0.0
    %6497 = vmatprep.subr.mxu0 0.0
    %6498 = vmatpush1.msra.mxu0 0.0
    %6499 = vmatprep.subr.mxu0 0.0
    %6500 = vmatpush1.msra.mxu0 0.0
    %6501 = vmatprep.subr.mxu0 0.0
    %6502 = vmatpush1.msra.mxu0 0.0
    %6503 = vmatprep.subr.mxu0 0.0
    %6504 = vmatpush1.msra.mxu0 0.0
    %6505 = vmatprep.subr.mxu0 0.0
    %6506 = vmatpush1.msra.mxu0 0.0
    %6507 = vmatprep.subr.mxu0 0.0
    %6508 = vmatpush1.msra.mxu0 0.0
    %6509 = vmatprep.subr.mxu0 0.0
    %6510 = vmatpush1.msra.mxu0 0.0
    %6511 = vmatprep.subr.mxu0 0.0
    %6512 = vmatpush1.msra.mxu0 0.0
    %6513 = vmatprep.subr.mxu0 0.0
    %6514 = vmatpush1.msra.mxu0 0.0
    %6515 = vmatprep.subr.mxu0 0.0
    %6516 = vmatpush1.msra.mxu0 0.0
    %6517 = vmatprep.subr.mxu0 0.0
    %6518 = vmatpush1.msra.mxu0 0.0
    %6519 = vmatprep.subr.mxu0 0.0
    %6520 = vmatpush1.msra.mxu0 0.0
    %6521 = vmatprep.subr.mxu0 0.0
    %6522 = vmatpush1.msra.mxu0 0.0
    %6523 = vmatprep.subr.mxu0 0.0
    %6524 = vmatpush1.msra.mxu0 0.0
    %6525 = vmatprep.subr.mxu0 0.0
    %6526 = vmatpush1.msra.mxu0 0.0
    %6527 = vmatprep.subr.mxu0 0.0
    %6528 = vmatpush1.msra.mxu0 0.0
    %6529 = vmatprep.subr.mxu0 0.0
    %6530 = vmatpush1.msra.mxu0 0.0
    %6531 = vmatprep.subr.mxu0 0.0
    %6532 = vmatpush1.msra.mxu0 0.0
    %6533 = vmatprep.subr.mxu0 0.0
    %6534 = vmatpush1.msra.mxu0 0.0
    %6535 = vmatprep.subr.mxu0 0.0
    %6536 = vmatpush1.msra.mxu0 0.0
    %6537 = vmatprep.subr.mxu0 0.0
    %6538 = vmatpush1.msra.mxu0 0.0
    %6539 = vmatprep.subr.mxu0 0.0
    %6540 = vmatpush1.msra.mxu0 0.0
    %6541 = vmatprep.mubr.f32.mxu0 0.0
    %6542 = vmatmul.mubr.f32.gmra.mrb[0].mxu0 %v6451
    %v6543 = vpop.f32.mrb[0].mxu0
    %v6544 = vadd.f32 0.0, %v6543
    %v6545 = vpop.f32.mrb[0].mxu0
    %6546 = vmatprep.mubr.f32.mxu0 0.0
    %6547 = vmatmul.mubr.f32.gmra.mrb[0].mxu0 %v6454
    %v6548 = vpop.f32.mrb[0].mxu0
    %v6549 = vadd.f32 0.0, %v6548
    %v6550 = vpop.f32.mrb[0].mxu0
    %6551 = vmatprep.mubr.f32.mxu0 0.0
    %6552 = vmatmul.mubr.f32.gmra.mrb[0].mxu0 %v6457
    %v6553 = vpop.f32.mrb[0].mxu0
    %v6554 = vadd.f32 0.0, %v6553
    %v6555 = vpop.f32.mrb[0].mxu0
    %6556 = vmatprep.mubr.f32.mxu0 0.0
    %6557 = vmatmul.mubr.f32.gmra.mrb[0].mxu0 %v6460
    %v6558 = vpop.f32.mrb[0].mxu0
    %v6559 = vadd.f32 0.0, %v6558
    %v6560 = vpop.f32.mrb[0].mxu0
    %6561 = vmatprep.mubr.f32.mxu0 0.0
    %6562 = vmatmul.mubr.f32.gmra.mrb[0].mxu0 %v6463
    %v6563 = vpop.f32.mrb[0].mxu0
    %v6564 = vadd.f32 0.0, %v6563
    %v6565 = vpop.f32.mrb[0].mxu0
    %6566 = vmatprep.mubr.f32.mxu0 0.0
    %6567 = vmatmul.mubr.f32.gmra.mrb[0].mxu0 %v6466
    %v6568 = vpop.f32.mrb[0].mxu0
    %v6569 = vadd.f32 0.0, %v6568
    %v6570 = vpop.f32.mrb[0].mxu0
    %6571 = vmatprep.mubr.f32.mxu0 0.0
    %6572 = vmatmul.mubr.f32.gmra.mrb[0].mxu0 %v6469
    %v6573 = vpop.f32.mrb[0].mxu0
    %v6574 = vadd.f32 0.0, %v6573
    %v6575 = vpop.f32.mrb[0].mxu0
    %6576 = vmatprep.mubr.f32.mxu0 0.0
    %6577 = vmatmul.mubr.f32.gmra.mrb[0].mxu0 %v6472
    %v6578 = vpop.f32.mrb[0].mxu0
    %v6579 = vadd.f32 0.0, %v6578
    %v6580 = vpop.f32.mrb[0].mxu0
    %6581 = vmatprep.mubr.f32.mxu0 0.0
    %6582 = vmatmul.mubr.f32.gmra.mrb[0].mxu0 %v6475
    %v6583 = vpop.f32.mrb[0].mxu0
    %v6584 = vadd.f32 0.0, %v6583
    %v6585 = vpop.f32.mrb[0].mxu0
    %6586 = vdwg.mxu0
    %v6588 = vsel %vm361, %v6009, 0
    %v6591 = vsel %vm361, %v6014, 0
    %v6594 = vsel %vm361, %v6019, 0
    %v6597 = vsel %vm361, %v6024, 0
    %v6600 = vsel %vm361, %v6029, 0
    %v6603 = vsel %vm361, %v6034, 0
    %v6606 = vsel %vm361, %v6039, 0
    %v6609 = vsel %vm361, %v6044, 0
    %v6612 = vsel %vm361, %v6049, 0
    %6614 = vmatprep.subr.mxu0 0.0
    %6615 = vmatpush1.msra.mxu0 %v37
    %6616 = vmatprep.subr.mxu0 0.0
    %6617 = vmatpush1.msra.mxu0 0.0
    %6618 = vmatprep.subr.mxu0 0.0
    %6619 = vmatpush1.msra.mxu0 0.0
    %6620 = vmatprep.subr.mxu0 0.0
    %6621 = vmatpush1.msra.mxu0 0.0
    %6622 = vmatprep.subr.mxu0 0.0
    %6623 = vmatpush1.msra.mxu0 0.0
    %6624 = vmatprep.subr.mxu0 0.0
    %6625 = vmatpush1.msra.mxu0 0.0
    %6626 = vmatprep.subr.mxu0 0.0
    %6627 = vmatpush1.msra.mxu0 0.0
    %6628 = vmatprep.subr.mxu0 0.0
    %6629 = vmatpush1.msra.mxu0 0.0
    %6630 = vmatprep.subr.mxu0 0.0
    %6631 = vmatpush1.msra.mxu0 0.0
    %6632 = vmatprep.subr.mxu0 0.0
    %6633 = vmatpush1.msra.mxu0 0.0
    %6634 = vmatprep.subr.mxu0 0.0
    %6635 = vmatpush1.msra.mxu0 0.0
    %6636 = vmatprep.subr.mxu0 0.0
    %6637 = vmatpush1.msra.mxu0 0.0
    %6638 = vmatprep.subr.mxu0 0.0
    %6639 = vmatpush1.msra.mxu0 0.0
    %6640 = vmatprep.subr.mxu0 0.0
    %6641 = vmatpush1.msra.mxu0 0.0
    %6642 = vmatprep.subr.mxu0 0.0
    %6643 = vmatpush1.msra.mxu0 0.0
    %6644 = vmatprep.subr.mxu0 0.0
    %6645 = vmatpush1.msra.mxu0 0.0
    %6646 = vmatprep.subr.mxu0 0.0
    %6647 = vmatpush1.msra.mxu0 0.0
    %6648 = vmatprep.subr.mxu0 0.0
    %6649 = vmatpush1.msra.mxu0 0.0
    %6650 = vmatprep.subr.mxu0 0.0
    %6651 = vmatpush1.msra.mxu0 0.0
    %6652 = vmatprep.subr.mxu0 0.0
    %6653 = vmatpush1.msra.mxu0 0.0
    %6654 = vmatprep.subr.mxu0 0.0
    %6655 = vmatpush1.msra.mxu0 0.0
    %6656 = vmatprep.subr.mxu0 0.0
    %6657 = vmatpush1.msra.mxu0 0.0
    %6658 = vmatprep.subr.mxu0 0.0
    %6659 = vmatpush1.msra.mxu0 0.0
    %6660 = vmatprep.subr.mxu0 0.0
    %6661 = vmatpush1.msra.mxu0 0.0
    %6662 = vmatprep.subr.mxu0 0.0
    %6663 = vmatpush1.msra.mxu0 0.0
    %6664 = vmatprep.subr.mxu0 0.0
    %6665 = vmatpush1.msra.mxu0 0.0
    %6666 = vmatprep.subr.mxu0 0.0
    %6667 = vmatpush1.msra.mxu0 0.0
    %6668 = vmatprep.subr.mxu0 0.0
    %6669 = vmatpush1.msra.mxu0 0.0
    %6670 = vmatprep.subr.mxu0 0.0
    %6671 = vmatpush1.msra.mxu0 0.0
    %6672 = vmatprep.subr.mxu0 0.0
    %6673 = vmatpush1.msra.mxu0 0.0
    %6674 = vmatprep.subr.mxu0 0.0
    %6675 = vmatpush1.msra.mxu0 0.0
    %6676 = vmatprep.subr.mxu0 0.0
    %6677 = vmatpush1.msra.mxu0 0.0
    %6678 = vmatprep.mubr.f32.mxu0 0.0
    %6679 = vmatmul.mubr.f32.gmra.mrb[0].mxu0 %v6588
    %v6680 = vpop.f32.mrb[0].mxu0
    %v6681 = vadd.f32 %v6544, %v6680
    %v6682 = vpop.f32.mrb[0].mxu0
    %6683 = vmatprep.mubr.f32.mxu0 0.0
    %6684 = vmatmul.mubr.f32.gmra.mrb[0].mxu0 %v6591
    %v6685 = vpop.f32.mrb[0].mxu0
    %v6686 = vadd.f32 %v6549, %v6685
    %v6687 = vpop.f32.mrb[0].mxu0
    %6688 = vmatprep.mubr.f32.mxu0 0.0
    %6689 = vmatmul.mubr.f32.gmra.mrb[0].mxu0 %v6594
    %v6690 = vpop.f32.mrb[0].mxu0
    %v6691 = vadd.f32 %v6554, %v6690
    %v6692 = vpop.f32.mrb[0].mxu0
    %6693 = vmatprep.mubr.f32.mxu0 0.0
    %6694 = vmatmul.mubr.f32.gmra.mrb[0].mxu0 %v6597
    %v6695 = vpop.f32.mrb[0].mxu0
    %v6696 = vadd.f32 %v6559, %v6695
    %v6697 = vpop.f32.mrb[0].mxu0
    %6698 = vmatprep.mubr.f32.mxu0 0.0
    %6699 = vmatmul.mubr.f32.gmra.mrb[0].mxu0 %v6600
    %v6700 = vpop.f32.mrb[0].mxu0
    %v6701 = vadd.f32 %v6564, %v6700
    %v6702 = vpop.f32.mrb[0].mxu0
    %6703 = vmatprep.mubr.f32.mxu0 0.0
    %6704 = vmatmul.mubr.f32.gmra.mrb[0].mxu0 %v6603
    %v6705 = vpop.f32.mrb[0].mxu0
    %v6706 = vadd.f32 %v6569, %v6705
    %v6707 = vpop.f32.mrb[0].mxu0
    %6708 = vmatprep.mubr.f32.mxu0 0.0
    %6709 = vmatmul.mubr.f32.gmra.mrb[0].mxu0 %v6606
    %v6710 = vpop.f32.mrb[0].mxu0
    %v6711 = vadd.f32 %v6574, %v6710
    %v6712 = vpop.f32.mrb[0].mxu0
    %6713 = vmatprep.mubr.f32.mxu0 0.0
    %6714 = vmatmul.mubr.f32.gmra.mrb[0].mxu0 %v6609
    %v6715 = vpop.f32.mrb[0].mxu0
    %v6716 = vadd.f32 %v6579, %v6715
    %v6717 = vpop.f32.mrb[0].mxu0
    %6718 = vmatprep.mubr.f32.mxu0 0.0
    %6719 = vmatmul.mubr.f32.gmra.mrb[0].mxu0 %v6612
    %v6720 = vpop.f32.mrb[0].mxu0
    %v6721 = vadd.f32 %v6584, %v6720
    %v6722 = vpop.f32.mrb[0].mxu0
    %6723 = vdwg.mxu0
    %6724 = vrot.lane.b32.xlu0 %v5544, 112
    %v6725 = vpop.permute.xlu0 %6724
    %6726 = vrot.lane.b32.xlu0 %v5549, 112
    %v6727 = vpop.permute.xlu0 %6726
    %6728 = vrot.lane.b32.xlu0 %v5554, 112
    %v6729 = vpop.permute.xlu0 %6728
    %6730 = vrot.lane.b32.xlu0 %v5559, 112
    %v6731 = vpop.permute.xlu0 %6730
    %6732 = vrot.lane.b32.xlu0 %v5564, 112
    %v6733 = vpop.permute.xlu0 %6732
    %6734 = vrot.lane.b32.xlu0 %v5569, 112
    %v6735 = vpop.permute.xlu0 %6734
    %6736 = vrot.lane.b32.xlu0 %v5574, 112
    %v6737 = vpop.permute.xlu0 %6736
    %6738 = vrot.lane.b32.xlu0 %v5579, 112
    %v6739 = vpop.permute.xlu0 %6738
    %6740 = vrot.lane.b32.xlu0 %v5584, 112
    %v6741 = vpop.permute.xlu0 %6740
    %6742 = vrot.lane.b32.xlu0 %v5661, 112
    %v6743 = vpop.permute.xlu0 %6742
    %v6744 = vsel %vm361, %v6725, 0
    %v6746 = vsel %vm361, %v6727, 0
    %v6748 = vsel %vm361, %v6729, 0
    %v6750 = vsel %vm361, %v6731, 0
    %v6752 = vsel %vm361, %v6733, 0
    %v6754 = vsel %vm361, %v6735, 0
    %v6756 = vsel %vm361, %v6737, 0
    %v6758 = vsel %vm361, %v6739, 0
    %v6760 = vsel %vm361, %v6741, 0
    %v6762 = vsel %vm361, %v6743, 0
    %6764 = vmatprep.subr.mxu0 0.0
    %6765 = vmatpush1.xpose.msra.mxu0 %v6762
    %6766 = vmatprep.subr.mxu0 0.0
    %6767 = vmatpush1.xpose.msra.mxu0 0.0
    %6768 = vmatprep.subr.mxu0 0.0
    %6769 = vmatpush1.xpose.msra.mxu0 0.0
    %6770 = vmatprep.subr.mxu0 0.0
    %6771 = vmatpush1.xpose.msra.mxu0 0.0
    %6772 = vmatprep.subr.mxu0 0.0
    %6773 = vmatpush1.xpose.msra.mxu0 0.0
    %6774 = vmatprep.subr.mxu0 0.0
    %6775 = vmatpush1.xpose.msra.mxu0 0.0
    %6776 = vmatprep.subr.mxu0 0.0
    %6777 = vmatpush1.xpose.msra.mxu0 0.0
    %6778 = vmatprep.subr.mxu0 0.0
    %6779 = vmatpush1.xpose.msra.mxu0 0.0
    %6780 = vmatprep.subr.mxu0 0.0
    %6781 = vmatpush1.xpose.msra.mxu0 0.0
    %6782 = vmatprep.subr.mxu0 0.0
    %6783 = vmatpush1.xpose.msra.mxu0 0.0
    %6784 = vmatprep.subr.mxu0 0.0
    %6785 = vmatpush1.xpose.msra.mxu0 0.0
    %6786 = vmatprep.subr.mxu0 0.0
    %6787 = vmatpush1.xpose.msra.mxu0 0.0
    %6788 = vmatprep.subr.mxu0 0.0
    %6789 = vmatpush1.xpose.msra.mxu0 0.0
    %6790 = vmatprep.subr.mxu0 0.0
    %6791 = vmatpush1.xpose.msra.mxu0 0.0
    %6792 = vmatprep.subr.mxu0 0.0
    %6793 = vmatpush1.xpose.msra.mxu0 0.0
    %6794 = vmatprep.subr.mxu0 0.0
    %6795 = vmatpush1.xpose.msra.mxu0 0.0
    %6796 = vmatprep.subr.mxu0 0.0
    %6797 = vmatpush1.xpose.msra.mxu0 0.0
    %6798 = vmatprep.subr.mxu0 0.0
    %6799 = vmatpush1.xpose.msra.mxu0 0.0
    %6800 = vmatprep.subr.mxu0 0.0
    %6801 = vmatpush1.xpose.msra.mxu0 0.0
    %6802 = vmatprep.subr.mxu0 0.0
    %6803 = vmatpush1.xpose.msra.mxu0 0.0
    %6804 = vmatprep.subr.mxu0 0.0
    %6805 = vmatpush1.xpose.msra.mxu0 0.0
    %6806 = vmatprep.subr.mxu0 0.0
    %6807 = vmatpush1.xpose.msra.mxu0 0.0
    %6808 = vmatprep.subr.mxu0 0.0
    %6809 = vmatpush1.xpose.msra.mxu0 0.0
    %6810 = vmatprep.subr.mxu0 0.0
    %6811 = vmatpush1.xpose.msra.mxu0 0.0
    %6812 = vmatprep.subr.mxu0 0.0
    %6813 = vmatpush1.xpose.msra.mxu0 0.0
    %6814 = vmatprep.subr.mxu0 0.0
    %6815 = vmatpush1.xpose.msra.mxu0 0.0
    %6816 = vmatprep.subr.mxu0 0.0
    %6817 = vmatpush1.xpose.msra.mxu0 0.0
    %6818 = vmatprep.subr.mxu0 0.0
    %6819 = vmatpush1.xpose.msra.mxu0 0.0
    %6820 = vmatprep.subr.mxu0 0.0
    %6821 = vmatpush1.xpose.msra.mxu0 0.0
    %6822 = vmatprep.subr.mxu0 0.0
    %6823 = vmatpush1.xpose.msra.mxu0 0.0
    %6824 = vmatprep.subr.mxu0 0.0
    %6825 = vmatpush1.xpose.msra.mxu0 0.0
    %6826 = vmatprep.subr.mxu0 0.0
    %6827 = vmatpush1.xpose.msra.mxu0 0.0
    %6828 = vmatprep.mubr.f32.mxu0 0.0
    %6829 = vmatmul.mubr.f32.gmra.mrb[0].mxu0 %v6744
    %v6830 = vpop.f32.mrb[0].mxu0
    %v6831 = vadd.f32 0.0, %v6830
    %v6832 = vpop.f32.mrb[0].mxu0
    %6833 = vmatprep.mubr.f32.mxu0 0.0
    %6834 = vmatmul.mubr.f32.gmra.mrb[0].mxu0 %v6746
    %v6835 = vpop.f32.mrb[0].mxu0
    %v6836 = vadd.f32 0.0, %v6835
    %v6837 = vpop.f32.mrb[0].mxu0
    %6838 = vmatprep.mubr.f32.mxu0 0.0
    %6839 = vmatmul.mubr.f32.gmra.mrb[0].mxu0 %v6748
    %v6840 = vpop.f32.mrb[0].mxu0
    %v6841 = vadd.f32 0.0, %v6840
    %v6842 = vpop.f32.mrb[0].mxu0
    %6843 = vmatprep.mubr.f32.mxu0 0.0
    %6844 = vmatmul.mubr.f32.gmra.mrb[0].mxu0 %v6750
    %v6845 = vpop.f32.mrb[0].mxu0
    %v6846 = vadd.f32 0.0, %v6845
    %v6847 = vpop.f32.mrb[0].mxu0
    %6848 = vmatprep.mubr.f32.mxu0 0.0
    %6849 = vmatmul.mubr.f32.gmra.mrb[0].mxu0 %v6752
    %v6850 = vpop.f32.mrb[0].mxu0
    %v6851 = vadd.f32 0.0, %v6850
    %v6852 = vpop.f32.mrb[0].mxu0
    %6853 = vmatprep.mubr.f32.mxu0 0.0
    %6854 = vmatmul.mubr.f32.gmra.mrb[0].mxu0 %v6754
    %v6855 = vpop.f32.mrb[0].mxu0
    %v6856 = vadd.f32 0.0, %v6855
    %v6857 = vpop.f32.mrb[0].mxu0
    %6858 = vmatprep.mubr.f32.mxu0 0.0
    %6859 = vmatmul.mubr.f32.gmra.mrb[0].mxu0 %v6756
    %v6860 = vpop.f32.mrb[0].mxu0
    %v6861 = vadd.f32 0.0, %v6860
    %v6862 = vpop.f32.mrb[0].mxu0
    %6863 = vmatprep.mubr.f32.mxu0 0.0
    %6864 = vmatmul.mubr.f32.gmra.mrb[0].mxu0 %v6758
    %v6865 = vpop.f32.mrb[0].mxu0
    %v6866 = vadd.f32 0.0, %v6865
    %v6867 = vpop.f32.mrb[0].mxu0
    %6868 = vmatprep.mubr.f32.mxu0 0.0
    %6869 = vmatmul.mubr.f32.gmra.mrb[0].mxu0 %v6760
    %v6870 = vpop.f32.mrb[0].mxu0
    %v6871 = vadd.f32 0.0, %v6870
    %v6872 = vpop.f32.mrb[0].mxu0
    %6873 = vdwg.mxu0
    %v6874 = vmul.f32 %v6831, 0.35355338
    %v6875 = vmul.f32 %v6836, 0.35355338
    %v6876 = vmul.f32 %v6841, 0.35355338
    %v6877 = vmul.f32 %v6846, 0.35355338
    %v6878 = vmul.f32 %v6851, 0.35355338
    %v6879 = vmul.f32 %v6856, 0.35355338
    %v6880 = vmul.f32 %v6861, 0.35355338
    %v6881 = vmul.f32 %v6866, 0.35355338
    %v6882 = vmul.f32 %v6871, 0.35355338
    %v6883 = vsel %vm361, %v6874, -inf
    %6884 = vmax.xlane.f32.xlu0 %v6883
    %v6885 = vpop.xlane.xlu0 %6884
    %v6886 = vsel %vm361, %v6875, -inf
    %6887 = vmax.xlane.f32.xlu0 %v6886
    %v6888 = vpop.xlane.xlu0 %6887
    %v6889 = vsel %vm361, %v6876, -inf
    %6890 = vmax.xlane.f32.xlu0 %v6889
    %v6891 = vpop.xlane.xlu0 %6890
    %v6892 = vsel %vm361, %v6877, -inf
    %6893 = vmax.xlane.f32.xlu0 %v6892
    %v6894 = vpop.xlane.xlu0 %6893
    %v6895 = vsel %vm361, %v6878, -inf
    %6896 = vmax.xlane.f32.xlu0 %v6895
    %v6897 = vpop.xlane.xlu0 %6896
    %v6898 = vsel %vm361, %v6879, -inf
    %6899 = vmax.xlane.f32.xlu0 %v6898
    %v6900 = vpop.xlane.xlu0 %6899
    %v6901 = vsel %vm361, %v6880, -inf
    %6902 = vmax.xlane.f32.xlu0 %v6901
    %v6903 = vpop.xlane.xlu0 %6902
    %v6904 = vsel %vm361, %v6881, -inf
    %6905 = vmax.xlane.f32.xlu0 %v6904
    %v6906 = vpop.xlane.xlu0 %6905
    %v6907 = vsel %vm361, %v6882, -inf
    %6908 = vmax.xlane.f32.xlu0 %v6907
    %v6909 = vpop.xlane.xlu0 %6908
    %v6910 = vsub.f32 %v6874, %v6885
    %v6911 = vsub.f32 %v6875, %v6888
    %v6912 = vsub.f32 %v6876, %v6891
    %v6913 = vsub.f32 %v6877, %v6894
    %v6914 = vsub.f32 %v6878, %v6897
    %v6915 = vsub.f32 %v6879, %v6900
    %v6916 = vsub.f32 %v6880, %v6903
    %v6917 = vsub.f32 %v6881, %v6906
    %v6918 = vsub.f32 %v6882, %v6909
    %v6919 = vmul.f32 %v6910, 1.442695
    %v6920 = vpow.pop %v6919
    %v6921 = vmul.f32 %v6911, 1.442695
    %v6922 = vpow.pop %v6921
    %v6923 = vmul.f32 %v6912, 1.442695
    %v6924 = vpow.pop %v6923
    %v6925 = vmul.f32 %v6913, 1.442695
    %v6926 = vpow.pop %v6925
    %v6927 = vmul.f32 %v6914, 1.442695
    %v6928 = vpow.pop %v6927
    %v6929 = vmul.f32 %v6915, 1.442695
    %v6930 = vpow.pop %v6929
    %v6931 = vmul.f32 %v6916, 1.442695
    %v6932 = vpow.pop %v6931
    %v6933 = vmul.f32 %v6917, 1.442695
    %v6934 = vpow.pop %v6933
    %v6935 = vmul.f32 %v6918, 1.442695
    %v6936 = vpow.pop %v6935
    %v6937 = vsel %vm361, %v6920, 0.0
    %6938 = vadd.xlane.f32.xlu0 %v6937
    %v6939 = vpop.xlane.xlu0 %6938
    %v6940 = vsel %vm361, %v6922, 0.0
    %6941 = vadd.xlane.f32.xlu0 %v6940
    %v6942 = vpop.xlane.xlu0 %6941
    %v6943 = vsel %vm361, %v6924, 0.0
    %6944 = vadd.xlane.f32.xlu0 %v6943
    %v6945 = vpop.xlane.xlu0 %6944
    %v6946 = vsel %vm361, %v6926, 0.0
    %6947 = vadd.xlane.f32.xlu0 %v6946
    %v6948 = vpop.xlane.xlu0 %6947
    %v6949 = vsel %vm361, %v6928, 0.0
    %6950 = vadd.xlane.f32.xlu0 %v6949
    %v6951 = vpop.xlane.xlu0 %6950
    %v6952 = vsel %vm361, %v6930, 0.0
    %6953 = vadd.xlane.f32.xlu0 %v6952
    %v6954 = vpop.xlane.xlu0 %6953
    %v6955 = vsel %vm361, %v6932, 0.0
    %6956 = vadd.xlane.f32.xlu0 %v6955
    %v6957 = vpop.xlane.xlu0 %6956
    %v6958 = vsel %vm361, %v6934, 0.0
    %6959 = vadd.xlane.f32.xlu0 %v6958
    %v6960 = vpop.xlane.xlu0 %6959
    %v6961 = vsel %vm361, %v6936, 0.0
    %6962 = vadd.xlane.f32.xlu0 %v6961
    %v6963 = vpop.xlane.xlu0 %6962
    %v6964 = vrcp.pop %v6939
    %v6965 = vrcp.pop %v6942
    %v6966 = vrcp.pop %v6945
    %v6967 = vrcp.pop %v6948
    %v6968 = vrcp.pop %v6951
    %v6969 = vrcp.pop %v6954
    %v6970 = vrcp.pop %v6957
    %v6971 = vrcp.pop %v6960
    %v6972 = vrcp.pop %v6963
    %v6973 = vmul.f32 %v6920, %v6964
    %v6974 = vmul.f32 %v6922, %v6965
    %v6975 = vmul.f32 %v6924, %v6966
    %v6976 = vmul.f32 %v6926, %v6967
    %v6977 = vmul.f32 %v6928, %v6968
    %v6978 = vmul.f32 %v6930, %v6969
    %v6979 = vmul.f32 %v6932, %v6970
    %v6980 = vmul.f32 %v6934, %v6971
    %v6981 = vmul.f32 %v6936, %v6972
    %6982 = vrot.lane.b32.xlu0 %v5661, 80
    %v6983 = vpop.permute.xlu0 %6982
    %v6986 = vsel %vm361, %v6973, 0
    %v6989 = vsel %vm361, %v6974, 0
    %v6992 = vsel %vm361, %v6975, 0
    %v6995 = vsel %vm361, %v6976, 0
    %v6998 = vsel %vm361, %v6977, 0
    %v7001 = vsel %vm361, %v6978, 0
    %v7004 = vsel %vm361, %v6979, 0
    %v7007 = vsel %vm361, %v6980, 0
    %v7010 = vsel %vm361, %v6981, 0
    %7012 = vmatprep.subr.mxu0 0.0
    %7013 = vmatpush1.msra.mxu0 %v6983
    %7014 = vmatprep.subr.mxu0 0.0
    %7015 = vmatpush1.msra.mxu0 0.0
    %7016 = vmatprep.subr.mxu0 0.0
    %7017 = vmatpush1.msra.mxu0 0.0
    %7018 = vmatprep.subr.mxu0 0.0
    %7019 = vmatpush1.msra.mxu0 0.0
    %7020 = vmatprep.subr.mxu0 0.0
    %7021 = vmatpush1.msra.mxu0 0.0
    %7022 = vmatprep.subr.mxu0 0.0
    %7023 = vmatpush1.msra.mxu0 0.0
    %7024 = vmatprep.subr.mxu0 0.0
    %7025 = vmatpush1.msra.mxu0 0.0
    %7026 = vmatprep.subr.mxu0 0.0
    %7027 = vmatpush1.msra.mxu0 0.0
    %7028 = vmatprep.subr.mxu0 0.0
    %7029 = vmatpush1.msra.mxu0 0.0
    %7030 = vmatprep.subr.mxu0 0.0
    %7031 = vmatpush1.msra.mxu0 0.0
    %7032 = vmatprep.subr.mxu0 0.0
    %7033 = vmatpush1.msra.mxu0 0.0
    %7034 = vmatprep.subr.mxu0 0.0
    %7035 = vmatpush1.msra.mxu0 0.0
    %7036 = vmatprep.subr.mxu0 0.0
    %7037 = vmatpush1.msra.mxu0 0.0
    %7038 = vmatprep.subr.mxu0 0.0
    %7039 = vmatpush1.msra.mxu0 0.0
    %7040 = vmatprep.subr.mxu0 0.0
    %7041 = vmatpush1.msra.mxu0 0.0
    %7042 = vmatprep.subr.mxu0 0.0
    %7043 = vmatpush1.msra.mxu0 0.0
    %7044 = vmatprep.subr.mxu0 0.0
    %7045 = vmatpush1.msra.mxu0 0.0
    %7046 = vmatprep.subr.mxu0 0.0
    %7047 = vmatpush1.msra.mxu0 0.0
    %7048 = vmatprep.subr.mxu0 0.0
    %7049 = vmatpush1.msra.mxu0 0.0
    %7050 = vmatprep.subr.mxu0 0.0
    %7051 = vmatpush1.msra.mxu0 0.0
    %7052 = vmatprep.subr.mxu0 0.0
    %7053 = vmatpush1.msra.mxu0 0.0
    %7054 = vmatprep.subr.mxu0 0.0
    %7055 = vmatpush1.msra.mxu0 0.0
    %7056 = vmatprep.subr.mxu0 0.0
    %7057 = vmatpush1.msra.mxu0 0.0
    %7058 = vmatprep.subr.mxu0 0.0
    %7059 = vmatpush1.msra.mxu0 0.0
    %7060 = vmatprep.subr.mxu0 0.0
    %7061 = vmatpush1.msra.mxu0 0.0
    %7062 = vmatprep.subr.mxu0 0.0
    %7063 = vmatpush1.msra.mxu0 0.0
    %7064 = vmatprep.subr.mxu0 0.0
    %7065 = vmatpush1.msra.mxu0 0.0
    %7066 = vmatprep.subr.mxu0 0.0
    %7067 = vmatpush1.msra.mxu0 0.0
    %7068 = vmatprep.subr.mxu0 0.0
    %7069 = vmatpush1.msra.mxu0 0.0
    %7070 = vmatprep.subr.mxu0 0.0
    %7071 = vmatpush1.msra.mxu0 0.0
    %7072 = vmatprep.subr.mxu0 0.0
    %7073 = vmatpush1.msra.mxu0 0.0
    %7074 = vmatprep.subr.mxu0 0.0
    %7075 = vmatpush1.msra.mxu0 0.0
    %7076 = vmatprep.mubr.f32.mxu0 0.0
    %7077 = vmatmul.mubr.f32.gmra.mrb[0].mxu0 %v6986
    %v7078 = vpop.f32.mrb[0].mxu0
    %v7079 = vadd.f32 0.0, %v7078
    %v7080 = vpop.f32.mrb[0].mxu0
    %7081 = vmatprep.mubr.f32.mxu0 0.0
    %7082 = vmatmul.mubr.f32.gmra.mrb[0].mxu0 %v6989
    %v7083 = vpop.f32.mrb[0].mxu0
    %v7084 = vadd.f32 0.0, %v7083
    %v7085 = vpop.f32.mrb[0].mxu0
    %7086 = vmatprep.mubr.f32.mxu0 0.0
    %7087 = vmatmul.mubr.f32.gmra.mrb[0].mxu0 %v6992
    %v7088 = vpop.f32.mrb[0].mxu0
    %v7089 = vadd.f32 0.0, %v7088
    %v7090 = vpop.f32.mrb[0].mxu0
    %7091 = vmatprep.mubr.f32.mxu0 0.0
    %7092 = vmatmul.mubr.f32.gmra.mrb[0].mxu0 %v6995
    %v7093 = vpop.f32.mrb[0].mxu0
    %v7094 = vadd.f32 0.0, %v7093
    %v7095 = vpop.f32.mrb[0].mxu0
    %7096 = vmatprep.mubr.f32.mxu0 0.0
    %7097 = vmatmul.mubr.f32.gmra.mrb[0].mxu0 %v6998
    %v7098 = vpop.f32.mrb[0].mxu0
    %v7099 = vadd.f32 0.0, %v7098
    %v7100 = vpop.f32.mrb[0].mxu0
    %7101 = vmatprep.mubr.f32.mxu0 0.0
    %7102 = vmatmul.mubr.f32.gmra.mrb[0].mxu0 %v7001
    %v7103 = vpop.f32.mrb[0].mxu0
    %v7104 = vadd.f32 0.0, %v7103
    %v7105 = vpop.f32.mrb[0].mxu0
    %7106 = vmatprep.mubr.f32.mxu0 0.0
    %7107 = vmatmul.mubr.f32.gmra.mrb[0].mxu0 %v7004
    %v7108 = vpop.f32.mrb[0].mxu0
    %v7109 = vadd.f32 0.0, %v7108
    %v7110 = vpop.f32.mrb[0].mxu0
    %7111 = vmatprep.mubr.f32.mxu0 0.0
    %7112 = vmatmul.mubr.f32.gmra.mrb[0].mxu0 %v7007
    %v7113 = vpop.f32.mrb[0].mxu0
    %v7114 = vadd.f32 0.0, %v7113
    %v7115 = vpop.f32.mrb[0].mxu0
    %7116 = vmatprep.mubr.f32.mxu0 0.0
    %7117 = vmatmul.mubr.f32.gmra.mrb[0].mxu0 %v7010
    %v7118 = vpop.f32.mrb[0].mxu0
    %v7119 = vadd.f32 0.0, %v7118
    %v7120 = vpop.f32.mrb[0].mxu0
    %7121 = vdwg.mxu0
    %v7123 = vsel %vm361, %v7079, 0
    %v7126 = vsel %vm361, %v7084, 0
    %v7129 = vsel %vm361, %v7089, 0
    %v7132 = vsel %vm361, %v7094, 0
    %v7135 = vsel %vm361, %v7099, 0
    %v7138 = vsel %vm361, %v7104, 0
    %v7141 = vsel %vm361, %v7109, 0
    %v7144 = vsel %vm361, %v7114, 0
    %v7147 = vsel %vm361, %v7119, 0
    %7149 = vmatprep.subr.mxu0 0.0
    %7150 = vmatpush1.msra.mxu0 %v39
    %7151 = vmatprep.subr.mxu0 0.0
    %7152 = vmatpush1.msra.mxu0 0.0
    %7153 = vmatprep.subr.mxu0 0.0
    %7154 = vmatpush1.msra.mxu0 0.0
    %7155 = vmatprep.subr.mxu0 0.0
    %7156 = vmatpush1.msra.mxu0 0.0
    %7157 = vmatprep.subr.mxu0 0.0
    %7158 = vmatpush1.msra.mxu0 0.0
    %7159 = vmatprep.subr.mxu0 0.0
    %7160 = vmatpush1.msra.mxu0 0.0
    %7161 = vmatprep.subr.mxu0 0.0
    %7162 = vmatpush1.msra.mxu0 0.0
    %7163 = vmatprep.subr.mxu0 0.0
    %7164 = vmatpush1.msra.mxu0 0.0
    %7165 = vmatprep.subr.mxu0 0.0
    %7166 = vmatpush1.msra.mxu0 0.0
    %7167 = vmatprep.subr.mxu0 0.0
    %7168 = vmatpush1.msra.mxu0 0.0
    %7169 = vmatprep.subr.mxu0 0.0
    %7170 = vmatpush1.msra.mxu0 0.0
    %7171 = vmatprep.subr.mxu0 0.0
    %7172 = vmatpush1.msra.mxu0 0.0
    %7173 = vmatprep.subr.mxu0 0.0
    %7174 = vmatpush1.msra.mxu0 0.0
    %7175 = vmatprep.subr.mxu0 0.0
    %7176 = vmatpush1.msra.mxu0 0.0
    %7177 = vmatprep.subr.mxu0 0.0
    %7178 = vmatpush1.msra.mxu0 0.0
    %7179 = vmatprep.subr.mxu0 0.0
    %7180 = vmatpush1.msra.mxu0 0.0
    %7181 = vmatprep.subr.mxu0 0.0
    %7182 = vmatpush1.msra.mxu0 0.0
    %7183 = vmatprep.subr.mxu0 0.0
    %7184 = vmatpush1.msra.mxu0 0.0
    %7185 = vmatprep.subr.mxu0 0.0
    %7186 = vmatpush1.msra.mxu0 0.0
    %7187 = vmatprep.subr.mxu0 0.0
    %7188 = vmatpush1.msra.mxu0 0.0
    %7189 = vmatprep.subr.mxu0 0.0
    %7190 = vmatpush1.msra.mxu0 0.0
    %7191 = vmatprep.subr.mxu0 0.0
    %7192 = vmatpush1.msra.mxu0 0.0
    %7193 = vmatprep.subr.mxu0 0.0
    %7194 = vmatpush1.msra.mxu0 0.0
    %7195 = vmatprep.subr.mxu0 0.0
    %7196 = vmatpush1.msra.mxu0 0.0
    %7197 = vmatprep.subr.mxu0 0.0
    %7198 = vmatpush1.msra.mxu0 0.0
    %7199 = vmatprep.subr.mxu0 0.0
    %7200 = vmatpush1.msra.mxu0 0.0
    %7201 = vmatprep.subr.mxu0 0.0
    %7202 = vmatpush1.msra.mxu0 0.0
    %7203 = vmatprep.subr.mxu0 0.0
    %7204 = vmatpush1.msra.mxu0 0.0
    %7205 = vmatprep.subr.mxu0 0.0
    %7206 = vmatpush1.msra.mxu0 0.0
    %7207 = vmatprep.subr.mxu0 0.0
    %7208 = vmatpush1.msra.mxu0 0.0
    %7209 = vmatprep.subr.mxu0 0.0
    %7210 = vmatpush1.msra.mxu0 0.0
    %7211 = vmatprep.subr.mxu0 0.0
    %7212 = vmatpush1.msra.mxu0 0.0
    %7213 = vmatprep.mubr.f32.mxu0 0.0
    %7214 = vmatmul.mubr.f32.gmra.mrb[0].mxu0 %v7123
    %v7215 = vpop.f32.mrb[0].mxu0
    %v7216 = vadd.f32 0.0, %v7215
    %v7217 = vpop.f32.mrb[0].mxu0
    %7218 = vmatprep.mubr.f32.mxu0 0.0
    %7219 = vmatmul.mubr.f32.gmra.mrb[0].mxu0 %v7126
    %v7220 = vpop.f32.mrb[0].mxu0
    %v7221 = vadd.f32 0.0, %v7220
    %v7222 = vpop.f32.mrb[0].mxu0
    %7223 = vmatprep.mubr.f32.mxu0 0.0
    %7224 = vmatmul.mubr.f32.gmra.mrb[0].mxu0 %v7129
    %v7225 = vpop.f32.mrb[0].mxu0
    %v7226 = vadd.f32 0.0, %v7225
    %v7227 = vpop.f32.mrb[0].mxu0
    %7228 = vmatprep.mubr.f32.mxu0 0.0
    %7229 = vmatmul.mubr.f32.gmra.mrb[0].mxu0 %v7132
    %v7230 = vpop.f32.mrb[0].mxu0
    %v7231 = vadd.f32 0.0, %v7230
    %v7232 = vpop.f32.mrb[0].mxu0
    %7233 = vmatprep.mubr.f32.mxu0 0.0
    %7234 = vmatmul.mubr.f32.gmra.mrb[0].mxu0 %v7135
    %v7235 = vpop.f32.mrb[0].mxu0
    %v7236 = vadd.f32 0.0, %v7235
    %v7237 = vpop.f32.mrb[0].mxu0
    %7238 = vmatprep.mubr.f32.mxu0 0.0
    %7239 = vmatmul.mubr.f32.gmra.mrb[0].mxu0 %v7138
    %v7240 = vpop.f32.mrb[0].mxu0
    %v7241 = vadd.f32 0.0, %v7240
    %v7242 = vpop.f32.mrb[0].mxu0
    %7243 = vmatprep.mubr.f32.mxu0 0.0
    %7244 = vmatmul.mubr.f32.gmra.mrb[0].mxu0 %v7141
    %v7245 = vpop.f32.mrb[0].mxu0
    %v7246 = vadd.f32 0.0, %v7245
    %v7247 = vpop.f32.mrb[0].mxu0
    %7248 = vmatprep.mubr.f32.mxu0 0.0
    %7249 = vmatmul.mubr.f32.gmra.mrb[0].mxu0 %v7144
    %v7250 = vpop.f32.mrb[0].mxu0
    %v7251 = vadd.f32 0.0, %v7250
    %v7252 = vpop.f32.mrb[0].mxu0
    %7253 = vmatprep.mubr.f32.mxu0 0.0
    %7254 = vmatmul.mubr.f32.gmra.mrb[0].mxu0 %v7147
    %v7255 = vpop.f32.mrb[0].mxu0
    %v7256 = vadd.f32 0.0, %v7255
    %v7257 = vpop.f32.mrb[0].mxu0
    %7258 = vdwg.mxu0
    %v7259 = vadd.f32 %v6681, %v7216
    %v7260 = vadd.f32 %v6686, %v7221
    %v7261 = vadd.f32 %v6691, %v7226
    %v7262 = vadd.f32 %v6696, %v7231
    %v7263 = vadd.f32 %v6701, %v7236
    %v7264 = vadd.f32 %v6706, %v7241
    %v7265 = vadd.f32 %v6711, %v7246
    %v7266 = vadd.f32 %v6716, %v7251
    %v7267 = vadd.f32 %v6721, %v7256
    %7268 = vrot.lane.b32.xlu0 %v5544, 104
    %v7269 = vpop.permute.xlu0 %7268
    %7270 = vrot.lane.b32.xlu0 %v5549, 104
    %v7271 = vpop.permute.xlu0 %7270
    %7272 = vrot.lane.b32.xlu0 %v5554, 104
    %v7273 = vpop.permute.xlu0 %7272
    %7274 = vrot.lane.b32.xlu0 %v5559, 104
    %v7275 = vpop.permute.xlu0 %7274
    %7276 = vrot.lane.b32.xlu0 %v5564, 104
    %v7277 = vpop.permute.xlu0 %7276
    %7278 = vrot.lane.b32.xlu0 %v5569, 104
    %v7279 = vpop.permute.xlu0 %7278
    %7280 = vrot.lane.b32.xlu0 %v5574, 104
    %v7281 = vpop.permute.xlu0 %7280
    %7282 = vrot.lane.b32.xlu0 %v5579, 104
    %v7283 = vpop.permute.xlu0 %7282
    %7284 = vrot.lane.b32.xlu0 %v5584, 104
    %v7285 = vpop.permute.xlu0 %7284
    %7286 = vrot.lane.b32.xlu0 %v5661, 104
    %v7287 = vpop.permute.xlu0 %7286
    %v7288 = vsel %vm361, %v7269, 0
    %v7290 = vsel %vm361, %v7271, 0
    %v7292 = vsel %vm361, %v7273, 0
    %v7294 = vsel %vm361, %v7275, 0
    %v7296 = vsel %vm361, %v7277, 0
    %v7298 = vsel %vm361, %v7279, 0
    %v7300 = vsel %vm361, %v7281, 0
    %v7302 = vsel %vm361, %v7283, 0
    %v7304 = vsel %vm361, %v7285, 0
    %v7306 = vsel %vm361, %v7287, 0
    %7308 = vmatprep.subr.mxu0 0.0
    %7309 = vmatpush1.xpose.msra.mxu0 %v7306
    %7310 = vmatprep.subr.mxu0 0.0
    %7311 = vmatpush1.xpose.msra.mxu0 0.0
    %7312 = vmatprep.subr.mxu0 0.0
    %7313 = vmatpush1.xpose.msra.mxu0 0.0
    %7314 = vmatprep.subr.mxu0 0.0
    %7315 = vmatpush1.xpose.msra.mxu0 0.0
    %7316 = vmatprep.subr.mxu0 0.0
    %7317 = vmatpush1.xpose.msra.mxu0 0.0
    %7318 = vmatprep.subr.mxu0 0.0
    %7319 = vmatpush1.xpose.msra.mxu0 0.0
    %7320 = vmatprep.subr.mxu0 0.0
    %7321 = vmatpush1.xpose.msra.mxu0 0.0
    %7322 = vmatprep.subr.mxu0 0.0
    %7323 = vmatpush1.xpose.msra.mxu0 0.0
    %7324 = vmatprep.subr.mxu0 0.0
    %7325 = vmatpush1.xpose.msra.mxu0 0.0
    %7326 = vmatprep.subr.mxu0 0.0
    %7327 = vmatpush1.xpose.msra.mxu0 0.0
    %7328 = vmatprep.subr.mxu0 0.0
    %7329 = vmatpush1.xpose.msra.mxu0 0.0
    %7330 = vmatprep.subr.mxu0 0.0
    %7331 = vmatpush1.xpose.msra.mxu0 0.0
    %7332 = vmatprep.subr.mxu0 0.0
    %7333 = vmatpush1.xpose.msra.mxu0 0.0
    %7334 = vmatprep.subr.mxu0 0.0
    %7335 = vmatpush1.xpose.msra.mxu0 0.0
    %7336 = vmatprep.subr.mxu0 0.0
    %7337 = vmatpush1.xpose.msra.mxu0 0.0
    %7338 = vmatprep.subr.mxu0 0.0
    %7339 = vmatpush1.xpose.msra.mxu0 0.0
    %7340 = vmatprep.subr.mxu0 0.0
    %7341 = vmatpush1.xpose.msra.mxu0 0.0
    %7342 = vmatprep.subr.mxu0 0.0
    %7343 = vmatpush1.xpose.msra.mxu0 0.0
    %7344 = vmatprep.subr.mxu0 0.0
    %7345 = vmatpush1.xpose.msra.mxu0 0.0
    %7346 = vmatprep.subr.mxu0 0.0
    %7347 = vmatpush1.xpose.msra.mxu0 0.0
    %7348 = vmatprep.subr.mxu0 0.0
    %7349 = vmatpush1.xpose.msra.mxu0 0.0
    %7350 = vmatprep.subr.mxu0 0.0
    %7351 = vmatpush1.xpose.msra.mxu0 0.0
    %7352 = vmatprep.subr.mxu0 0.0
    %7353 = vmatpush1.xpose.msra.mxu0 0.0
    %7354 = vmatprep.subr.mxu0 0.0
    %7355 = vmatpush1.xpose.msra.mxu0 0.0
    %7356 = vmatprep.subr.mxu0 0.0
    %7357 = vmatpush1.xpose.msra.mxu0 0.0
    %7358 = vmatprep.subr.mxu0 0.0
    %7359 = vmatpush1.xpose.msra.mxu0 0.0
    %7360 = vmatprep.subr.mxu0 0.0
    %7361 = vmatpush1.xpose.msra.mxu0 0.0
    %7362 = vmatprep.subr.mxu0 0.0
    %7363 = vmatpush1.xpose.msra.mxu0 0.0
    %7364 = vmatprep.subr.mxu0 0.0
    %7365 = vmatpush1.xpose.msra.mxu0 0.0
    %7366 = vmatprep.subr.mxu0 0.0
    %7367 = vmatpush1.xpose.msra.mxu0 0.0
    %7368 = vmatprep.subr.mxu0 0.0
    %7369 = vmatpush1.xpose.msra.mxu0 0.0
    %7370 = vmatprep.subr.mxu0 0.0
    %7371 = vmatpush1.xpose.msra.mxu0 0.0
    %7372 = vmatprep.mubr.f32.mxu0 0.0
    %7373 = vmatmul.mubr.f32.gmra.mrb[0].mxu0 %v7288
    %v7374 = vpop.f32.mrb[0].mxu0
    %v7375 = vadd.f32 0.0, %v7374
    %v7376 = vpop.f32.mrb[0].mxu0
    %7377 = vmatprep.mubr.f32.mxu0 0.0
    %7378 = vmatmul.mubr.f32.gmra.mrb[0].mxu0 %v7290
    %v7379 = vpop.f32.mrb[0].mxu0
    %v7380 = vadd.f32 0.0, %v7379
    %v7381 = vpop.f32.mrb[0].mxu0
    %7382 = vmatprep.mubr.f32.mxu0 0.0
    %7383 = vmatmul.mubr.f32.gmra.mrb[0].mxu0 %v7292
    %v7384 = vpop.f32.mrb[0].mxu0
    %v7385 = vadd.f32 0.0, %v7384
    %v7386 = vpop.f32.mrb[0].mxu0
    %7387 = vmatprep.mubr.f32.mxu0 0.0
    %7388 = vmatmul.mubr.f32.gmra.mrb[0].mxu0 %v7294
    %v7389 = vpop.f32.mrb[0].mxu0
    %v7390 = vadd.f32 0.0, %v7389
    %v7391 = vpop.f32.mrb[0].mxu0
    %7392 = vmatprep.mubr.f32.mxu0 0.0
    %7393 = vmatmul.mubr.f32.gmra.mrb[0].mxu0 %v7296
    %v7394 = vpop.f32.mrb[0].mxu0
    %v7395 = vadd.f32 0.0, %v7394
    %v7396 = vpop.f32.mrb[0].mxu0
    %7397 = vmatprep.mubr.f32.mxu0 0.0
    %7398 = vmatmul.mubr.f32.gmra.mrb[0].mxu0 %v7298
    %v7399 = vpop.f32.mrb[0].mxu0
    %v7400 = vadd.f32 0.0, %v7399
    %v7401 = vpop.f32.mrb[0].mxu0
    %7402 = vmatprep.mubr.f32.mxu0 0.0
    %7403 = vmatmul.mubr.f32.gmra.mrb[0].mxu0 %v7300
    %v7404 = vpop.f32.mrb[0].mxu0
    %v7405 = vadd.f32 0.0, %v7404
    %v7406 = vpop.f32.mrb[0].mxu0
    %7407 = vmatprep.mubr.f32.mxu0 0.0
    %7408 = vmatmul.mubr.f32.gmra.mrb[0].mxu0 %v7302
    %v7409 = vpop.f32.mrb[0].mxu0
    %v7410 = vadd.f32 0.0, %v7409
    %v7411 = vpop.f32.mrb[0].mxu0
    %7412 = vmatprep.mubr.f32.mxu0 0.0
    %7413 = vmatmul.mubr.f32.gmra.mrb[0].mxu0 %v7304
    %v7414 = vpop.f32.mrb[0].mxu0
    %v7415 = vadd.f32 0.0, %v7414
    %v7416 = vpop.f32.mrb[0].mxu0
    %7417 = vdwg.mxu0
    %v7418 = vmul.f32 %v7375, 0.35355338
    %v7419 = vmul.f32 %v7380, 0.35355338
    %v7420 = vmul.f32 %v7385, 0.35355338
    %v7421 = vmul.f32 %v7390, 0.35355338
    %v7422 = vmul.f32 %v7395, 0.35355338
    %v7423 = vmul.f32 %v7400, 0.35355338
    %v7424 = vmul.f32 %v7405, 0.35355338
    %v7425 = vmul.f32 %v7410, 0.35355338
    %v7426 = vmul.f32 %v7415, 0.35355338
    %v7427 = vsel %vm361, %v7418, -inf
    %7428 = vmax.xlane.f32.xlu0 %v7427
    %v7429 = vpop.xlane.xlu0 %7428
    %v7430 = vsel %vm361, %v7419, -inf
    %7431 = vmax.xlane.f32.xlu0 %v7430
    %v7432 = vpop.xlane.xlu0 %7431
    %v7433 = vsel %vm361, %v7420, -inf
    %7434 = vmax.xlane.f32.xlu0 %v7433
    %v7435 = vpop.xlane.xlu0 %7434
    %v7436 = vsel %vm361, %v7421, -inf
    %7437 = vmax.xlane.f32.xlu0 %v7436
    %v7438 = vpop.xlane.xlu0 %7437
    %v7439 = vsel %vm361, %v7422, -inf
    %7440 = vmax.xlane.f32.xlu0 %v7439
    %v7441 = vpop.xlane.xlu0 %7440
    %v7442 = vsel %vm361, %v7423, -inf
    %7443 = vmax.xlane.f32.xlu0 %v7442
    %v7444 = vpop.xlane.xlu0 %7443
    %v7445 = vsel %vm361, %v7424, -inf
    %7446 = vmax.xlane.f32.xlu0 %v7445
    %v7447 = vpop.xlane.xlu0 %7446
    %v7448 = vsel %vm361, %v7425, -inf
    %7449 = vmax.xlane.f32.xlu0 %v7448
    %v7450 = vpop.xlane.xlu0 %7449
    %v7451 = vsel %vm361, %v7426, -inf
    %7452 = vmax.xlane.f32.xlu0 %v7451
    %v7453 = vpop.xlane.xlu0 %7452
    %v7454 = vsub.f32 %v7418, %v7429
    %v7455 = vsub.f32 %v7419, %v7432
    %v7456 = vsub.f32 %v7420, %v7435
    %v7457 = vsub.f32 %v7421, %v7438
    %v7458 = vsub.f32 %v7422, %v7441
    %v7459 = vsub.f32 %v7423, %v7444
    %v7460 = vsub.f32 %v7424, %v7447
    %v7461 = vsub.f32 %v7425, %v7450
    %v7462 = vsub.f32 %v7426, %v7453
    %v7463 = vmul.f32 %v7454, 1.442695
    %v7464 = vpow.pop %v7463
    %v7465 = vmul.f32 %v7455, 1.442695
    %v7466 = vpow.pop %v7465
    %v7467 = vmul.f32 %v7456, 1.442695
    %v7468 = vpow.pop %v7467
    %v7469 = vmul.f32 %v7457, 1.442695
    %v7470 = vpow.pop %v7469
    %v7471 = vmul.f32 %v7458, 1.442695
    %v7472 = vpow.pop %v7471
    %v7473 = vmul.f32 %v7459, 1.442695
    %v7474 = vpow.pop %v7473
    %v7475 = vmul.f32 %v7460, 1.442695
    %v7476 = vpow.pop %v7475
    %v7477 = vmul.f32 %v7461, 1.442695
    %v7478 = vpow.pop %v7477
    %v7479 = vmul.f32 %v7462, 1.442695
    %v7480 = vpow.pop %v7479
    %v7481 = vsel %vm361, %v7464, 0.0
    %7482 = vadd.xlane.f32.xlu0 %v7481
    %v7483 = vpop.xlane.xlu0 %7482
    %v7484 = vsel %vm361, %v7466, 0.0
    %7485 = vadd.xlane.f32.xlu0 %v7484
    %v7486 = vpop.xlane.xlu0 %7485
    %v7487 = vsel %vm361, %v7468, 0.0
    %7488 = vadd.xlane.f32.xlu0 %v7487
    %v7489 = vpop.xlane.xlu0 %7488
    %v7490 = vsel %vm361, %v7470, 0.0
    %7491 = vadd.xlane.f32.xlu0 %v7490
    %v7492 = vpop.xlane.xlu0 %7491
    %v7493 = vsel %vm361, %v7472, 0.0
    %7494 = vadd.xlane.f32.xlu0 %v7493
    %v7495 = vpop.xlane.xlu0 %7494
    %v7496 = vsel %vm361, %v7474, 0.0
    %7497 = vadd.xlane.f32.xlu0 %v7496
    %v7498 = vpop.xlane.xlu0 %7497
    %v7499 = vsel %vm361, %v7476, 0.0
    %7500 = vadd.xlane.f32.xlu0 %v7499
    %v7501 = vpop.xlane.xlu0 %7500
    %v7502 = vsel %vm361, %v7478, 0.0
    %7503 = vadd.xlane.f32.xlu0 %v7502
    %v7504 = vpop.xlane.xlu0 %7503
    %v7505 = vsel %vm361, %v7480, 0.0
    %7506 = vadd.xlane.f32.xlu0 %v7505
    %v7507 = vpop.xlane.xlu0 %7506
    %v7508 = vrcp.pop %v7483
    %v7509 = vrcp.pop %v7486
    %v7510 = vrcp.pop %v7489
    %v7511 = vrcp.pop %v7492
    %v7512 = vrcp.pop %v7495
    %v7513 = vrcp.pop %v7498
    %v7514 = vrcp.pop %v7501
    %v7515 = vrcp.pop %v7504
    %v7516 = vrcp.pop %v7507
    %v7517 = vmul.f32 %v7464, %v7508
    %v7518 = vmul.f32 %v7466, %v7509
    %v7519 = vmul.f32 %v7468, %v7510
    %v7520 = vmul.f32 %v7470, %v7511
    %v7521 = vmul.f32 %v7472, %v7512
    %v7522 = vmul.f32 %v7474, %v7513
    %v7523 = vmul.f32 %v7476, %v7514
    %v7524 = vmul.f32 %v7478, %v7515
    %v7525 = vmul.f32 %v7480, %v7516
    %7526 = vrot.lane.b32.xlu0 %v5661, 72
    %v7527 = vpop.permute.xlu0 %7526
    %v7530 = vsel %vm361, %v7517, 0
    %v7533 = vsel %vm361, %v7518, 0
    %v7536 = vsel %vm361, %v7519, 0
    %v7539 = vsel %vm361, %v7520, 0
    %v7542 = vsel %vm361, %v7521, 0
    %v7545 = vsel %vm361, %v7522, 0
    %v7548 = vsel %vm361, %v7523, 0
    %v7551 = vsel %vm361, %v7524, 0
    %v7554 = vsel %vm361, %v7525, 0
    %7556 = vmatprep.subr.mxu0 0.0
    %7557 = vmatpush1.msra.mxu0 %v7527
    %7558 = vmatprep.subr.mxu0 0.0
    %7559 = vmatpush1.msra.mxu0 0.0
    %7560 = vmatprep.subr.mxu0 0.0
    %7561 = vmatpush1.msra.mxu0 0.0
    %7562 = vmatprep.subr.mxu0 0.0
    %7563 = vmatpush1.msra.mxu0 0.0
    %7564 = vmatprep.subr.mxu0 0.0
    %7565 = vmatpush1.msra.mxu0 0.0
    %7566 = vmatprep.subr.mxu0 0.0
    %7567 = vmatpush1.msra.mxu0 0.0
    %7568 = vmatprep.subr.mxu0 0.0
    %7569 = vmatpush1.msra.mxu0 0.0
    %7570 = vmatprep.subr.mxu0 0.0
    %7571 = vmatpush1.msra.mxu0 0.0
    %7572 = vmatprep.subr.mxu0 0.0
    %7573 = vmatpush1.msra.mxu0 0.0
    %7574 = vmatprep.subr.mxu0 0.0
    %7575 = vmatpush1.msra.mxu0 0.0
    %7576 = vmatprep.subr.mxu0 0.0
    %7577 = vmatpush1.msra.mxu0 0.0
    %7578 = vmatprep.subr.mxu0 0.0
    %7579 = vmatpush1.msra.mxu0 0.0
    %7580 = vmatprep.subr.mxu0 0.0
    %7581 = vmatpush1.msra.mxu0 0.0
    %7582 = vmatprep.subr.mxu0 0.0
    %7583 = vmatpush1.msra.mxu0 0.0
    %7584 = vmatprep.subr.mxu0 0.0
    %7585 = vmatpush1.msra.mxu0 0.0
    %7586 = vmatprep.subr.mxu0 0.0
    %7587 = vmatpush1.msra.mxu0 0.0
    %7588 = vmatprep.subr.mxu0 0.0
    %7589 = vmatpush1.msra.mxu0 0.0
    %7590 = vmatprep.subr.mxu0 0.0
    %7591 = vmatpush1.msra.mxu0 0.0
    %7592 = vmatprep.subr.mxu0 0.0
    %7593 = vmatpush1.msra.mxu0 0.0
    %7594 = vmatprep.subr.mxu0 0.0
    %7595 = vmatpush1.msra.mxu0 0.0
    %7596 = vmatprep.subr.mxu0 0.0
    %7597 = vmatpush1.msra.mxu0 0.0
    %7598 = vmatprep.subr.mxu0 0.0
    %7599 = vmatpush1.msra.mxu0 0.0
    %7600 = vmatprep.subr.mxu0 0.0
    %7601 = vmatpush1.msra.mxu0 0.0
    %7602 = vmatprep.subr.mxu0 0.0
    %7603 = vmatpush1.msra.mxu0 0.0
    %7604 = vmatprep.subr.mxu0 0.0
    %7605 = vmatpush1.msra.mxu0 0.0
    %7606 = vmatprep.subr.mxu0 0.0
    %7607 = vmatpush1.msra.mxu0 0.0
    %7608 = vmatprep.subr.mxu0 0.0
    %7609 = vmatpush1.msra.mxu0 0.0
    %7610 = vmatprep.subr.mxu0 0.0
    %7611 = vmatpush1.msra.mxu0 0.0
    %7612 = vmatprep.subr.mxu0 0.0
    %7613 = vmatpush1.msra.mxu0 0.0
    %7614 = vmatprep.subr.mxu0 0.0
    %7615 = vmatpush1.msra.mxu0 0.0
    %7616 = vmatprep.subr.mxu0 0.0
    %7617 = vmatpush1.msra.mxu0 0.0
    %7618 = vmatprep.subr.mxu0 0.0
    %7619 = vmatpush1.msra.mxu0 0.0
    %7620 = vmatprep.mubr.f32.mxu0 0.0
    %7621 = vmatmul.mubr.f32.gmra.mrb[0].mxu0 %v7530
    %v7622 = vpop.f32.mrb[0].mxu0
    %v7623 = vadd.f32 0.0, %v7622
    %v7624 = vpop.f32.mrb[0].mxu0
    %7625 = vmatprep.mubr.f32.mxu0 0.0
    %7626 = vmatmul.mubr.f32.gmra.mrb[0].mxu0 %v7533
    %v7627 = vpop.f32.mrb[0].mxu0
    %v7628 = vadd.f32 0.0, %v7627
    %v7629 = vpop.f32.mrb[0].mxu0
    %7630 = vmatprep.mubr.f32.mxu0 0.0
    %7631 = vmatmul.mubr.f32.gmra.mrb[0].mxu0 %v7536
    %v7632 = vpop.f32.mrb[0].mxu0
    %v7633 = vadd.f32 0.0, %v7632
    %v7634 = vpop.f32.mrb[0].mxu0
    %7635 = vmatprep.mubr.f32.mxu0 0.0
    %7636 = vmatmul.mubr.f32.gmra.mrb[0].mxu0 %v7539
    %v7637 = vpop.f32.mrb[0].mxu0
    %v7638 = vadd.f32 0.0, %v7637
    %v7639 = vpop.f32.mrb[0].mxu0
    %7640 = vmatprep.mubr.f32.mxu0 0.0
    %7641 = vmatmul.mubr.f32.gmra.mrb[0].mxu0 %v7542
    %v7642 = vpop.f32.mrb[0].mxu0
    %v7643 = vadd.f32 0.0, %v7642
    %v7644 = vpop.f32.mrb[0].mxu0
    %7645 = vmatprep.mubr.f32.mxu0 0.0
    %7646 = vmatmul.mubr.f32.gmra.mrb[0].mxu0 %v7545
    %v7647 = vpop.f32.mrb[0].mxu0
    %v7648 = vadd.f32 0.0, %v7647
    %v7649 = vpop.f32.mrb[0].mxu0
    %7650 = vmatprep.mubr.f32.mxu0 0.0
    %7651 = vmatmul.mubr.f32.gmra.mrb[0].mxu0 %v7548
    %v7652 = vpop.f32.mrb[0].mxu0
    %v7653 = vadd.f32 0.0, %v7652
    %v7654 = vpop.f32.mrb[0].mxu0
    %7655 = vmatprep.mubr.f32.mxu0 0.0
    %7656 = vmatmul.mubr.f32.gmra.mrb[0].mxu0 %v7551
    %v7657 = vpop.f32.mrb[0].mxu0
    %v7658 = vadd.f32 0.0, %v7657
    %v7659 = vpop.f32.mrb[0].mxu0
    %7660 = vmatprep.mubr.f32.mxu0 0.0
    %7661 = vmatmul.mubr.f32.gmra.mrb[0].mxu0 %v7554
    %v7662 = vpop.f32.mrb[0].mxu0
    %v7663 = vadd.f32 0.0, %v7662
    %v7664 = vpop.f32.mrb[0].mxu0
    %7665 = vdwg.mxu0
    %v7667 = vsel %vm361, %v7623, 0
    %v7670 = vsel %vm361, %v7628, 0
    %v7673 = vsel %vm361, %v7633, 0
    %v7676 = vsel %vm361, %v7638, 0
    %v7679 = vsel %vm361, %v7643, 0
    %v7682 = vsel %vm361, %v7648, 0
    %v7685 = vsel %vm361, %v7653, 0
    %v7688 = vsel %vm361, %v7658, 0
    %v7691 = vsel %vm361, %v7663, 0
    %7693 = vmatprep.subr.mxu0 0.0
    %7694 = vmatpush1.msra.mxu0 %v40
    %7695 = vmatprep.subr.mxu0 0.0
    %7696 = vmatpush1.msra.mxu0 0.0
    %7697 = vmatprep.subr.mxu0 0.0
    %7698 = vmatpush1.msra.mxu0 0.0
    %7699 = vmatprep.subr.mxu0 0.0
    %7700 = vmatpush1.msra.mxu0 0.0
    %7701 = vmatprep.subr.mxu0 0.0
    %7702 = vmatpush1.msra.mxu0 0.0
    %7703 = vmatprep.subr.mxu0 0.0
    %7704 = vmatpush1.msra.mxu0 0.0
    %7705 = vmatprep.subr.mxu0 0.0
    %7706 = vmatpush1.msra.mxu0 0.0
    %7707 = vmatprep.subr.mxu0 0.0
    %7708 = vmatpush1.msra.mxu0 0.0
    %7709 = vmatprep.subr.mxu0 0.0
    %7710 = vmatpush1.msra.mxu0 0.0
    %7711 = vmatprep.subr.mxu0 0.0
    %7712 = vmatpush1.msra.mxu0 0.0
    %7713 = vmatprep.subr.mxu0 0.0
    %7714 = vmatpush1.msra.mxu0 0.0
    %7715 = vmatprep.subr.mxu0 0.0
    %7716 = vmatpush1.msra.mxu0 0.0
    %7717 = vmatprep.subr.mxu0 0.0
    %7718 = vmatpush1.msra.mxu0 0.0
    %7719 = vmatprep.subr.mxu0 0.0
    %7720 = vmatpush1.msra.mxu0 0.0
    %7721 = vmatprep.subr.mxu0 0.0
    %7722 = vmatpush1.msra.mxu0 0.0
    %7723 = vmatprep.subr.mxu0 0.0
    %7724 = vmatpush1.msra.mxu0 0.0
    %7725 = vmatprep.subr.mxu0 0.0
    %7726 = vmatpush1.msra.mxu0 0.0
    %7727 = vmatprep.subr.mxu0 0.0
    %7728 = vmatpush1.msra.mxu0 0.0
    %7729 = vmatprep.subr.mxu0 0.0
    %7730 = vmatpush1.msra.mxu0 0.0
    %7731 = vmatprep.subr.mxu0 0.0
    %7732 = vmatpush1.msra.mxu0 0.0
    %7733 = vmatprep.subr.mxu0 0.0
    %7734 = vmatpush1.msra.mxu0 0.0
    %7735 = vmatprep.subr.mxu0 0.0
    %7736 = vmatpush1.msra.mxu0 0.0
    %7737 = vmatprep.subr.mxu0 0.0
    %7738 = vmatpush1.msra.mxu0 0.0
    %7739 = vmatprep.subr.mxu0 0.0
    %7740 = vmatpush1.msra.mxu0 0.0
    %7741 = vmatprep.subr.mxu0 0.0
    %7742 = vmatpush1.msra.mxu0 0.0
    %7743 = vmatprep.subr.mxu0 0.0
    %7744 = vmatpush1.msra.mxu0 0.0
    %7745 = vmatprep.subr.mxu0 0.0
    %7746 = vmatpush1.msra.mxu0 0.0
    %7747 = vmatprep.subr.mxu0 0.0
    %7748 = vmatpush1.msra.mxu0 0.0
    %7749 = vmatprep.subr.mxu0 0.0
    %7750 = vmatpush1.msra.mxu0 0.0
    %7751 = vmatprep.subr.mxu0 0.0
    %7752 = vmatpush1.msra.mxu0 0.0
    %7753 = vmatprep.subr.mxu0 0.0
    %7754 = vmatpush1.msra.mxu0 0.0
    %7755 = vmatprep.subr.mxu0 0.0
    %7756 = vmatpush1.msra.mxu0 0.0
    %7757 = vmatprep.mubr.f32.mxu0 0.0
    %7758 = vmatmul.mubr.f32.gmra.mrb[0].mxu0 %v7667
    %v7759 = vpop.f32.mrb[0].mxu0
    %v7760 = vadd.f32 0.0, %v7759
    %v7761 = vpop.f32.mrb[0].mxu0
    %7762 = vmatprep.mubr.f32.mxu0 0.0
    %7763 = vmatmul.mubr.f32.gmra.mrb[0].mxu0 %v7670
    %v7764 = vpop.f32.mrb[0].mxu0
    %v7765 = vadd.f32 0.0, %v7764
    %v7766 = vpop.f32.mrb[0].mxu0
    %7767 = vmatprep.mubr.f32.mxu0 0.0
    %7768 = vmatmul.mubr.f32.gmra.mrb[0].mxu0 %v7673
    %v7769 = vpop.f32.mrb[0].mxu0
    %v7770 = vadd.f32 0.0, %v7769
    %v7771 = vpop.f32.mrb[0].mxu0
    %7772 = vmatprep.mubr.f32.mxu0 0.0
    %7773 = vmatmul.mubr.f32.gmra.mrb[0].mxu0 %v7676
    %v7774 = vpop.f32.mrb[0].mxu0
    %v7775 = vadd.f32 0.0, %v7774
    %v7776 = vpop.f32.mrb[0].mxu0
    %7777 = vmatprep.mubr.f32.mxu0 0.0
    %7778 = vmatmul.mubr.f32.gmra.mrb[0].mxu0 %v7679
    %v7779 = vpop.f32.mrb[0].mxu0
    %v7780 = vadd.f32 0.0, %v7779
    %v7781 = vpop.f32.mrb[0].mxu0
    %7782 = vmatprep.mubr.f32.mxu0 0.0
    %7783 = vmatmul.mubr.f32.gmra.mrb[0].mxu0 %v7682
    %v7784 = vpop.f32.mrb[0].mxu0
    %v7785 = vadd.f32 0.0, %v7784
    %v7786 = vpop.f32.mrb[0].mxu0
    %7787 = vmatprep.mubr.f32.mxu0 0.0
    %7788 = vmatmul.mubr.f32.gmra.mrb[0].mxu0 %v7685
    %v7789 = vpop.f32.mrb[0].mxu0
    %v7790 = vadd.f32 0.0, %v7789
    %v7791 = vpop.f32.mrb[0].mxu0
    %7792 = vmatprep.mubr.f32.mxu0 0.0
    %7793 = vmatmul.mubr.f32.gmra.mrb[0].mxu0 %v7688
    %v7794 = vpop.f32.mrb[0].mxu0
    %v7795 = vadd.f32 0.0, %v7794
    %v7796 = vpop.f32.mrb[0].mxu0
    %7797 = vmatprep.mubr.f32.mxu0 0.0
    %7798 = vmatmul.mubr.f32.gmra.mrb[0].mxu0 %v7691
    %v7799 = vpop.f32.mrb[0].mxu0
    %v7800 = vadd.f32 0.0, %v7799
    %v7801 = vpop.f32.mrb[0].mxu0
    %7802 = vdwg.mxu0
    %v7803 = vadd.f32 %v7259, %v7760
    %v7804 = vadd.f32 %v7260, %v7765
    %v7805 = vadd.f32 %v7261, %v7770
    %v7806 = vadd.f32 %v7262, %v7775
    %v7807 = vadd.f32 %v7263, %v7780
    %v7808 = vadd.f32 %v7264, %v7785
    %v7809 = vadd.f32 %v7265, %v7790
    %v7810 = vadd.f32 %v7266, %v7795
    %v7811 = vadd.f32 %v7267, %v7800
    %v7812 = vlaneseq
    %v7813 = vshrl.u32 %v7812, 7
    %v7814 = vsub.s32 0, %v7813
    %v7815 = vrot.slane %v31, %v7814
    %v7816 = vadd.f32 %v7803, %v7815
    %v7817 = vadd.f32 %v7804, %v7815
    %v7818 = vadd.f32 %v7805, %v7815
    %v7819 = vadd.f32 %v7806, %v7815
    %v7820 = vadd.f32 %v7807, %v7815
    %v7821 = vadd.f32 %v7808, %v7815
    %v7822 = vadd.f32 %v7809, %v7815
    %v7823 = vadd.f32 %v7810, %v7815
    %v7824 = vadd.f32 %v7811, %v7815
    %v7825 = vadd.f32 %v5437, %v7816
    %v7826 = vadd.f32 %v5438, %v7817
    %v7827 = vadd.f32 %v5439, %v7818
    %v7828 = vadd.f32 %v5440, %v7819
    %v7829 = vadd.f32 %v5441, %v7820
    %v7830 = vadd.f32 %v5442, %v7821
    %v7831 = vadd.f32 %v5443, %v7822
    %v7832 = vadd.f32 %v5444, %v7823
    %v7833 = vadd.f32 %v5445, %v7824
    %v7834 = vsel %vm240, %v7825, 0.0
    %7835 = vadd.xlane.f32.xlu0 %v7834
    %v7836 = vpop.xlane.xlu0 %7835
    %v7837 = vsel %vm240, %v7826, 0.0
    %7838 = vadd.xlane.f32.xlu0 %v7837
    %v7839 = vpop.xlane.xlu0 %7838
    %v7840 = vsel %vm240, %v7827, 0.0
    %7841 = vadd.xlane.f32.xlu0 %v7840
    %v7842 = vpop.xlane.xlu0 %7841
    %v7843 = vsel %vm240, %v7828, 0.0
    %7844 = vadd.xlane.f32.xlu0 %v7843
    %v7845 = vpop.xlane.xlu0 %7844
    %v7846 = vsel %vm240, %v7829, 0.0
    %7847 = vadd.xlane.f32.xlu0 %v7846
    %v7848 = vpop.xlane.xlu0 %7847
    %v7849 = vsel %vm240, %v7830, 0.0
    %7850 = vadd.xlane.f32.xlu0 %v7849
    %v7851 = vpop.xlane.xlu0 %7850
    %v7852 = vsel %vm240, %v7831, 0.0
    %7853 = vadd.xlane.f32.xlu0 %v7852
    %v7854 = vpop.xlane.xlu0 %7853
    %v7855 = vsel %vm240, %v7832, 0.0
    %7856 = vadd.xlane.f32.xlu0 %v7855
    %v7857 = vpop.xlane.xlu0 %7856
    %v7858 = vsel %vm240, %v7833, 0.0
    %7859 = vadd.xlane.f32.xlu0 %v7858
    %v7860 = vpop.xlane.xlu0 %7859
    %v7861 = vmul.f32 %v7836, %v2068
    %v7862 = vmul.f32 %v7839, %v2068
    %v7863 = vmul.f32 %v7842, %v2068
    %v7864 = vmul.f32 %v7845, %v2068
    %v7865 = vmul.f32 %v7848, %v2068
    %v7866 = vmul.f32 %v7851, %v2068
    %v7867 = vmul.f32 %v7854, %v2068
    %v7868 = vmul.f32 %v7857, %v2068
    %v7869 = vmul.f32 %v7860, %v2068
    %v7870 = vsub.f32 %v7825, %v7861
    %v7871 = vsub.f32 %v7826, %v7862
    %v7872 = vsub.f32 %v7827, %v7863
    %v7873 = vsub.f32 %v7828, %v7864
    %v7874 = vsub.f32 %v7829, %v7865
    %v7875 = vsub.f32 %v7830, %v7866
    %v7876 = vsub.f32 %v7831, %v7867
    %v7877 = vsub.f32 %v7832, %v7868
    %v7878 = vsub.f32 %v7833, %v7869
    %v7879 = vmul.f32 %v7870, %v7870
    %v7880 = vmul.f32 %v7871, %v7871
    %v7881 = vmul.f32 %v7872, %v7872
    %v7882 = vmul.f32 %v7873, %v7873
    %v7883 = vmul.f32 %v7874, %v7874
    %v7884 = vmul.f32 %v7875, %v7875
    %v7885 = vmul.f32 %v7876, %v7876
    %v7886 = vmul.f32 %v7877, %v7877
    %v7887 = vmul.f32 %v7878, %v7878
    %v7888 = vsel %vm240, %v7879, 0.0
    %7889 = vadd.xlane.f32.xlu0 %v7888
    %v7890 = vpop.xlane.xlu0 %7889
    %v7891 = vsel %vm240, %v7880, 0.0
    %7892 = vadd.xlane.f32.xlu0 %v7891
    %v7893 = vpop.xlane.xlu0 %7892
    %v7894 = vsel %vm240, %v7881, 0.0
    %7895 = vadd.xlane.f32.xlu0 %v7894
    %v7896 = vpop.xlane.xlu0 %7895
    %v7897 = vsel %vm240, %v7882, 0.0
    %7898 = vadd.xlane.f32.xlu0 %v7897
    %v7899 = vpop.xlane.xlu0 %7898
    %v7900 = vsel %vm240, %v7883, 0.0
    %7901 = vadd.xlane.f32.xlu0 %v7900
    %v7902 = vpop.xlane.xlu0 %7901
    %v7903 = vsel %vm240, %v7884, 0.0
    %7904 = vadd.xlane.f32.xlu0 %v7903
    %v7905 = vpop.xlane.xlu0 %7904
    %v7906 = vsel %vm240, %v7885, 0.0
    %7907 = vadd.xlane.f32.xlu0 %v7906
    %v7908 = vpop.xlane.xlu0 %7907
    %v7909 = vsel %vm240, %v7886, 0.0
    %7910 = vadd.xlane.f32.xlu0 %v7909
    %v7911 = vpop.xlane.xlu0 %7910
    %v7912 = vsel %vm240, %v7887, 0.0
    %7913 = vadd.xlane.f32.xlu0 %v7912
    %v7914 = vpop.xlane.xlu0 %7913
    %v7915 = vmul.f32 %v7890, %v2068
    %v7916 = vmul.f32 %v7893, %v2068
    %v7917 = vmul.f32 %v7896, %v2068
    %v7918 = vmul.f32 %v7899, %v2068
    %v7919 = vmul.f32 %v7902, %v2068
    %v7920 = vmul.f32 %v7905, %v2068
    %v7921 = vmul.f32 %v7908, %v2068
    %v7922 = vmul.f32 %v7911, %v2068
    %v7923 = vmul.f32 %v7914, %v2068
    %v7924 = vadd.f32 %v7915, 1e-05
    %v7925 = vadd.f32 %v7916, 1e-05
    %v7926 = vadd.f32 %v7917, 1e-05
    %v7927 = vadd.f32 %v7918, 1e-05
    %v7928 = vadd.f32 %v7919, 1e-05
    %v7929 = vadd.f32 %v7920, 1e-05
    %v7930 = vadd.f32 %v7921, 1e-05
    %v7931 = vadd.f32 %v7922, 1e-05
    %v7932 = vadd.f32 %v7923, 1e-05
    %v7933 = vrsqrt.pop %v7924
    %v7934 = vrsqrt.pop %v7925
    %v7935 = vrsqrt.pop %v7926
    %v7936 = vrsqrt.pop %v7927
    %v7937 = vrsqrt.pop %v7928
    %v7938 = vrsqrt.pop %v7929
    %v7939 = vrsqrt.pop %v7930
    %v7940 = vrsqrt.pop %v7931
    %v7941 = vrsqrt.pop %v7932
    %v7942 = vmul.f32 %v7870, %v7933
    %v7943 = vmul.f32 %v7871, %v7934
    %v7944 = vmul.f32 %v7872, %v7935
    %v7945 = vmul.f32 %v7873, %v7936
    %v7946 = vmul.f32 %v7874, %v7937
    %v7947 = vmul.f32 %v7875, %v7938
    %v7948 = vmul.f32 %v7876, %v7939
    %v7949 = vmul.f32 %v7877, %v7940
    %v7950 = vmul.f32 %v7878, %v7941
    %v7951 = vlaneseq
    %v7952 = vshrl.u32 %v7951, 7
    %v7953 = vsub.s32 0, %v7952
    %v7954 = vrot.slane %v48, %v7953
    %v7955 = vmul.f32 %v7942, %v7954
    %v7956 = vmul.f32 %v7943, %v7954
    %v7957 = vmul.f32 %v7944, %v7954
    %v7958 = vmul.f32 %v7945, %v7954
    %v7959 = vmul.f32 %v7946, %v7954
    %v7960 = vmul.f32 %v7947, %v7954
    %v7961 = vmul.f32 %v7948, %v7954
    %v7962 = vmul.f32 %v7949, %v7954
    %v7963 = vmul.f32 %v7950, %v7954
    %v7964 = vlaneseq
    %v7965 = vshrl.u32 %v7964, 7
    %v7966 = vsub.s32 0, %v7965
    %v7967 = vrot.slane %v47, %v7966
    %v7968 = vadd.f32 %v7955, %v7967
    %v7969 = vadd.f32 %v7956, %v7967
    %v7970 = vadd.f32 %v7957, %v7967
    %v7971 = vadd.f32 %v7958, %v7967
    %v7972 = vadd.f32 %v7959, %v7967
    %v7973 = vadd.f32 %v7960, %v7967
    %v7974 = vadd.f32 %v7961, %v7967
    %v7975 = vadd.f32 %v7962, %v7967
    %v7976 = vadd.f32 %v7963, %v7967
    %v7977 = vlaneseq
    %v7978 = vshrl.u32 %v7977, 7
    %v7979 = vsub.s32 0, %v7978
    %v7980 = vrot.slane %v28, %v7979
    %v7982 = vsel %vm240, %v7968, 0
    %v7985 = vsel %vm240, %v7969, 0
    %v7988 = vsel %vm240, %v7970, 0
    %v7991 = vsel %vm240, %v7971, 0
    %v7994 = vsel %vm240, %v7972, 0
    %v7997 = vsel %vm240, %v7973, 0
    %v8000 = vsel %vm240, %v7974, 0
    %v8003 = vsel %vm240, %v7975, 0
    %v8006 = vsel %vm240, %v7976, 0
    %8008 = vmatprep.subr.mxu0 0.0
    %8009 = vmatpush1.msra.mxu0 %v61
    %8010 = vmatprep.subr.mxu0 0.0
    %8011 = vmatpush1.msra.mxu0 %v62
    %8012 = vmatprep.subr.mxu0 0.0
    %8013 = vmatpush1.msra.mxu0 %v63
    %8014 = vmatprep.subr.mxu0 0.0
    %8015 = vmatpush1.msra.mxu0 %v64
    %8016 = vmatprep.subr.mxu0 0.0
    %8017 = vmatpush1.msra.mxu0 0.0
    %8018 = vmatprep.subr.mxu0 0.0
    %8019 = vmatpush1.msra.mxu0 0.0
    %8020 = vmatprep.subr.mxu0 0.0
    %8021 = vmatpush1.msra.mxu0 0.0
    %8022 = vmatprep.subr.mxu0 0.0
    %8023 = vmatpush1.msra.mxu0 0.0
    %8024 = vmatprep.subr.mxu0 0.0
    %8025 = vmatpush1.msra.mxu0 0.0
    %8026 = vmatprep.subr.mxu0 0.0
    %8027 = vmatpush1.msra.mxu0 0.0
    %8028 = vmatprep.subr.mxu0 0.0
    %8029 = vmatpush1.msra.mxu0 0.0
    %8030 = vmatprep.subr.mxu0 0.0
    %8031 = vmatpush1.msra.mxu0 0.0
    %8032 = vmatprep.subr.mxu0 0.0
    %8033 = vmatpush1.msra.mxu0 0.0
    %8034 = vmatprep.subr.mxu0 0.0
    %8035 = vmatpush1.msra.mxu0 0.0
    %8036 = vmatprep.subr.mxu0 0.0
    %8037 = vmatpush1.msra.mxu0 0.0
    %8038 = vmatprep.subr.mxu0 0.0
    %8039 = vmatpush1.msra.mxu0 0.0
    %8040 = vmatprep.subr.mxu0 0.0
    %8041 = vmatpush1.msra.mxu0 0.0
    %8042 = vmatprep.subr.mxu0 0.0
    %8043 = vmatpush1.msra.mxu0 0.0
    %8044 = vmatprep.subr.mxu0 0.0
    %8045 = vmatpush1.msra.mxu0 0.0
    %8046 = vmatprep.subr.mxu0 0.0
    %8047 = vmatpush1.msra.mxu0 0.0
    %8048 = vmatprep.subr.mxu0 0.0
    %8049 = vmatpush1.msra.mxu0 0.0
    %8050 = vmatprep.subr.mxu0 0.0
    %8051 = vmatpush1.msra.mxu0 0.0
    %8052 = vmatprep.subr.mxu0 0.0
    %8053 = vmatpush1.msra.mxu0 0.0
    %8054 = vmatprep.subr.mxu0 0.0
    %8055 = vmatpush1.msra.mxu0 0.0
    %8056 = vmatprep.subr.mxu0 0.0
    %8057 = vmatpush1.msra.mxu0 0.0
    %8058 = vmatprep.subr.mxu0 0.0
    %8059 = vmatpush1.msra.mxu0 0.0
    %8060 = vmatprep.subr.mxu0 0.0
    %8061 = vmatpush1.msra.mxu0 0.0
    %8062 = vmatprep.subr.mxu0 0.0
    %8063 = vmatpush1.msra.mxu0 0.0
    %8064 = vmatprep.subr.mxu0 0.0
    %8065 = vmatpush1.msra.mxu0 0.0
    %8066 = vmatprep.subr.mxu0 0.0
    %8067 = vmatpush1.msra.mxu0 0.0
    %8068 = vmatprep.subr.mxu0 0.0
    %8069 = vmatpush1.msra.mxu0 0.0
    %8070 = vmatprep.subr.mxu0 0.0
    %8071 = vmatpush1.msra.mxu0 0.0
    %8072 = vmatprep.mubr.f32.mxu0 0.0
    %8073 = vmatmul.mubr.f32.gmra.mrb[0].mxu0 %v7982
    %v8074 = vpop.f32.mrb[0].mxu0
    %v8075 = vadd.f32 %v7980, %v8074
    %v8076 = vpop.f32.mrb[0].mxu0
    %8077 = vmatprep.mubr.f32.mxu0 0.0
    %8078 = vmatmul.mubr.f32.gmra.mrb[0].mxu0 %v7985
    %v8079 = vpop.f32.mrb[0].mxu0
    %v8080 = vadd.f32 %v7980, %v8079
    %v8081 = vpop.f32.mrb[0].mxu0
    %8082 = vmatprep.mubr.f32.mxu0 0.0
    %8083 = vmatmul.mubr.f32.gmra.mrb[0].mxu0 %v7988
    %v8084 = vpop.f32.mrb[0].mxu0
    %v8085 = vadd.f32 %v7980, %v8084
    %v8086 = vpop.f32.mrb[0].mxu0
    %8087 = vmatprep.mubr.f32.mxu0 0.0
    %8088 = vmatmul.mubr.f32.gmra.mrb[0].mxu0 %v7991
    %v8089 = vpop.f32.mrb[0].mxu0
    %v8090 = vadd.f32 %v7980, %v8089
    %v8091 = vpop.f32.mrb[0].mxu0
    %8092 = vmatprep.mubr.f32.mxu0 0.0
    %8093 = vmatmul.mubr.f32.gmra.mrb[0].mxu0 %v7994
    %v8094 = vpop.f32.mrb[0].mxu0
    %v8095 = vadd.f32 %v7980, %v8094
    %v8096 = vpop.f32.mrb[0].mxu0
    %8097 = vmatprep.mubr.f32.mxu0 0.0
    %8098 = vmatmul.mubr.f32.gmra.mrb[0].mxu0 %v7997
    %v8099 = vpop.f32.mrb[0].mxu0
    %v8100 = vadd.f32 %v7980, %v8099
    %v8101 = vpop.f32.mrb[0].mxu0
    %8102 = vmatprep.mubr.f32.mxu0 0.0
    %8103 = vmatmul.mubr.f32.gmra.mrb[0].mxu0 %v8000
    %v8104 = vpop.f32.mrb[0].mxu0
    %v8105 = vadd.f32 %v7980, %v8104
    %v8106 = vpop.f32.mrb[0].mxu0
    %8107 = vmatprep.mubr.f32.mxu0 0.0
    %8108 = vmatmul.mubr.f32.gmra.mrb[0].mxu0 %v8003
    %v8109 = vpop.f32.mrb[0].mxu0
    %v8110 = vadd.f32 %v7980, %v8109
    %v8111 = vpop.f32.mrb[0].mxu0
    %8112 = vmatprep.mubr.f32.mxu0 0.0
    %8113 = vmatmul.mubr.f32.gmra.mrb[0].mxu0 %v8006
    %v8114 = vpop.f32.mrb[0].mxu0
    %v8115 = vadd.f32 %v7980, %v8114
    %v8116 = vpop.f32.mrb[0].mxu0
    %8117 = vdwg.mxu0
    %v8118 = vmul.f32 %v8075, %v8075
    %v8119 = vmul.f32 %v8080, %v8080
    %v8120 = vmul.f32 %v8085, %v8085
    %v8121 = vmul.f32 %v8090, %v8090
    %v8122 = vmul.f32 %v8095, %v8095
    %v8123 = vmul.f32 %v8100, %v8100
    %v8124 = vmul.f32 %v8105, %v8105
    %v8125 = vmul.f32 %v8110, %v8110
    %v8126 = vmul.f32 %v8115, %v8115
    %v8127 = vmul.f32 %v8075, %v8118
    %v8128 = vmul.f32 %v8080, %v8119
    %v8129 = vmul.f32 %v8085, %v8120
    %v8130 = vmul.f32 %v8090, %v8121
    %v8131 = vmul.f32 %v8095, %v8122
    %v8132 = vmul.f32 %v8100, %v8123
    %v8133 = vmul.f32 %v8105, %v8124
    %v8134 = vmul.f32 %v8110, %v8125
    %v8135 = vmul.f32 %v8115, %v8126
    %v8136 = vmul.f32 %v8127, 0.044715
    %v8137 = vmul.f32 %v8128, 0.044715
    %v8138 = vmul.f32 %v8129, 0.044715
    %v8139 = vmul.f32 %v8130, 0.044715
    %v8140 = vmul.f32 %v8131, 0.044715
    %v8141 = vmul.f32 %v8132, 0.044715
    %v8142 = vmul.f32 %v8133, 0.044715
    %v8143 = vmul.f32 %v8134, 0.044715
    %v8144 = vmul.f32 %v8135, 0.044715
    %v8145 = vadd.f32 %v8075, %v8136
    %v8146 = vadd.f32 %v8080, %v8137
    %v8147 = vadd.f32 %v8085, %v8138
    %v8148 = vadd.f32 %v8090, %v8139
    %v8149 = vadd.f32 %v8095, %v8140
    %v8150 = vadd.f32 %v8100, %v8141
    %v8151 = vadd.f32 %v8105, %v8142
    %v8152 = vadd.f32 %v8110, %v8143
    %v8153 = vadd.f32 %v8115, %v8144
    %v8154 = vmul.f32 %v8145, 0.7978846
    %v8155 = vmul.f32 %v8146, 0.7978846
    %v8156 = vmul.f32 %v8147, 0.7978846
    %v8157 = vmul.f32 %v8148, 0.7978846
    %v8158 = vmul.f32 %v8149, 0.7978846
    %v8159 = vmul.f32 %v8150, 0.7978846
    %v8160 = vmul.f32 %v8151, 0.7978846
    %v8161 = vmul.f32 %v8152, 0.7978846
    %v8162 = vmul.f32 %v8153, 0.7978846
    %v8163 = vtanh.pop %v8154
    %v8164 = vtanh.pop %v8155
    %v8165 = vtanh.pop %v8156
    %v8166 = vtanh.pop %v8157
    %v8167 = vtanh.pop %v8158
    %v8168 = vtanh.pop %v8159
    %v8169 = vtanh.pop %v8160
    %v8170 = vtanh.pop %v8161
    %v8171 = vtanh.pop %v8162
    %v8172 = vadd.f32 %v8163, 1.0
    %v8173 = vadd.f32 %v8164, 1.0
    %v8174 = vadd.f32 %v8165, 1.0
    %v8175 = vadd.f32 %v8166, 1.0
    %v8176 = vadd.f32 %v8167, 1.0
    %v8177 = vadd.f32 %v8168, 1.0
    %v8178 = vadd.f32 %v8169, 1.0
    %v8179 = vadd.f32 %v8170, 1.0
    %v8180 = vadd.f32 %v8171, 1.0
    %v8181 = vmul.f32 %v8172, 0.5
    %v8182 = vmul.f32 %v8173, 0.5
    %v8183 = vmul.f32 %v8174, 0.5
    %v8184 = vmul.f32 %v8175, 0.5
    %v8185 = vmul.f32 %v8176, 0.5
    %v8186 = vmul.f32 %v8177, 0.5
    %v8187 = vmul.f32 %v8178, 0.5
    %v8188 = vmul.f32 %v8179, 0.5
    %v8189 = vmul.f32 %v8180, 0.5
    %v8190 = vmul.f32 %v8075, %v8181
    %v8191 = vmul.f32 %v8080, %v8182
    %v8192 = vmul.f32 %v8085, %v8183
    %v8193 = vmul.f32 %v8090, %v8184
    %v8194 = vmul.f32 %v8095, %v8185
    %v8195 = vmul.f32 %v8100, %v8186
    %v8196 = vmul.f32 %v8105, %v8187
    %v8197 = vmul.f32 %v8110, %v8188
    %v8198 = vmul.f32 %v8115, %v8189
    %v8199 = vlaneseq
    %v8200 = vshrl.u32 %v8199, 7
    %v8201 = vsub.s32 0, %v8200
    %v8202 = vrot.slane %v29, %v8201
    %v8204 = vsel %vm2295, %v8190, 0
    %v8207 = vsel %vm2295, %v8191, 0
    %v8210 = vsel %vm2295, %v8192, 0
    %v8213 = vsel %vm2295, %v8193, 0
    %v8216 = vsel %vm2295, %v8194, 0
    %v8219 = vsel %vm2295, %v8195, 0
    %v8222 = vsel %vm2295, %v8196, 0
    %v8225 = vsel %vm2295, %v8197, 0
    %v8228 = vsel %vm2295, %v8198, 0
    %8230 = vmatprep.subr.mxu0 0.0
    %8231 = vmatpush1.msra.mxu0 %v65
    %8232 = vmatprep.subr.mxu0 0.0
    %8233 = vmatpush1.msra.mxu0 %v66
    %8234 = vmatprep.subr.mxu0 0.0
    %8235 = vmatpush1.msra.mxu0 %v67
    %8236 = vmatprep.subr.mxu0 0.0
    %8237 = vmatpush1.msra.mxu0 %v68
    %8238 = vmatprep.subr.mxu0 0.0
    %8239 = vmatpush1.msra.mxu0 %v69
    %8240 = vmatprep.subr.mxu0 0.0
    %8241 = vmatpush1.msra.mxu0 %v70
    %8242 = vmatprep.subr.mxu0 0.0
    %8243 = vmatpush1.msra.mxu0 %v71
    %8244 = vmatprep.subr.mxu0 0.0
    %8245 = vmatpush1.msra.mxu0 %v72
    %8246 = vmatprep.subr.mxu0 0.0
    %8247 = vmatpush1.msra.mxu0 0.0
    %8248 = vmatprep.subr.mxu0 0.0
    %8249 = vmatpush1.msra.mxu0 0.0
    %8250 = vmatprep.subr.mxu0 0.0
    %8251 = vmatpush1.msra.mxu0 0.0
    %8252 = vmatprep.subr.mxu0 0.0
    %8253 = vmatpush1.msra.mxu0 0.0
    %8254 = vmatprep.subr.mxu0 0.0
    %8255 = vmatpush1.msra.mxu0 0.0
    %8256 = vmatprep.subr.mxu0 0.0
    %8257 = vmatpush1.msra.mxu0 0.0
    %8258 = vmatprep.subr.mxu0 0.0
    %8259 = vmatpush1.msra.mxu0 0.0
    %8260 = vmatprep.subr.mxu0 0.0
    %8261 = vmatpush1.msra.mxu0 0.0
    %8262 = vmatprep.subr.mxu0 0.0
    %8263 = vmatpush1.msra.mxu0 0.0
    %8264 = vmatprep.subr.mxu0 0.0
    %8265 = vmatpush1.msra.mxu0 0.0
    %8266 = vmatprep.subr.mxu0 0.0
    %8267 = vmatpush1.msra.mxu0 0.0
    %8268 = vmatprep.subr.mxu0 0.0
    %8269 = vmatpush1.msra.mxu0 0.0
    %8270 = vmatprep.subr.mxu0 0.0
    %8271 = vmatpush1.msra.mxu0 0.0
    %8272 = vmatprep.subr.mxu0 0.0
    %8273 = vmatpush1.msra.mxu0 0.0
    %8274 = vmatprep.subr.mxu0 0.0
    %8275 = vmatpush1.msra.mxu0 0.0
    %8276 = vmatprep.subr.mxu0 0.0
    %8277 = vmatpush1.msra.mxu0 0.0
    %8278 = vmatprep.subr.mxu0 0.0
    %8279 = vmatpush1.msra.mxu0 0.0
    %8280 = vmatprep.subr.mxu0 0.0
    %8281 = vmatpush1.msra.mxu0 0.0
    %8282 = vmatprep.subr.mxu0 0.0
    %8283 = vmatpush1.msra.mxu0 0.0
    %8284 = vmatprep.subr.mxu0 0.0
    %8285 = vmatpush1.msra.mxu0 0.0
    %8286 = vmatprep.subr.mxu0 0.0
    %8287 = vmatpush1.msra.mxu0 0.0
    %8288 = vmatprep.subr.mxu0 0.0
    %8289 = vmatpush1.msra.mxu0 0.0
    %8290 = vmatprep.subr.mxu0 0.0
    %8291 = vmatpush1.msra.mxu0 0.0
    %8292 = vmatprep.subr.mxu0 0.0
    %8293 = vmatpush1.msra.mxu0 0.0
    %8294 = vmatprep.mubr.f32.mxu0 0.0
    %8295 = vmatmul.mubr.f32.gmra.mrb[0].mxu0 %v8204
    %v8296 = vpop.f32.mrb[0].mxu0
    %v8297 = vadd.f32 %v8202, %v8296
    %v8298 = vpop.f32.mrb[0].mxu0
    %8299 = vmatprep.mubr.f32.mxu0 0.0
    %8300 = vmatmul.mubr.f32.gmra.mrb[0].mxu0 %v8207
    %v8301 = vpop.f32.mrb[0].mxu0
    %v8302 = vadd.f32 %v8202, %v8301
    %v8303 = vpop.f32.mrb[0].mxu0
    %8304 = vmatprep.mubr.f32.mxu0 0.0
    %8305 = vmatmul.mubr.f32.gmra.mrb[0].mxu0 %v8210
    %v8306 = vpop.f32.mrb[0].mxu0
    %v8307 = vadd.f32 %v8202, %v8306
    %v8308 = vpop.f32.mrb[0].mxu0
    %8309 = vmatprep.mubr.f32.mxu0 0.0
    %8310 = vmatmul.mubr.f32.gmra.mrb[0].mxu0 %v8213
    %v8311 = vpop.f32.mrb[0].mxu0
    %v8312 = vadd.f32 %v8202, %v8311
    %v8313 = vpop.f32.mrb[0].mxu0
    %8314 = vmatprep.mubr.f32.mxu0 0.0
    %8315 = vmatmul.mubr.f32.gmra.mrb[0].mxu0 %v8216
    %v8316 = vpop.f32.mrb[0].mxu0
    %v8317 = vadd.f32 %v8202, %v8316
    %v8318 = vpop.f32.mrb[0].mxu0
    %8319 = vmatprep.mubr.f32.mxu0 0.0
    %8320 = vmatmul.mubr.f32.gmra.mrb[0].mxu0 %v8219
    %v8321 = vpop.f32.mrb[0].mxu0
    %v8322 = vadd.f32 %v8202, %v8321
    %v8323 = vpop.f32.mrb[0].mxu0
    %8324 = vmatprep.mubr.f32.mxu0 0.0
    %8325 = vmatmul.mubr.f32.gmra.mrb[0].mxu0 %v8222
    %v8326 = vpop.f32.mrb[0].mxu0
    %v8327 = vadd.f32 %v8202, %v8326
    %v8328 = vpop.f32.mrb[0].mxu0
    %8329 = vmatprep.mubr.f32.mxu0 0.0
    %8330 = vmatmul.mubr.f32.gmra.mrb[0].mxu0 %v8225
    %v8331 = vpop.f32.mrb[0].mxu0
    %v8332 = vadd.f32 %v8202, %v8331
    %v8333 = vpop.f32.mrb[0].mxu0
    %8334 = vmatprep.mubr.f32.mxu0 0.0
    %8335 = vmatmul.mubr.f32.gmra.mrb[0].mxu0 %v8228
    %v8336 = vpop.f32.mrb[0].mxu0
    %v8337 = vadd.f32 %v8202, %v8336
    %v8338 = vpop.f32.mrb[0].mxu0
    %8339 = vdwg.mxu0
    %v8340 = vadd.f32 %v7968, %v8297
    %v8341 = vadd.f32 %v7969, %v8302
    %v8342 = vadd.f32 %v7970, %v8307
    %v8343 = vadd.f32 %v7971, %v8312
    %v8344 = vadd.f32 %v7972, %v8317
    %v8345 = vadd.f32 %v7973, %v8322
    %v8346 = vadd.f32 %v7974, %v8327
    %v8347 = vadd.f32 %v7975, %v8332
    %v8348 = vadd.f32 %v7976, %v8337
    %v8349 = vsel %vm240, %v8340, 0.0
    %8350 = vadd.xlane.f32.xlu0 %v8349
    %v8351 = vpop.xlane.xlu0 %8350
    %v8352 = vsel %vm240, %v8341, 0.0
    %8353 = vadd.xlane.f32.xlu0 %v8352
    %v8354 = vpop.xlane.xlu0 %8353
    %v8355 = vsel %vm240, %v8342, 0.0
    %8356 = vadd.xlane.f32.xlu0 %v8355
    %v8357 = vpop.xlane.xlu0 %8356
    %v8358 = vsel %vm240, %v8343, 0.0
    %8359 = vadd.xlane.f32.xlu0 %v8358
    %v8360 = vpop.xlane.xlu0 %8359
    %v8361 = vsel %vm240, %v8344, 0.0
    %8362 = vadd.xlane.f32.xlu0 %v8361
    %v8363 = vpop.xlane.xlu0 %8362
    %v8364 = vsel %vm240, %v8345, 0.0
    %8365 = vadd.xlane.f32.xlu0 %v8364
    %v8366 = vpop.xlane.xlu0 %8365
    %v8367 = vsel %vm240, %v8346, 0.0
    %8368 = vadd.xlane.f32.xlu0 %v8367
    %v8369 = vpop.xlane.xlu0 %8368
    %v8370 = vsel %vm240, %v8347, 0.0
    %8371 = vadd.xlane.f32.xlu0 %v8370
    %v8372 = vpop.xlane.xlu0 %8371
    %v8373 = vsel %vm240, %v8348, 0.0
    %8374 = vadd.xlane.f32.xlu0 %v8373
    %v8375 = vpop.xlane.xlu0 %8374
    %v8376 = vmul.f32 %v8351, %v2068
    %v8377 = vmul.f32 %v8354, %v2068
    %v8378 = vmul.f32 %v8357, %v2068
    %v8379 = vmul.f32 %v8360, %v2068
    %v8380 = vmul.f32 %v8363, %v2068
    %v8381 = vmul.f32 %v8366, %v2068
    %v8382 = vmul.f32 %v8369, %v2068
    %v8383 = vmul.f32 %v8372, %v2068
    %v8384 = vmul.f32 %v8375, %v2068
    %v8385 = vsub.f32 %v8340, %v8376
    %v8386 = vsub.f32 %v8341, %v8377
    %v8387 = vsub.f32 %v8342, %v8378
    %v8388 = vsub.f32 %v8343, %v8379
    %v8389 = vsub.f32 %v8344, %v8380
    %v8390 = vsub.f32 %v8345, %v8381
    %v8391 = vsub.f32 %v8346, %v8382
    %v8392 = vsub.f32 %v8347, %v8383
    %v8393 = vsub.f32 %v8348, %v8384
    %v8394 = vmul.f32 %v8385, %v8385
    %v8395 = vmul.f32 %v8386, %v8386
    %v8396 = vmul.f32 %v8387, %v8387
    %v8397 = vmul.f32 %v8388, %v8388
    %v8398 = vmul.f32 %v8389, %v8389
    %v8399 = vmul.f32 %v8390, %v8390
    %v8400 = vmul.f32 %v8391, %v8391
    %v8401 = vmul.f32 %v8392, %v8392
    %v8402 = vmul.f32 %v8393, %v8393
    %v8403 = vsel %vm240, %v8394, 0.0
    %8404 = vadd.xlane.f32.xlu0 %v8403
    %v8405 = vpop.xlane.xlu0 %8404
    %v8406 = vsel %vm240, %v8395, 0.0
    %8407 = vadd.xlane.f32.xlu0 %v8406
    %v8408 = vpop.xlane.xlu0 %8407
    %v8409 = vsel %vm240, %v8396, 0.0
    %8410 = vadd.xlane.f32.xlu0 %v8409
    %v8411 = vpop.xlane.xlu0 %8410
    %v8412 = vsel %vm240, %v8397, 0.0
    %8413 = vadd.xlane.f32.xlu0 %v8412
    %v8414 = vpop.xlane.xlu0 %8413
    %v8415 = vsel %vm240, %v8398, 0.0
    %8416 = vadd.xlane.f32.xlu0 %v8415
    %v8417 = vpop.xlane.xlu0 %8416
    %v8418 = vsel %vm240, %v8399, 0.0
    %8419 = vadd.xlane.f32.xlu0 %v8418
    %v8420 = vpop.xlane.xlu0 %8419
    %v8421 = vsel %vm240, %v8400, 0.0
    %8422 = vadd.xlane.f32.xlu0 %v8421
    %v8423 = vpop.xlane.xlu0 %8422
    %v8424 = vsel %vm240, %v8401, 0.0
    %8425 = vadd.xlane.f32.xlu0 %v8424
    %v8426 = vpop.xlane.xlu0 %8425
    %v8427 = vsel %vm240, %v8402, 0.0
    %8428 = vadd.xlane.f32.xlu0 %v8427
    %v8429 = vpop.xlane.xlu0 %8428
    %v8430 = vmul.f32 %v8405, %v2068
    %v8431 = vmul.f32 %v8408, %v2068
    %v8432 = vmul.f32 %v8411, %v2068
    %v8433 = vmul.f32 %v8414, %v2068
    %v8434 = vmul.f32 %v8417, %v2068
    %v8435 = vmul.f32 %v8420, %v2068
    %v8436 = vmul.f32 %v8423, %v2068
    %v8437 = vmul.f32 %v8426, %v2068
    %v8438 = vmul.f32 %v8429, %v2068
    %v8439 = vadd.f32 %v8430, 1e-05
    %v8440 = vadd.f32 %v8431, 1e-05
    %v8441 = vadd.f32 %v8432, 1e-05
    %v8442 = vadd.f32 %v8433, 1e-05
    %v8443 = vadd.f32 %v8434, 1e-05
    %v8444 = vadd.f32 %v8435, 1e-05
    %v8445 = vadd.f32 %v8436, 1e-05
    %v8446 = vadd.f32 %v8437, 1e-05
    %v8447 = vadd.f32 %v8438, 1e-05
    %v8448 = vrsqrt.pop %v8439
    %v8449 = vrsqrt.pop %v8440
    %v8450 = vrsqrt.pop %v8441
    %v8451 = vrsqrt.pop %v8442
    %v8452 = vrsqrt.pop %v8443
    %v8453 = vrsqrt.pop %v8444
    %v8454 = vrsqrt.pop %v8445
    %v8455 = vrsqrt.pop %v8446
    %v8456 = vrsqrt.pop %v8447
    %v8457 = vmul.f32 %v8385, %v8448
    %v8458 = vmul.f32 %v8386, %v8449
    %v8459 = vmul.f32 %v8387, %v8450
    %v8460 = vmul.f32 %v8388, %v8451
    %v8461 = vmul.f32 %v8389, %v8452
    %v8462 = vmul.f32 %v8390, %v8453
    %v8463 = vmul.f32 %v8391, %v8454
    %v8464 = vmul.f32 %v8392, %v8455
    %v8465 = vmul.f32 %v8393, %v8456
    %v8466 = vlaneseq
    %v8467 = vshrl.u32 %v8466, 7
    %v8468 = vsub.s32 0, %v8467
    %v8469 = vrot.slane %v50, %v8468
    %v8470 = vmul.f32 %v8457, %v8469
    %v8471 = vmul.f32 %v8458, %v8469
    %v8472 = vmul.f32 %v8459, %v8469
    %v8473 = vmul.f32 %v8460, %v8469
    %v8474 = vmul.f32 %v8461, %v8469
    %v8475 = vmul.f32 %v8462, %v8469
    %v8476 = vmul.f32 %v8463, %v8469
    %v8477 = vmul.f32 %v8464, %v8469
    %v8478 = vmul.f32 %v8465, %v8469
    %v8479 = vlaneseq
    %v8480 = vshrl.u32 %v8479, 7
    %v8481 = vsub.s32 0, %v8480
    %v8482 = vrot.slane %v49, %v8481
    %v8483 = vadd.f32 %v8470, %v8482
    %v8484 = vadd.f32 %v8471, %v8482
    %v8485 = vadd.f32 %v8472, %v8482
    %v8486 = vadd.f32 %v8473, %v8482
    %v8487 = vadd.f32 %v8474, %v8482
    %v8488 = vadd.f32 %v8475, %v8482
    %v8489 = vadd.f32 %v8476, %v8482
    %v8490 = vadd.f32 %v8477, %v8482
    %v8491 = vadd.f32 %v8478, %v8482
    %v8492 = vsel %vm240, %v8483, 0.0
    %8493 = vadd.xlane.f32.xlu0 %v8492
    %v8494 = vpop.xlane.xlu0 %8493
    %v8495 = vsel %vm240, %v8484, 0.0
    %8496 = vadd.xlane.f32.xlu0 %v8495
    %v8497 = vpop.xlane.xlu0 %8496
    %v8498 = vsel %vm240, %v8485, 0.0
    %8499 = vadd.xlane.f32.xlu0 %v8498
    %v8500 = vpop.xlane.xlu0 %8499
    %v8501 = vsel %vm240, %v8486, 0.0
    %8502 = vadd.xlane.f32.xlu0 %v8501
    %v8503 = vpop.xlane.xlu0 %8502
    %v8504 = vsel %vm240, %v8487, 0.0
    %8505 = vadd.xlane.f32.xlu0 %v8504
    %v8506 = vpop.xlane.xlu0 %8505
    %v8507 = vsel %vm240, %v8488, 0.0
    %8508 = vadd.xlane.f32.xlu0 %v8507
    %v8509 = vpop.xlane.xlu0 %8508
    %v8510 = vsel %vm240, %v8489, 0.0
    %8511 = vadd.xlane.f32.xlu0 %v8510
    %v8512 = vpop.xlane.xlu0 %8511
    %v8513 = vsel %vm240, %v8490, 0.0
    %8514 = vadd.xlane.f32.xlu0 %v8513
    %v8515 = vpop.xlane.xlu0 %8514
    %v8516 = vsel %vm240, %v8491, 0.0
    %8517 = vadd.xlane.f32.xlu0 %v8516
    %v8518 = vpop.xlane.xlu0 %8517
    %v8519 = vmul.f32 %v8494, %v2068
    %v8520 = vmul.f32 %v8497, %v2068
    %v8521 = vmul.f32 %v8500, %v2068
    %v8522 = vmul.f32 %v8503, %v2068
    %v8523 = vmul.f32 %v8506, %v2068
    %v8524 = vmul.f32 %v8509, %v2068
    %v8525 = vmul.f32 %v8512, %v2068
    %v8526 = vmul.f32 %v8515, %v2068
    %v8527 = vmul.f32 %v8518, %v2068
    %v8528 = vsub.f32 %v8483, %v8519
    %v8529 = vsub.f32 %v8484, %v8520
    %v8530 = vsub.f32 %v8485, %v8521
    %v8531 = vsub.f32 %v8486, %v8522
    %v8532 = vsub.f32 %v8487, %v8523
    %v8533 = vsub.f32 %v8488, %v8524
    %v8534 = vsub.f32 %v8489, %v8525
    %v8535 = vsub.f32 %v8490, %v8526
    %v8536 = vsub.f32 %v8491, %v8527
    %v8537 = vmul.f32 %v8528, %v8528
    %v8538 = vmul.f32 %v8529, %v8529
    %v8539 = vmul.f32 %v8530, %v8530
    %v8540 = vmul.f32 %v8531, %v8531
    %v8541 = vmul.f32 %v8532, %v8532
    %v8542 = vmul.f32 %v8533, %v8533
    %v8543 = vmul.f32 %v8534, %v8534
    %v8544 = vmul.f32 %v8535, %v8535
    %v8545 = vmul.f32 %v8536, %v8536
    %v8546 = vsel %vm240, %v8537, 0.0
    %8547 = vadd.xlane.f32.xlu0 %v8546
    %v8548 = vpop.xlane.xlu0 %8547
    %v8549 = vsel %vm240, %v8538, 0.0
    %8550 = vadd.xlane.f32.xlu0 %v8549
    %v8551 = vpop.xlane.xlu0 %8550
    %v8552 = vsel %vm240, %v8539, 0.0
    %8553 = vadd.xlane.f32.xlu0 %v8552
    %v8554 = vpop.xlane.xlu0 %8553
    %v8555 = vsel %vm240, %v8540, 0.0
    %8556 = vadd.xlane.f32.xlu0 %v8555
    %v8557 = vpop.xlane.xlu0 %8556
    %v8558 = vsel %vm240, %v8541, 0.0
    %8559 = vadd.xlane.f32.xlu0 %v8558
    %v8560 = vpop.xlane.xlu0 %8559
    %v8561 = vsel %vm240, %v8542, 0.0
    %8562 = vadd.xlane.f32.xlu0 %v8561
    %v8563 = vpop.xlane.xlu0 %8562
    %v8564 = vsel %vm240, %v8543, 0.0
    %8565 = vadd.xlane.f32.xlu0 %v8564
    %v8566 = vpop.xlane.xlu0 %8565
    %v8567 = vsel %vm240, %v8544, 0.0
    %8568 = vadd.xlane.f32.xlu0 %v8567
    %v8569 = vpop.xlane.xlu0 %8568
    %v8570 = vsel %vm240, %v8545, 0.0
    %8571 = vadd.xlane.f32.xlu0 %v8570
    %v8572 = vpop.xlane.xlu0 %8571
    %v8573 = vmul.f32 %v8548, %v2068
    %v8574 = vmul.f32 %v8551, %v2068
    %v8575 = vmul.f32 %v8554, %v2068
    %v8576 = vmul.f32 %v8557, %v2068
    %v8577 = vmul.f32 %v8560, %v2068
    %v8578 = vmul.f32 %v8563, %v2068
    %v8579 = vmul.f32 %v8566, %v2068
    %v8580 = vmul.f32 %v8569, %v2068
    %v8581 = vmul.f32 %v8572, %v2068
    %v8582 = vadd.f32 %v8573, 1e-05
    %v8583 = vadd.f32 %v8574, 1e-05
    %v8584 = vadd.f32 %v8575, 1e-05
    %v8585 = vadd.f32 %v8576, 1e-05
    %v8586 = vadd.f32 %v8577, 1e-05
    %v8587 = vadd.f32 %v8578, 1e-05
    %v8588 = vadd.f32 %v8579, 1e-05
    %v8589 = vadd.f32 %v8580, 1e-05
    %v8590 = vadd.f32 %v8581, 1e-05
    %v8591 = vrsqrt.pop %v8582
    %v8592 = vrsqrt.pop %v8583
    %v8593 = vrsqrt.pop %v8584
    %v8594 = vrsqrt.pop %v8585
    %v8595 = vrsqrt.pop %v8586
    %v8596 = vrsqrt.pop %v8587
    %v8597 = vrsqrt.pop %v8588
    %v8598 = vrsqrt.pop %v8589
    %v8599 = vrsqrt.pop %v8590
    %v8600 = vmul.f32 %v8528, %v8591
    %v8601 = vmul.f32 %v8529, %v8592
    %v8602 = vmul.f32 %v8530, %v8593
    %v8603 = vmul.f32 %v8531, %v8594
    %v8604 = vmul.f32 %v8532, %v8595
    %v8605 = vmul.f32 %v8533, %v8596
    %v8606 = vmul.f32 %v8534, %v8597
    %v8607 = vmul.f32 %v8535, %v8598
    %v8608 = vmul.f32 %v8536, %v8599
    %v8609 = vlaneseq
    %v8610 = vshrl.u32 %v8609, 7
    %v8611 = vsub.s32 0, %v8610
    %v8612 = vrot.slane %v74, %v8611
    %v8613 = vmul.f32 %v8600, %v8612
    %v8614 = vmul.f32 %v8601, %v8612
    %v8615 = vmul.f32 %v8602, %v8612
    %v8616 = vmul.f32 %v8603, %v8612
    %v8617 = vmul.f32 %v8604, %v8612
    %v8618 = vmul.f32 %v8605, %v8612
    %v8619 = vmul.f32 %v8606, %v8612
    %v8620 = vmul.f32 %v8607, %v8612
    %v8621 = vmul.f32 %v8608, %v8612
    %v8622 = vlaneseq
    %v8623 = vshrl.u32 %v8622, 7
    %v8624 = vsub.s32 0, %v8623
    %v8625 = vrot.slane %v73, %v8624
    %v8626 = vadd.f32 %v8613, %v8625
    %v8627 = vadd.f32 %v8614, %v8625
    %v8628 = vadd.f32 %v8615, %v8625
    %v8629 = vadd.f32 %v8616, %v8625
    %v8630 = vadd.f32 %v8617, %v8625
    %v8631 = vadd.f32 %v8618, %v8625
    %v8632 = vadd.f32 %v8619, %v8625
    %v8633 = vadd.f32 %v8620, %v8625
    %v8634 = vadd.f32 %v8621, %v8625
    %v8635 = vlaneseq
    %v8636 = vshrl.u32 %v8635, 7
    %v8637 = vsub.s32 0, %v8636
    %v8638 = vrot.slane %v105, %v8637
    %v8640 = vsel %vm240, %v8626, 0
    %v8643 = vsel %vm240, %v8627, 0
    %v8646 = vsel %vm240, %v8628, 0
    %v8649 = vsel %vm240, %v8629, 0
    %v8652 = vsel %vm240, %v8630, 0
    %v8655 = vsel %vm240, %v8631, 0
    %v8658 = vsel %vm240, %v8632, 0
    %v8661 = vsel %vm240, %v8633, 0
    %v8664 = vsel %vm240, %v8634, 0
    %8666 = vmatprep.subr.mxu0 0.0
    %8667 = vmatpush1.msra.mxu0 %v106
    %8668 = vmatprep.subr.mxu0 0.0
    %8669 = vmatpush1.msra.mxu0 %v107
    %8670 = vmatprep.subr.mxu0 0.0
    %8671 = vmatpush1.msra.mxu0 %v108
    %8672 = vmatprep.subr.mxu0 0.0
    %8673 = vmatpush1.msra.mxu0 %v109
    %8674 = vmatprep.subr.mxu0 0.0
    %8675 = vmatpush1.msra.mxu0 0.0
    %8676 = vmatprep.subr.mxu0 0.0
    %8677 = vmatpush1.msra.mxu0 0.0
    %8678 = vmatprep.subr.mxu0 0.0
    %8679 = vmatpush1.msra.mxu0 0.0
    %8680 = vmatprep.subr.mxu0 0.0
    %8681 = vmatpush1.msra.mxu0 0.0
    %8682 = vmatprep.subr.mxu0 0.0
    %8683 = vmatpush1.msra.mxu0 0.0
    %8684 = vmatprep.subr.mxu0 0.0
    %8685 = vmatpush1.msra.mxu0 0.0
    %8686 = vmatprep.subr.mxu0 0.0
    %8687 = vmatpush1.msra.mxu0 0.0
    %8688 = vmatprep.subr.mxu0 0.0
    %8689 = vmatpush1.msra.mxu0 0.0
    %8690 = vmatprep.subr.mxu0 0.0
    %8691 = vmatpush1.msra.mxu0 0.0
    %8692 = vmatprep.subr.mxu0 0.0
    %8693 = vmatpush1.msra.mxu0 0.0
    %8694 = vmatprep.subr.mxu0 0.0
    %8695 = vmatpush1.msra.mxu0 0.0
    %8696 = vmatprep.subr.mxu0 0.0
    %8697 = vmatpush1.msra.mxu0 0.0
    %8698 = vmatprep.subr.mxu0 0.0
    %8699 = vmatpush1.msra.mxu0 0.0
    %8700 = vmatprep.subr.mxu0 0.0
    %8701 = vmatpush1.msra.mxu0 0.0
    %8702 = vmatprep.subr.mxu0 0.0
    %8703 = vmatpush1.msra.mxu0 0.0
    %8704 = vmatprep.subr.mxu0 0.0
    %8705 = vmatpush1.msra.mxu0 0.0
    %8706 = vmatprep.subr.mxu0 0.0
    %8707 = vmatpush1.msra.mxu0 0.0
    %8708 = vmatprep.subr.mxu0 0.0
    %8709 = vmatpush1.msra.mxu0 0.0
    %8710 = vmatprep.subr.mxu0 0.0
    %8711 = vmatpush1.msra.mxu0 0.0
    %8712 = vmatprep.subr.mxu0 0.0
    %8713 = vmatpush1.msra.mxu0 0.0
    %8714 = vmatprep.subr.mxu0 0.0
    %8715 = vmatpush1.msra.mxu0 0.0
    %8716 = vmatprep.subr.mxu0 0.0
    %8717 = vmatpush1.msra.mxu0 0.0
    %8718 = vmatprep.subr.mxu0 0.0
    %8719 = vmatpush1.msra.mxu0 0.0
    %8720 = vmatprep.subr.mxu0 0.0
    %8721 = vmatpush1.msra.mxu0 0.0
    %8722 = vmatprep.subr.mxu0 0.0
    %8723 = vmatpush1.msra.mxu0 0.0
    %8724 = vmatprep.subr.mxu0 0.0
    %8725 = vmatpush1.msra.mxu0 0.0
    %8726 = vmatprep.subr.mxu0 0.0
    %8727 = vmatpush1.msra.mxu0 0.0
    %8728 = vmatprep.subr.mxu0 0.0
    %8729 = vmatpush1.msra.mxu0 0.0
    %8730 = vmatprep.mubr.f32.mxu0 0.0
    %8731 = vmatmul.mubr.f32.gmra.mrb[0].mxu0 %v8640
    %v8732 = vpop.f32.mrb[0].mxu0
    %v8733 = vadd.f32 %v8638, %v8732
    %v8734 = vpop.f32.mrb[0].mxu0
    %8735 = vmatprep.mubr.f32.mxu0 0.0
    %8736 = vmatmul.mubr.f32.gmra.mrb[0].mxu0 %v8643
    %v8737 = vpop.f32.mrb[0].mxu0
    %v8738 = vadd.f32 %v8638, %v8737
    %v8739 = vpop.f32.mrb[0].mxu0
    %8740 = vmatprep.mubr.f32.mxu0 0.0
    %8741 = vmatmul.mubr.f32.gmra.mrb[0].mxu0 %v8646
    %v8742 = vpop.f32.mrb[0].mxu0
    %v8743 = vadd.f32 %v8638, %v8742
    %v8744 = vpop.f32.mrb[0].mxu0
    %8745 = vmatprep.mubr.f32.mxu0 0.0
    %8746 = vmatmul.mubr.f32.gmra.mrb[0].mxu0 %v8649
    %v8747 = vpop.f32.mrb[0].mxu0
    %v8748 = vadd.f32 %v8638, %v8747
    %v8749 = vpop.f32.mrb[0].mxu0
    %8750 = vmatprep.mubr.f32.mxu0 0.0
    %8751 = vmatmul.mubr.f32.gmra.mrb[0].mxu0 %v8652
    %v8752 = vpop.f32.mrb[0].mxu0
    %v8753 = vadd.f32 %v8638, %v8752
    %v8754 = vpop.f32.mrb[0].mxu0
    %8755 = vmatprep.mubr.f32.mxu0 0.0
    %8756 = vmatmul.mubr.f32.gmra.mrb[0].mxu0 %v8655
    %v8757 = vpop.f32.mrb[0].mxu0
    %v8758 = vadd.f32 %v8638, %v8757
    %v8759 = vpop.f32.mrb[0].mxu0
    %8760 = vmatprep.mubr.f32.mxu0 0.0
    %8761 = vmatmul.mubr.f32.gmra.mrb[0].mxu0 %v8658
    %v8762 = vpop.f32.mrb[0].mxu0
    %v8763 = vadd.f32 %v8638, %v8762
    %v8764 = vpop.f32.mrb[0].mxu0
    %8765 = vmatprep.mubr.f32.mxu0 0.0
    %8766 = vmatmul.mubr.f32.gmra.mrb[0].mxu0 %v8661
    %v8767 = vpop.f32.mrb[0].mxu0
    %v8768 = vadd.f32 %v8638, %v8767
    %v8769 = vpop.f32.mrb[0].mxu0
    %8770 = vmatprep.mubr.f32.mxu0 0.0
    %8771 = vmatmul.mubr.f32.gmra.mrb[0].mxu0 %v8664
    %v8772 = vpop.f32.mrb[0].mxu0
    %v8773 = vadd.f32 %v8638, %v8772
    %v8774 = vpop.f32.mrb[0].mxu0
    %8775 = vdwg.mxu0
    %v8776 = vld [vmem:[%s2] sm:$0xff]
    %v8777 = vld [vmem:[%s2 + $0x8] sm:$0xff]
    %v8778 = vld [vmem:[%s2 + $0x10] sm:$0xff]
    %v8779 = vld [vmem:[%s2 + $0x18] sm:$0xff]
    %v8780 = vld [vmem:[%s2 + $0x20] sm:$0xff]
    %v8781 = vld [vmem:[%s2 + $0x28] sm:$0xff]
    %v8782 = vld [vmem:[%s2 + $0x30] sm:$0xff]
    %v8783 = vld [vmem:[%s2 + $0x38] sm:$0xff]
    %v8784 = vld [vmem:[%s2 + $0x40] sm:$0xff]
    %v8785 = vsub.f32 %v8733, %v8776
    %v8786 = vsub.f32 %v8738, %v8777
    %v8787 = vsub.f32 %v8743, %v8778
    %v8788 = vsub.f32 %v8748, %v8779
    %v8789 = vsub.f32 %v8753, %v8780
    %v8790 = vsub.f32 %v8758, %v8781
    %v8791 = vsub.f32 %v8763, %v8782
    %v8792 = vsub.f32 %v8768, %v8783
    %v8793 = vsub.f32 %v8773, %v8784
    %v8794 = vmul.f32 %v8785, %v8785
    %v8795 = vmul.f32 %v8786, %v8786
    %v8796 = vmul.f32 %v8787, %v8787
    %v8797 = vmul.f32 %v8788, %v8788
    %v8798 = vmul.f32 %v8789, %v8789
    %v8799 = vmul.f32 %v8790, %v8790
    %v8800 = vmul.f32 %v8791, %v8791
    %v8801 = vmul.f32 %v8792, %v8792
    %v8802 = vmul.f32 %v8793, %v8793
    %v8803 = vsel %vm121, %v8794, 0.0
    %8804 = vadd.xlane.f32.xlu0 %v8803
    %v8805 = vpop.xlane.xlu0 %8804
    %v8806 = vsel %vm121, %v8795, 0.0
    %8807 = vadd.xlane.f32.xlu0 %v8806
    %v8808 = vpop.xlane.xlu0 %8807
    %v8809 = vsel %vm121, %v8796, 0.0
    %8810 = vadd.xlane.f32.xlu0 %v8809
    %v8811 = vpop.xlane.xlu0 %8810
    %v8812 = vsel %vm121, %v8797, 0.0
    %8813 = vadd.xlane.f32.xlu0 %v8812
    %v8814 = vpop.xlane.xlu0 %8813
    %v8815 = vsel %vm121, %v8798, 0.0
    %8816 = vadd.xlane.f32.xlu0 %v8815
    %v8817 = vpop.xlane.xlu0 %8816
    %v8818 = vsel %vm121, %v8799, 0.0
    %8819 = vadd.xlane.f32.xlu0 %v8818
    %v8820 = vpop.xlane.xlu0 %8819
    %v8821 = vsel %vm121, %v8800, 0.0
    %8822 = vadd.xlane.f32.xlu0 %v8821
    %v8823 = vpop.xlane.xlu0 %8822
    %v8824 = vsel %vm121, %v8801, 0.0
    %8825 = vadd.xlane.f32.xlu0 %v8824
    %v8826 = vpop.xlane.xlu0 %8825
    %v8827 = vsel %vm121, %v8802, 0.0
    %8828 = vadd.xlane.f32.xlu0 %v8827
    %v8829 = vpop.xlane.xlu0 %8828
    %v8830 = vadd.f32 %v8805, %v8808
    %v8831 = vadd.f32 %v8830, %v8811
    %v8832 = vadd.f32 %v8831, %v8814
    %v8833 = vadd.f32 %v8832, %v8817
    %v8834 = vadd.f32 %v8833, %v8820
    %v8835 = vadd.f32 %v8834, %v8823
    %v8836 = vadd.f32 %v8835, %v8826
    %v8837 = vadd.f32 %v8836, %v8829
    %v8838 = vrot.slane %v8837, 4
    %v8839 = vadd.f32 %v8837, %v8838
    %v8840 = vrot.slane %v8839, 2
    %v8841 = vadd.f32 %v8839, %v8840
    %v8842 = vrot.slane %v8841, 1
    %v8843 = vadd.f32 %v8841, %v8842
    %v8844 = vrcp.pop 288.0
    %v8845 = vmul.f32 %v8843, %v8844
    %vm8846 = vcmask 0
    %8847 = vst.msk [vmem:[#allocation2] sm:$0x1] %vm8846, %v8845
    // Predicated region
    $region30: #{forward.1} parent=1 // pred_check
      _
    $region31: #{forward.1} parent=1 // pred_check_branch
      %8849 = sbr.rel (0) target = $region33
    $region32: #{forward.1} parent=1 // pred_region
      %s8851 = ssub.s32 16, 16
      %8852 = vsyncadd [#allocation3], %s8851
      %s8854 = sshll.u32 [#allocation2], 4
      %s8855 = int_to_ptr.vmem [resolvable:$true] %s8854
      %8857 = dma.vmem_to_hbm [thread:$0]  %s8855, 16, %s7, [#allocation3]
    $region33: #{forward.1} parent=1 // pred_fallthru
      _
    // Predicated region
    $region34: #{forward.1} parent=1 // pred_check
      _
    $region35: #{forward.1} parent=1 // pred_check_branch
      %8859 = sbr.rel (0) target = $region37
    $region36: #{forward.1} parent=1 // pred_region
      %8860 = dma.done [#allocation3], 16
    $region37: #{forward.1} parent=1 // pred_fallthru
      _
    %8861 = vsyncpa [#allocation3], 1

</llo_original>
